<compile_context>
chip_gen: v6e
topology: v6e:2x2x1
jax: 0.10.0
libtpu: 0.0.40
codegen_flags: <defaults>
</compile_context>

<pallas_src>
import functools

import jax
import jax.numpy as jnp
from jax.experimental import pallas as pl
from jax.experimental.pallas import tpu as pltpu

# Layer widths (encoder then decoder).
DIMS = [28 * 28, 128, 64, 36, 18, 9, 18, 36, 64, 128, 28 * 28]
N_LAYERS = len(DIMS) - 1  # 10 linear layers

# Activation applied after each linear layer.
ACTS = ["relu", "relu", "relu", "relu", "none",
        "relu", "relu", "relu", "relu", "sigmoid"]

LANE = 128
# Padded widths: keep 784 at the ends (full-array last dim), pad every hidden width
# up to one full 128-lane tile. Zero-padded weight columns + zero biases keep the
# padded activations exactly 0 through the whole chain, so semantics are unchanged.
PDIMS = [DIMS[0]] + [((d + LANE - 1) // LANE) * LANE for d in DIMS[1:-1]] + [DIMS[-1]]


def _ae_kernel(*refs):
    """refs = (x_ref, w0, b0, ..., w9, b9, out_ref).

    x_ref: (tile_b, 784) f32 (cast to bf16 in-kernel).
    w_i:   bf16 (in_pad, out_pad), fully VMEM-resident.
    b_i:   f32  (1, out_pad).
    out_ref: (tile_b, 784) bf16.
    Whole 10-layer MLP runs per batch tile; dots use bf16 operands with f32 MXU
    accumulation, element-wise work stays in f32.
    """
    x_ref = refs[0]
    out_ref = refs[-1]
    wb = refs[1:-1]

    h = x_ref[...].astype(jnp.bfloat16)
    for i in range(N_LAYERS):
        w = wb[2 * i][...]          # bf16 (in_pad, out_pad)
        b = wb[2 * i + 1][...]      # f32  (1, out_pad)
        acc = jnp.dot(h, w, preferred_element_type=jnp.float32) + b
        act = ACTS[i]
        if act == "relu":
            acc = jnp.maximum(acc, 0.0)
        elif act == "sigmoid":
            # sigmoid = 1 / (1 + exp(-x)); reciprocal on the EUP slot (approx).
            e = jnp.exp(-acc)
            acc = pl.reciprocal(1.0 + e, approx=True)
        # keep f32 for element-wise; cast only the next dot's LHS to bf16
        h = acc if i == N_LAYERS - 1 else acc.astype(jnp.bfloat16)
    out_ref[...] = h.astype(out_ref.dtype)


@functools.partial(jax.jit, static_argnames=("tile_b",))
def _ae_pallas(x, weights_bf16, biases_f32, *, tile_b):
    B, F = x.shape
    grid = (pl.cdiv(B, tile_b),)

    # Full last dim (784) is a legal block shape; batch tile is a multiple of 8.
    x_spec = pl.BlockSpec((tile_b, F), lambda i: (i, 0))
    out_spec = pl.BlockSpec((tile_b, F), lambda i: (i, 0))
    # Constants: full arrays resident in VMEM, no pipelining / double-buffering.
    vmem_spec = pl.BlockSpec(memory_space=pltpu.MemorySpace.VMEM)

    wb_specs = []
    args = [x]
    for w, b in zip(weights_bf16, biases_f32):
        wb_specs += [vmem_spec, vmem_spec]
        args += [w, b]

    flops = 2 * B * sum(PDIMS[i] * PDIMS[i + 1] for i in range(N_LAYERS))
    bytes_accessed = (
        x.size * 4                                  # f32 input
        + B * F * 2                                 # bf16 output
        + sum(w.size * 2 for w in weights_bf16)     # bf16 weights (read once)
        + sum(b.size * 4 for b in biases_f32))      # f32 biases

    return pl.pallas_call(
        _ae_kernel,
        out_shape=jax.ShapeDtypeStruct((B, F), jnp.bfloat16),
        grid_spec=pltpu.PrefetchScalarGridSpec(
            num_scalar_prefetch=0,
            grid=grid,
            in_specs=[x_spec] + wb_specs,
            out_specs=out_spec,
        ),
        compiler_params=pltpu.CompilerParams(
            dimension_semantics=("parallel",),
            vmem_limit_bytes=48 * 1024 * 1024,
        ),
        cost_estimate=pl.CostEstimate(
            flops=flops,
            transcendentals=B * F,
            bytes_accessed=bytes_accessed),
    )(*args)


def autoencoder_forward(x, weights, biases, *, tile_b=256):
    """x: (B, 784) f32. weights[i]: (in_i, out_i) f32. biases[i]: (1, out_i) f32.

    Returns (B, 784) bf16 (sigmoid outputs); cast downstream only if f32 is needed.
    """
    B, F = x.shape
    assert F == DIMS[0]

    # Zero-pad the tiny hidden widths up to a full 128-lane tile and cast weights to
    # bf16 (biases stay f32). Padded columns/rows are exact zeros, so results match.
    w_p, b_p = [], []
    for i, (w, b) in enumerate(zip(weights, biases)):
        in_p, out_p = PDIMS[i], PDIMS[i + 1]
        wp = jnp.zeros((in_p, out_p), jnp.bfloat16).at[
            :w.shape[0], :w.shape[1]].set(w.astype(jnp.bfloat16))
        bp = jnp.zeros((1, out_p), jnp.float32).at[
            :, :b.shape[1]].set(b.astype(jnp.float32))
        w_p.append(wp)
        b_p.append(bp)

    return _ae_pallas(x, w_p, b_p, tile_b=tile_b)


def init_params(key):
    """PyTorch nn.Linear-style init, weights pre-transposed to (in, out)."""
    weights, biases = [], []
    for i in range(N_LAYERS):
        fan_in, fan_out = DIMS[i], DIMS[i + 1]
        key, kw, kb = jax.random.split(key, 3)
        bound = 1.0 / jnp.sqrt(float(fan_in))
        weights.append(
            jax.random.uniform(kw, (fan_in, fan_out), jnp.float32, -bound, bound))
        biases.append(
            jax.random.uniform(kb, (1, fan_out), jnp.float32, -bound, bound))
    return weights, biases


def reference_forward(x, weights, biases):
    """Plain-JAX reference using the same bf16-operand / f32-accumulate recipe."""
    h = x.astype(jnp.bfloat16)
    for i in range(N_LAYERS):
        acc = jnp.dot(h, weights[i].astype(jnp.bfloat16),
                      preferred_element_type=jnp.float32) + biases[i]
        if ACTS[i] == "relu":
            acc = jnp.maximum(acc, 0.0)
        elif ACTS[i] == "sigmoid":
            acc = jax.nn.sigmoid(acc)
        h = acc if i == N_LAYERS - 1 else acc.astype(jnp.bfloat16)
    return h


if __name__ == "__main__":
    key = jax.random.PRNGKey(0)
    key, kx = jax.random.split(key)

    # tile_b=256 -> grid of 2 (even, >=2) so the v7x megacore shards the batch axis.
    B = 512
    x = jax.random.uniform(kx, (B, 28 * 28), jnp.float32)

    weights, biases = init_params(key)

    out = autoencoder_forward(x, weights, biases, tile_b=256)
    out = jax.block_until_ready(out)

    assert out.shape == (B, 28 * 28), out.shape
    assert out.dtype == jnp.bfloat16, out.dtype

    ref = reference_forward(x, weights, biases).astype(jnp.float32)
    err = float(jnp.max(jnp.abs(out.astype(jnp.float32) - ref)))
    # bf16 output ulp (~4e-3 near 1) + approx-reciprocal sigmoid -> ~1e-2 budget.
    assert err < 1.5e-2, err

    print("KERNEL_OK")
</pallas_src>

<mosaic_0001>
module attributes {stable_mosaic.version = 11 : i64} {
  func.func @_ae_kernel(%arg0: i32, %arg1: memref<256x784xf32, #tpu.memory_space<vmem>>, %arg2: memref<784x128xbf16, #tpu.memory_space<vmem>>, %arg3: memref<1x128xf32, #tpu.memory_space<vmem>>, %arg4: memref<128x128xbf16, #tpu.memory_space<vmem>>, %arg5: memref<1x128xf32, #tpu.memory_space<vmem>>, %arg6: memref<128x128xbf16, #tpu.memory_space<vmem>>, %arg7: memref<1x128xf32, #tpu.memory_space<vmem>>, %arg8: memref<128x128xbf16, #tpu.memory_space<vmem>>, %arg9: memref<1x128xf32, #tpu.memory_space<vmem>>, %arg10: memref<128x128xbf16, #tpu.memory_space<vmem>>, %arg11: memref<1x128xf32, #tpu.memory_space<vmem>>, %arg12: memref<128x128xbf16, #tpu.memory_space<vmem>>, %arg13: memref<1x128xf32, #tpu.memory_space<vmem>>, %arg14: memref<128x128xbf16, #tpu.memory_space<vmem>>, %arg15: memref<1x128xf32, #tpu.memory_space<vmem>>, %arg16: memref<128x128xbf16, #tpu.memory_space<vmem>>, %arg17: memref<1x128xf32, #tpu.memory_space<vmem>>, %arg18: memref<128x128xbf16, #tpu.memory_space<vmem>>, %arg19: memref<1x128xf32, #tpu.memory_space<vmem>>, %arg20: memref<128x784xbf16, #tpu.memory_space<vmem>>, %arg21: memref<1x784xf32, #tpu.memory_space<vmem>>, %arg22: memref<256x784xbf16, #tpu.memory_space<vmem>>) attributes {dimension_semantics = [#tpu.dimension_semantics<parallel>], iteration_bounds = array<i64: 2>, scalar_prefetch = 0 : i64, scratch_operands = 0 : i64, tpu.core_type = #tpu.core_type<tc>, window_params = [{transform_indices = @transform_0, window_bounds = array<i64: 256, 784>}, {pipeline_mode = #tpu.pipeline_mode<synchronous>, transform_indices = @transform_1, window_bounds = array<i64: 784, 128>}, {pipeline_mode = #tpu.pipeline_mode<synchronous>, transform_indices = @transform_2, window_bounds = array<i64: 1, 128>}, {pipeline_mode = #tpu.pipeline_mode<synchronous>, transform_indices = @transform_3, window_bounds = array<i64: 128, 128>}, {pipeline_mode = #tpu.pipeline_mode<synchronous>, transform_indices = @transform_4, window_bounds = array<i64: 1, 128>}, {pipeline_mode = #tpu.pipeline_mode<synchronous>, transform_indices = @transform_5, window_bounds = array<i64: 128, 128>}, {pipeline_mode = #tpu.pipeline_mode<synchronous>, transform_indices = @transform_6, window_bounds = array<i64: 1, 128>}, {pipeline_mode = #tpu.pipeline_mode<synchronous>, transform_indices = @transform_7, window_bounds = array<i64: 128, 128>}, {pipeline_mode = #tpu.pipeline_mode<synchronous>, transform_indices = @transform_8, window_bounds = array<i64: 1, 128>}, {pipeline_mode = #tpu.pipeline_mode<synchronous>, transform_indices = @transform_9, window_bounds = array<i64: 128, 128>}, {pipeline_mode = #tpu.pipeline_mode<synchronous>, transform_indices = @transform_10, window_bounds = array<i64: 1, 128>}, {pipeline_mode = #tpu.pipeline_mode<synchronous>, transform_indices = @transform_11, window_bounds = array<i64: 128, 128>}, {pipeline_mode = #tpu.pipeline_mode<synchronous>, transform_indices = @transform_12, window_bounds = array<i64: 1, 128>}, {pipeline_mode = #tpu.pipeline_mode<synchronous>, transform_indices = @transform_13, window_bounds = array<i64: 128, 128>}, {pipeline_mode = #tpu.pipeline_mode<synchronous>, transform_indices = @transform_14, window_bounds = array<i64: 1, 128>}, {pipeline_mode = #tpu.pipeline_mode<synchronous>, transform_indices = @transform_15, window_bounds = array<i64: 128, 128>}, {pipeline_mode = #tpu.pipeline_mode<synchronous>, transform_indices = @transform_16, window_bounds = array<i64: 1, 128>}, {pipeline_mode = #tpu.pipeline_mode<synchronous>, transform_indices = @transform_17, window_bounds = array<i64: 128, 128>}, {pipeline_mode = #tpu.pipeline_mode<synchronous>, transform_indices = @transform_18, window_bounds = array<i64: 1, 128>}, {pipeline_mode = #tpu.pipeline_mode<synchronous>, transform_indices = @transform_19, window_bounds = array<i64: 128, 784>}, {pipeline_mode = #tpu.pipeline_mode<synchronous>, transform_indices = @transform_20, window_bounds = array<i64: 1, 784>}, {transform_indices = @transform_21, window_bounds = array<i64: 256, 784>}]} {
    %c0 = arith.constant 0 : index
    %c0_0 = arith.constant 0 : index
    %0 = vector.load %arg1[%c0, %c0_0] : memref<256x784xf32, #tpu.memory_space<vmem>>, vector<256x784xf32>
    %1 = arith.truncf %0 : vector<256x784xf32> to vector<256x784xbf16>
    %c0_1 = arith.constant 0 : index
    %c0_2 = arith.constant 0 : index
    %2 = vector.load %arg2[%c0_1, %c0_2] : memref<784x128xbf16, #tpu.memory_space<vmem>>, vector<784x128xbf16>
    %c0_3 = arith.constant 0 : index
    %c0_4 = arith.constant 0 : index
    %3 = vector.load %arg3[%c0_3, %c0_4] : memref<1x128xf32, #tpu.memory_space<vmem>>, vector<1x128xf32>
    %cst = arith.constant dense<0.000000e+00> : vector<256x128xf32>
    %4 = tpu.matmul %1, %2, %cst {dimension_numbers = #tpu.dot_dimension_numbers<[1], [0], [0], [1], [0, 0, 1, 1], [], []>} : vector<256x784xbf16>, vector<784x128xbf16>, vector<256x128xf32> -> vector<256x128xf32>
    %5 = vector.broadcast %3 : vector<1x128xf32> to vector<256x128xf32>
    %6 = arith.addf %4, %5 : vector<256x128xf32>
    %cst_5 = arith.constant 0.000000e+00 : f32
    %7 = vector.broadcast %cst_5 : f32 to vector<256x128xf32>
    %8 = arith.maximumf %6, %7 : vector<256x128xf32>
    %9 = arith.truncf %8 : vector<256x128xf32> to vector<256x128xbf16>
    %c0_6 = arith.constant 0 : index
    %c0_7 = arith.constant 0 : index
    %10 = vector.load %arg4[%c0_6, %c0_7] : memref<128x128xbf16, #tpu.memory_space<vmem>>, vector<128x128xbf16>
    %c0_8 = arith.constant 0 : index
    %c0_9 = arith.constant 0 : index
    %11 = vector.load %arg5[%c0_8, %c0_9] : memref<1x128xf32, #tpu.memory_space<vmem>>, vector<1x128xf32>
    %cst_10 = arith.constant dense<0.000000e+00> : vector<256x128xf32>
    %12 = tpu.matmul %9, %10, %cst_10 {dimension_numbers = #tpu.dot_dimension_numbers<[1], [0], [0], [1], [0, 0, 1, 1], [], []>} : vector<256x128xbf16>, vector<128x128xbf16>, vector<256x128xf32> -> vector<256x128xf32>
    %13 = vector.broadcast %11 : vector<1x128xf32> to vector<256x128xf32>
    %14 = arith.addf %12, %13 : vector<256x128xf32>
    %cst_11 = arith.constant 0.000000e+00 : f32
    %15 = vector.broadcast %cst_11 : f32 to vector<256x128xf32>
    %16 = arith.maximumf %14, %15 : vector<256x128xf32>
    %17 = arith.truncf %16 : vector<256x128xf32> to vector<256x128xbf16>
    %c0_12 = arith.constant 0 : index
    %c0_13 = arith.constant 0 : index
    %18 = vector.load %arg6[%c0_12, %c0_13] : memref<128x128xbf16, #tpu.memory_space<vmem>>, vector<128x128xbf16>
    %c0_14 = arith.constant 0 : index
    %c0_15 = arith.constant 0 : index
    %19 = vector.load %arg7[%c0_14, %c0_15] : memref<1x128xf32, #tpu.memory_space<vmem>>, vector<1x128xf32>
    %cst_16 = arith.constant dense<0.000000e+00> : vector<256x128xf32>
    %20 = tpu.matmul %17, %18, %cst_16 {dimension_numbers = #tpu.dot_dimension_numbers<[1], [0], [0], [1], [0, 0, 1, 1], [], []>} : vector<256x128xbf16>, vector<128x128xbf16>, vector<256x128xf32> -> vector<256x128xf32>
    %21 = vector.broadcast %19 : vector<1x128xf32> to vector<256x128xf32>
    %22 = arith.addf %20, %21 : vector<256x128xf32>
    %cst_17 = arith.constant 0.000000e+00 : f32
    %23 = vector.broadcast %cst_17 : f32 to vector<256x128xf32>
    %24 = arith.maximumf %22, %23 : vector<256x128xf32>
    %25 = arith.truncf %24 : vector<256x128xf32> to vector<256x128xbf16>
    %c0_18 = arith.constant 0 : index
    %c0_19 = arith.constant 0 : index
    %26 = vector.load %arg8[%c0_18, %c0_19] : memref<128x128xbf16, #tpu.memory_space<vmem>>, vector<128x128xbf16>
    %c0_20 = arith.constant 0 : index
    %c0_21 = arith.constant 0 : index
    %27 = vector.load %arg9[%c0_20, %c0_21] : memref<1x128xf32, #tpu.memory_space<vmem>>, vector<1x128xf32>
    %cst_22 = arith.constant dense<0.000000e+00> : vector<256x128xf32>
    %28 = tpu.matmul %25, %26, %cst_22 {dimension_numbers = #tpu.dot_dimension_numbers<[1], [0], [0], [1], [0, 0, 1, 1], [], []>} : vector<256x128xbf16>, vector<128x128xbf16>, vector<256x128xf32> -> vector<256x128xf32>
    %29 = vector.broadcast %27 : vector<1x128xf32> to vector<256x128xf32>
    %30 = arith.addf %28, %29 : vector<256x128xf32>
    %cst_23 = arith.constant 0.000000e+00 : f32
    %31 = vector.broadcast %cst_23 : f32 to vector<256x128xf32>
    %32 = arith.maximumf %30, %31 : vector<256x128xf32>
    %33 = arith.truncf %32 : vector<256x128xf32> to vector<256x128xbf16>
    %c0_24 = arith.constant 0 : index
    %c0_25 = arith.constant 0 : index
    %34 = vector.load %arg10[%c0_24, %c0_25] : memref<128x128xbf16, #tpu.memory_space<vmem>>, vector<128x128xbf16>
    %c0_26 = arith.constant 0 : index
    %c0_27 = arith.constant 0 : index
    %35 = vector.load %arg11[%c0_26, %c0_27] : memref<1x128xf32, #tpu.memory_space<vmem>>, vector<1x128xf32>
    %cst_28 = arith.constant dense<0.000000e+00> : vector<256x128xf32>
    %36 = tpu.matmul %33, %34, %cst_28 {dimension_numbers = #tpu.dot_dimension_numbers<[1], [0], [0], [1], [0, 0, 1, 1], [], []>} : vector<256x128xbf16>, vector<128x128xbf16>, vector<256x128xf32> -> vector<256x128xf32>
    %37 = vector.broadcast %35 : vector<1x128xf32> to vector<256x128xf32>
    %38 = arith.addf %36, %37 : vector<256x128xf32>
    %39 = arith.truncf %38 : vector<256x128xf32> to vector<256x128xbf16>
    %c0_29 = arith.constant 0 : index
    %c0_30 = arith.constant 0 : index
    %40 = vector.load %arg12[%c0_29, %c0_30] : memref<128x128xbf16, #tpu.memory_space<vmem>>, vector<128x128xbf16>
    %c0_31 = arith.constant 0 : index
    %c0_32 = arith.constant 0 : index
    %41 = vector.load %arg13[%c0_31, %c0_32] : memref<1x128xf32, #tpu.memory_space<vmem>>, vector<1x128xf32>
    %cst_33 = arith.constant dense<0.000000e+00> : vector<256x128xf32>
    %42 = tpu.matmul %39, %40, %cst_33 {dimension_numbers = #tpu.dot_dimension_numbers<[1], [0], [0], [1], [0, 0, 1, 1], [], []>} : vector<256x128xbf16>, vector<128x128xbf16>, vector<256x128xf32> -> vector<256x128xf32>
    %43 = vector.broadcast %41 : vector<1x128xf32> to vector<256x128xf32>
    %44 = arith.addf %42, %43 : vector<256x128xf32>
    %cst_34 = arith.constant 0.000000e+00 : f32
    %45 = vector.broadcast %cst_34 : f32 to vector<256x128xf32>
    %46 = arith.maximumf %44, %45 : vector<256x128xf32>
    %47 = arith.truncf %46 : vector<256x128xf32> to vector<256x128xbf16>
    %c0_35 = arith.constant 0 : index
    %c0_36 = arith.constant 0 : index
    %48 = vector.load %arg14[%c0_35, %c0_36] : memref<128x128xbf16, #tpu.memory_space<vmem>>, vector<128x128xbf16>
    %c0_37 = arith.constant 0 : index
    %c0_38 = arith.constant 0 : index
    %49 = vector.load %arg15[%c0_37, %c0_38] : memref<1x128xf32, #tpu.memory_space<vmem>>, vector<1x128xf32>
    %cst_39 = arith.constant dense<0.000000e+00> : vector<256x128xf32>
    %50 = tpu.matmul %47, %48, %cst_39 {dimension_numbers = #tpu.dot_dimension_numbers<[1], [0], [0], [1], [0, 0, 1, 1], [], []>} : vector<256x128xbf16>, vector<128x128xbf16>, vector<256x128xf32> -> vector<256x128xf32>
    %51 = vector.broadcast %49 : vector<1x128xf32> to vector<256x128xf32>
    %52 = arith.addf %50, %51 : vector<256x128xf32>
    %cst_40 = arith.constant 0.000000e+00 : f32
    %53 = vector.broadcast %cst_40 : f32 to vector<256x128xf32>
    %54 = arith.maximumf %52, %53 : vector<256x128xf32>
    %55 = arith.truncf %54 : vector<256x128xf32> to vector<256x128xbf16>
    %c0_41 = arith.constant 0 : index
    %c0_42 = arith.constant 0 : index
    %56 = vector.load %arg16[%c0_41, %c0_42] : memref<128x128xbf16, #tpu.memory_space<vmem>>, vector<128x128xbf16>
    %c0_43 = arith.constant 0 : index
    %c0_44 = arith.constant 0 : index
    %57 = vector.load %arg17[%c0_43, %c0_44] : memref<1x128xf32, #tpu.memory_space<vmem>>, vector<1x128xf32>
    %cst_45 = arith.constant dense<0.000000e+00> : vector<256x128xf32>
    %58 = tpu.matmul %55, %56, %cst_45 {dimension_numbers = #tpu.dot_dimension_numbers<[1], [0], [0], [1], [0, 0, 1, 1], [], []>} : vector<256x128xbf16>, vector<128x128xbf16>, vector<256x128xf32> -> vector<256x128xf32>
    %59 = vector.broadcast %57 : vector<1x128xf32> to vector<256x128xf32>
    %60 = arith.addf %58, %59 : vector<256x128xf32>
    %cst_46 = arith.constant 0.000000e+00 : f32
    %61 = vector.broadcast %cst_46 : f32 to vector<256x128xf32>
    %62 = arith.maximumf %60, %61 : vector<256x128xf32>
    %63 = arith.truncf %62 : vector<256x128xf32> to vector<256x128xbf16>
    %c0_47 = arith.constant 0 : index
    %c0_48 = arith.constant 0 : index
    %64 = vector.load %arg18[%c0_47, %c0_48] : memref<128x128xbf16, #tpu.memory_space<vmem>>, vector<128x128xbf16>
    %c0_49 = arith.constant 0 : index
    %c0_50 = arith.constant 0 : index
    %65 = vector.load %arg19[%c0_49, %c0_50] : memref<1x128xf32, #tpu.memory_space<vmem>>, vector<1x128xf32>
    %cst_51 = arith.constant dense<0.000000e+00> : vector<256x128xf32>
    %66 = tpu.matmul %63, %64, %cst_51 {dimension_numbers = #tpu.dot_dimension_numbers<[1], [0], [0], [1], [0, 0, 1, 1], [], []>} : vector<256x128xbf16>, vector<128x128xbf16>, vector<256x128xf32> -> vector<256x128xf32>
    %67 = vector.broadcast %65 : vector<1x128xf32> to vector<256x128xf32>
    %68 = arith.addf %66, %67 : vector<256x128xf32>
    %cst_52 = arith.constant 0.000000e+00 : f32
    %69 = vector.broadcast %cst_52 : f32 to vector<256x128xf32>
    %70 = arith.maximumf %68, %69 : vector<256x128xf32>
    %71 = arith.truncf %70 : vector<256x128xf32> to vector<256x128xbf16>
    %c0_53 = arith.constant 0 : index
    %c0_54 = arith.constant 0 : index
    %72 = vector.load %arg20[%c0_53, %c0_54] : memref<128x784xbf16, #tpu.memory_space<vmem>>, vector<128x784xbf16>
    %c0_55 = arith.constant 0 : index
    %c0_56 = arith.constant 0 : index
    %73 = vector.load %arg21[%c0_55, %c0_56] : memref<1x784xf32, #tpu.memory_space<vmem>>, vector<1x784xf32>
    %cst_57 = arith.constant dense<0.000000e+00> : vector<256x784xf32>
    %74 = tpu.matmul %71, %72, %cst_57 {dimension_numbers = #tpu.dot_dimension_numbers<[1], [0], [0], [1], [0, 0, 1, 1], [], []>} : vector<256x128xbf16>, vector<128x784xbf16>, vector<256x784xf32> -> vector<256x784xf32>
    %75 = vector.broadcast %73 : vector<1x784xf32> to vector<256x784xf32>
    %76 = arith.addf %74, %75 : vector<256x784xf32>
    %cst_58 = arith.constant 0.000000e+00 : f32
    %77 = vector.broadcast %cst_58 : f32 to vector<256x784xf32>
    %78 = arith.subf %77, %76 : vector<256x784xf32>
    %79 = math.exp %78 : vector<256x784xf32>
    %cst_59 = arith.constant 1.000000e+00 : f32
    %80 = vector.broadcast %cst_59 : f32 to vector<256x784xf32>
    %81 = arith.addf %80, %79 : vector<256x784xf32>
    %82 = tpu.reciprocal %81 {approx = true} : vector<256x784xf32> -> vector<256x784xf32>
    %83 = arith.truncf %82 : vector<256x784xf32> to vector<256x784xbf16>
    %c0_60 = arith.constant 0 : index
    %c0_61 = arith.constant 0 : index
    %84 = vector.load %arg22[%c0_60, %c0_61] : memref<256x784xbf16, #tpu.memory_space<vmem>>, vector<256x784xbf16>
    tpu.vector_store %arg22[%c0_60, %c0_61], %83 {strides = array<i32>} : memref<256x784xbf16, #tpu.memory_space<vmem>>, vector<256x784xbf16>,
    return
  }
  func.func @transform_0(%arg0: i32) -> (i32, i32) {
    %c0_i32 = arith.constant 0 : i32
    %c0_i32_0 = arith.constant 0 : i32
    return %arg0, %c0_i32 : i32, i32
  }
  func.func @transform_1(%arg0: i32) -> (i32, i32) {
    %c0_i32 = arith.constant 0 : i32
    %c0_i32_0 = arith.constant 0 : i32
    %c0_i32_1 = arith.constant 0 : i32
    return %c0_i32, %c0_i32_0 : i32, i32
  }
  func.func @transform_2(%arg0: i32) -> (i32, i32) {
    %c0_i32 = arith.constant 0 : i32
    %c0_i32_0 = arith.constant 0 : i32
    %c0_i32_1 = arith.constant 0 : i32
    return %c0_i32, %c0_i32_0 : i32, i32
  }
  func.func @transform_3(%arg0: i32) -> (i32, i32) {
    %c0_i32 = arith.constant 0 : i32
    %c0_i32_0 = arith.constant 0 : i32
    %c0_i32_1 = arith.constant 0 : i32
    return %c0_i32, %c0_i32_0 : i32, i32
  }
  func.func @transform_4(%arg0: i32) -> (i32, i32) {
    %c0_i32 = arith.constant 0 : i32
    %c0_i32_0 = arith.constant 0 : i32
    %c0_i32_1 = arith.constant 0 : i32
    return %c0_i32, %c0_i32_0 : i32, i32
  }
  func.func @transform_5(%arg0: i32) -> (i32, i32) {
    %c0_i32 = arith.constant 0 : i32
    %c0_i32_0 = arith.constant 0 : i32
    %c0_i32_1 = arith.constant 0 : i32
    return %c0_i32, %c0_i32_0 : i32, i32
  }
  func.func @transform_6(%arg0: i32) -> (i32, i32) {
    %c0_i32 = arith.constant 0 : i32
    %c0_i32_0 = arith.constant 0 : i32
    %c0_i32_1 = arith.constant 0 : i32
    return %c0_i32, %c0_i32_0 : i32, i32
  }
  func.func @transform_7(%arg0: i32) -> (i32, i32) {
    %c0_i32 = arith.constant 0 : i32
    %c0_i32_0 = arith.constant 0 : i32
    %c0_i32_1 = arith.constant 0 : i32
    return %c0_i32, %c0_i32_0 : i32, i32
  }
  func.func @transform_8(%arg0: i32) -> (i32, i32) {
    %c0_i32 = arith.constant 0 : i32
    %c0_i32_0 = arith.constant 0 : i32
    %c0_i32_1 = arith.constant 0 : i32
    return %c0_i32, %c0_i32_0 : i32, i32
  }
  func.func @transform_9(%arg0: i32) -> (i32, i32) {
    %c0_i32 = arith.constant 0 : i32
    %c0_i32_0 = arith.constant 0 : i32
    %c0_i32_1 = arith.constant 0 : i32
    return %c0_i32, %c0_i32_0 : i32, i32
  }
  func.func @transform_10(%arg0: i32) -> (i32, i32) {
    %c0_i32 = arith.constant 0 : i32
    %c0_i32_0 = arith.constant 0 : i32
    %c0_i32_1 = arith.constant 0 : i32
    return %c0_i32, %c0_i32_0 : i32, i32
  }
  func.func @transform_11(%arg0: i32) -> (i32, i32) {
    %c0_i32 = arith.constant 0 : i32
    %c0_i32_0 = arith.constant 0 : i32
    %c0_i32_1 = arith.constant 0 : i32
    return %c0_i32, %c0_i32_0 : i32, i32
  }
  func.func @transform_12(%arg0: i32) -> (i32, i32) {
    %c0_i32 = arith.constant 0 : i32
    %c0_i32_0 = arith.constant 0 : i32
    %c0_i32_1 = arith.constant 0 : i32
    return %c0_i32, %c0_i32_0 : i32, i32
  }
  func.func @transform_13(%arg0: i32) -> (i32, i32) {
    %c0_i32 = arith.constant 0 : i32
    %c0_i32_0 = arith.constant 0 : i32
    %c0_i32_1 = arith.constant 0 : i32
    return %c0_i32, %c0_i32_0 : i32, i32
  }
  func.func @transform_14(%arg0: i32) -> (i32, i32) {
    %c0_i32 = arith.constant 0 : i32
    %c0_i32_0 = arith.constant 0 : i32
    %c0_i32_1 = arith.constant 0 : i32
    return %c0_i32, %c0_i32_0 : i32, i32
  }
  func.func @transform_15(%arg0: i32) -> (i32, i32) {
    %c0_i32 = arith.constant 0 : i32
    %c0_i32_0 = arith.constant 0 : i32
    %c0_i32_1 = arith.constant 0 : i32
    return %c0_i32, %c0_i32_0 : i32, i32
  }
  func.func @transform_16(%arg0: i32) -> (i32, i32) {
    %c0_i32 = arith.constant 0 : i32
    %c0_i32_0 = arith.constant 0 : i32
    %c0_i32_1 = arith.constant 0 : i32
    return %c0_i32, %c0_i32_0 : i32, i32
  }
  func.func @transform_17(%arg0: i32) -> (i32, i32) {
    %c0_i32 = arith.constant 0 : i32
    %c0_i32_0 = arith.constant 0 : i32
    %c0_i32_1 = arith.constant 0 : i32
    return %c0_i32, %c0_i32_0 : i32, i32
  }
  func.func @transform_18(%arg0: i32) -> (i32, i32) {
    %c0_i32 = arith.constant 0 : i32
    %c0_i32_0 = arith.constant 0 : i32
    %c0_i32_1 = arith.constant 0 : i32
    return %c0_i32, %c0_i32_0 : i32, i32
  }
  func.func @transform_19(%arg0: i32) -> (i32, i32) {
    %c0_i32 = arith.constant 0 : i32
    %c0_i32_0 = arith.constant 0 : i32
    %c0_i32_1 = arith.constant 0 : i32
    return %c0_i32, %c0_i32_0 : i32, i32
  }
  func.func @transform_20(%arg0: i32) -> (i32, i32) {
    %c0_i32 = arith.constant 0 : i32
    %c0_i32_0 = arith.constant 0 : i32
    %c0_i32_1 = arith.constant 0 : i32
    return %c0_i32, %c0_i32_0 : i32, i32
  }
  func.func @transform_21(%arg0: i32) -> (i32, i32) {
    %c0_i32 = arith.constant 0 : i32
    %c0_i32_0 = arith.constant 0 : i32
    return %arg0, %c0_i32 : i32, i32
  }
}

</mosaic_0001>

<llo_original>
// kernel: _ae_pallas.1
$region0: #{_ae_pallas.1}
  #allocation0 [shape = 'u32[]', space=smem, size = 0x4, offset = 0x4, fixed_abs, tag = 'smem constant byte address 0x4 - core index']
  #allocation1 [shape = 'u32[144,128]{1,0:T(1,128)}', space=vmem, size = 0x12000, scoped, tag = 'internal scratch']
  %s0 = inlined_call_operand.vmem [shape: f32[512,784], index: 0, kind: input, shape index: {}]
  %s1 = inlined_call_operand.vmem [shape: bf16[784,128], index: 1, kind: input, shape index: {}]
  %s2 = inlined_call_operand.vmem [shape: f32[1,128], index: 2, kind: input, shape index: {}]
  %s3 = inlined_call_operand.vmem [shape: bf16[128,128], index: 3, kind: input, shape index: {}]
  %s4 = inlined_call_operand.vmem [shape: f32[1,128], index: 4, kind: input, shape index: {}]
  %s5 = inlined_call_operand.vmem [shape: bf16[128,128], index: 5, kind: input, shape index: {}]
  %s6 = inlined_call_operand.vmem [shape: f32[1,128], index: 6, kind: input, shape index: {}]
  %s7 = inlined_call_operand.vmem [shape: bf16[128,128], index: 7, kind: input, shape index: {}]
  %s8 = inlined_call_operand.vmem [shape: f32[1,128], index: 8, kind: input, shape index: {}]
  %s9 = inlined_call_operand.vmem [shape: bf16[128,128], index: 9, kind: input, shape index: {}]
  %s10 = inlined_call_operand.vmem [shape: f32[1,128], index: 10, kind: input, shape index: {}]
  %s11 = inlined_call_operand.vmem [shape: bf16[128,128], index: 11, kind: input, shape index: {}]
  %s12 = inlined_call_operand.vmem [shape: f32[1,128], index: 12, kind: input, shape index: {}]
  %s13 = inlined_call_operand.vmem [shape: bf16[128,128], index: 13, kind: input, shape index: {}]
  %s14 = inlined_call_operand.vmem [shape: f32[1,128], index: 14, kind: input, shape index: {}]
  %s15 = inlined_call_operand.vmem [shape: bf16[128,128], index: 15, kind: input, shape index: {}]
  %s16 = inlined_call_operand.vmem [shape: f32[1,128], index: 16, kind: input, shape index: {}]
  %s17 = inlined_call_operand.vmem [shape: bf16[128,128], index: 17, kind: input, shape index: {}]
  %s18 = inlined_call_operand.vmem [shape: f32[1,128], index: 18, kind: input, shape index: {}]
  %s19 = inlined_call_operand.vmem [shape: bf16[128,784], index: 19, kind: input, shape index: {}]
  %s20 = inlined_call_operand.vmem [shape: f32[1,784], index: 20, kind: input, shape index: {}]
  %s21 = inlined_call_operand.vmem [shape: bf16[512,784], index: 21, kind: output, shape index: {}]
  %s22 = sld [smem:[#allocation0]]
  $region117: #{_ae_pallas.1} parent=0
    _
  %s24 = ssub.s32 1, %s22
  %s25 = scalar_select 0, %s24, %s22
  loop: start=0, step=1, limit=4
  $region2: #{_ae_pallas.1} parent=0 // loop_pre_header
    _
  $region3: #{_ae_pallas.1} parent=0 // loop_header
    %s27 = sphi 0, %s31
    %p28 = scmp.ge.s32.totalorder %s27, 4
    %s37 = sphi 0, %s39
    %s40 = sphi 0, %s37
    %s41 = sphi 0, %s40
    %s57 = sphi 0, %s41
    %s61 = sphi 0, %s61
    %s63 = sphi 0, %s61
    %s64 = sphi 0, %s63
    %s78 = sphi 0, %s64
    %s82 = sphi 0, %s82
    %s84 = sphi 0, %s82
    %s85 = sphi 0, %s84
    %s99 = sphi 0, %s85
    %s103 = sphi 0, %s103
    %s105 = sphi 0, %s103
    %s106 = sphi 0, %s105
    %s120 = sphi 0, %s106
    %s124 = sphi 0, %s124
    %s126 = sphi 0, %s124
    %s127 = sphi 0, %s126
    %s141 = sphi 0, %s127
    %s145 = sphi 0, %s145
    %s147 = sphi 0, %s145
    %s148 = sphi 0, %s147
    %s162 = sphi 0, %s148
    %s166 = sphi 0, %s166
    %s168 = sphi 0, %s166
    %s169 = sphi 0, %s168
    %s183 = sphi 0, %s169
    %s187 = sphi 0, %s187
    %s189 = sphi 0, %s187
    %s190 = sphi 0, %s189
    %s204 = sphi 0, %s190
    %s208 = sphi 0, %s208
    %s210 = sphi 0, %s208
    %s211 = sphi 0, %s210
    %s225 = sphi 0, %s211
    %s229 = sphi 0, %s229
    %s231 = sphi 0, %s229
    %s232 = sphi 0, %s231
    %s246 = sphi 0, %s232
    %s250 = sphi 0, %s250
    %s252 = sphi 0, %s250
    %s253 = sphi 0, %s252
    %s267 = sphi 0, %s253
    %s271 = sphi 0, %s271
    %s273 = sphi 0, %s271
    %s274 = sphi 0, %s273
    %s288 = sphi 0, %s274
    %s292 = sphi 0, %s292
    %s294 = sphi 0, %s292
    %s295 = sphi 0, %s294
    %s309 = sphi 0, %s295
    %s313 = sphi 0, %s313
    %s315 = sphi 0, %s313
    %s316 = sphi 0, %s315
    %s330 = sphi 0, %s316
    %s334 = sphi 0, %s334
    %s336 = sphi 0, %s334
    %s337 = sphi 0, %s336
    %s351 = sphi 0, %s337
    %s355 = sphi 0, %s355
    %s357 = sphi 0, %s355
    %s358 = sphi 0, %s357
    %s372 = sphi 0, %s358
    %s376 = sphi 0, %s376
    %s378 = sphi 0, %s376
    %s379 = sphi 0, %s378
    %s393 = sphi 0, %s379
    %s397 = sphi 0, %s397
    %s399 = sphi 0, %s397
    %s400 = sphi 0, %s399
    %s414 = sphi 0, %s400
    %s418 = sphi 0, %s418
    %s420 = sphi 0, %s418
    %s421 = sphi 0, %s420
    %s435 = sphi 0, %s421
    %s439 = sphi 0, %s439
    %s441 = sphi 0, %s439
    %s442 = sphi 0, %s441
    %s456 = sphi 0, %s442
    %s460 = sphi 0, %s460
    %s462 = sphi 0, %s460
    %s463 = sphi 0, %s462
    %s477 = sphi 0, %s463
    %s483 = sphi 0, %s485
    %s486 = sphi 0, %s483
    %s487 = sphi 0, %s486
    %s503 = sphi 0, %s487
  $region4: #{_ae_pallas.1} parent=0 // loop_header_branch
    %30 = sbr.rel (%p28) target = $region8
  $region5: #{_ae_pallas.1} parent=0 // loop_body
    %s32 = ssub.s32 %s27, 1
    %s33 = ssub.s32 %s27, 2
    %s34 = sadd.s32 %s27, 1
    %s35 = ssub.s32 %s27, %s34
    %p36 = scmp.eq.s32.totalorder %s35, 0
    %s38 = sadd.s32 %s37, 1
    %s39 = scalar_select %p36, %s37, %s38
    %p42 = pneg %p36
    %p43 = scmp.eq.s32.totalorder %s27, 1
    %p44 = por %p42, %p43
    %p45 = scmp.ne.s32.totalorder %s37, %s40
    %p46 = scmp.eq.s32.totalorder %s27, 0
    %p47 = por %p45, %p46
    %p48 = scmp.ne.s32.totalorder %s37, %s40
    %p49 = scmp.eq.s32.totalorder %s32, 1
    %p50 = por %p48, %p49
    %p51 = scmp.ne.s32.totalorder %s40, %s41
    %p52 = scmp.eq.s32.totalorder %s32, 0
    %p53 = por %p51, %p52
    %p54 = scmp.ne.s32.totalorder %s40, %s41
    %p55 = scmp.eq.s32.totalorder %s33, 1
    %p56 = por %p54, %p55
    %p58 = scmp.ne.s32.totalorder %s41, %s57
    %p59 = scmp.eq.s32.totalorder %s33, 0
    %p60 = por %p58, %p59
    %s62 = sadd.s32 %s61, 1
    %p65 = scmp.eq.s32.totalorder %s27, 1
    %p66 = scmp.ne.s32.totalorder %s61, %s63
    %p67 = scmp.eq.s32.totalorder %s27, 0
    %p68 = por %p66, %p67
    %p69 = scmp.ne.s32.totalorder %s61, %s63
    %p70 = scmp.eq.s32.totalorder %s32, 1
    %p71 = por %p69, %p70
    %p72 = scmp.ne.s32.totalorder %s63, %s64
    %p73 = scmp.eq.s32.totalorder %s32, 0
    %p74 = por %p72, %p73
    %p75 = scmp.ne.s32.totalorder %s63, %s64
    %p76 = scmp.eq.s32.totalorder %s33, 1
    %p77 = por %p75, %p76
    %p79 = scmp.ne.s32.totalorder %s64, %s78
    %p80 = scmp.eq.s32.totalorder %s33, 0
    %p81 = por %p79, %p80
    %s83 = sadd.s32 %s82, 1
    %p86 = scmp.eq.s32.totalorder %s27, 1
    %p87 = scmp.ne.s32.totalorder %s82, %s84
    %p88 = scmp.eq.s32.totalorder %s27, 0
    %p89 = por %p87, %p88
    %p90 = scmp.ne.s32.totalorder %s82, %s84
    %p91 = scmp.eq.s32.totalorder %s32, 1
    %p92 = por %p90, %p91
    %p93 = scmp.ne.s32.totalorder %s84, %s85
    %p94 = scmp.eq.s32.totalorder %s32, 0
    %p95 = por %p93, %p94
    %p96 = scmp.ne.s32.totalorder %s84, %s85
    %p97 = scmp.eq.s32.totalorder %s33, 1
    %p98 = por %p96, %p97
    %p100 = scmp.ne.s32.totalorder %s85, %s99
    %p101 = scmp.eq.s32.totalorder %s33, 0
    %p102 = por %p100, %p101
    %s104 = sadd.s32 %s103, 1
    %p107 = scmp.eq.s32.totalorder %s27, 1
    %p108 = scmp.ne.s32.totalorder %s103, %s105
    %p109 = scmp.eq.s32.totalorder %s27, 0
    %p110 = por %p108, %p109
    %p111 = scmp.ne.s32.totalorder %s103, %s105
    %p112 = scmp.eq.s32.totalorder %s32, 1
    %p113 = por %p111, %p112
    %p114 = scmp.ne.s32.totalorder %s105, %s106
    %p115 = scmp.eq.s32.totalorder %s32, 0
    %p116 = por %p114, %p115
    %p117 = scmp.ne.s32.totalorder %s105, %s106
    %p118 = scmp.eq.s32.totalorder %s33, 1
    %p119 = por %p117, %p118
    %p121 = scmp.ne.s32.totalorder %s106, %s120
    %p122 = scmp.eq.s32.totalorder %s33, 0
    %p123 = por %p121, %p122
    %s125 = sadd.s32 %s124, 1
    %p128 = scmp.eq.s32.totalorder %s27, 1
    %p129 = scmp.ne.s32.totalorder %s124, %s126
    %p130 = scmp.eq.s32.totalorder %s27, 0
    %p131 = por %p129, %p130
    %p132 = scmp.ne.s32.totalorder %s124, %s126
    %p133 = scmp.eq.s32.totalorder %s32, 1
    %p134 = por %p132, %p133
    %p135 = scmp.ne.s32.totalorder %s126, %s127
    %p136 = scmp.eq.s32.totalorder %s32, 0
    %p137 = por %p135, %p136
    %p138 = scmp.ne.s32.totalorder %s126, %s127
    %p139 = scmp.eq.s32.totalorder %s33, 1
    %p140 = por %p138, %p139
    %p142 = scmp.ne.s32.totalorder %s127, %s141
    %p143 = scmp.eq.s32.totalorder %s33, 0
    %p144 = por %p142, %p143
    %s146 = sadd.s32 %s145, 1
    %p149 = scmp.eq.s32.totalorder %s27, 1
    %p150 = scmp.ne.s32.totalorder %s145, %s147
    %p151 = scmp.eq.s32.totalorder %s27, 0
    %p152 = por %p150, %p151
    %p153 = scmp.ne.s32.totalorder %s145, %s147
    %p154 = scmp.eq.s32.totalorder %s32, 1
    %p155 = por %p153, %p154
    %p156 = scmp.ne.s32.totalorder %s147, %s148
    %p157 = scmp.eq.s32.totalorder %s32, 0
    %p158 = por %p156, %p157
    %p159 = scmp.ne.s32.totalorder %s147, %s148
    %p160 = scmp.eq.s32.totalorder %s33, 1
    %p161 = por %p159, %p160
    %p163 = scmp.ne.s32.totalorder %s148, %s162
    %p164 = scmp.eq.s32.totalorder %s33, 0
    %p165 = por %p163, %p164
    %s167 = sadd.s32 %s166, 1
    %p170 = scmp.eq.s32.totalorder %s27, 1
    %p171 = scmp.ne.s32.totalorder %s166, %s168
    %p172 = scmp.eq.s32.totalorder %s27, 0
    %p173 = por %p171, %p172
    %p174 = scmp.ne.s32.totalorder %s166, %s168
    %p175 = scmp.eq.s32.totalorder %s32, 1
    %p176 = por %p174, %p175
    %p177 = scmp.ne.s32.totalorder %s168, %s169
    %p178 = scmp.eq.s32.totalorder %s32, 0
    %p179 = por %p177, %p178
    %p180 = scmp.ne.s32.totalorder %s168, %s169
    %p181 = scmp.eq.s32.totalorder %s33, 1
    %p182 = por %p180, %p181
    %p184 = scmp.ne.s32.totalorder %s169, %s183
    %p185 = scmp.eq.s32.totalorder %s33, 0
    %p186 = por %p184, %p185
    %s188 = sadd.s32 %s187, 1
    %p191 = scmp.eq.s32.totalorder %s27, 1
    %p192 = scmp.ne.s32.totalorder %s187, %s189
    %p193 = scmp.eq.s32.totalorder %s27, 0
    %p194 = por %p192, %p193
    %p195 = scmp.ne.s32.totalorder %s187, %s189
    %p196 = scmp.eq.s32.totalorder %s32, 1
    %p197 = por %p195, %p196
    %p198 = scmp.ne.s32.totalorder %s189, %s190
    %p199 = scmp.eq.s32.totalorder %s32, 0
    %p200 = por %p198, %p199
    %p201 = scmp.ne.s32.totalorder %s189, %s190
    %p202 = scmp.eq.s32.totalorder %s33, 1
    %p203 = por %p201, %p202
    %p205 = scmp.ne.s32.totalorder %s190, %s204
    %p206 = scmp.eq.s32.totalorder %s33, 0
    %p207 = por %p205, %p206
    %s209 = sadd.s32 %s208, 1
    %p212 = scmp.eq.s32.totalorder %s27, 1
    %p213 = scmp.ne.s32.totalorder %s208, %s210
    %p214 = scmp.eq.s32.totalorder %s27, 0
    %p215 = por %p213, %p214
    %p216 = scmp.ne.s32.totalorder %s208, %s210
    %p217 = scmp.eq.s32.totalorder %s32, 1
    %p218 = por %p216, %p217
    %p219 = scmp.ne.s32.totalorder %s210, %s211
    %p220 = scmp.eq.s32.totalorder %s32, 0
    %p221 = por %p219, %p220
    %p222 = scmp.ne.s32.totalorder %s210, %s211
    %p223 = scmp.eq.s32.totalorder %s33, 1
    %p224 = por %p222, %p223
    %p226 = scmp.ne.s32.totalorder %s211, %s225
    %p227 = scmp.eq.s32.totalorder %s33, 0
    %p228 = por %p226, %p227
    %s230 = sadd.s32 %s229, 1
    %p233 = scmp.eq.s32.totalorder %s27, 1
    %p234 = scmp.ne.s32.totalorder %s229, %s231
    %p235 = scmp.eq.s32.totalorder %s27, 0
    %p236 = por %p234, %p235
    %p237 = scmp.ne.s32.totalorder %s229, %s231
    %p238 = scmp.eq.s32.totalorder %s32, 1
    %p239 = por %p237, %p238
    %p240 = scmp.ne.s32.totalorder %s231, %s232
    %p241 = scmp.eq.s32.totalorder %s32, 0
    %p242 = por %p240, %p241
    %p243 = scmp.ne.s32.totalorder %s231, %s232
    %p244 = scmp.eq.s32.totalorder %s33, 1
    %p245 = por %p243, %p244
    %p247 = scmp.ne.s32.totalorder %s232, %s246
    %p248 = scmp.eq.s32.totalorder %s33, 0
    %p249 = por %p247, %p248
    %s251 = sadd.s32 %s250, 1
    %p254 = scmp.eq.s32.totalorder %s27, 1
    %p255 = scmp.ne.s32.totalorder %s250, %s252
    %p256 = scmp.eq.s32.totalorder %s27, 0
    %p257 = por %p255, %p256
    %p258 = scmp.ne.s32.totalorder %s250, %s252
    %p259 = scmp.eq.s32.totalorder %s32, 1
    %p260 = por %p258, %p259
    %p261 = scmp.ne.s32.totalorder %s252, %s253
    %p262 = scmp.eq.s32.totalorder %s32, 0
    %p263 = por %p261, %p262
    %p264 = scmp.ne.s32.totalorder %s252, %s253
    %p265 = scmp.eq.s32.totalorder %s33, 1
    %p266 = por %p264, %p265
    %p268 = scmp.ne.s32.totalorder %s253, %s267
    %p269 = scmp.eq.s32.totalorder %s33, 0
    %p270 = por %p268, %p269
    %s272 = sadd.s32 %s271, 1
    %p275 = scmp.eq.s32.totalorder %s27, 1
    %p276 = scmp.ne.s32.totalorder %s271, %s273
    %p277 = scmp.eq.s32.totalorder %s27, 0
    %p278 = por %p276, %p277
    %p279 = scmp.ne.s32.totalorder %s271, %s273
    %p280 = scmp.eq.s32.totalorder %s32, 1
    %p281 = por %p279, %p280
    %p282 = scmp.ne.s32.totalorder %s273, %s274
    %p283 = scmp.eq.s32.totalorder %s32, 0
    %p284 = por %p282, %p283
    %p285 = scmp.ne.s32.totalorder %s273, %s274
    %p286 = scmp.eq.s32.totalorder %s33, 1
    %p287 = por %p285, %p286
    %p289 = scmp.ne.s32.totalorder %s274, %s288
    %p290 = scmp.eq.s32.totalorder %s33, 0
    %p291 = por %p289, %p290
    %s293 = sadd.s32 %s292, 1
    %p296 = scmp.eq.s32.totalorder %s27, 1
    %p297 = scmp.ne.s32.totalorder %s292, %s294
    %p298 = scmp.eq.s32.totalorder %s27, 0
    %p299 = por %p297, %p298
    %p300 = scmp.ne.s32.totalorder %s292, %s294
    %p301 = scmp.eq.s32.totalorder %s32, 1
    %p302 = por %p300, %p301
    %p303 = scmp.ne.s32.totalorder %s294, %s295
    %p304 = scmp.eq.s32.totalorder %s32, 0
    %p305 = por %p303, %p304
    %p306 = scmp.ne.s32.totalorder %s294, %s295
    %p307 = scmp.eq.s32.totalorder %s33, 1
    %p308 = por %p306, %p307
    %p310 = scmp.ne.s32.totalorder %s295, %s309
    %p311 = scmp.eq.s32.totalorder %s33, 0
    %p312 = por %p310, %p311
    %s314 = sadd.s32 %s313, 1
    %p317 = scmp.eq.s32.totalorder %s27, 1
    %p318 = scmp.ne.s32.totalorder %s313, %s315
    %p319 = scmp.eq.s32.totalorder %s27, 0
    %p320 = por %p318, %p319
    %p321 = scmp.ne.s32.totalorder %s313, %s315
    %p322 = scmp.eq.s32.totalorder %s32, 1
    %p323 = por %p321, %p322
    %p324 = scmp.ne.s32.totalorder %s315, %s316
    %p325 = scmp.eq.s32.totalorder %s32, 0
    %p326 = por %p324, %p325
    %p327 = scmp.ne.s32.totalorder %s315, %s316
    %p328 = scmp.eq.s32.totalorder %s33, 1
    %p329 = por %p327, %p328
    %p331 = scmp.ne.s32.totalorder %s316, %s330
    %p332 = scmp.eq.s32.totalorder %s33, 0
    %p333 = por %p331, %p332
    %s335 = sadd.s32 %s334, 1
    %p338 = scmp.eq.s32.totalorder %s27, 1
    %p339 = scmp.ne.s32.totalorder %s334, %s336
    %p340 = scmp.eq.s32.totalorder %s27, 0
    %p341 = por %p339, %p340
    %p342 = scmp.ne.s32.totalorder %s334, %s336
    %p343 = scmp.eq.s32.totalorder %s32, 1
    %p344 = por %p342, %p343
    %p345 = scmp.ne.s32.totalorder %s336, %s337
    %p346 = scmp.eq.s32.totalorder %s32, 0
    %p347 = por %p345, %p346
    %p348 = scmp.ne.s32.totalorder %s336, %s337
    %p349 = scmp.eq.s32.totalorder %s33, 1
    %p350 = por %p348, %p349
    %p352 = scmp.ne.s32.totalorder %s337, %s351
    %p353 = scmp.eq.s32.totalorder %s33, 0
    %p354 = por %p352, %p353
    %s356 = sadd.s32 %s355, 1
    %p359 = scmp.eq.s32.totalorder %s27, 1
    %p360 = scmp.ne.s32.totalorder %s355, %s357
    %p361 = scmp.eq.s32.totalorder %s27, 0
    %p362 = por %p360, %p361
    %p363 = scmp.ne.s32.totalorder %s355, %s357
    %p364 = scmp.eq.s32.totalorder %s32, 1
    %p365 = por %p363, %p364
    %p366 = scmp.ne.s32.totalorder %s357, %s358
    %p367 = scmp.eq.s32.totalorder %s32, 0
    %p368 = por %p366, %p367
    %p369 = scmp.ne.s32.totalorder %s357, %s358
    %p370 = scmp.eq.s32.totalorder %s33, 1
    %p371 = por %p369, %p370
    %p373 = scmp.ne.s32.totalorder %s358, %s372
    %p374 = scmp.eq.s32.totalorder %s33, 0
    %p375 = por %p373, %p374
    %s377 = sadd.s32 %s376, 1
    %p380 = scmp.eq.s32.totalorder %s27, 1
    %p381 = scmp.ne.s32.totalorder %s376, %s378
    %p382 = scmp.eq.s32.totalorder %s27, 0
    %p383 = por %p381, %p382
    %p384 = scmp.ne.s32.totalorder %s376, %s378
    %p385 = scmp.eq.s32.totalorder %s32, 1
    %p386 = por %p384, %p385
    %p387 = scmp.ne.s32.totalorder %s378, %s379
    %p388 = scmp.eq.s32.totalorder %s32, 0
    %p389 = por %p387, %p388
    %p390 = scmp.ne.s32.totalorder %s378, %s379
    %p391 = scmp.eq.s32.totalorder %s33, 1
    %p392 = por %p390, %p391
    %p394 = scmp.ne.s32.totalorder %s379, %s393
    %p395 = scmp.eq.s32.totalorder %s33, 0
    %p396 = por %p394, %p395
    %s398 = sadd.s32 %s397, 1
    %p401 = scmp.eq.s32.totalorder %s27, 1
    %p402 = scmp.ne.s32.totalorder %s397, %s399
    %p403 = scmp.eq.s32.totalorder %s27, 0
    %p404 = por %p402, %p403
    %p405 = scmp.ne.s32.totalorder %s397, %s399
    %p406 = scmp.eq.s32.totalorder %s32, 1
    %p407 = por %p405, %p406
    %p408 = scmp.ne.s32.totalorder %s399, %s400
    %p409 = scmp.eq.s32.totalorder %s32, 0
    %p410 = por %p408, %p409
    %p411 = scmp.ne.s32.totalorder %s399, %s400
    %p412 = scmp.eq.s32.totalorder %s33, 1
    %p413 = por %p411, %p412
    %p415 = scmp.ne.s32.totalorder %s400, %s414
    %p416 = scmp.eq.s32.totalorder %s33, 0
    %p417 = por %p415, %p416
    %s419 = sadd.s32 %s418, 1
    %p422 = scmp.eq.s32.totalorder %s27, 1
    %p423 = scmp.ne.s32.totalorder %s418, %s420
    %p424 = scmp.eq.s32.totalorder %s27, 0
    %p425 = por %p423, %p424
    %p426 = scmp.ne.s32.totalorder %s418, %s420
    %p427 = scmp.eq.s32.totalorder %s32, 1
    %p428 = por %p426, %p427
    %p429 = scmp.ne.s32.totalorder %s420, %s421
    %p430 = scmp.eq.s32.totalorder %s32, 0
    %p431 = por %p429, %p430
    %p432 = scmp.ne.s32.totalorder %s420, %s421
    %p433 = scmp.eq.s32.totalorder %s33, 1
    %p434 = por %p432, %p433
    %p436 = scmp.ne.s32.totalorder %s421, %s435
    %p437 = scmp.eq.s32.totalorder %s33, 0
    %p438 = por %p436, %p437
    %s440 = sadd.s32 %s439, 1
    %p443 = scmp.eq.s32.totalorder %s27, 1
    %p444 = scmp.ne.s32.totalorder %s439, %s441
    %p445 = scmp.eq.s32.totalorder %s27, 0
    %p446 = por %p444, %p445
    %p447 = scmp.ne.s32.totalorder %s439, %s441
    %p448 = scmp.eq.s32.totalorder %s32, 1
    %p449 = por %p447, %p448
    %p450 = scmp.ne.s32.totalorder %s441, %s442
    %p451 = scmp.eq.s32.totalorder %s32, 0
    %p452 = por %p450, %p451
    %p453 = scmp.ne.s32.totalorder %s441, %s442
    %p454 = scmp.eq.s32.totalorder %s33, 1
    %p455 = por %p453, %p454
    %p457 = scmp.ne.s32.totalorder %s442, %s456
    %p458 = scmp.eq.s32.totalorder %s33, 0
    %p459 = por %p457, %p458
    %s461 = sadd.s32 %s460, 1
    %p464 = scmp.eq.s32.totalorder %s27, 1
    %p465 = scmp.ne.s32.totalorder %s460, %s462
    %p466 = scmp.eq.s32.totalorder %s27, 0
    %p467 = por %p465, %p466
    %p468 = scmp.ne.s32.totalorder %s460, %s462
    %p469 = scmp.eq.s32.totalorder %s32, 1
    %p470 = por %p468, %p469
    %p471 = scmp.ne.s32.totalorder %s462, %s463
    %p472 = scmp.eq.s32.totalorder %s32, 0
    %p473 = por %p471, %p472
    %p474 = scmp.ne.s32.totalorder %s462, %s463
    %p475 = scmp.eq.s32.totalorder %s33, 1
    %p476 = por %p474, %p475
    %p478 = scmp.ne.s32.totalorder %s463, %s477
    %p479 = scmp.eq.s32.totalorder %s33, 0
    %p480 = por %p478, %p479
    %s481 = ssub.s32 %s27, %s34
    %p482 = scmp.eq.s32.totalorder %s481, 0
    %s484 = sadd.s32 %s483, 1
    %s485 = scalar_select %p482, %s483, %s484
    %p488 = pneg %p482
    %p489 = scmp.eq.s32.totalorder %s27, 1
    %p490 = por %p488, %p489
    %p491 = scmp.ne.s32.totalorder %s483, %s486
    %p492 = scmp.eq.s32.totalorder %s27, 0
    %p493 = por %p491, %p492
    %p494 = scmp.ne.s32.totalorder %s483, %s486
    %p495 = scmp.eq.s32.totalorder %s32, 1
    %p496 = por %p494, %p495
    %p497 = scmp.ne.s32.totalorder %s486, %s487
    %p498 = scmp.eq.s32.totalorder %s32, 0
    %p499 = por %p497, %p498
    %p500 = scmp.ne.s32.totalorder %s486, %s487
    %p501 = scmp.eq.s32.totalorder %s33, 1
    %p502 = por %p500, %p501
    %p504 = scmp.ne.s32.totalorder %s487, %s503
    %p505 = scmp.eq.s32.totalorder %s33, 0
    %p506 = por %p504, %p505
    %p507 = scmp.le.s32.totalorder 1, %s27
    %p508 = scmp.lt.s32.totalorder %s27, 3
    %p509 = pnand %p507, %p508
    %p510 = pneg %p509
    // Predicated region
    $region9: #{_ae_pallas.1} parent=5 // pred_check
      _
    $region10: #{_ae_pallas.1} parent=5 // pred_check_branch
      %512 = sbr.rel (%p509) target = $region12
    $region11: #{_ae_pallas.1} parent=5 // pred_region
      %s513 = ssub.s32 %s27, 1
      // Predicated region
      $region13: #{_ae_pallas.1} parent=11 // pred_check
        %p514 = pneg %p74
      $region14: #{_ae_pallas.1} parent=11 // pred_check_branch
        %516 = sbr.rel (%p514) target = $region16
      $region15: #{_ae_pallas.1} parent=11 // pred_region
        _
      $region16: #{_ae_pallas.1} parent=11 // pred_fallthru
        _
      // Predicated region
      $region17: #{_ae_pallas.1} parent=11 // pred_check
        %p517 = pneg %p95
      $region18: #{_ae_pallas.1} parent=11 // pred_check_branch
        %519 = sbr.rel (%p517) target = $region20
      $region19: #{_ae_pallas.1} parent=11 // pred_region
        _
      $region20: #{_ae_pallas.1} parent=11 // pred_fallthru
        _
      // Predicated region
      $region21: #{_ae_pallas.1} parent=11 // pred_check
        %p520 = pneg %p116
      $region22: #{_ae_pallas.1} parent=11 // pred_check_branch
        %522 = sbr.rel (%p520) target = $region24
      $region23: #{_ae_pallas.1} parent=11 // pred_region
        _
      $region24: #{_ae_pallas.1} parent=11 // pred_fallthru
        _
      // Predicated region
      $region25: #{_ae_pallas.1} parent=11 // pred_check
        %p523 = pneg %p137
      $region26: #{_ae_pallas.1} parent=11 // pred_check_branch
        %525 = sbr.rel (%p523) target = $region28
      $region27: #{_ae_pallas.1} parent=11 // pred_region
        _
      $region28: #{_ae_pallas.1} parent=11 // pred_fallthru
        _
      // Predicated region
      $region29: #{_ae_pallas.1} parent=11 // pred_check
        %p526 = pneg %p158
      $region30: #{_ae_pallas.1} parent=11 // pred_check_branch
        %528 = sbr.rel (%p526) target = $region32
      $region31: #{_ae_pallas.1} parent=11 // pred_region
        _
      $region32: #{_ae_pallas.1} parent=11 // pred_fallthru
        _
      // Predicated region
      $region33: #{_ae_pallas.1} parent=11 // pred_check
        %p529 = pneg %p179
      $region34: #{_ae_pallas.1} parent=11 // pred_check_branch
        %531 = sbr.rel (%p529) target = $region36
      $region35: #{_ae_pallas.1} parent=11 // pred_region
        _
      $region36: #{_ae_pallas.1} parent=11 // pred_fallthru
        _
      // Predicated region
      $region37: #{_ae_pallas.1} parent=11 // pred_check
        %p532 = pneg %p200
      $region38: #{_ae_pallas.1} parent=11 // pred_check_branch
        %534 = sbr.rel (%p532) target = $region40
      $region39: #{_ae_pallas.1} parent=11 // pred_region
        _
      $region40: #{_ae_pallas.1} parent=11 // pred_fallthru
        _
      // Predicated region
      $region41: #{_ae_pallas.1} parent=11 // pred_check
        %p535 = pneg %p221
      $region42: #{_ae_pallas.1} parent=11 // pred_check_branch
        %537 = sbr.rel (%p535) target = $region44
      $region43: #{_ae_pallas.1} parent=11 // pred_region
        _
      $region44: #{_ae_pallas.1} parent=11 // pred_fallthru
        _
      // Predicated region
      $region45: #{_ae_pallas.1} parent=11 // pred_check
        %p538 = pneg %p242
      $region46: #{_ae_pallas.1} parent=11 // pred_check_branch
        %540 = sbr.rel (%p538) target = $region48
      $region47: #{_ae_pallas.1} parent=11 // pred_region
        _
      $region48: #{_ae_pallas.1} parent=11 // pred_fallthru
        _
      // Predicated region
      $region49: #{_ae_pallas.1} parent=11 // pred_check
        %p541 = pneg %p263
      $region50: #{_ae_pallas.1} parent=11 // pred_check_branch
        %543 = sbr.rel (%p541) target = $region52
      $region51: #{_ae_pallas.1} parent=11 // pred_region
        _
      $region52: #{_ae_pallas.1} parent=11 // pred_fallthru
        _
      // Predicated region
      $region53: #{_ae_pallas.1} parent=11 // pred_check
        %p544 = pneg %p284
      $region54: #{_ae_pallas.1} parent=11 // pred_check_branch
        %546 = sbr.rel (%p544) target = $region56
      $region55: #{_ae_pallas.1} parent=11 // pred_region
        _
      $region56: #{_ae_pallas.1} parent=11 // pred_fallthru
        _
      // Predicated region
      $region57: #{_ae_pallas.1} parent=11 // pred_check
        %p547 = pneg %p305
      $region58: #{_ae_pallas.1} parent=11 // pred_check_branch
        %549 = sbr.rel (%p547) target = $region60
      $region59: #{_ae_pallas.1} parent=11 // pred_region
        _
      $region60: #{_ae_pallas.1} parent=11 // pred_fallthru
        _
      // Predicated region
      $region61: #{_ae_pallas.1} parent=11 // pred_check
        %p550 = pneg %p326
      $region62: #{_ae_pallas.1} parent=11 // pred_check_branch
        %552 = sbr.rel (%p550) target = $region64
      $region63: #{_ae_pallas.1} parent=11 // pred_region
        _
      $region64: #{_ae_pallas.1} parent=11 // pred_fallthru
        _
      // Predicated region
      $region65: #{_ae_pallas.1} parent=11 // pred_check
        %p553 = pneg %p347
      $region66: #{_ae_pallas.1} parent=11 // pred_check_branch
        %555 = sbr.rel (%p553) target = $region68
      $region67: #{_ae_pallas.1} parent=11 // pred_region
        _
      $region68: #{_ae_pallas.1} parent=11 // pred_fallthru
        _
      // Predicated region
      $region69: #{_ae_pallas.1} parent=11 // pred_check
        %p556 = pneg %p368
      $region70: #{_ae_pallas.1} parent=11 // pred_check_branch
        %558 = sbr.rel (%p556) target = $region72
      $region71: #{_ae_pallas.1} parent=11 // pred_region
        _
      $region72: #{_ae_pallas.1} parent=11 // pred_fallthru
        _
      // Predicated region
      $region73: #{_ae_pallas.1} parent=11 // pred_check
        %p559 = pneg %p389
      $region74: #{_ae_pallas.1} parent=11 // pred_check_branch
        %561 = sbr.rel (%p559) target = $region76
      $region75: #{_ae_pallas.1} parent=11 // pred_region
        _
      $region76: #{_ae_pallas.1} parent=11 // pred_fallthru
        _
      // Predicated region
      $region77: #{_ae_pallas.1} parent=11 // pred_check
        %p562 = pneg %p410
      $region78: #{_ae_pallas.1} parent=11 // pred_check_branch
        %564 = sbr.rel (%p562) target = $region80
      $region79: #{_ae_pallas.1} parent=11 // pred_region
        _
      $region80: #{_ae_pallas.1} parent=11 // pred_fallthru
        _
      // Predicated region
      $region81: #{_ae_pallas.1} parent=11 // pred_check
        %p565 = pneg %p431
      $region82: #{_ae_pallas.1} parent=11 // pred_check_branch
        %567 = sbr.rel (%p565) target = $region84
      $region83: #{_ae_pallas.1} parent=11 // pred_region
        _
      $region84: #{_ae_pallas.1} parent=11 // pred_fallthru
        _
      // Predicated region
      $region85: #{_ae_pallas.1} parent=11 // pred_check
        %p568 = pneg %p452
      $region86: #{_ae_pallas.1} parent=11 // pred_check_branch
        %570 = sbr.rel (%p568) target = $region88
      $region87: #{_ae_pallas.1} parent=11 // pred_region
        _
      $region88: #{_ae_pallas.1} parent=11 // pred_fallthru
        _
      // Predicated region
      $region89: #{_ae_pallas.1} parent=11 // pred_check
        %p571 = pneg %p473
      $region90: #{_ae_pallas.1} parent=11 // pred_check_branch
        %573 = sbr.rel (%p571) target = $region92
      $region91: #{_ae_pallas.1} parent=11 // pred_region
        _
      $region92: #{_ae_pallas.1} parent=11 // pred_fallthru
        _
    $region12: #{_ae_pallas.1} parent=5 // pred_fallthru
      _
    %p574 = scmp.lt.s32.totalorder %s27, 2
    // Predicated region
    $region93: #{_ae_pallas.1} parent=5 // pred_check
      %p575 = pneg %p574
    $region94: #{_ae_pallas.1} parent=5 // pred_check_branch
      %577 = sbr.rel (%p575) target = $region96
    $region95: #{_ae_pallas.1} parent=5 // pred_region
      // Predicated region
      $region97: #{_ae_pallas.1} parent=95 // pred_check
        %p578 = pneg %p47
      $region98: #{_ae_pallas.1} parent=95 // pred_check_branch
        %580 = sbr.rel (%p578) target = $region100
      $region99: #{_ae_pallas.1} parent=95 // pred_region
        %s581 = smul.u32 32, %s27
        %p582 = scmp.lt.s32.totalorder %s581, 63
        %s583 = scalar_select %p582, %s581, 63
        %s584 = smul.addr %s583, 7
        %s585 = smul.addr %s584, 8
        %s586 = scalar_lea.vmem %s0, %s585
        %s587 = smul.u32 32, %s27
      $region100: #{_ae_pallas.1} parent=95 // pred_fallthru
        _
    $region96: #{_ae_pallas.1} parent=5 // pred_fallthru
      _
    %p588 = scmp.le.s32.totalorder 1, %s27
    %p589 = scmp.lt.s32.totalorder %s27, 3
    %p590 = pnand %p588, %p589
    %p591 = pneg %p590
    // Predicated region
    $region101: #{_ae_pallas.1} parent=5 // pred_check
      _
    $region102: #{_ae_pallas.1} parent=5 // pred_check_branch
      %593 = sbr.rel (%p590) target = $region104
    $region103: #{_ae_pallas.1} parent=5 // pred_region
      %s594 = ssub.s32 %s27, 1
      %s595 = smul.u32 32, %s32
      %p596 = scmp.lt.s32.totalorder %s595, 63
      %s597 = scalar_select %p596, %s595, 63
      %s598 = smul.addr %s597, 7
      %s599 = smul.addr %s598, 8
      %s600 = scalar_lea.vmem %s0, %s599
      %p601 = pneg %p53
      %p602 = pneg %p50
      %p603 = pneg %p74
      %p604 = pneg %p71
      %p605 = pneg %p95
      %p606 = pneg %p92
      %p607 = pneg %p116
      %p608 = pneg %p113
      %p609 = pneg %p137
      %p610 = pneg %p134
      %p611 = pneg %p158
      %p612 = pneg %p155
      %p613 = pneg %p179
      %p614 = pneg %p176
      %p615 = pneg %p200
      %p616 = pneg %p197
      %p617 = pneg %p221
      %p618 = pneg %p218
      %p619 = pneg %p242
      %p620 = pneg %p239
      %p621 = pneg %p263
      %p622 = pneg %p260
      %p623 = pneg %p284
      %p624 = pneg %p281
      %p625 = pneg %p305
      %p626 = pneg %p302
      %p627 = pneg %p326
      %p628 = pneg %p323
      %p629 = pneg %p347
      %p630 = pneg %p344
      %p631 = pneg %p368
      %p632 = pneg %p365
      %p633 = pneg %p389
      %p634 = pneg %p386
      %p635 = pneg %p410
      %p636 = pneg %p407
      %p637 = pneg %p431
      %p638 = pneg %p428
      %p639 = pneg %p452
      %p640 = pneg %p449
      %p641 = pneg %p473
      %p642 = pneg %p470
      %p643 = pneg %p499
      %p644 = pneg %p496
      %s645 = smul.u32 32, %s32
      %p646 = scmp.lt.s32.totalorder %s645, 63
      %s647 = scalar_select %p646, %s645, 63
      %s648 = smul.addr %s647, 7
      %s649 = smul.addr %s648, 4
      %s650 = scalar_lea.vmem %s21, %s649
      %s651 = smul.u32 32, %s32
      %p652 = scmp.lt.s32.totalorder %s651, 63
      %s653 = scalar_select %p652, %s651, 63
      %s654 = smul.addr %s653, 7
      %s655 = smul.addr %s654, 8
      %s656 = scalar_lea.vmem %s0, %s655
      %s657 = smul.u32 32, %s32
      %s658 = smul.u32 32, %s32
      %p659 = scmp.lt.s32.totalorder %s658, 63
      %s660 = scalar_select %p659, %s658, 63
      %s661 = smul.addr %s660, 7
      %s662 = smul.addr %s661, 4
      %s663 = scalar_lea.vmem %s21, %s662
      %s664 = smul.u32 32, %s32
      %v666 = vld [vmem:[%s656] sm:$0xff]
      %v667 = vld [vmem:[%s656 + $0x8] sm:$0xff]
      %v668 = vld [vmem:[%s656 + $0x10] sm:$0xff]
      %v669 = vld [vmem:[%s656 + $0x18] sm:$0xff]
      %v670 = vld [vmem:[%s656 + $0x20] sm:$0xff]
      %v671 = vld [vmem:[%s656 + $0x28] sm:$0xff]
      %v672 = vld [vmem:[%s656 + $0x30] sm:$0xff]
      %v673 = vld [vmem:[%s656 + $0x38] sm:$0xff]
      %v674 = vld [vmem:[%s656 + $0x40] sm:$0xff]
      %v675 = vld [vmem:[%s656 + $0x48] sm:$0xff]
      %v676 = vld [vmem:[%s656 + $0x50] sm:$0xff]
      %v677 = vld [vmem:[%s656 + $0x58] sm:$0xff]
      %v678 = vld [vmem:[%s656 + $0x60] sm:$0xff]
      %v679 = vld [vmem:[%s656 + $0x68] sm:$0xff]
      %v680 = vld [vmem:[%s656 + $0x70] sm:$0xff]
      %v681 = vld [vmem:[%s656 + $0x78] sm:$0xff]
      %v682 = vld [vmem:[%s656 + $0x80] sm:$0xff]
      %v683 = vld [vmem:[%s656 + $0x88] sm:$0xff]
      %v684 = vld [vmem:[%s656 + $0x90] sm:$0xff]
      %v685 = vld [vmem:[%s656 + $0x98] sm:$0xff]
      %v686 = vld [vmem:[%s656 + $0xa0] sm:$0xff]
      %v687 = vld [vmem:[%s656 + $0xa8] sm:$0xff]
      %v688 = vld [vmem:[%s656 + $0xb0] sm:$0xff]
      %v689 = vld [vmem:[%s656 + $0xb8] sm:$0xff]
      %v690 = vld [vmem:[%s656 + $0xc0] sm:$0xff]
      %v691 = vld [vmem:[%s656 + $0xc8] sm:$0xff]
      %v692 = vld [vmem:[%s656 + $0xd0] sm:$0xff]
      %v693 = vld [vmem:[%s656 + $0xd8] sm:$0xff]
      %v694 = vld [vmem:[%s656 + $0xe0] sm:$0xff]
      %v695 = vld [vmem:[%s656 + $0xe8] sm:$0xff]
      %v696 = vld [vmem:[%s656 + $0xf0] sm:$0xff]
      %v697 = vld [vmem:[%s656 + $0xf8] sm:$0xff]
      %v698 = vld [vmem:[%s656 + $0x100] sm:$0xff]
      %v699 = vld [vmem:[%s656 + $0x108] sm:$0xff]
      %v700 = vld [vmem:[%s656 + $0x110] sm:$0xff]
      %v701 = vld [vmem:[%s656 + $0x118] sm:$0xff]
      %v702 = vld [vmem:[%s656 + $0x120] sm:$0xff]
      %v703 = vld [vmem:[%s656 + $0x128] sm:$0xff]
      %v704 = vld [vmem:[%s656 + $0x130] sm:$0xff]
      %v705 = vld [vmem:[%s656 + $0x138] sm:$0xff]
      %v706 = vld [vmem:[%s656 + $0x140] sm:$0xff]
      %v707 = vld [vmem:[%s656 + $0x148] sm:$0xff]
      %v708 = vld [vmem:[%s656 + $0x150] sm:$0xff]
      %v709 = vld [vmem:[%s656 + $0x158] sm:$0xff]
      %v710 = vld [vmem:[%s656 + $0x160] sm:$0xff]
      %v711 = vld [vmem:[%s656 + $0x168] sm:$0xff]
      %v712 = vld [vmem:[%s656 + $0x170] sm:$0xff]
      %v713 = vld [vmem:[%s656 + $0x178] sm:$0xff]
      %v714 = vld [vmem:[%s656 + $0x180] sm:$0xff]
      %v715 = vld [vmem:[%s656 + $0x188] sm:$0xff]
      %v716 = vld [vmem:[%s656 + $0x190] sm:$0xff]
      %v717 = vld [vmem:[%s656 + $0x198] sm:$0xff]
      %v718 = vld [vmem:[%s656 + $0x1a0] sm:$0xff]
      %v719 = vld [vmem:[%s656 + $0x1a8] sm:$0xff]
      %v720 = vld [vmem:[%s656 + $0x1b0] sm:$0xff]
      %v721 = vld [vmem:[%s656 + $0x1b8] sm:$0xff]
      %v722 = vld [vmem:[%s656 + $0x1c0] sm:$0xff]
      %v723 = vld [vmem:[%s656 + $0x1c8] sm:$0xff]
      %v724 = vld [vmem:[%s656 + $0x1d0] sm:$0xff]
      %v725 = vld [vmem:[%s656 + $0x1d8] sm:$0xff]
      %v726 = vld [vmem:[%s656 + $0x1e0] sm:$0xff]
      %v727 = vld [vmem:[%s656 + $0x1e8] sm:$0xff]
      %v728 = vld [vmem:[%s656 + $0x1f0] sm:$0xff]
      %v729 = vld [vmem:[%s656 + $0x1f8] sm:$0xff]
      %v730 = vld [vmem:[%s656 + $0x200] sm:$0xff]
      %v731 = vld [vmem:[%s656 + $0x208] sm:$0xff]
      %v732 = vld [vmem:[%s656 + $0x210] sm:$0xff]
      %v733 = vld [vmem:[%s656 + $0x218] sm:$0xff]
      %v734 = vld [vmem:[%s656 + $0x220] sm:$0xff]
      %v735 = vld [vmem:[%s656 + $0x228] sm:$0xff]
      %v736 = vld [vmem:[%s656 + $0x230] sm:$0xff]
      %v737 = vld [vmem:[%s656 + $0x238] sm:$0xff]
      %v738 = vld [vmem:[%s656 + $0x240] sm:$0xff]
      %v739 = vld [vmem:[%s656 + $0x248] sm:$0xff]
      %v740 = vld [vmem:[%s656 + $0x250] sm:$0xff]
      %v741 = vld [vmem:[%s656 + $0x258] sm:$0xff]
      %v742 = vld [vmem:[%s656 + $0x260] sm:$0xff]
      %v743 = vld [vmem:[%s656 + $0x268] sm:$0xff]
      %v744 = vld [vmem:[%s656 + $0x270] sm:$0xff]
      %v745 = vld [vmem:[%s656 + $0x278] sm:$0xff]
      %v746 = vld [vmem:[%s656 + $0x280] sm:$0xff]
      %v747 = vld [vmem:[%s656 + $0x288] sm:$0xff]
      %v748 = vld [vmem:[%s656 + $0x290] sm:$0xff]
      %v749 = vld [vmem:[%s656 + $0x298] sm:$0xff]
      %v750 = vld [vmem:[%s656 + $0x2a0] sm:$0xff]
      %v751 = vld [vmem:[%s656 + $0x2a8] sm:$0xff]
      %v752 = vld [vmem:[%s656 + $0x2b0] sm:$0xff]
      %v753 = vld [vmem:[%s656 + $0x2b8] sm:$0xff]
      %v754 = vld [vmem:[%s656 + $0x2c0] sm:$0xff]
      %v755 = vld [vmem:[%s656 + $0x2c8] sm:$0xff]
      %v756 = vld [vmem:[%s656 + $0x2d0] sm:$0xff]
      %v757 = vld [vmem:[%s656 + $0x2d8] sm:$0xff]
      %v758 = vld [vmem:[%s656 + $0x2e0] sm:$0xff]
      %v759 = vld [vmem:[%s656 + $0x2e8] sm:$0xff]
      %v760 = vld [vmem:[%s656 + $0x2f0] sm:$0xff]
      %v761 = vld [vmem:[%s656 + $0x2f8] sm:$0xff]
      %v762 = vld [vmem:[%s656 + $0x300] sm:$0xff]
      %v763 = vld [vmem:[%s656 + $0x308] sm:$0xff]
      %v764 = vld [vmem:[%s656 + $0x310] sm:$0xff]
      %v765 = vld [vmem:[%s656 + $0x318] sm:$0xff]
      %v766 = vld [vmem:[%s656 + $0x320] sm:$0xff]
      %v767 = vld [vmem:[%s656 + $0x328] sm:$0xff]
      %v768 = vld [vmem:[%s656 + $0x330] sm:$0xff]
      %v769 = vld [vmem:[%s656 + $0x338] sm:$0xff]
      %v770 = vld [vmem:[%s656 + $0x340] sm:$0xff]
      %v771 = vld [vmem:[%s656 + $0x348] sm:$0xff]
      %v772 = vld [vmem:[%s656 + $0x350] sm:$0xff]
      %v773 = vld [vmem:[%s656 + $0x358] sm:$0xff]
      %v774 = vld [vmem:[%s656 + $0x360] sm:$0xff]
      %v775 = vld [vmem:[%s656 + $0x368] sm:$0xff]
      %v776 = vld [vmem:[%s656 + $0x370] sm:$0xff]
      %v777 = vld [vmem:[%s656 + $0x378] sm:$0xff]
      %v778 = vld [vmem:[%s656 + $0x380] sm:$0xff]
      %v779 = vld [vmem:[%s656 + $0x388] sm:$0xff]
      %v780 = vld [vmem:[%s656 + $0x390] sm:$0xff]
      %v781 = vld [vmem:[%s656 + $0x398] sm:$0xff]
      %v782 = vld [vmem:[%s656 + $0x3a0] sm:$0xff]
      %v783 = vld [vmem:[%s656 + $0x3a8] sm:$0xff]
      %v784 = vld [vmem:[%s656 + $0x3b0] sm:$0xff]
      %v785 = vld [vmem:[%s656 + $0x3b8] sm:$0xff]
      %v786 = vld [vmem:[%s656 + $0x3c0] sm:$0xff]
      %v787 = vld [vmem:[%s656 + $0x3c8] sm:$0xff]
      %v788 = vld [vmem:[%s656 + $0x3d0] sm:$0xff]
      %v789 = vld [vmem:[%s656 + $0x3d8] sm:$0xff]
      %v790 = vld [vmem:[%s656 + $0x3e0] sm:$0xff]
      %v791 = vld [vmem:[%s656 + $0x3e8] sm:$0xff]
      %v792 = vld [vmem:[%s656 + $0x3f0] sm:$0xff]
      %v793 = vld [vmem:[%s656 + $0x3f8] sm:$0xff]
      %v794 = vld [vmem:[%s656 + $0x400] sm:$0xff]
      %v795 = vld [vmem:[%s656 + $0x408] sm:$0xff]
      %v796 = vld [vmem:[%s656 + $0x410] sm:$0xff]
      %v797 = vld [vmem:[%s656 + $0x418] sm:$0xff]
      %v798 = vld [vmem:[%s656 + $0x420] sm:$0xff]
      %v799 = vld [vmem:[%s656 + $0x428] sm:$0xff]
      %v800 = vld [vmem:[%s656 + $0x430] sm:$0xff]
      %v801 = vld [vmem:[%s656 + $0x438] sm:$0xff]
      %v802 = vld [vmem:[%s656 + $0x440] sm:$0xff]
      %v803 = vld [vmem:[%s656 + $0x448] sm:$0xff]
      %v804 = vld [vmem:[%s656 + $0x450] sm:$0xff]
      %v805 = vld [vmem:[%s656 + $0x458] sm:$0xff]
      %v806 = vld [vmem:[%s656 + $0x460] sm:$0xff]
      %v807 = vld [vmem:[%s656 + $0x468] sm:$0xff]
      %v808 = vld [vmem:[%s656 + $0x470] sm:$0xff]
      %v809 = vld [vmem:[%s656 + $0x478] sm:$0xff]
      %v810 = vld [vmem:[%s656 + $0x480] sm:$0xff]
      %v811 = vld [vmem:[%s656 + $0x488] sm:$0xff]
      %v812 = vld [vmem:[%s656 + $0x490] sm:$0xff]
      %v813 = vld [vmem:[%s656 + $0x498] sm:$0xff]
      %v814 = vld [vmem:[%s656 + $0x4a0] sm:$0xff]
      %v815 = vld [vmem:[%s656 + $0x4a8] sm:$0xff]
      %v816 = vld [vmem:[%s656 + $0x4b0] sm:$0xff]
      %v817 = vld [vmem:[%s656 + $0x4b8] sm:$0xff]
      %v818 = vld [vmem:[%s656 + $0x4c0] sm:$0xff]
      %v819 = vld [vmem:[%s656 + $0x4c8] sm:$0xff]
      %v820 = vld [vmem:[%s656 + $0x4d0] sm:$0xff]
      %v821 = vld [vmem:[%s656 + $0x4d8] sm:$0xff]
      %v822 = vld [vmem:[%s656 + $0x4e0] sm:$0xff]
      %v823 = vld [vmem:[%s656 + $0x4e8] sm:$0xff]
      %v824 = vld [vmem:[%s656 + $0x4f0] sm:$0xff]
      %v825 = vld [vmem:[%s656 + $0x4f8] sm:$0xff]
      %v826 = vld [vmem:[%s656 + $0x500] sm:$0xff]
      %v827 = vld [vmem:[%s656 + $0x508] sm:$0xff]
      %v828 = vld [vmem:[%s656 + $0x510] sm:$0xff]
      %v829 = vld [vmem:[%s656 + $0x518] sm:$0xff]
      %v830 = vld [vmem:[%s656 + $0x520] sm:$0xff]
      %v831 = vld [vmem:[%s656 + $0x528] sm:$0xff]
      %v832 = vld [vmem:[%s656 + $0x530] sm:$0xff]
      %v833 = vld [vmem:[%s656 + $0x538] sm:$0xff]
      %v834 = vld [vmem:[%s656 + $0x540] sm:$0xff]
      %v835 = vld [vmem:[%s656 + $0x548] sm:$0xff]
      %v836 = vld [vmem:[%s656 + $0x550] sm:$0xff]
      %v837 = vld [vmem:[%s656 + $0x558] sm:$0xff]
      %v838 = vld [vmem:[%s656 + $0x560] sm:$0xff]
      %v839 = vld [vmem:[%s656 + $0x568] sm:$0xff]
      %v840 = vld [vmem:[%s656 + $0x570] sm:$0xff]
      %v841 = vld [vmem:[%s656 + $0x578] sm:$0xff]
      %v842 = vld [vmem:[%s656 + $0x580] sm:$0xff]
      %v843 = vld [vmem:[%s656 + $0x588] sm:$0xff]
      %v844 = vld [vmem:[%s656 + $0x590] sm:$0xff]
      %v845 = vld [vmem:[%s656 + $0x598] sm:$0xff]
      %v846 = vld [vmem:[%s656 + $0x5a0] sm:$0xff]
      %v847 = vld [vmem:[%s656 + $0x5a8] sm:$0xff]
      %v848 = vld [vmem:[%s656 + $0x5b0] sm:$0xff]
      %v849 = vld [vmem:[%s656 + $0x5b8] sm:$0xff]
      %v850 = vld [vmem:[%s656 + $0x5c0] sm:$0xff]
      %v851 = vld [vmem:[%s656 + $0x5c8] sm:$0xff]
      %v852 = vld [vmem:[%s656 + $0x5d0] sm:$0xff]
      %v853 = vld [vmem:[%s656 + $0x5d8] sm:$0xff]
      %v854 = vld [vmem:[%s656 + $0x5e0] sm:$0xff]
      %v855 = vld [vmem:[%s656 + $0x5e8] sm:$0xff]
      %v856 = vld [vmem:[%s656 + $0x5f0] sm:$0xff]
      %v857 = vld [vmem:[%s656 + $0x5f8] sm:$0xff]
      %v858 = vld [vmem:[%s656 + $0x600] sm:$0xff]
      %v859 = vld [vmem:[%s656 + $0x608] sm:$0xff]
      %v860 = vld [vmem:[%s656 + $0x610] sm:$0xff]
      %v861 = vld [vmem:[%s656 + $0x618] sm:$0xff]
      %v862 = vld [vmem:[%s656 + $0x620] sm:$0xff]
      %v863 = vld [vmem:[%s656 + $0x628] sm:$0xff]
      %v864 = vld [vmem:[%s656 + $0x630] sm:$0xff]
      %v865 = vld [vmem:[%s656 + $0x638] sm:$0xff]
      %v866 = vld [vmem:[%s656 + $0x640] sm:$0xff]
      %v867 = vld [vmem:[%s656 + $0x648] sm:$0xff]
      %v868 = vld [vmem:[%s656 + $0x650] sm:$0xff]
      %v869 = vld [vmem:[%s656 + $0x658] sm:$0xff]
      %v870 = vld [vmem:[%s656 + $0x660] sm:$0xff]
      %v871 = vld [vmem:[%s656 + $0x668] sm:$0xff]
      %v872 = vld [vmem:[%s656 + $0x670] sm:$0xff]
      %v873 = vld [vmem:[%s656 + $0x678] sm:$0xff]
      %v874 = vld [vmem:[%s656 + $0x680] sm:$0xff]
      %v875 = vld [vmem:[%s656 + $0x688] sm:$0xff]
      %v876 = vld [vmem:[%s656 + $0x690] sm:$0xff]
      %v877 = vld [vmem:[%s656 + $0x698] sm:$0xff]
      %v878 = vld [vmem:[%s656 + $0x6a0] sm:$0xff]
      %v879 = vld [vmem:[%s656 + $0x6a8] sm:$0xff]
      %v880 = vld [vmem:[%s656 + $0x6b0] sm:$0xff]
      %v881 = vld [vmem:[%s656 + $0x6b8] sm:$0xff]
      %v882 = vld [vmem:[%s656 + $0x6c0] sm:$0xff]
      %v883 = vld [vmem:[%s656 + $0x6c8] sm:$0xff]
      %v884 = vld [vmem:[%s656 + $0x6d0] sm:$0xff]
      %v885 = vld [vmem:[%s656 + $0x6d8] sm:$0xff]
      %v886 = vld [vmem:[%s656 + $0x6e0] sm:$0xff]
      %v887 = vld [vmem:[%s656 + $0x6e8] sm:$0xff]
      %v888 = vld [vmem:[%s656 + $0x6f0] sm:$0xff]
      %v889 = vld [vmem:[%s656 + $0x6f8] sm:$0xff]
      %v890 = vpack.c.bf16 %v673, %v666
      %v891 = vpack.c.bf16 %v674, %v667
      %v892 = vpack.c.bf16 %v675, %v668
      %v893 = vpack.c.bf16 %v676, %v669
      %v894 = vpack.c.bf16 %v677, %v670
      %v895 = vpack.c.bf16 %v678, %v671
      %v896 = vpack.c.bf16 %v679, %v672
      %v897 = vpack.c.bf16 %v687, %v680
      %v898 = vpack.c.bf16 %v688, %v681
      %v899 = vpack.c.bf16 %v689, %v682
      %v900 = vpack.c.bf16 %v690, %v683
      %v901 = vpack.c.bf16 %v691, %v684
      %v902 = vpack.c.bf16 %v692, %v685
      %v903 = vpack.c.bf16 %v693, %v686
      %v904 = vpack.c.bf16 %v701, %v694
      %v905 = vpack.c.bf16 %v702, %v695
      %v906 = vpack.c.bf16 %v703, %v696
      %v907 = vpack.c.bf16 %v704, %v697
      %v908 = vpack.c.bf16 %v705, %v698
      %v909 = vpack.c.bf16 %v706, %v699
      %v910 = vpack.c.bf16 %v707, %v700
      %v911 = vpack.c.bf16 %v715, %v708
      %v912 = vpack.c.bf16 %v716, %v709
      %v913 = vpack.c.bf16 %v717, %v710
      %v914 = vpack.c.bf16 %v718, %v711
      %v915 = vpack.c.bf16 %v719, %v712
      %v916 = vpack.c.bf16 %v720, %v713
      %v917 = vpack.c.bf16 %v721, %v714
      %v918 = vpack.c.bf16 %v729, %v722
      %v919 = vpack.c.bf16 %v730, %v723
      %v920 = vpack.c.bf16 %v731, %v724
      %v921 = vpack.c.bf16 %v732, %v725
      %v922 = vpack.c.bf16 %v733, %v726
      %v923 = vpack.c.bf16 %v734, %v727
      %v924 = vpack.c.bf16 %v735, %v728
      %v925 = vpack.c.bf16 %v743, %v736
      %v926 = vpack.c.bf16 %v744, %v737
      %v927 = vpack.c.bf16 %v745, %v738
      %v928 = vpack.c.bf16 %v746, %v739
      %v929 = vpack.c.bf16 %v747, %v740
      %v930 = vpack.c.bf16 %v748, %v741
      %v931 = vpack.c.bf16 %v749, %v742
      %v932 = vpack.c.bf16 %v757, %v750
      %v933 = vpack.c.bf16 %v758, %v751
      %v934 = vpack.c.bf16 %v759, %v752
      %v935 = vpack.c.bf16 %v760, %v753
      %v936 = vpack.c.bf16 %v761, %v754
      %v937 = vpack.c.bf16 %v762, %v755
      %v938 = vpack.c.bf16 %v763, %v756
      %v939 = vpack.c.bf16 %v771, %v764
      %v940 = vpack.c.bf16 %v772, %v765
      %v941 = vpack.c.bf16 %v773, %v766
      %v942 = vpack.c.bf16 %v774, %v767
      %v943 = vpack.c.bf16 %v775, %v768
      %v944 = vpack.c.bf16 %v776, %v769
      %v945 = vpack.c.bf16 %v777, %v770
      %v946 = vpack.c.bf16 %v785, %v778
      %v947 = vpack.c.bf16 %v786, %v779
      %v948 = vpack.c.bf16 %v787, %v780
      %v949 = vpack.c.bf16 %v788, %v781
      %v950 = vpack.c.bf16 %v789, %v782
      %v951 = vpack.c.bf16 %v790, %v783
      %v952 = vpack.c.bf16 %v791, %v784
      %v953 = vpack.c.bf16 %v799, %v792
      %v954 = vpack.c.bf16 %v800, %v793
      %v955 = vpack.c.bf16 %v801, %v794
      %v956 = vpack.c.bf16 %v802, %v795
      %v957 = vpack.c.bf16 %v803, %v796
      %v958 = vpack.c.bf16 %v804, %v797
      %v959 = vpack.c.bf16 %v805, %v798
      %v960 = vpack.c.bf16 %v813, %v806
      %v961 = vpack.c.bf16 %v814, %v807
      %v962 = vpack.c.bf16 %v815, %v808
      %v963 = vpack.c.bf16 %v816, %v809
      %v964 = vpack.c.bf16 %v817, %v810
      %v965 = vpack.c.bf16 %v818, %v811
      %v966 = vpack.c.bf16 %v819, %v812
      %v967 = vpack.c.bf16 %v827, %v820
      %v968 = vpack.c.bf16 %v828, %v821
      %v969 = vpack.c.bf16 %v829, %v822
      %v970 = vpack.c.bf16 %v830, %v823
      %v971 = vpack.c.bf16 %v831, %v824
      %v972 = vpack.c.bf16 %v832, %v825
      %v973 = vpack.c.bf16 %v833, %v826
      %v974 = vpack.c.bf16 %v841, %v834
      %v975 = vpack.c.bf16 %v842, %v835
      %v976 = vpack.c.bf16 %v843, %v836
      %v977 = vpack.c.bf16 %v844, %v837
      %v978 = vpack.c.bf16 %v845, %v838
      %v979 = vpack.c.bf16 %v846, %v839
      %v980 = vpack.c.bf16 %v847, %v840
      %v981 = vpack.c.bf16 %v855, %v848
      %v982 = vpack.c.bf16 %v856, %v849
      %v983 = vpack.c.bf16 %v857, %v850
      %v984 = vpack.c.bf16 %v858, %v851
      %v985 = vpack.c.bf16 %v859, %v852
      %v986 = vpack.c.bf16 %v860, %v853
      %v987 = vpack.c.bf16 %v861, %v854
      %v988 = vpack.c.bf16 %v869, %v862
      %v989 = vpack.c.bf16 %v870, %v863
      %v990 = vpack.c.bf16 %v871, %v864
      %v991 = vpack.c.bf16 %v872, %v865
      %v992 = vpack.c.bf16 %v873, %v866
      %v993 = vpack.c.bf16 %v874, %v867
      %v994 = vpack.c.bf16 %v875, %v868
      %v995 = vpack.c.bf16 %v883, %v876
      %v996 = vpack.c.bf16 %v884, %v877
      %v997 = vpack.c.bf16 %v885, %v878
      %v998 = vpack.c.bf16 %v886, %v879
      %v999 = vpack.c.bf16 %v887, %v880
      %v1000 = vpack.c.bf16 %v888, %v881
      %v1001 = vpack.c.bf16 %v889, %v882
      %v1002 = vld [vmem:[%s1] sm:$0xf]
      %v1003 = vld [vmem:[%s1 + $0x4] sm:$0xf]
      %v1004 = vld [vmem:[%s1 + $0x8] sm:$0xf]
      %v1005 = vld [vmem:[%s1 + $0xc] sm:$0xf]
      %v1006 = vld [vmem:[%s1 + $0x10] sm:$0xf]
      %v1007 = vld [vmem:[%s1 + $0x14] sm:$0xf]
      %v1008 = vld [vmem:[%s1 + $0x18] sm:$0xf]
      %v1009 = vld [vmem:[%s1 + $0x1c] sm:$0xf]
      %v1010 = vld [vmem:[%s1 + $0x20] sm:$0xf]
      %v1011 = vld [vmem:[%s1 + $0x24] sm:$0xf]
      %v1012 = vld [vmem:[%s1 + $0x28] sm:$0xf]
      %v1013 = vld [vmem:[%s1 + $0x2c] sm:$0xf]
      %v1014 = vld [vmem:[%s1 + $0x30] sm:$0xf]
      %v1015 = vld [vmem:[%s1 + $0x34] sm:$0xf]
      %v1016 = vld [vmem:[%s1 + $0x38] sm:$0xf]
      %v1017 = vld [vmem:[%s1 + $0x3c] sm:$0xf]
      %v1018 = vld [vmem:[%s1 + $0x40] sm:$0xf]
      %v1019 = vld [vmem:[%s1 + $0x44] sm:$0xf]
      %v1020 = vld [vmem:[%s1 + $0x48] sm:$0xf]
      %v1021 = vld [vmem:[%s1 + $0x4c] sm:$0xf]
      %v1022 = vld [vmem:[%s1 + $0x50] sm:$0xf]
      %v1023 = vld [vmem:[%s1 + $0x54] sm:$0xf]
      %v1024 = vld [vmem:[%s1 + $0x58] sm:$0xf]
      %v1025 = vld [vmem:[%s1 + $0x5c] sm:$0xf]
      %v1026 = vld [vmem:[%s1 + $0x60] sm:$0xf]
      %v1027 = vld [vmem:[%s1 + $0x64] sm:$0xf]
      %v1028 = vld [vmem:[%s1 + $0x68] sm:$0xf]
      %v1029 = vld [vmem:[%s1 + $0x6c] sm:$0xf]
      %v1030 = vld [vmem:[%s1 + $0x70] sm:$0xf]
      %v1031 = vld [vmem:[%s1 + $0x74] sm:$0xf]
      %v1032 = vld [vmem:[%s1 + $0x78] sm:$0xf]
      %v1033 = vld [vmem:[%s1 + $0x7c] sm:$0xf]
      %v1034 = vld [vmem:[%s1 + $0x80] sm:$0xf]
      %v1035 = vld [vmem:[%s1 + $0x84] sm:$0xf]
      %v1036 = vld [vmem:[%s1 + $0x88] sm:$0xf]
      %v1037 = vld [vmem:[%s1 + $0x8c] sm:$0xf]
      %v1038 = vld [vmem:[%s1 + $0x90] sm:$0xf]
      %v1039 = vld [vmem:[%s1 + $0x94] sm:$0xf]
      %v1040 = vld [vmem:[%s1 + $0x98] sm:$0xf]
      %v1041 = vld [vmem:[%s1 + $0x9c] sm:$0xf]
      %v1042 = vld [vmem:[%s1 + $0xa0] sm:$0xf]
      %v1043 = vld [vmem:[%s1 + $0xa4] sm:$0xf]
      %v1044 = vld [vmem:[%s1 + $0xa8] sm:$0xf]
      %v1045 = vld [vmem:[%s1 + $0xac] sm:$0xf]
      %v1046 = vld [vmem:[%s1 + $0xb0] sm:$0xf]
      %v1047 = vld [vmem:[%s1 + $0xb4] sm:$0xf]
      %v1048 = vld [vmem:[%s1 + $0xb8] sm:$0xf]
      %v1049 = vld [vmem:[%s1 + $0xbc] sm:$0xf]
      %v1050 = vld [vmem:[%s1 + $0xc0] sm:$0xf]
      %v1051 = vld [vmem:[%s1 + $0xc4] sm:$0xf]
      %v1052 = vld [vmem:[%s1 + $0xc8] sm:$0xf]
      %v1053 = vld [vmem:[%s1 + $0xcc] sm:$0xf]
      %v1054 = vld [vmem:[%s1 + $0xd0] sm:$0xf]
      %v1055 = vld [vmem:[%s1 + $0xd4] sm:$0xf]
      %v1056 = vld [vmem:[%s1 + $0xd8] sm:$0xf]
      %v1057 = vld [vmem:[%s1 + $0xdc] sm:$0xf]
      %v1058 = vld [vmem:[%s1 + $0xe0] sm:$0xf]
      %v1059 = vld [vmem:[%s1 + $0xe4] sm:$0xf]
      %v1060 = vld [vmem:[%s1 + $0xe8] sm:$0xf]
      %v1061 = vld [vmem:[%s1 + $0xec] sm:$0xf]
      %v1062 = vld [vmem:[%s1 + $0xf0] sm:$0xf]
      %v1063 = vld [vmem:[%s1 + $0xf4] sm:$0xf]
      %v1064 = vld [vmem:[%s1 + $0xf8] sm:$0xf]
      %v1065 = vld [vmem:[%s1 + $0xfc] sm:$0xf]
      %v1066 = vld [vmem:[%s1 + $0x100] sm:$0xf]
      %v1067 = vld [vmem:[%s1 + $0x104] sm:$0xf]
      %v1068 = vld [vmem:[%s1 + $0x108] sm:$0xf]
      %v1069 = vld [vmem:[%s1 + $0x10c] sm:$0xf]
      %v1070 = vld [vmem:[%s1 + $0x110] sm:$0xf]
      %v1071 = vld [vmem:[%s1 + $0x114] sm:$0xf]
      %v1072 = vld [vmem:[%s1 + $0x118] sm:$0xf]
      %v1073 = vld [vmem:[%s1 + $0x11c] sm:$0xf]
      %v1074 = vld [vmem:[%s1 + $0x120] sm:$0xf]
      %v1075 = vld [vmem:[%s1 + $0x124] sm:$0xf]
      %v1076 = vld [vmem:[%s1 + $0x128] sm:$0xf]
      %v1077 = vld [vmem:[%s1 + $0x12c] sm:$0xf]
      %v1078 = vld [vmem:[%s1 + $0x130] sm:$0xf]
      %v1079 = vld [vmem:[%s1 + $0x134] sm:$0xf]
      %v1080 = vld [vmem:[%s1 + $0x138] sm:$0xf]
      %v1081 = vld [vmem:[%s1 + $0x13c] sm:$0xf]
      %v1082 = vld [vmem:[%s1 + $0x140] sm:$0xf]
      %v1083 = vld [vmem:[%s1 + $0x144] sm:$0xf]
      %v1084 = vld [vmem:[%s1 + $0x148] sm:$0xf]
      %v1085 = vld [vmem:[%s1 + $0x14c] sm:$0xf]
      %v1086 = vld [vmem:[%s1 + $0x150] sm:$0xf]
      %v1087 = vld [vmem:[%s1 + $0x154] sm:$0xf]
      %v1088 = vld [vmem:[%s1 + $0x158] sm:$0xf]
      %v1089 = vld [vmem:[%s1 + $0x15c] sm:$0xf]
      %v1090 = vld [vmem:[%s1 + $0x160] sm:$0xf]
      %v1091 = vld [vmem:[%s1 + $0x164] sm:$0xf]
      %v1092 = vld [vmem:[%s1 + $0x168] sm:$0xf]
      %v1093 = vld [vmem:[%s1 + $0x16c] sm:$0xf]
      %v1094 = vld [vmem:[%s1 + $0x170] sm:$0xf]
      %v1095 = vld [vmem:[%s1 + $0x174] sm:$0xf]
      %v1096 = vld [vmem:[%s1 + $0x178] sm:$0xf]
      %v1097 = vld [vmem:[%s1 + $0x17c] sm:$0xf]
      %v1098 = vld [vmem:[%s1 + $0x180] sm:$0xf]
      %v1099 = vld [vmem:[%s1 + $0x184] sm:$0xf]
      %v1100 = vld [vmem:[%s2] sm:$0x1]
      %v1102 = vlaneseq
      %v1103 = vshrl.u32 %v1102, 7
      %v1104 = vsub.s32 0, %v1103
      %v1105 = vrot.slane %v1100, %v1104
      %v1205 = vunpack.c.l.b16 %v1002
      %v1206 = vunpack.c.l.b16 %v1003
      %v1207 = vunpack.c.l.b16 %v1004
      %v1208 = vunpack.c.l.b16 %v1005
      %v1209 = vunpack.c.l.b16 %v1006
      %v1210 = vunpack.c.l.b16 %v1007
      %v1211 = vunpack.c.l.b16 %v1008
      %v1212 = vunpack.c.l.b16 %v1009
      %v1213 = vunpack.c.l.b16 %v1010
      %v1214 = vunpack.c.l.b16 %v1011
      %v1215 = vunpack.c.l.b16 %v1012
      %v1216 = vunpack.c.l.b16 %v1013
      %v1217 = vunpack.c.l.b16 %v1014
      %v1218 = vunpack.c.l.b16 %v1015
      %v1219 = vunpack.c.l.b16 %v1016
      %v1220 = vunpack.c.l.b16 %v1017
      %v1221 = vunpack.c.l.b16 %v1018
      %v1222 = vunpack.c.l.b16 %v1019
      %v1223 = vunpack.c.l.b16 %v1020
      %v1224 = vunpack.c.l.b16 %v1021
      %v1225 = vunpack.c.l.b16 %v1022
      %v1226 = vunpack.c.l.b16 %v1023
      %v1227 = vunpack.c.l.b16 %v1024
      %v1228 = vunpack.c.l.b16 %v1025
      %v1229 = vunpack.c.l.b16 %v1026
      %v1230 = vunpack.c.l.b16 %v1027
      %v1231 = vunpack.c.l.b16 %v1028
      %v1232 = vunpack.c.l.b16 %v1029
      %v1233 = vunpack.c.l.b16 %v1030
      %v1234 = vunpack.c.l.b16 %v1031
      %v1235 = vunpack.c.l.b16 %v1032
      %v1236 = vunpack.c.l.b16 %v1033
      %v1237 = vunpack.c.l.b16 %v1034
      %v1238 = vunpack.c.l.b16 %v1035
      %v1239 = vunpack.c.l.b16 %v1036
      %v1240 = vunpack.c.l.b16 %v1037
      %v1241 = vunpack.c.l.b16 %v1038
      %v1242 = vunpack.c.l.b16 %v1039
      %v1243 = vunpack.c.l.b16 %v1040
      %v1244 = vunpack.c.l.b16 %v1041
      %v1245 = vunpack.c.l.b16 %v1042
      %v1246 = vunpack.c.l.b16 %v1043
      %v1247 = vunpack.c.l.b16 %v1044
      %v1248 = vunpack.c.l.b16 %v1045
      %v1249 = vunpack.c.l.b16 %v1046
      %v1250 = vunpack.c.l.b16 %v1047
      %v1251 = vunpack.c.l.b16 %v1048
      %v1252 = vunpack.c.l.b16 %v1049
      %v1253 = vunpack.c.l.b16 %v1050
      %v1254 = vunpack.c.l.b16 %v1051
      %v1255 = vunpack.c.l.b16 %v1052
      %v1256 = vunpack.c.l.b16 %v1053
      %v1257 = vunpack.c.l.b16 %v1054
      %v1258 = vunpack.c.l.b16 %v1055
      %v1259 = vunpack.c.l.b16 %v1056
      %v1260 = vunpack.c.l.b16 %v1057
      %v1261 = vunpack.c.l.b16 %v1058
      %v1262 = vunpack.c.l.b16 %v1059
      %v1263 = vunpack.c.l.b16 %v1060
      %v1264 = vunpack.c.l.b16 %v1061
      %v1265 = vunpack.c.l.b16 %v1062
      %v1266 = vunpack.c.l.b16 %v1063
      %v1267 = vunpack.c.l.b16 %v1064
      %v1268 = vunpack.c.l.b16 %v1065
      %v1269 = vunpack.c.l.b16 %v1066
      %v1270 = vunpack.c.l.b16 %v1067
      %v1271 = vunpack.c.l.b16 %v1068
      %v1272 = vunpack.c.l.b16 %v1069
      %v1273 = vunpack.c.l.b16 %v1070
      %v1274 = vunpack.c.l.b16 %v1071
      %v1275 = vunpack.c.l.b16 %v1072
      %v1276 = vunpack.c.l.b16 %v1073
      %v1277 = vunpack.c.l.b16 %v1074
      %v1278 = vunpack.c.l.b16 %v1075
      %v1279 = vunpack.c.l.b16 %v1076
      %v1280 = vunpack.c.l.b16 %v1077
      %v1281 = vunpack.c.l.b16 %v1078
      %v1282 = vunpack.c.l.b16 %v1079
      %v1283 = vunpack.c.l.b16 %v1080
      %v1284 = vunpack.c.l.b16 %v1081
      %v1285 = vunpack.c.l.b16 %v1082
      %v1286 = vunpack.c.l.b16 %v1083
      %v1287 = vunpack.c.l.b16 %v1084
      %v1288 = vunpack.c.l.b16 %v1085
      %v1289 = vunpack.c.l.b16 %v1086
      %v1290 = vunpack.c.l.b16 %v1087
      %v1291 = vunpack.c.l.b16 %v1088
      %v1292 = vunpack.c.l.b16 %v1089
      %v1293 = vunpack.c.l.b16 %v1090
      %v1294 = vunpack.c.l.b16 %v1091
      %v1295 = vunpack.c.l.b16 %v1092
      %v1296 = vunpack.c.l.b16 %v1093
      %v1297 = vunpack.c.l.b16 %v1094
      %v1298 = vunpack.c.l.b16 %v1095
      %v1299 = vunpack.c.l.b16 %v1096
      %v1300 = vunpack.c.l.b16 %v1097
      %v1301 = vunpack.c.l.b16 %v1098
      %v1302 = vunpack.c.l.b16 %v1099
      %v1303 = vpack.c.b16 %v1206, %v1205
      %v1304 = vpack.c.b16 %v1208, %v1207
      %v1305 = vpack.c.b16 %v1210, %v1209
      %v1306 = vpack.c.b16 %v1212, %v1211
      %v1307 = vpack.c.b16 %v1214, %v1213
      %v1308 = vpack.c.b16 %v1216, %v1215
      %v1309 = vpack.c.b16 %v1218, %v1217
      %v1310 = vpack.c.b16 %v1220, %v1219
      %v1311 = vpack.c.b16 %v1222, %v1221
      %v1312 = vpack.c.b16 %v1224, %v1223
      %v1313 = vpack.c.b16 %v1226, %v1225
      %v1314 = vpack.c.b16 %v1228, %v1227
      %v1315 = vpack.c.b16 %v1230, %v1229
      %v1316 = vpack.c.b16 %v1232, %v1231
      %v1317 = vpack.c.b16 %v1234, %v1233
      %v1318 = vpack.c.b16 %v1236, %v1235
      %v1319 = vpack.c.b16 %v1238, %v1237
      %v1320 = vpack.c.b16 %v1240, %v1239
      %v1321 = vpack.c.b16 %v1242, %v1241
      %v1322 = vpack.c.b16 %v1244, %v1243
      %v1323 = vpack.c.b16 %v1246, %v1245
      %v1324 = vpack.c.b16 %v1248, %v1247
      %v1325 = vpack.c.b16 %v1250, %v1249
      %v1326 = vpack.c.b16 %v1252, %v1251
      %v1327 = vpack.c.b16 %v1254, %v1253
      %v1328 = vpack.c.b16 %v1256, %v1255
      %v1329 = vpack.c.b16 %v1258, %v1257
      %v1330 = vpack.c.b16 %v1260, %v1259
      %v1331 = vpack.c.b16 %v1262, %v1261
      %v1332 = vpack.c.b16 %v1264, %v1263
      %v1333 = vpack.c.b16 %v1266, %v1265
      %v1334 = vpack.c.b16 %v1268, %v1267
      %v1335 = vpack.c.b16 %v1270, %v1269
      %v1336 = vpack.c.b16 %v1272, %v1271
      %v1337 = vpack.c.b16 %v1274, %v1273
      %v1338 = vpack.c.b16 %v1276, %v1275
      %v1339 = vpack.c.b16 %v1278, %v1277
      %v1340 = vpack.c.b16 %v1280, %v1279
      %v1341 = vpack.c.b16 %v1282, %v1281
      %v1342 = vpack.c.b16 %v1284, %v1283
      %v1343 = vpack.c.b16 %v1286, %v1285
      %v1344 = vpack.c.b16 %v1288, %v1287
      %v1345 = vpack.c.b16 %v1290, %v1289
      %v1346 = vpack.c.b16 %v1292, %v1291
      %v1347 = vpack.c.b16 %v1294, %v1293
      %v1348 = vpack.c.b16 %v1296, %v1295
      %v1349 = vpack.c.b16 %v1298, %v1297
      %v1350 = vpack.c.b16 %v1300, %v1299
      %v1351 = vpack.c.b16 %v1302, %v1301
      %vm1401 = vcmask 130048
      %v1403 = vsel %vm1401, %v896, 0
      %v1406 = vsel %vm1401, %v903, 0
      %v1409 = vsel %vm1401, %v910, 0
      %v1412 = vsel %vm1401, %v917, 0
      %v1415 = vsel %vm1401, %v924, 0
      %v1418 = vsel %vm1401, %v931, 0
      %v1421 = vsel %vm1401, %v938, 0
      %v1424 = vsel %vm1401, %v945, 0
      %v1427 = vsel %vm1401, %v952, 0
      %v1430 = vsel %vm1401, %v959, 0
      %v1433 = vsel %vm1401, %v966, 0
      %v1436 = vsel %vm1401, %v973, 0
      %v1439 = vsel %vm1401, %v980, 0
      %v1442 = vsel %vm1401, %v987, 0
      %v1445 = vsel %vm1401, %v994, 0
      %v1448 = vsel %vm1401, %v1001, 0
      %1450 = vmatprep.subr.bf16.mxu0 0
      %1451 = vmatpush1.bf16.msra.mxu0 %v1310
      %1452 = vmatprep.subr.bf16.mxu0 0
      %1453 = vmatpush1.bf16.msra.mxu0 %v1309
      %1454 = vmatprep.subr.bf16.mxu0 0
      %1455 = vmatpush1.bf16.msra.mxu0 %v1308
      %1456 = vmatprep.subr.bf16.mxu0 0
      %1457 = vmatpush1.bf16.msra.mxu0 %v1307
      %1458 = vmatprep.subr.bf16.mxu0 0
      %1459 = vmatpush1.bf16.msra.mxu0 %v1306
      %1460 = vmatprep.subr.bf16.mxu0 0
      %1461 = vmatpush1.bf16.msra.mxu0 %v1305
      %1462 = vmatprep.subr.bf16.mxu0 0
      %1463 = vmatpush1.bf16.msra.mxu0 %v1304
      %1464 = vmatprep.subr.bf16.mxu0 0
      %1465 = vmatpush1.bf16.msra.mxu0 %v1303
      %1466 = vmatprep.subr.bf16.mxu0 0
      %1467 = vmatpush2.bf16.msra.mxu0 %v1318
      %1468 = vmatprep.subr.bf16.mxu0 0
      %1469 = vmatpush2.bf16.msra.mxu0 %v1317
      %1470 = vmatprep.subr.bf16.mxu0 0
      %1471 = vmatpush2.bf16.msra.mxu0 %v1316
      %1472 = vmatprep.subr.bf16.mxu0 0
      %1473 = vmatpush2.bf16.msra.mxu0 %v1315
      %1474 = vmatprep.subr.bf16.mxu0 0
      %1475 = vmatpush2.bf16.msra.mxu0 %v1314
      %1476 = vmatprep.subr.bf16.mxu0 0
      %1477 = vmatpush2.bf16.msra.mxu0 %v1313
      %1478 = vmatprep.subr.bf16.mxu0 0
      %1479 = vmatpush2.bf16.msra.mxu0 %v1312
      %1480 = vmatprep.subr.bf16.mxu0 0
      %1481 = vmatpush2.bf16.msra.mxu0 %v1311
      %1482 = vmatprep.mubr.bf16.mxu0 %v891
      %1483 = vmatmul.mubr.bf16.gmra.mxu0 %v890
      %v1484 = vpop.f32.mrf.mxu0
      %v1485 = vadd.f32 %v1105, %v1484
      %v1486 = vpop.f32.mrf.mxu0
      %v1487 = vpop.f32.mrf.mxu0
      %v1488 = vadd.f32 %v1105, %v1487
      %v1489 = vpop.f32.mrf.mxu0
      %1490 = vmatprep.mubr.bf16.mxu0 %v898
      %1491 = vmatmul.mubr.bf16.gmra.mxu0 %v897
      %v1492 = vpop.f32.mrf.mxu0
      %v1493 = vadd.f32 %v1105, %v1492
      %v1494 = vpop.f32.mrf.mxu0
      %v1495 = vpop.f32.mrf.mxu0
      %v1496 = vadd.f32 %v1105, %v1495
      %v1497 = vpop.f32.mrf.mxu0
      %1498 = vmatprep.mubr.bf16.mxu0 %v905
      %1499 = vmatmul.mubr.bf16.gmra.mxu0 %v904
      %v1500 = vpop.f32.mrf.mxu0
      %v1501 = vadd.f32 %v1105, %v1500
      %v1502 = vpop.f32.mrf.mxu0
      %v1503 = vpop.f32.mrf.mxu0
      %v1504 = vadd.f32 %v1105, %v1503
      %v1505 = vpop.f32.mrf.mxu0
      %1506 = vmatprep.mubr.bf16.mxu0 %v912
      %1507 = vmatmul.mubr.bf16.gmra.mxu0 %v911
      %v1508 = vpop.f32.mrf.mxu0
      %v1509 = vadd.f32 %v1105, %v1508
      %v1510 = vpop.f32.mrf.mxu0
      %v1511 = vpop.f32.mrf.mxu0
      %v1512 = vadd.f32 %v1105, %v1511
      %v1513 = vpop.f32.mrf.mxu0
      %1514 = vmatprep.mubr.bf16.mxu0 %v919
      %1515 = vmatmul.mubr.bf16.gmra.mxu0 %v918
      %v1516 = vpop.f32.mrf.mxu0
      %v1517 = vadd.f32 %v1105, %v1516
      %v1518 = vpop.f32.mrf.mxu0
      %v1519 = vpop.f32.mrf.mxu0
      %v1520 = vadd.f32 %v1105, %v1519
      %v1521 = vpop.f32.mrf.mxu0
      %1522 = vmatprep.mubr.bf16.mxu0 %v926
      %1523 = vmatmul.mubr.bf16.gmra.mxu0 %v925
      %v1524 = vpop.f32.mrf.mxu0
      %v1525 = vadd.f32 %v1105, %v1524
      %v1526 = vpop.f32.mrf.mxu0
      %v1527 = vpop.f32.mrf.mxu0
      %v1528 = vadd.f32 %v1105, %v1527
      %v1529 = vpop.f32.mrf.mxu0
      %1530 = vmatprep.mubr.bf16.mxu0 %v933
      %1531 = vmatmul.mubr.bf16.gmra.mxu0 %v932
      %v1532 = vpop.f32.mrf.mxu0
      %v1533 = vadd.f32 %v1105, %v1532
      %v1534 = vpop.f32.mrf.mxu0
      %v1535 = vpop.f32.mrf.mxu0
      %v1536 = vadd.f32 %v1105, %v1535
      %v1537 = vpop.f32.mrf.mxu0
      %1538 = vmatprep.mubr.bf16.mxu0 %v940
      %1539 = vmatmul.mubr.bf16.gmra.mxu0 %v939
      %v1540 = vpop.f32.mrf.mxu0
      %v1541 = vadd.f32 %v1105, %v1540
      %v1542 = vpop.f32.mrf.mxu0
      %v1543 = vpop.f32.mrf.mxu0
      %v1544 = vadd.f32 %v1105, %v1543
      %v1545 = vpop.f32.mrf.mxu0
      %1546 = vmatprep.mubr.bf16.mxu0 %v947
      %1547 = vmatmul.mubr.bf16.gmra.mxu0 %v946
      %v1548 = vpop.f32.mrf.mxu0
      %v1549 = vadd.f32 %v1105, %v1548
      %v1550 = vpop.f32.mrf.mxu0
      %v1551 = vpop.f32.mrf.mxu0
      %v1552 = vadd.f32 %v1105, %v1551
      %v1553 = vpop.f32.mrf.mxu0
      %1554 = vmatprep.mubr.bf16.mxu0 %v954
      %1555 = vmatmul.mubr.bf16.gmra.mxu0 %v953
      %v1556 = vpop.f32.mrf.mxu0
      %v1557 = vadd.f32 %v1105, %v1556
      %v1558 = vpop.f32.mrf.mxu0
      %v1559 = vpop.f32.mrf.mxu0
      %v1560 = vadd.f32 %v1105, %v1559
      %v1561 = vpop.f32.mrf.mxu0
      %1562 = vmatprep.mubr.bf16.mxu0 %v961
      %1563 = vmatmul.mubr.bf16.gmra.mxu0 %v960
      %v1564 = vpop.f32.mrf.mxu0
      %v1565 = vadd.f32 %v1105, %v1564
      %v1566 = vpop.f32.mrf.mxu0
      %v1567 = vpop.f32.mrf.mxu0
      %v1568 = vadd.f32 %v1105, %v1567
      %v1569 = vpop.f32.mrf.mxu0
      %1570 = vmatprep.mubr.bf16.mxu0 %v968
      %1571 = vmatmul.mubr.bf16.gmra.mxu0 %v967
      %v1572 = vpop.f32.mrf.mxu0
      %v1573 = vadd.f32 %v1105, %v1572
      %v1574 = vpop.f32.mrf.mxu0
      %v1575 = vpop.f32.mrf.mxu0
      %v1576 = vadd.f32 %v1105, %v1575
      %v1577 = vpop.f32.mrf.mxu0
      %1578 = vmatprep.mubr.bf16.mxu0 %v975
      %1579 = vmatmul.mubr.bf16.gmra.mxu0 %v974
      %v1580 = vpop.f32.mrf.mxu0
      %v1581 = vadd.f32 %v1105, %v1580
      %v1582 = vpop.f32.mrf.mxu0
      %v1583 = vpop.f32.mrf.mxu0
      %v1584 = vadd.f32 %v1105, %v1583
      %v1585 = vpop.f32.mrf.mxu0
      %1586 = vmatprep.mubr.bf16.mxu0 %v982
      %1587 = vmatmul.mubr.bf16.gmra.mxu0 %v981
      %v1588 = vpop.f32.mrf.mxu0
      %v1589 = vadd.f32 %v1105, %v1588
      %v1590 = vpop.f32.mrf.mxu0
      %v1591 = vpop.f32.mrf.mxu0
      %v1592 = vadd.f32 %v1105, %v1591
      %v1593 = vpop.f32.mrf.mxu0
      %1594 = vmatprep.mubr.bf16.mxu0 %v989
      %1595 = vmatmul.mubr.bf16.gmra.mxu0 %v988
      %v1596 = vpop.f32.mrf.mxu0
      %v1597 = vadd.f32 %v1105, %v1596
      %v1598 = vpop.f32.mrf.mxu0
      %v1599 = vpop.f32.mrf.mxu0
      %v1600 = vadd.f32 %v1105, %v1599
      %v1601 = vpop.f32.mrf.mxu0
      %1602 = vmatprep.mubr.bf16.mxu0 %v996
      %1603 = vmatmul.mubr.bf16.gmra.mxu0 %v995
      %v1604 = vpop.f32.mrf.mxu0
      %v1605 = vadd.f32 %v1105, %v1604
      %v1606 = vpop.f32.mrf.mxu0
      %v1607 = vpop.f32.mrf.mxu0
      %v1608 = vadd.f32 %v1105, %v1607
      %v1609 = vpop.f32.mrf.mxu0
      %1610 = vdwg.mxu0
      %1611 = vmatprep.subr.bf16.mxu0 0
      %1612 = vmatpush1.bf16.msra.mxu0 %v1326
      %1613 = vmatprep.subr.bf16.mxu0 0
      %1614 = vmatpush1.bf16.msra.mxu0 %v1325
      %1615 = vmatprep.subr.bf16.mxu0 0
      %1616 = vmatpush1.bf16.msra.mxu0 %v1324
      %1617 = vmatprep.subr.bf16.mxu0 0
      %1618 = vmatpush1.bf16.msra.mxu0 %v1323
      %1619 = vmatprep.subr.bf16.mxu0 0
      %1620 = vmatpush1.bf16.msra.mxu0 %v1322
      %1621 = vmatprep.subr.bf16.mxu0 0
      %1622 = vmatpush1.bf16.msra.mxu0 %v1321
      %1623 = vmatprep.subr.bf16.mxu0 0
      %1624 = vmatpush1.bf16.msra.mxu0 %v1320
      %1625 = vmatprep.subr.bf16.mxu0 0
      %1626 = vmatpush1.bf16.msra.mxu0 %v1319
      %1627 = vmatprep.subr.bf16.mxu0 0
      %1628 = vmatpush2.bf16.msra.mxu0 %v1334
      %1629 = vmatprep.subr.bf16.mxu0 0
      %1630 = vmatpush2.bf16.msra.mxu0 %v1333
      %1631 = vmatprep.subr.bf16.mxu0 0
      %1632 = vmatpush2.bf16.msra.mxu0 %v1332
      %1633 = vmatprep.subr.bf16.mxu0 0
      %1634 = vmatpush2.bf16.msra.mxu0 %v1331
      %1635 = vmatprep.subr.bf16.mxu0 0
      %1636 = vmatpush2.bf16.msra.mxu0 %v1330
      %1637 = vmatprep.subr.bf16.mxu0 0
      %1638 = vmatpush2.bf16.msra.mxu0 %v1329
      %1639 = vmatprep.subr.bf16.mxu0 0
      %1640 = vmatpush2.bf16.msra.mxu0 %v1328
      %1641 = vmatprep.subr.bf16.mxu0 0
      %1642 = vmatpush2.bf16.msra.mxu0 %v1327
      %1643 = vmatprep.mubr.bf16.mxu0 %v893
      %1644 = vmatmul.mubr.bf16.gmra.mxu0 %v892
      %v1645 = vpop.f32.mrf.mxu0
      %v1646 = vadd.f32 %v1485, %v1645
      %v1647 = vpop.f32.mrf.mxu0
      %v1648 = vpop.f32.mrf.mxu0
      %v1649 = vadd.f32 %v1488, %v1648
      %v1650 = vpop.f32.mrf.mxu0
      %1651 = vmatprep.mubr.bf16.mxu0 %v900
      %1652 = vmatmul.mubr.bf16.gmra.mxu0 %v899
      %v1653 = vpop.f32.mrf.mxu0
      %v1654 = vadd.f32 %v1493, %v1653
      %v1655 = vpop.f32.mrf.mxu0
      %v1656 = vpop.f32.mrf.mxu0
      %v1657 = vadd.f32 %v1496, %v1656
      %v1658 = vpop.f32.mrf.mxu0
      %1659 = vmatprep.mubr.bf16.mxu0 %v907
      %1660 = vmatmul.mubr.bf16.gmra.mxu0 %v906
      %v1661 = vpop.f32.mrf.mxu0
      %v1662 = vadd.f32 %v1501, %v1661
      %v1663 = vpop.f32.mrf.mxu0
      %v1664 = vpop.f32.mrf.mxu0
      %v1665 = vadd.f32 %v1504, %v1664
      %v1666 = vpop.f32.mrf.mxu0
      %1667 = vmatprep.mubr.bf16.mxu0 %v914
      %1668 = vmatmul.mubr.bf16.gmra.mxu0 %v913
      %v1669 = vpop.f32.mrf.mxu0
      %v1670 = vadd.f32 %v1509, %v1669
      %v1671 = vpop.f32.mrf.mxu0
      %v1672 = vpop.f32.mrf.mxu0
      %v1673 = vadd.f32 %v1512, %v1672
      %v1674 = vpop.f32.mrf.mxu0
      %1675 = vmatprep.mubr.bf16.mxu0 %v921
      %1676 = vmatmul.mubr.bf16.gmra.mxu0 %v920
      %v1677 = vpop.f32.mrf.mxu0
      %v1678 = vadd.f32 %v1517, %v1677
      %v1679 = vpop.f32.mrf.mxu0
      %v1680 = vpop.f32.mrf.mxu0
      %v1681 = vadd.f32 %v1520, %v1680
      %v1682 = vpop.f32.mrf.mxu0
      %1683 = vmatprep.mubr.bf16.mxu0 %v928
      %1684 = vmatmul.mubr.bf16.gmra.mxu0 %v927
      %v1685 = vpop.f32.mrf.mxu0
      %v1686 = vadd.f32 %v1525, %v1685
      %v1687 = vpop.f32.mrf.mxu0
      %v1688 = vpop.f32.mrf.mxu0
      %v1689 = vadd.f32 %v1528, %v1688
      %v1690 = vpop.f32.mrf.mxu0
      %1691 = vmatprep.mubr.bf16.mxu0 %v935
      %1692 = vmatmul.mubr.bf16.gmra.mxu0 %v934
      %v1693 = vpop.f32.mrf.mxu0
      %v1694 = vadd.f32 %v1533, %v1693
      %v1695 = vpop.f32.mrf.mxu0
      %v1696 = vpop.f32.mrf.mxu0
      %v1697 = vadd.f32 %v1536, %v1696
      %v1698 = vpop.f32.mrf.mxu0
      %1699 = vmatprep.mubr.bf16.mxu0 %v942
      %1700 = vmatmul.mubr.bf16.gmra.mxu0 %v941
      %v1701 = vpop.f32.mrf.mxu0
      %v1702 = vadd.f32 %v1541, %v1701
      %v1703 = vpop.f32.mrf.mxu0
      %v1704 = vpop.f32.mrf.mxu0
      %v1705 = vadd.f32 %v1544, %v1704
      %v1706 = vpop.f32.mrf.mxu0
      %1707 = vmatprep.mubr.bf16.mxu0 %v949
      %1708 = vmatmul.mubr.bf16.gmra.mxu0 %v948
      %v1709 = vpop.f32.mrf.mxu0
      %v1710 = vadd.f32 %v1549, %v1709
      %v1711 = vpop.f32.mrf.mxu0
      %v1712 = vpop.f32.mrf.mxu0
      %v1713 = vadd.f32 %v1552, %v1712
      %v1714 = vpop.f32.mrf.mxu0
      %1715 = vmatprep.mubr.bf16.mxu0 %v956
      %1716 = vmatmul.mubr.bf16.gmra.mxu0 %v955
      %v1717 = vpop.f32.mrf.mxu0
      %v1718 = vadd.f32 %v1557, %v1717
      %v1719 = vpop.f32.mrf.mxu0
      %v1720 = vpop.f32.mrf.mxu0
      %v1721 = vadd.f32 %v1560, %v1720
      %v1722 = vpop.f32.mrf.mxu0
      %1723 = vmatprep.mubr.bf16.mxu0 %v963
      %1724 = vmatmul.mubr.bf16.gmra.mxu0 %v962
      %v1725 = vpop.f32.mrf.mxu0
      %v1726 = vadd.f32 %v1565, %v1725
      %v1727 = vpop.f32.mrf.mxu0
      %v1728 = vpop.f32.mrf.mxu0
      %v1729 = vadd.f32 %v1568, %v1728
      %v1730 = vpop.f32.mrf.mxu0
      %1731 = vmatprep.mubr.bf16.mxu0 %v970
      %1732 = vmatmul.mubr.bf16.gmra.mxu0 %v969
      %v1733 = vpop.f32.mrf.mxu0
      %v1734 = vadd.f32 %v1573, %v1733
      %v1735 = vpop.f32.mrf.mxu0
      %v1736 = vpop.f32.mrf.mxu0
      %v1737 = vadd.f32 %v1576, %v1736
      %v1738 = vpop.f32.mrf.mxu0
      %1739 = vmatprep.mubr.bf16.mxu0 %v977
      %1740 = vmatmul.mubr.bf16.gmra.mxu0 %v976
      %v1741 = vpop.f32.mrf.mxu0
      %v1742 = vadd.f32 %v1581, %v1741
      %v1743 = vpop.f32.mrf.mxu0
      %v1744 = vpop.f32.mrf.mxu0
      %v1745 = vadd.f32 %v1584, %v1744
      %v1746 = vpop.f32.mrf.mxu0
      %1747 = vmatprep.mubr.bf16.mxu0 %v984
      %1748 = vmatmul.mubr.bf16.gmra.mxu0 %v983
      %v1749 = vpop.f32.mrf.mxu0
      %v1750 = vadd.f32 %v1589, %v1749
      %v1751 = vpop.f32.mrf.mxu0
      %v1752 = vpop.f32.mrf.mxu0
      %v1753 = vadd.f32 %v1592, %v1752
      %v1754 = vpop.f32.mrf.mxu0
      %1755 = vmatprep.mubr.bf16.mxu0 %v991
      %1756 = vmatmul.mubr.bf16.gmra.mxu0 %v990
      %v1757 = vpop.f32.mrf.mxu0
      %v1758 = vadd.f32 %v1597, %v1757
      %v1759 = vpop.f32.mrf.mxu0
      %v1760 = vpop.f32.mrf.mxu0
      %v1761 = vadd.f32 %v1600, %v1760
      %v1762 = vpop.f32.mrf.mxu0
      %1763 = vmatprep.mubr.bf16.mxu0 %v998
      %1764 = vmatmul.mubr.bf16.gmra.mxu0 %v997
      %v1765 = vpop.f32.mrf.mxu0
      %v1766 = vadd.f32 %v1605, %v1765
      %v1767 = vpop.f32.mrf.mxu0
      %v1768 = vpop.f32.mrf.mxu0
      %v1769 = vadd.f32 %v1608, %v1768
      %v1770 = vpop.f32.mrf.mxu0
      %1771 = vdwg.mxu0
      %1772 = vmatprep.subr.bf16.mxu0 0
      %1773 = vmatpush1.bf16.msra.mxu0 %v1342
      %1774 = vmatprep.subr.bf16.mxu0 0
      %1775 = vmatpush1.bf16.msra.mxu0 %v1341
      %1776 = vmatprep.subr.bf16.mxu0 0
      %1777 = vmatpush1.bf16.msra.mxu0 %v1340
      %1778 = vmatprep.subr.bf16.mxu0 0
      %1779 = vmatpush1.bf16.msra.mxu0 %v1339
      %1780 = vmatprep.subr.bf16.mxu0 0
      %1781 = vmatpush1.bf16.msra.mxu0 %v1338
      %1782 = vmatprep.subr.bf16.mxu0 0
      %1783 = vmatpush1.bf16.msra.mxu0 %v1337
      %1784 = vmatprep.subr.bf16.mxu0 0
      %1785 = vmatpush1.bf16.msra.mxu0 %v1336
      %1786 = vmatprep.subr.bf16.mxu0 0
      %1787 = vmatpush1.bf16.msra.mxu0 %v1335
      %1788 = vmatprep.subr.bf16.mxu0 0
      %1789 = vmatpush2.bf16.msra.mxu0 %v1350
      %1790 = vmatprep.subr.bf16.mxu0 0
      %1791 = vmatpush2.bf16.msra.mxu0 %v1349
      %1792 = vmatprep.subr.bf16.mxu0 0
      %1793 = vmatpush2.bf16.msra.mxu0 %v1348
      %1794 = vmatprep.subr.bf16.mxu0 0
      %1795 = vmatpush2.bf16.msra.mxu0 %v1347
      %1796 = vmatprep.subr.bf16.mxu0 0
      %1797 = vmatpush2.bf16.msra.mxu0 %v1346
      %1798 = vmatprep.subr.bf16.mxu0 0
      %1799 = vmatpush2.bf16.msra.mxu0 %v1345
      %1800 = vmatprep.subr.bf16.mxu0 0
      %1801 = vmatpush2.bf16.msra.mxu0 %v1344
      %1802 = vmatprep.subr.bf16.mxu0 0
      %1803 = vmatpush2.bf16.msra.mxu0 %v1343
      %1804 = vmatprep.mubr.bf16.mxu0 %v895
      %1805 = vmatmul.mubr.bf16.gmra.mxu0 %v894
      %v1806 = vpop.f32.mrf.mxu0
      %v1807 = vadd.f32 %v1646, %v1806
      %v1808 = vpop.f32.mrf.mxu0
      %v1809 = vpop.f32.mrf.mxu0
      %v1810 = vadd.f32 %v1649, %v1809
      %v1811 = vpop.f32.mrf.mxu0
      %1812 = vmatprep.mubr.bf16.mxu0 %v902
      %1813 = vmatmul.mubr.bf16.gmra.mxu0 %v901
      %v1814 = vpop.f32.mrf.mxu0
      %v1815 = vadd.f32 %v1654, %v1814
      %v1816 = vpop.f32.mrf.mxu0
      %v1817 = vpop.f32.mrf.mxu0
      %v1818 = vadd.f32 %v1657, %v1817
      %v1819 = vpop.f32.mrf.mxu0
      %1820 = vmatprep.mubr.bf16.mxu0 %v909
      %1821 = vmatmul.mubr.bf16.gmra.mxu0 %v908
      %v1822 = vpop.f32.mrf.mxu0
      %v1823 = vadd.f32 %v1662, %v1822
      %v1824 = vpop.f32.mrf.mxu0
      %v1825 = vpop.f32.mrf.mxu0
      %v1826 = vadd.f32 %v1665, %v1825
      %v1827 = vpop.f32.mrf.mxu0
      %1828 = vmatprep.mubr.bf16.mxu0 %v916
      %1829 = vmatmul.mubr.bf16.gmra.mxu0 %v915
      %v1830 = vpop.f32.mrf.mxu0
      %v1831 = vadd.f32 %v1670, %v1830
      %v1832 = vpop.f32.mrf.mxu0
      %v1833 = vpop.f32.mrf.mxu0
      %v1834 = vadd.f32 %v1673, %v1833
      %v1835 = vpop.f32.mrf.mxu0
      %1836 = vmatprep.mubr.bf16.mxu0 %v923
      %1837 = vmatmul.mubr.bf16.gmra.mxu0 %v922
      %v1838 = vpop.f32.mrf.mxu0
      %v1839 = vadd.f32 %v1678, %v1838
      %v1840 = vpop.f32.mrf.mxu0
      %v1841 = vpop.f32.mrf.mxu0
      %v1842 = vadd.f32 %v1681, %v1841
      %v1843 = vpop.f32.mrf.mxu0
      %1844 = vmatprep.mubr.bf16.mxu0 %v930
      %1845 = vmatmul.mubr.bf16.gmra.mxu0 %v929
      %v1846 = vpop.f32.mrf.mxu0
      %v1847 = vadd.f32 %v1686, %v1846
      %v1848 = vpop.f32.mrf.mxu0
      %v1849 = vpop.f32.mrf.mxu0
      %v1850 = vadd.f32 %v1689, %v1849
      %v1851 = vpop.f32.mrf.mxu0
      %1852 = vmatprep.mubr.bf16.mxu0 %v937
      %1853 = vmatmul.mubr.bf16.gmra.mxu0 %v936
      %v1854 = vpop.f32.mrf.mxu0
      %v1855 = vadd.f32 %v1694, %v1854
      %v1856 = vpop.f32.mrf.mxu0
      %v1857 = vpop.f32.mrf.mxu0
      %v1858 = vadd.f32 %v1697, %v1857
      %v1859 = vpop.f32.mrf.mxu0
      %1860 = vmatprep.mubr.bf16.mxu0 %v944
      %1861 = vmatmul.mubr.bf16.gmra.mxu0 %v943
      %v1862 = vpop.f32.mrf.mxu0
      %v1863 = vadd.f32 %v1702, %v1862
      %v1864 = vpop.f32.mrf.mxu0
      %v1865 = vpop.f32.mrf.mxu0
      %v1866 = vadd.f32 %v1705, %v1865
      %v1867 = vpop.f32.mrf.mxu0
      %1868 = vmatprep.mubr.bf16.mxu0 %v951
      %1869 = vmatmul.mubr.bf16.gmra.mxu0 %v950
      %v1870 = vpop.f32.mrf.mxu0
      %v1871 = vadd.f32 %v1710, %v1870
      %v1872 = vpop.f32.mrf.mxu0
      %v1873 = vpop.f32.mrf.mxu0
      %v1874 = vadd.f32 %v1713, %v1873
      %v1875 = vpop.f32.mrf.mxu0
      %1876 = vmatprep.mubr.bf16.mxu0 %v958
      %1877 = vmatmul.mubr.bf16.gmra.mxu0 %v957
      %v1878 = vpop.f32.mrf.mxu0
      %v1879 = vadd.f32 %v1718, %v1878
      %v1880 = vpop.f32.mrf.mxu0
      %v1881 = vpop.f32.mrf.mxu0
      %v1882 = vadd.f32 %v1721, %v1881
      %v1883 = vpop.f32.mrf.mxu0
      %1884 = vmatprep.mubr.bf16.mxu0 %v965
      %1885 = vmatmul.mubr.bf16.gmra.mxu0 %v964
      %v1886 = vpop.f32.mrf.mxu0
      %v1887 = vadd.f32 %v1726, %v1886
      %v1888 = vpop.f32.mrf.mxu0
      %v1889 = vpop.f32.mrf.mxu0
      %v1890 = vadd.f32 %v1729, %v1889
      %v1891 = vpop.f32.mrf.mxu0
      %1892 = vmatprep.mubr.bf16.mxu0 %v972
      %1893 = vmatmul.mubr.bf16.gmra.mxu0 %v971
      %v1894 = vpop.f32.mrf.mxu0
      %v1895 = vadd.f32 %v1734, %v1894
      %v1896 = vpop.f32.mrf.mxu0
      %v1897 = vpop.f32.mrf.mxu0
      %v1898 = vadd.f32 %v1737, %v1897
      %v1899 = vpop.f32.mrf.mxu0
      %1900 = vmatprep.mubr.bf16.mxu0 %v979
      %1901 = vmatmul.mubr.bf16.gmra.mxu0 %v978
      %v1902 = vpop.f32.mrf.mxu0
      %v1903 = vadd.f32 %v1742, %v1902
      %v1904 = vpop.f32.mrf.mxu0
      %v1905 = vpop.f32.mrf.mxu0
      %v1906 = vadd.f32 %v1745, %v1905
      %v1907 = vpop.f32.mrf.mxu0
      %1908 = vmatprep.mubr.bf16.mxu0 %v986
      %1909 = vmatmul.mubr.bf16.gmra.mxu0 %v985
      %v1910 = vpop.f32.mrf.mxu0
      %v1911 = vadd.f32 %v1750, %v1910
      %v1912 = vpop.f32.mrf.mxu0
      %v1913 = vpop.f32.mrf.mxu0
      %v1914 = vadd.f32 %v1753, %v1913
      %v1915 = vpop.f32.mrf.mxu0
      %1916 = vmatprep.mubr.bf16.mxu0 %v993
      %1917 = vmatmul.mubr.bf16.gmra.mxu0 %v992
      %v1918 = vpop.f32.mrf.mxu0
      %v1919 = vadd.f32 %v1758, %v1918
      %v1920 = vpop.f32.mrf.mxu0
      %v1921 = vpop.f32.mrf.mxu0
      %v1922 = vadd.f32 %v1761, %v1921
      %v1923 = vpop.f32.mrf.mxu0
      %1924 = vmatprep.mubr.bf16.mxu0 %v1000
      %1925 = vmatmul.mubr.bf16.gmra.mxu0 %v999
      %v1926 = vpop.f32.mrf.mxu0
      %v1927 = vadd.f32 %v1766, %v1926
      %v1928 = vpop.f32.mrf.mxu0
      %v1929 = vpop.f32.mrf.mxu0
      %v1930 = vadd.f32 %v1769, %v1929
      %v1931 = vpop.f32.mrf.mxu0
      %1932 = vdwg.mxu0
      %1933 = vmatprep.subr.bf16.mxu0 0
      %1934 = vmatpush1.bf16.msra.mxu0 0
      %1935 = vmatprep.subr.bf16.mxu0 0
      %1936 = vmatpush1.bf16.msra.mxu0 0
      %1937 = vmatprep.subr.bf16.mxu0 0
      %1938 = vmatpush1.bf16.msra.mxu0 0
      %1939 = vmatprep.subr.bf16.mxu0 0
      %1940 = vmatpush1.bf16.msra.mxu0 0
      %1941 = vmatprep.subr.bf16.mxu0 0
      %1942 = vmatpush1.bf16.msra.mxu0 0
      %1943 = vmatprep.subr.bf16.mxu0 0
      %1944 = vmatpush1.bf16.msra.mxu0 0
      %1945 = vmatprep.subr.bf16.mxu0 0
      %1946 = vmatpush1.bf16.msra.mxu0 0
      %1947 = vmatprep.subr.bf16.mxu0 0
      %1948 = vmatpush1.bf16.msra.mxu0 %v1351
      %1949 = vmatprep.subr.bf16.mxu0 0
      %1950 = vmatpush2.bf16.msra.mxu0 0
      %1951 = vmatprep.subr.bf16.mxu0 0
      %1952 = vmatpush2.bf16.msra.mxu0 0
      %1953 = vmatprep.subr.bf16.mxu0 0
      %1954 = vmatpush2.bf16.msra.mxu0 0
      %1955 = vmatprep.subr.bf16.mxu0 0
      %1956 = vmatpush2.bf16.msra.mxu0 0
      %1957 = vmatprep.subr.bf16.mxu0 0
      %1958 = vmatpush2.bf16.msra.mxu0 0
      %1959 = vmatprep.subr.bf16.mxu0 0
      %1960 = vmatpush2.bf16.msra.mxu0 0
      %1961 = vmatprep.subr.bf16.mxu0 0
      %1962 = vmatpush2.bf16.msra.mxu0 0
      %1963 = vmatprep.subr.bf16.mxu0 0
      %1964 = vmatpush2.bf16.msra.mxu0 0
      %1965 = vmatprep.mubr.bf16.mxu0 0
      %1966 = vmatmul.mubr.bf16.gmra.mxu0 %v1403
      %v1967 = vpop.f32.mrf.mxu0
      %v1968 = vadd.f32 %v1807, %v1967
      %v1969 = vpop.f32.mrf.mxu0
      %v1970 = vpop.f32.mrf.mxu0
      %v1971 = vadd.f32 %v1810, %v1970
      %v1972 = vpop.f32.mrf.mxu0
      %1973 = vmatprep.mubr.bf16.mxu0 0
      %1974 = vmatmul.mubr.bf16.gmra.mxu0 %v1406
      %v1975 = vpop.f32.mrf.mxu0
      %v1976 = vadd.f32 %v1815, %v1975
      %v1977 = vpop.f32.mrf.mxu0
      %v1978 = vpop.f32.mrf.mxu0
      %v1979 = vadd.f32 %v1818, %v1978
      %v1980 = vpop.f32.mrf.mxu0
      %1981 = vmatprep.mubr.bf16.mxu0 0
      %1982 = vmatmul.mubr.bf16.gmra.mxu0 %v1409
      %v1983 = vpop.f32.mrf.mxu0
      %v1984 = vadd.f32 %v1823, %v1983
      %v1985 = vpop.f32.mrf.mxu0
      %v1986 = vpop.f32.mrf.mxu0
      %v1987 = vadd.f32 %v1826, %v1986
      %v1988 = vpop.f32.mrf.mxu0
      %1989 = vmatprep.mubr.bf16.mxu0 0
      %1990 = vmatmul.mubr.bf16.gmra.mxu0 %v1412
      %v1991 = vpop.f32.mrf.mxu0
      %v1992 = vadd.f32 %v1831, %v1991
      %v1993 = vpop.f32.mrf.mxu0
      %v1994 = vpop.f32.mrf.mxu0
      %v1995 = vadd.f32 %v1834, %v1994
      %v1996 = vpop.f32.mrf.mxu0
      %1997 = vmatprep.mubr.bf16.mxu0 0
      %1998 = vmatmul.mubr.bf16.gmra.mxu0 %v1415
      %v1999 = vpop.f32.mrf.mxu0
      %v2000 = vadd.f32 %v1839, %v1999
      %v2001 = vpop.f32.mrf.mxu0
      %v2002 = vpop.f32.mrf.mxu0
      %v2003 = vadd.f32 %v1842, %v2002
      %v2004 = vpop.f32.mrf.mxu0
      %2005 = vmatprep.mubr.bf16.mxu0 0
      %2006 = vmatmul.mubr.bf16.gmra.mxu0 %v1418
      %v2007 = vpop.f32.mrf.mxu0
      %v2008 = vadd.f32 %v1847, %v2007
      %v2009 = vpop.f32.mrf.mxu0
      %v2010 = vpop.f32.mrf.mxu0
      %v2011 = vadd.f32 %v1850, %v2010
      %v2012 = vpop.f32.mrf.mxu0
      %2013 = vmatprep.mubr.bf16.mxu0 0
      %2014 = vmatmul.mubr.bf16.gmra.mxu0 %v1421
      %v2015 = vpop.f32.mrf.mxu0
      %v2016 = vadd.f32 %v1855, %v2015
      %v2017 = vpop.f32.mrf.mxu0
      %v2018 = vpop.f32.mrf.mxu0
      %v2019 = vadd.f32 %v1858, %v2018
      %v2020 = vpop.f32.mrf.mxu0
      %2021 = vmatprep.mubr.bf16.mxu0 0
      %2022 = vmatmul.mubr.bf16.gmra.mxu0 %v1424
      %v2023 = vpop.f32.mrf.mxu0
      %v2024 = vadd.f32 %v1863, %v2023
      %v2025 = vpop.f32.mrf.mxu0
      %v2026 = vpop.f32.mrf.mxu0
      %v2027 = vadd.f32 %v1866, %v2026
      %v2028 = vpop.f32.mrf.mxu0
      %2029 = vmatprep.mubr.bf16.mxu0 0
      %2030 = vmatmul.mubr.bf16.gmra.mxu0 %v1427
      %v2031 = vpop.f32.mrf.mxu0
      %v2032 = vadd.f32 %v1871, %v2031
      %v2033 = vpop.f32.mrf.mxu0
      %v2034 = vpop.f32.mrf.mxu0
      %v2035 = vadd.f32 %v1874, %v2034
      %v2036 = vpop.f32.mrf.mxu0
      %2037 = vmatprep.mubr.bf16.mxu0 0
      %2038 = vmatmul.mubr.bf16.gmra.mxu0 %v1430
      %v2039 = vpop.f32.mrf.mxu0
      %v2040 = vadd.f32 %v1879, %v2039
      %v2041 = vpop.f32.mrf.mxu0
      %v2042 = vpop.f32.mrf.mxu0
      %v2043 = vadd.f32 %v1882, %v2042
      %v2044 = vpop.f32.mrf.mxu0
      %2045 = vmatprep.mubr.bf16.mxu0 0
      %2046 = vmatmul.mubr.bf16.gmra.mxu0 %v1433
      %v2047 = vpop.f32.mrf.mxu0
      %v2048 = vadd.f32 %v1887, %v2047
      %v2049 = vpop.f32.mrf.mxu0
      %v2050 = vpop.f32.mrf.mxu0
      %v2051 = vadd.f32 %v1890, %v2050
      %v2052 = vpop.f32.mrf.mxu0
      %2053 = vmatprep.mubr.bf16.mxu0 0
      %2054 = vmatmul.mubr.bf16.gmra.mxu0 %v1436
      %v2055 = vpop.f32.mrf.mxu0
      %v2056 = vadd.f32 %v1895, %v2055
      %v2057 = vpop.f32.mrf.mxu0
      %v2058 = vpop.f32.mrf.mxu0
      %v2059 = vadd.f32 %v1898, %v2058
      %v2060 = vpop.f32.mrf.mxu0
      %2061 = vmatprep.mubr.bf16.mxu0 0
      %2062 = vmatmul.mubr.bf16.gmra.mxu0 %v1439
      %v2063 = vpop.f32.mrf.mxu0
      %v2064 = vadd.f32 %v1903, %v2063
      %v2065 = vpop.f32.mrf.mxu0
      %v2066 = vpop.f32.mrf.mxu0
      %v2067 = vadd.f32 %v1906, %v2066
      %v2068 = vpop.f32.mrf.mxu0
      %2069 = vmatprep.mubr.bf16.mxu0 0
      %2070 = vmatmul.mubr.bf16.gmra.mxu0 %v1442
      %v2071 = vpop.f32.mrf.mxu0
      %v2072 = vadd.f32 %v1911, %v2071
      %v2073 = vpop.f32.mrf.mxu0
      %v2074 = vpop.f32.mrf.mxu0
      %v2075 = vadd.f32 %v1914, %v2074
      %v2076 = vpop.f32.mrf.mxu0
      %2077 = vmatprep.mubr.bf16.mxu0 0
      %2078 = vmatmul.mubr.bf16.gmra.mxu0 %v1445
      %v2079 = vpop.f32.mrf.mxu0
      %v2080 = vadd.f32 %v1919, %v2079
      %v2081 = vpop.f32.mrf.mxu0
      %v2082 = vpop.f32.mrf.mxu0
      %v2083 = vadd.f32 %v1922, %v2082
      %v2084 = vpop.f32.mrf.mxu0
      %2085 = vmatprep.mubr.bf16.mxu0 0
      %2086 = vmatmul.mubr.bf16.gmra.mxu0 %v1448
      %v2087 = vpop.f32.mrf.mxu0
      %v2088 = vadd.f32 %v1927, %v2087
      %v2089 = vpop.f32.mrf.mxu0
      %v2090 = vpop.f32.mrf.mxu0
      %v2091 = vadd.f32 %v1930, %v2090
      %v2092 = vpop.f32.mrf.mxu0
      %2093 = vdwg.mxu0
      %v2094 = vmax.f32 %v1968, 0.0
      %v2095 = vmax.f32 %v1971, 0.0
      %v2096 = vmax.f32 %v1976, 0.0
      %v2097 = vmax.f32 %v1979, 0.0
      %v2098 = vmax.f32 %v1984, 0.0
      %v2099 = vmax.f32 %v1987, 0.0
      %v2100 = vmax.f32 %v1992, 0.0
      %v2101 = vmax.f32 %v1995, 0.0
      %v2102 = vmax.f32 %v2000, 0.0
      %v2103 = vmax.f32 %v2003, 0.0
      %v2104 = vmax.f32 %v2008, 0.0
      %v2105 = vmax.f32 %v2011, 0.0
      %v2106 = vmax.f32 %v2016, 0.0
      %v2107 = vmax.f32 %v2019, 0.0
      %v2108 = vmax.f32 %v2024, 0.0
      %v2109 = vmax.f32 %v2027, 0.0
      %v2110 = vmax.f32 %v2032, 0.0
      %v2111 = vmax.f32 %v2035, 0.0
      %v2112 = vmax.f32 %v2040, 0.0
      %v2113 = vmax.f32 %v2043, 0.0
      %v2114 = vmax.f32 %v2048, 0.0
      %v2115 = vmax.f32 %v2051, 0.0
      %v2116 = vmax.f32 %v2056, 0.0
      %v2117 = vmax.f32 %v2059, 0.0
      %v2118 = vmax.f32 %v2064, 0.0
      %v2119 = vmax.f32 %v2067, 0.0
      %v2120 = vmax.f32 %v2072, 0.0
      %v2121 = vmax.f32 %v2075, 0.0
      %v2122 = vmax.f32 %v2080, 0.0
      %v2123 = vmax.f32 %v2083, 0.0
      %v2124 = vmax.f32 %v2088, 0.0
      %v2125 = vmax.f32 %v2091, 0.0
      %v2126 = vpack.c.bf16 %v2095, %v2094
      %v2127 = vpack.c.bf16 %v2097, %v2096
      %v2128 = vpack.c.bf16 %v2099, %v2098
      %v2129 = vpack.c.bf16 %v2101, %v2100
      %v2130 = vpack.c.bf16 %v2103, %v2102
      %v2131 = vpack.c.bf16 %v2105, %v2104
      %v2132 = vpack.c.bf16 %v2107, %v2106
      %v2133 = vpack.c.bf16 %v2109, %v2108
      %v2134 = vpack.c.bf16 %v2111, %v2110
      %v2135 = vpack.c.bf16 %v2113, %v2112
      %v2136 = vpack.c.bf16 %v2115, %v2114
      %v2137 = vpack.c.bf16 %v2117, %v2116
      %v2138 = vpack.c.bf16 %v2119, %v2118
      %v2139 = vpack.c.bf16 %v2121, %v2120
      %v2140 = vpack.c.bf16 %v2123, %v2122
      %v2141 = vpack.c.bf16 %v2125, %v2124
      %v2142 = vld [vmem:[%s3] sm:$0xf]
      %v2143 = vld [vmem:[%s3 + $0x4] sm:$0xf]
      %v2144 = vld [vmem:[%s3 + $0x8] sm:$0xf]
      %v2145 = vld [vmem:[%s3 + $0xc] sm:$0xf]
      %v2146 = vld [vmem:[%s3 + $0x10] sm:$0xf]
      %v2147 = vld [vmem:[%s3 + $0x14] sm:$0xf]
      %v2148 = vld [vmem:[%s3 + $0x18] sm:$0xf]
      %v2149 = vld [vmem:[%s3 + $0x1c] sm:$0xf]
      %v2150 = vld [vmem:[%s3 + $0x20] sm:$0xf]
      %v2151 = vld [vmem:[%s3 + $0x24] sm:$0xf]
      %v2152 = vld [vmem:[%s3 + $0x28] sm:$0xf]
      %v2153 = vld [vmem:[%s3 + $0x2c] sm:$0xf]
      %v2154 = vld [vmem:[%s3 + $0x30] sm:$0xf]
      %v2155 = vld [vmem:[%s3 + $0x34] sm:$0xf]
      %v2156 = vld [vmem:[%s3 + $0x38] sm:$0xf]
      %v2157 = vld [vmem:[%s3 + $0x3c] sm:$0xf]
      %v2158 = vld [vmem:[%s4] sm:$0x1]
      %v2160 = vlaneseq
      %v2161 = vshrl.u32 %v2160, 7
      %v2162 = vsub.s32 0, %v2161
      %v2163 = vrot.slane %v2158, %v2162
      %v2181 = vunpack.c.l.b16 %v2142
      %v2182 = vunpack.c.l.b16 %v2143
      %v2183 = vunpack.c.l.b16 %v2144
      %v2184 = vunpack.c.l.b16 %v2145
      %v2185 = vunpack.c.l.b16 %v2146
      %v2186 = vunpack.c.l.b16 %v2147
      %v2187 = vunpack.c.l.b16 %v2148
      %v2188 = vunpack.c.l.b16 %v2149
      %v2189 = vunpack.c.l.b16 %v2150
      %v2190 = vunpack.c.l.b16 %v2151
      %v2191 = vunpack.c.l.b16 %v2152
      %v2192 = vunpack.c.l.b16 %v2153
      %v2193 = vunpack.c.l.b16 %v2154
      %v2194 = vunpack.c.l.b16 %v2155
      %v2195 = vunpack.c.l.b16 %v2156
      %v2196 = vunpack.c.l.b16 %v2157
      %v2197 = vpack.c.b16 %v2182, %v2181
      %v2198 = vpack.c.b16 %v2184, %v2183
      %v2199 = vpack.c.b16 %v2186, %v2185
      %v2200 = vpack.c.b16 %v2188, %v2187
      %v2201 = vpack.c.b16 %v2190, %v2189
      %v2202 = vpack.c.b16 %v2192, %v2191
      %v2203 = vpack.c.b16 %v2194, %v2193
      %v2204 = vpack.c.b16 %v2196, %v2195
      %2213 = vmatprep.subr.bf16.mxu0 0
      %2214 = vmatpush1.bf16.msra.mxu0 %v2204
      %2215 = vmatprep.subr.bf16.mxu0 0
      %2216 = vmatpush1.bf16.msra.mxu0 %v2203
      %2217 = vmatprep.subr.bf16.mxu0 0
      %2218 = vmatpush1.bf16.msra.mxu0 %v2202
      %2219 = vmatprep.subr.bf16.mxu0 0
      %2220 = vmatpush1.bf16.msra.mxu0 %v2201
      %2221 = vmatprep.subr.bf16.mxu0 0
      %2222 = vmatpush1.bf16.msra.mxu0 %v2200
      %2223 = vmatprep.subr.bf16.mxu0 0
      %2224 = vmatpush1.bf16.msra.mxu0 %v2199
      %2225 = vmatprep.subr.bf16.mxu0 0
      %2226 = vmatpush1.bf16.msra.mxu0 %v2198
      %2227 = vmatprep.subr.bf16.mxu0 0
      %2228 = vmatpush1.bf16.msra.mxu0 %v2197
      %2229 = vmatprep.subr.bf16.mxu0 0
      %2230 = vmatpush2.bf16.msra.mxu0 0
      %2231 = vmatprep.subr.bf16.mxu0 0
      %2232 = vmatpush2.bf16.msra.mxu0 0
      %2233 = vmatprep.subr.bf16.mxu0 0
      %2234 = vmatpush2.bf16.msra.mxu0 0
      %2235 = vmatprep.subr.bf16.mxu0 0
      %2236 = vmatpush2.bf16.msra.mxu0 0
      %2237 = vmatprep.subr.bf16.mxu0 0
      %2238 = vmatpush2.bf16.msra.mxu0 0
      %2239 = vmatprep.subr.bf16.mxu0 0
      %2240 = vmatpush2.bf16.msra.mxu0 0
      %2241 = vmatprep.subr.bf16.mxu0 0
      %2242 = vmatpush2.bf16.msra.mxu0 0
      %2243 = vmatprep.subr.bf16.mxu0 0
      %2244 = vmatpush2.bf16.msra.mxu0 0
      %2245 = vmatprep.mubr.bf16.mxu0 0
      %2246 = vmatmul.mubr.bf16.gmra.mxu0 %v2126
      %v2247 = vpop.f32.mrf.mxu0
      %v2248 = vadd.f32 %v2163, %v2247
      %v2249 = vpop.f32.mrf.mxu0
      %v2250 = vpop.f32.mrf.mxu0
      %v2251 = vadd.f32 %v2163, %v2250
      %v2252 = vpop.f32.mrf.mxu0
      %2253 = vmatprep.mubr.bf16.mxu0 0
      %2254 = vmatmul.mubr.bf16.gmra.mxu0 %v2127
      %v2255 = vpop.f32.mrf.mxu0
      %v2256 = vadd.f32 %v2163, %v2255
      %v2257 = vpop.f32.mrf.mxu0
      %v2258 = vpop.f32.mrf.mxu0
      %v2259 = vadd.f32 %v2163, %v2258
      %v2260 = vpop.f32.mrf.mxu0
      %2261 = vmatprep.mubr.bf16.mxu0 0
      %2262 = vmatmul.mubr.bf16.gmra.mxu0 %v2128
      %v2263 = vpop.f32.mrf.mxu0
      %v2264 = vadd.f32 %v2163, %v2263
      %v2265 = vpop.f32.mrf.mxu0
      %v2266 = vpop.f32.mrf.mxu0
      %v2267 = vadd.f32 %v2163, %v2266
      %v2268 = vpop.f32.mrf.mxu0
      %2269 = vmatprep.mubr.bf16.mxu0 0
      %2270 = vmatmul.mubr.bf16.gmra.mxu0 %v2129
      %v2271 = vpop.f32.mrf.mxu0
      %v2272 = vadd.f32 %v2163, %v2271
      %v2273 = vpop.f32.mrf.mxu0
      %v2274 = vpop.f32.mrf.mxu0
      %v2275 = vadd.f32 %v2163, %v2274
      %v2276 = vpop.f32.mrf.mxu0
      %2277 = vmatprep.mubr.bf16.mxu0 0
      %2278 = vmatmul.mubr.bf16.gmra.mxu0 %v2130
      %v2279 = vpop.f32.mrf.mxu0
      %v2280 = vadd.f32 %v2163, %v2279
      %v2281 = vpop.f32.mrf.mxu0
      %v2282 = vpop.f32.mrf.mxu0
      %v2283 = vadd.f32 %v2163, %v2282
      %v2284 = vpop.f32.mrf.mxu0
      %2285 = vmatprep.mubr.bf16.mxu0 0
      %2286 = vmatmul.mubr.bf16.gmra.mxu0 %v2131
      %v2287 = vpop.f32.mrf.mxu0
      %v2288 = vadd.f32 %v2163, %v2287
      %v2289 = vpop.f32.mrf.mxu0
      %v2290 = vpop.f32.mrf.mxu0
      %v2291 = vadd.f32 %v2163, %v2290
      %v2292 = vpop.f32.mrf.mxu0
      %2293 = vmatprep.mubr.bf16.mxu0 0
      %2294 = vmatmul.mubr.bf16.gmra.mxu0 %v2132
      %v2295 = vpop.f32.mrf.mxu0
      %v2296 = vadd.f32 %v2163, %v2295
      %v2297 = vpop.f32.mrf.mxu0
      %v2298 = vpop.f32.mrf.mxu0
      %v2299 = vadd.f32 %v2163, %v2298
      %v2300 = vpop.f32.mrf.mxu0
      %2301 = vmatprep.mubr.bf16.mxu0 0
      %2302 = vmatmul.mubr.bf16.gmra.mxu0 %v2133
      %v2303 = vpop.f32.mrf.mxu0
      %v2304 = vadd.f32 %v2163, %v2303
      %v2305 = vpop.f32.mrf.mxu0
      %v2306 = vpop.f32.mrf.mxu0
      %v2307 = vadd.f32 %v2163, %v2306
      %v2308 = vpop.f32.mrf.mxu0
      %2309 = vmatprep.mubr.bf16.mxu0 0
      %2310 = vmatmul.mubr.bf16.gmra.mxu0 %v2134
      %v2311 = vpop.f32.mrf.mxu0
      %v2312 = vadd.f32 %v2163, %v2311
      %v2313 = vpop.f32.mrf.mxu0
      %v2314 = vpop.f32.mrf.mxu0
      %v2315 = vadd.f32 %v2163, %v2314
      %v2316 = vpop.f32.mrf.mxu0
      %2317 = vmatprep.mubr.bf16.mxu0 0
      %2318 = vmatmul.mubr.bf16.gmra.mxu0 %v2135
      %v2319 = vpop.f32.mrf.mxu0
      %v2320 = vadd.f32 %v2163, %v2319
      %v2321 = vpop.f32.mrf.mxu0
      %v2322 = vpop.f32.mrf.mxu0
      %v2323 = vadd.f32 %v2163, %v2322
      %v2324 = vpop.f32.mrf.mxu0
      %2325 = vmatprep.mubr.bf16.mxu0 0
      %2326 = vmatmul.mubr.bf16.gmra.mxu0 %v2136
      %v2327 = vpop.f32.mrf.mxu0
      %v2328 = vadd.f32 %v2163, %v2327
      %v2329 = vpop.f32.mrf.mxu0
      %v2330 = vpop.f32.mrf.mxu0
      %v2331 = vadd.f32 %v2163, %v2330
      %v2332 = vpop.f32.mrf.mxu0
      %2333 = vmatprep.mubr.bf16.mxu0 0
      %2334 = vmatmul.mubr.bf16.gmra.mxu0 %v2137
      %v2335 = vpop.f32.mrf.mxu0
      %v2336 = vadd.f32 %v2163, %v2335
      %v2337 = vpop.f32.mrf.mxu0
      %v2338 = vpop.f32.mrf.mxu0
      %v2339 = vadd.f32 %v2163, %v2338
      %v2340 = vpop.f32.mrf.mxu0
      %2341 = vmatprep.mubr.bf16.mxu0 0
      %2342 = vmatmul.mubr.bf16.gmra.mxu0 %v2138
      %v2343 = vpop.f32.mrf.mxu0
      %v2344 = vadd.f32 %v2163, %v2343
      %v2345 = vpop.f32.mrf.mxu0
      %v2346 = vpop.f32.mrf.mxu0
      %v2347 = vadd.f32 %v2163, %v2346
      %v2348 = vpop.f32.mrf.mxu0
      %2349 = vmatprep.mubr.bf16.mxu0 0
      %2350 = vmatmul.mubr.bf16.gmra.mxu0 %v2139
      %v2351 = vpop.f32.mrf.mxu0
      %v2352 = vadd.f32 %v2163, %v2351
      %v2353 = vpop.f32.mrf.mxu0
      %v2354 = vpop.f32.mrf.mxu0
      %v2355 = vadd.f32 %v2163, %v2354
      %v2356 = vpop.f32.mrf.mxu0
      %2357 = vmatprep.mubr.bf16.mxu0 0
      %2358 = vmatmul.mubr.bf16.gmra.mxu0 %v2140
      %v2359 = vpop.f32.mrf.mxu0
      %v2360 = vadd.f32 %v2163, %v2359
      %v2361 = vpop.f32.mrf.mxu0
      %v2362 = vpop.f32.mrf.mxu0
      %v2363 = vadd.f32 %v2163, %v2362
      %v2364 = vpop.f32.mrf.mxu0
      %2365 = vmatprep.mubr.bf16.mxu0 0
      %2366 = vmatmul.mubr.bf16.gmra.mxu0 %v2141
      %v2367 = vpop.f32.mrf.mxu0
      %v2368 = vadd.f32 %v2163, %v2367
      %v2369 = vpop.f32.mrf.mxu0
      %v2370 = vpop.f32.mrf.mxu0
      %v2371 = vadd.f32 %v2163, %v2370
      %v2372 = vpop.f32.mrf.mxu0
      %2373 = vdwg.mxu0
      %v2374 = vmax.f32 %v2248, 0.0
      %v2375 = vmax.f32 %v2251, 0.0
      %v2376 = vmax.f32 %v2256, 0.0
      %v2377 = vmax.f32 %v2259, 0.0
      %v2378 = vmax.f32 %v2264, 0.0
      %v2379 = vmax.f32 %v2267, 0.0
      %v2380 = vmax.f32 %v2272, 0.0
      %v2381 = vmax.f32 %v2275, 0.0
      %v2382 = vmax.f32 %v2280, 0.0
      %v2383 = vmax.f32 %v2283, 0.0
      %v2384 = vmax.f32 %v2288, 0.0
      %v2385 = vmax.f32 %v2291, 0.0
      %v2386 = vmax.f32 %v2296, 0.0
      %v2387 = vmax.f32 %v2299, 0.0
      %v2388 = vmax.f32 %v2304, 0.0
      %v2389 = vmax.f32 %v2307, 0.0
      %v2390 = vmax.f32 %v2312, 0.0
      %v2391 = vmax.f32 %v2315, 0.0
      %v2392 = vmax.f32 %v2320, 0.0
      %v2393 = vmax.f32 %v2323, 0.0
      %v2394 = vmax.f32 %v2328, 0.0
      %v2395 = vmax.f32 %v2331, 0.0
      %v2396 = vmax.f32 %v2336, 0.0
      %v2397 = vmax.f32 %v2339, 0.0
      %v2398 = vmax.f32 %v2344, 0.0
      %v2399 = vmax.f32 %v2347, 0.0
      %v2400 = vmax.f32 %v2352, 0.0
      %v2401 = vmax.f32 %v2355, 0.0
      %v2402 = vmax.f32 %v2360, 0.0
      %v2403 = vmax.f32 %v2363, 0.0
      %v2404 = vmax.f32 %v2368, 0.0
      %v2405 = vmax.f32 %v2371, 0.0
      %v2406 = vpack.c.bf16 %v2375, %v2374
      %v2407 = vpack.c.bf16 %v2377, %v2376
      %v2408 = vpack.c.bf16 %v2379, %v2378
      %v2409 = vpack.c.bf16 %v2381, %v2380
      %v2410 = vpack.c.bf16 %v2383, %v2382
      %v2411 = vpack.c.bf16 %v2385, %v2384
      %v2412 = vpack.c.bf16 %v2387, %v2386
      %v2413 = vpack.c.bf16 %v2389, %v2388
      %v2414 = vpack.c.bf16 %v2391, %v2390
      %v2415 = vpack.c.bf16 %v2393, %v2392
      %v2416 = vpack.c.bf16 %v2395, %v2394
      %v2417 = vpack.c.bf16 %v2397, %v2396
      %v2418 = vpack.c.bf16 %v2399, %v2398
      %v2419 = vpack.c.bf16 %v2401, %v2400
      %v2420 = vpack.c.bf16 %v2403, %v2402
      %v2421 = vpack.c.bf16 %v2405, %v2404
      %v2422 = vld [vmem:[%s5] sm:$0xf]
      %v2423 = vld [vmem:[%s5 + $0x4] sm:$0xf]
      %v2424 = vld [vmem:[%s5 + $0x8] sm:$0xf]
      %v2425 = vld [vmem:[%s5 + $0xc] sm:$0xf]
      %v2426 = vld [vmem:[%s5 + $0x10] sm:$0xf]
      %v2427 = vld [vmem:[%s5 + $0x14] sm:$0xf]
      %v2428 = vld [vmem:[%s5 + $0x18] sm:$0xf]
      %v2429 = vld [vmem:[%s5 + $0x1c] sm:$0xf]
      %v2430 = vld [vmem:[%s5 + $0x20] sm:$0xf]
      %v2431 = vld [vmem:[%s5 + $0x24] sm:$0xf]
      %v2432 = vld [vmem:[%s5 + $0x28] sm:$0xf]
      %v2433 = vld [vmem:[%s5 + $0x2c] sm:$0xf]
      %v2434 = vld [vmem:[%s5 + $0x30] sm:$0xf]
      %v2435 = vld [vmem:[%s5 + $0x34] sm:$0xf]
      %v2436 = vld [vmem:[%s5 + $0x38] sm:$0xf]
      %v2437 = vld [vmem:[%s5 + $0x3c] sm:$0xf]
      %v2438 = vld [vmem:[%s6] sm:$0x1]
      %v2440 = vlaneseq
      %v2441 = vshrl.u32 %v2440, 7
      %v2442 = vsub.s32 0, %v2441
      %v2443 = vrot.slane %v2438, %v2442
      %v2461 = vunpack.c.l.b16 %v2422
      %v2462 = vunpack.c.l.b16 %v2423
      %v2463 = vunpack.c.l.b16 %v2424
      %v2464 = vunpack.c.l.b16 %v2425
      %v2465 = vunpack.c.l.b16 %v2426
      %v2466 = vunpack.c.l.b16 %v2427
      %v2467 = vunpack.c.l.b16 %v2428
      %v2468 = vunpack.c.l.b16 %v2429
      %v2469 = vunpack.c.l.b16 %v2430
      %v2470 = vunpack.c.l.b16 %v2431
      %v2471 = vunpack.c.l.b16 %v2432
      %v2472 = vunpack.c.l.b16 %v2433
      %v2473 = vunpack.c.l.b16 %v2434
      %v2474 = vunpack.c.l.b16 %v2435
      %v2475 = vunpack.c.l.b16 %v2436
      %v2476 = vunpack.c.l.b16 %v2437
      %v2477 = vpack.c.b16 %v2462, %v2461
      %v2478 = vpack.c.b16 %v2464, %v2463
      %v2479 = vpack.c.b16 %v2466, %v2465
      %v2480 = vpack.c.b16 %v2468, %v2467
      %v2481 = vpack.c.b16 %v2470, %v2469
      %v2482 = vpack.c.b16 %v2472, %v2471
      %v2483 = vpack.c.b16 %v2474, %v2473
      %v2484 = vpack.c.b16 %v2476, %v2475
      %2493 = vmatprep.subr.bf16.mxu0 0
      %2494 = vmatpush1.bf16.msra.mxu0 %v2484
      %2495 = vmatprep.subr.bf16.mxu0 0
      %2496 = vmatpush1.bf16.msra.mxu0 %v2483
      %2497 = vmatprep.subr.bf16.mxu0 0
      %2498 = vmatpush1.bf16.msra.mxu0 %v2482
      %2499 = vmatprep.subr.bf16.mxu0 0
      %2500 = vmatpush1.bf16.msra.mxu0 %v2481
      %2501 = vmatprep.subr.bf16.mxu0 0
      %2502 = vmatpush1.bf16.msra.mxu0 %v2480
      %2503 = vmatprep.subr.bf16.mxu0 0
      %2504 = vmatpush1.bf16.msra.mxu0 %v2479
      %2505 = vmatprep.subr.bf16.mxu0 0
      %2506 = vmatpush1.bf16.msra.mxu0 %v2478
      %2507 = vmatprep.subr.bf16.mxu0 0
      %2508 = vmatpush1.bf16.msra.mxu0 %v2477
      %2509 = vmatprep.subr.bf16.mxu0 0
      %2510 = vmatpush2.bf16.msra.mxu0 0
      %2511 = vmatprep.subr.bf16.mxu0 0
      %2512 = vmatpush2.bf16.msra.mxu0 0
      %2513 = vmatprep.subr.bf16.mxu0 0
      %2514 = vmatpush2.bf16.msra.mxu0 0
      %2515 = vmatprep.subr.bf16.mxu0 0
      %2516 = vmatpush2.bf16.msra.mxu0 0
      %2517 = vmatprep.subr.bf16.mxu0 0
      %2518 = vmatpush2.bf16.msra.mxu0 0
      %2519 = vmatprep.subr.bf16.mxu0 0
      %2520 = vmatpush2.bf16.msra.mxu0 0
      %2521 = vmatprep.subr.bf16.mxu0 0
      %2522 = vmatpush2.bf16.msra.mxu0 0
      %2523 = vmatprep.subr.bf16.mxu0 0
      %2524 = vmatpush2.bf16.msra.mxu0 0
      %2525 = vmatprep.mubr.bf16.mxu0 0
      %2526 = vmatmul.mubr.bf16.gmra.mxu0 %v2406
      %v2527 = vpop.f32.mrf.mxu0
      %v2528 = vadd.f32 %v2443, %v2527
      %v2529 = vpop.f32.mrf.mxu0
      %v2530 = vpop.f32.mrf.mxu0
      %v2531 = vadd.f32 %v2443, %v2530
      %v2532 = vpop.f32.mrf.mxu0
      %2533 = vmatprep.mubr.bf16.mxu0 0
      %2534 = vmatmul.mubr.bf16.gmra.mxu0 %v2407
      %v2535 = vpop.f32.mrf.mxu0
      %v2536 = vadd.f32 %v2443, %v2535
      %v2537 = vpop.f32.mrf.mxu0
      %v2538 = vpop.f32.mrf.mxu0
      %v2539 = vadd.f32 %v2443, %v2538
      %v2540 = vpop.f32.mrf.mxu0
      %2541 = vmatprep.mubr.bf16.mxu0 0
      %2542 = vmatmul.mubr.bf16.gmra.mxu0 %v2408
      %v2543 = vpop.f32.mrf.mxu0
      %v2544 = vadd.f32 %v2443, %v2543
      %v2545 = vpop.f32.mrf.mxu0
      %v2546 = vpop.f32.mrf.mxu0
      %v2547 = vadd.f32 %v2443, %v2546
      %v2548 = vpop.f32.mrf.mxu0
      %2549 = vmatprep.mubr.bf16.mxu0 0
      %2550 = vmatmul.mubr.bf16.gmra.mxu0 %v2409
      %v2551 = vpop.f32.mrf.mxu0
      %v2552 = vadd.f32 %v2443, %v2551
      %v2553 = vpop.f32.mrf.mxu0
      %v2554 = vpop.f32.mrf.mxu0
      %v2555 = vadd.f32 %v2443, %v2554
      %v2556 = vpop.f32.mrf.mxu0
      %2557 = vmatprep.mubr.bf16.mxu0 0
      %2558 = vmatmul.mubr.bf16.gmra.mxu0 %v2410
      %v2559 = vpop.f32.mrf.mxu0
      %v2560 = vadd.f32 %v2443, %v2559
      %v2561 = vpop.f32.mrf.mxu0
      %v2562 = vpop.f32.mrf.mxu0
      %v2563 = vadd.f32 %v2443, %v2562
      %v2564 = vpop.f32.mrf.mxu0
      %2565 = vmatprep.mubr.bf16.mxu0 0
      %2566 = vmatmul.mubr.bf16.gmra.mxu0 %v2411
      %v2567 = vpop.f32.mrf.mxu0
      %v2568 = vadd.f32 %v2443, %v2567
      %v2569 = vpop.f32.mrf.mxu0
      %v2570 = vpop.f32.mrf.mxu0
      %v2571 = vadd.f32 %v2443, %v2570
      %v2572 = vpop.f32.mrf.mxu0
      %2573 = vmatprep.mubr.bf16.mxu0 0
      %2574 = vmatmul.mubr.bf16.gmra.mxu0 %v2412
      %v2575 = vpop.f32.mrf.mxu0
      %v2576 = vadd.f32 %v2443, %v2575
      %v2577 = vpop.f32.mrf.mxu0
      %v2578 = vpop.f32.mrf.mxu0
      %v2579 = vadd.f32 %v2443, %v2578
      %v2580 = vpop.f32.mrf.mxu0
      %2581 = vmatprep.mubr.bf16.mxu0 0
      %2582 = vmatmul.mubr.bf16.gmra.mxu0 %v2413
      %v2583 = vpop.f32.mrf.mxu0
      %v2584 = vadd.f32 %v2443, %v2583
      %v2585 = vpop.f32.mrf.mxu0
      %v2586 = vpop.f32.mrf.mxu0
      %v2587 = vadd.f32 %v2443, %v2586
      %v2588 = vpop.f32.mrf.mxu0
      %2589 = vmatprep.mubr.bf16.mxu0 0
      %2590 = vmatmul.mubr.bf16.gmra.mxu0 %v2414
      %v2591 = vpop.f32.mrf.mxu0
      %v2592 = vadd.f32 %v2443, %v2591
      %v2593 = vpop.f32.mrf.mxu0
      %v2594 = vpop.f32.mrf.mxu0
      %v2595 = vadd.f32 %v2443, %v2594
      %v2596 = vpop.f32.mrf.mxu0
      %2597 = vmatprep.mubr.bf16.mxu0 0
      %2598 = vmatmul.mubr.bf16.gmra.mxu0 %v2415
      %v2599 = vpop.f32.mrf.mxu0
      %v2600 = vadd.f32 %v2443, %v2599
      %v2601 = vpop.f32.mrf.mxu0
      %v2602 = vpop.f32.mrf.mxu0
      %v2603 = vadd.f32 %v2443, %v2602
      %v2604 = vpop.f32.mrf.mxu0
      %2605 = vmatprep.mubr.bf16.mxu0 0
      %2606 = vmatmul.mubr.bf16.gmra.mxu0 %v2416
      %v2607 = vpop.f32.mrf.mxu0
      %v2608 = vadd.f32 %v2443, %v2607
      %v2609 = vpop.f32.mrf.mxu0
      %v2610 = vpop.f32.mrf.mxu0
      %v2611 = vadd.f32 %v2443, %v2610
      %v2612 = vpop.f32.mrf.mxu0
      %2613 = vmatprep.mubr.bf16.mxu0 0
      %2614 = vmatmul.mubr.bf16.gmra.mxu0 %v2417
      %v2615 = vpop.f32.mrf.mxu0
      %v2616 = vadd.f32 %v2443, %v2615
      %v2617 = vpop.f32.mrf.mxu0
      %v2618 = vpop.f32.mrf.mxu0
      %v2619 = vadd.f32 %v2443, %v2618
      %v2620 = vpop.f32.mrf.mxu0
      %2621 = vmatprep.mubr.bf16.mxu0 0
      %2622 = vmatmul.mubr.bf16.gmra.mxu0 %v2418
      %v2623 = vpop.f32.mrf.mxu0
      %v2624 = vadd.f32 %v2443, %v2623
      %v2625 = vpop.f32.mrf.mxu0
      %v2626 = vpop.f32.mrf.mxu0
      %v2627 = vadd.f32 %v2443, %v2626
      %v2628 = vpop.f32.mrf.mxu0
      %2629 = vmatprep.mubr.bf16.mxu0 0
      %2630 = vmatmul.mubr.bf16.gmra.mxu0 %v2419
      %v2631 = vpop.f32.mrf.mxu0
      %v2632 = vadd.f32 %v2443, %v2631
      %v2633 = vpop.f32.mrf.mxu0
      %v2634 = vpop.f32.mrf.mxu0
      %v2635 = vadd.f32 %v2443, %v2634
      %v2636 = vpop.f32.mrf.mxu0
      %2637 = vmatprep.mubr.bf16.mxu0 0
      %2638 = vmatmul.mubr.bf16.gmra.mxu0 %v2420
      %v2639 = vpop.f32.mrf.mxu0
      %v2640 = vadd.f32 %v2443, %v2639
      %v2641 = vpop.f32.mrf.mxu0
      %v2642 = vpop.f32.mrf.mxu0
      %v2643 = vadd.f32 %v2443, %v2642
      %v2644 = vpop.f32.mrf.mxu0
      %2645 = vmatprep.mubr.bf16.mxu0 0
      %2646 = vmatmul.mubr.bf16.gmra.mxu0 %v2421
      %v2647 = vpop.f32.mrf.mxu0
      %v2648 = vadd.f32 %v2443, %v2647
      %v2649 = vpop.f32.mrf.mxu0
      %v2650 = vpop.f32.mrf.mxu0
      %v2651 = vadd.f32 %v2443, %v2650
      %v2652 = vpop.f32.mrf.mxu0
      %2653 = vdwg.mxu0
      %v2654 = vmax.f32 %v2528, 0.0
      %v2655 = vmax.f32 %v2531, 0.0
      %v2656 = vmax.f32 %v2536, 0.0
      %v2657 = vmax.f32 %v2539, 0.0
      %v2658 = vmax.f32 %v2544, 0.0
      %v2659 = vmax.f32 %v2547, 0.0
      %v2660 = vmax.f32 %v2552, 0.0
      %v2661 = vmax.f32 %v2555, 0.0
      %v2662 = vmax.f32 %v2560, 0.0
      %v2663 = vmax.f32 %v2563, 0.0
      %v2664 = vmax.f32 %v2568, 0.0
      %v2665 = vmax.f32 %v2571, 0.0
      %v2666 = vmax.f32 %v2576, 0.0
      %v2667 = vmax.f32 %v2579, 0.0
      %v2668 = vmax.f32 %v2584, 0.0
      %v2669 = vmax.f32 %v2587, 0.0
      %v2670 = vmax.f32 %v2592, 0.0
      %v2671 = vmax.f32 %v2595, 0.0
      %v2672 = vmax.f32 %v2600, 0.0
      %v2673 = vmax.f32 %v2603, 0.0
      %v2674 = vmax.f32 %v2608, 0.0
      %v2675 = vmax.f32 %v2611, 0.0
      %v2676 = vmax.f32 %v2616, 0.0
      %v2677 = vmax.f32 %v2619, 0.0
      %v2678 = vmax.f32 %v2624, 0.0
      %v2679 = vmax.f32 %v2627, 0.0
      %v2680 = vmax.f32 %v2632, 0.0
      %v2681 = vmax.f32 %v2635, 0.0
      %v2682 = vmax.f32 %v2640, 0.0
      %v2683 = vmax.f32 %v2643, 0.0
      %v2684 = vmax.f32 %v2648, 0.0
      %v2685 = vmax.f32 %v2651, 0.0
      %v2686 = vpack.c.bf16 %v2655, %v2654
      %v2687 = vpack.c.bf16 %v2657, %v2656
      %v2688 = vpack.c.bf16 %v2659, %v2658
      %v2689 = vpack.c.bf16 %v2661, %v2660
      %v2690 = vpack.c.bf16 %v2663, %v2662
      %v2691 = vpack.c.bf16 %v2665, %v2664
      %v2692 = vpack.c.bf16 %v2667, %v2666
      %v2693 = vpack.c.bf16 %v2669, %v2668
      %v2694 = vpack.c.bf16 %v2671, %v2670
      %v2695 = vpack.c.bf16 %v2673, %v2672
      %v2696 = vpack.c.bf16 %v2675, %v2674
      %v2697 = vpack.c.bf16 %v2677, %v2676
      %v2698 = vpack.c.bf16 %v2679, %v2678
      %v2699 = vpack.c.bf16 %v2681, %v2680
      %v2700 = vpack.c.bf16 %v2683, %v2682
      %v2701 = vpack.c.bf16 %v2685, %v2684
      %v2702 = vld [vmem:[%s7] sm:$0xf]
      %v2703 = vld [vmem:[%s7 + $0x4] sm:$0xf]
      %v2704 = vld [vmem:[%s7 + $0x8] sm:$0xf]
      %v2705 = vld [vmem:[%s7 + $0xc] sm:$0xf]
      %v2706 = vld [vmem:[%s7 + $0x10] sm:$0xf]
      %v2707 = vld [vmem:[%s7 + $0x14] sm:$0xf]
      %v2708 = vld [vmem:[%s7 + $0x18] sm:$0xf]
      %v2709 = vld [vmem:[%s7 + $0x1c] sm:$0xf]
      %v2710 = vld [vmem:[%s7 + $0x20] sm:$0xf]
      %v2711 = vld [vmem:[%s7 + $0x24] sm:$0xf]
      %v2712 = vld [vmem:[%s7 + $0x28] sm:$0xf]
      %v2713 = vld [vmem:[%s7 + $0x2c] sm:$0xf]
      %v2714 = vld [vmem:[%s7 + $0x30] sm:$0xf]
      %v2715 = vld [vmem:[%s7 + $0x34] sm:$0xf]
      %v2716 = vld [vmem:[%s7 + $0x38] sm:$0xf]
      %v2717 = vld [vmem:[%s7 + $0x3c] sm:$0xf]
      %v2718 = vld [vmem:[%s8] sm:$0x1]
      %v2720 = vlaneseq
      %v2721 = vshrl.u32 %v2720, 7
      %v2722 = vsub.s32 0, %v2721
      %v2723 = vrot.slane %v2718, %v2722
      %v2741 = vunpack.c.l.b16 %v2702
      %v2742 = vunpack.c.l.b16 %v2703
      %v2743 = vunpack.c.l.b16 %v2704
      %v2744 = vunpack.c.l.b16 %v2705
      %v2745 = vunpack.c.l.b16 %v2706
      %v2746 = vunpack.c.l.b16 %v2707
      %v2747 = vunpack.c.l.b16 %v2708
      %v2748 = vunpack.c.l.b16 %v2709
      %v2749 = vunpack.c.l.b16 %v2710
      %v2750 = vunpack.c.l.b16 %v2711
      %v2751 = vunpack.c.l.b16 %v2712
      %v2752 = vunpack.c.l.b16 %v2713
      %v2753 = vunpack.c.l.b16 %v2714
      %v2754 = vunpack.c.l.b16 %v2715
      %v2755 = vunpack.c.l.b16 %v2716
      %v2756 = vunpack.c.l.b16 %v2717
      %v2757 = vpack.c.b16 %v2742, %v2741
      %v2758 = vpack.c.b16 %v2744, %v2743
      %v2759 = vpack.c.b16 %v2746, %v2745
      %v2760 = vpack.c.b16 %v2748, %v2747
      %v2761 = vpack.c.b16 %v2750, %v2749
      %v2762 = vpack.c.b16 %v2752, %v2751
      %v2763 = vpack.c.b16 %v2754, %v2753
      %v2764 = vpack.c.b16 %v2756, %v2755
      %2773 = vmatprep.subr.bf16.mxu0 0
      %2774 = vmatpush1.bf16.msra.mxu0 %v2764
      %2775 = vmatprep.subr.bf16.mxu0 0
      %2776 = vmatpush1.bf16.msra.mxu0 %v2763
      %2777 = vmatprep.subr.bf16.mxu0 0
      %2778 = vmatpush1.bf16.msra.mxu0 %v2762
      %2779 = vmatprep.subr.bf16.mxu0 0
      %2780 = vmatpush1.bf16.msra.mxu0 %v2761
      %2781 = vmatprep.subr.bf16.mxu0 0
      %2782 = vmatpush1.bf16.msra.mxu0 %v2760
      %2783 = vmatprep.subr.bf16.mxu0 0
      %2784 = vmatpush1.bf16.msra.mxu0 %v2759
      %2785 = vmatprep.subr.bf16.mxu0 0
      %2786 = vmatpush1.bf16.msra.mxu0 %v2758
      %2787 = vmatprep.subr.bf16.mxu0 0
      %2788 = vmatpush1.bf16.msra.mxu0 %v2757
      %2789 = vmatprep.subr.bf16.mxu0 0
      %2790 = vmatpush2.bf16.msra.mxu0 0
      %2791 = vmatprep.subr.bf16.mxu0 0
      %2792 = vmatpush2.bf16.msra.mxu0 0
      %2793 = vmatprep.subr.bf16.mxu0 0
      %2794 = vmatpush2.bf16.msra.mxu0 0
      %2795 = vmatprep.subr.bf16.mxu0 0
      %2796 = vmatpush2.bf16.msra.mxu0 0
      %2797 = vmatprep.subr.bf16.mxu0 0
      %2798 = vmatpush2.bf16.msra.mxu0 0
      %2799 = vmatprep.subr.bf16.mxu0 0
      %2800 = vmatpush2.bf16.msra.mxu0 0
      %2801 = vmatprep.subr.bf16.mxu0 0
      %2802 = vmatpush2.bf16.msra.mxu0 0
      %2803 = vmatprep.subr.bf16.mxu0 0
      %2804 = vmatpush2.bf16.msra.mxu0 0
      %2805 = vmatprep.mubr.bf16.mxu0 0
      %2806 = vmatmul.mubr.bf16.gmra.mxu0 %v2686
      %v2807 = vpop.f32.mrf.mxu0
      %v2808 = vadd.f32 %v2723, %v2807
      %v2809 = vpop.f32.mrf.mxu0
      %v2810 = vpop.f32.mrf.mxu0
      %v2811 = vadd.f32 %v2723, %v2810
      %v2812 = vpop.f32.mrf.mxu0
      %2813 = vmatprep.mubr.bf16.mxu0 0
      %2814 = vmatmul.mubr.bf16.gmra.mxu0 %v2687
      %v2815 = vpop.f32.mrf.mxu0
      %v2816 = vadd.f32 %v2723, %v2815
      %v2817 = vpop.f32.mrf.mxu0
      %v2818 = vpop.f32.mrf.mxu0
      %v2819 = vadd.f32 %v2723, %v2818
      %v2820 = vpop.f32.mrf.mxu0
      %2821 = vmatprep.mubr.bf16.mxu0 0
      %2822 = vmatmul.mubr.bf16.gmra.mxu0 %v2688
      %v2823 = vpop.f32.mrf.mxu0
      %v2824 = vadd.f32 %v2723, %v2823
      %v2825 = vpop.f32.mrf.mxu0
      %v2826 = vpop.f32.mrf.mxu0
      %v2827 = vadd.f32 %v2723, %v2826
      %v2828 = vpop.f32.mrf.mxu0
      %2829 = vmatprep.mubr.bf16.mxu0 0
      %2830 = vmatmul.mubr.bf16.gmra.mxu0 %v2689
      %v2831 = vpop.f32.mrf.mxu0
      %v2832 = vadd.f32 %v2723, %v2831
      %v2833 = vpop.f32.mrf.mxu0
      %v2834 = vpop.f32.mrf.mxu0
      %v2835 = vadd.f32 %v2723, %v2834
      %v2836 = vpop.f32.mrf.mxu0
      %2837 = vmatprep.mubr.bf16.mxu0 0
      %2838 = vmatmul.mubr.bf16.gmra.mxu0 %v2690
      %v2839 = vpop.f32.mrf.mxu0
      %v2840 = vadd.f32 %v2723, %v2839
      %v2841 = vpop.f32.mrf.mxu0
      %v2842 = vpop.f32.mrf.mxu0
      %v2843 = vadd.f32 %v2723, %v2842
      %v2844 = vpop.f32.mrf.mxu0
      %2845 = vmatprep.mubr.bf16.mxu0 0
      %2846 = vmatmul.mubr.bf16.gmra.mxu0 %v2691
      %v2847 = vpop.f32.mrf.mxu0
      %v2848 = vadd.f32 %v2723, %v2847
      %v2849 = vpop.f32.mrf.mxu0
      %v2850 = vpop.f32.mrf.mxu0
      %v2851 = vadd.f32 %v2723, %v2850
      %v2852 = vpop.f32.mrf.mxu0
      %2853 = vmatprep.mubr.bf16.mxu0 0
      %2854 = vmatmul.mubr.bf16.gmra.mxu0 %v2692
      %v2855 = vpop.f32.mrf.mxu0
      %v2856 = vadd.f32 %v2723, %v2855
      %v2857 = vpop.f32.mrf.mxu0
      %v2858 = vpop.f32.mrf.mxu0
      %v2859 = vadd.f32 %v2723, %v2858
      %v2860 = vpop.f32.mrf.mxu0
      %2861 = vmatprep.mubr.bf16.mxu0 0
      %2862 = vmatmul.mubr.bf16.gmra.mxu0 %v2693
      %v2863 = vpop.f32.mrf.mxu0
      %v2864 = vadd.f32 %v2723, %v2863
      %v2865 = vpop.f32.mrf.mxu0
      %v2866 = vpop.f32.mrf.mxu0
      %v2867 = vadd.f32 %v2723, %v2866
      %v2868 = vpop.f32.mrf.mxu0
      %2869 = vmatprep.mubr.bf16.mxu0 0
      %2870 = vmatmul.mubr.bf16.gmra.mxu0 %v2694
      %v2871 = vpop.f32.mrf.mxu0
      %v2872 = vadd.f32 %v2723, %v2871
      %v2873 = vpop.f32.mrf.mxu0
      %v2874 = vpop.f32.mrf.mxu0
      %v2875 = vadd.f32 %v2723, %v2874
      %v2876 = vpop.f32.mrf.mxu0
      %2877 = vmatprep.mubr.bf16.mxu0 0
      %2878 = vmatmul.mubr.bf16.gmra.mxu0 %v2695
      %v2879 = vpop.f32.mrf.mxu0
      %v2880 = vadd.f32 %v2723, %v2879
      %v2881 = vpop.f32.mrf.mxu0
      %v2882 = vpop.f32.mrf.mxu0
      %v2883 = vadd.f32 %v2723, %v2882
      %v2884 = vpop.f32.mrf.mxu0
      %2885 = vmatprep.mubr.bf16.mxu0 0
      %2886 = vmatmul.mubr.bf16.gmra.mxu0 %v2696
      %v2887 = vpop.f32.mrf.mxu0
      %v2888 = vadd.f32 %v2723, %v2887
      %v2889 = vpop.f32.mrf.mxu0
      %v2890 = vpop.f32.mrf.mxu0
      %v2891 = vadd.f32 %v2723, %v2890
      %v2892 = vpop.f32.mrf.mxu0
      %2893 = vmatprep.mubr.bf16.mxu0 0
      %2894 = vmatmul.mubr.bf16.gmra.mxu0 %v2697
      %v2895 = vpop.f32.mrf.mxu0
      %v2896 = vadd.f32 %v2723, %v2895
      %v2897 = vpop.f32.mrf.mxu0
      %v2898 = vpop.f32.mrf.mxu0
      %v2899 = vadd.f32 %v2723, %v2898
      %v2900 = vpop.f32.mrf.mxu0
      %2901 = vmatprep.mubr.bf16.mxu0 0
      %2902 = vmatmul.mubr.bf16.gmra.mxu0 %v2698
      %v2903 = vpop.f32.mrf.mxu0
      %v2904 = vadd.f32 %v2723, %v2903
      %v2905 = vpop.f32.mrf.mxu0
      %v2906 = vpop.f32.mrf.mxu0
      %v2907 = vadd.f32 %v2723, %v2906
      %v2908 = vpop.f32.mrf.mxu0
      %2909 = vmatprep.mubr.bf16.mxu0 0
      %2910 = vmatmul.mubr.bf16.gmra.mxu0 %v2699
      %v2911 = vpop.f32.mrf.mxu0
      %v2912 = vadd.f32 %v2723, %v2911
      %v2913 = vpop.f32.mrf.mxu0
      %v2914 = vpop.f32.mrf.mxu0
      %v2915 = vadd.f32 %v2723, %v2914
      %v2916 = vpop.f32.mrf.mxu0
      %2917 = vmatprep.mubr.bf16.mxu0 0
      %2918 = vmatmul.mubr.bf16.gmra.mxu0 %v2700
      %v2919 = vpop.f32.mrf.mxu0
      %v2920 = vadd.f32 %v2723, %v2919
      %v2921 = vpop.f32.mrf.mxu0
      %v2922 = vpop.f32.mrf.mxu0
      %v2923 = vadd.f32 %v2723, %v2922
      %v2924 = vpop.f32.mrf.mxu0
      %2925 = vmatprep.mubr.bf16.mxu0 0
      %2926 = vmatmul.mubr.bf16.gmra.mxu0 %v2701
      %v2927 = vpop.f32.mrf.mxu0
      %v2928 = vadd.f32 %v2723, %v2927
      %v2929 = vpop.f32.mrf.mxu0
      %v2930 = vpop.f32.mrf.mxu0
      %v2931 = vadd.f32 %v2723, %v2930
      %v2932 = vpop.f32.mrf.mxu0
      %2933 = vdwg.mxu0
      %v2934 = vmax.f32 %v2808, 0.0
      %v2935 = vmax.f32 %v2811, 0.0
      %v2936 = vmax.f32 %v2816, 0.0
      %v2937 = vmax.f32 %v2819, 0.0
      %v2938 = vmax.f32 %v2824, 0.0
      %v2939 = vmax.f32 %v2827, 0.0
      %v2940 = vmax.f32 %v2832, 0.0
      %v2941 = vmax.f32 %v2835, 0.0
      %v2942 = vmax.f32 %v2840, 0.0
      %v2943 = vmax.f32 %v2843, 0.0
      %v2944 = vmax.f32 %v2848, 0.0
      %v2945 = vmax.f32 %v2851, 0.0
      %v2946 = vmax.f32 %v2856, 0.0
      %v2947 = vmax.f32 %v2859, 0.0
      %v2948 = vmax.f32 %v2864, 0.0
      %v2949 = vmax.f32 %v2867, 0.0
      %v2950 = vmax.f32 %v2872, 0.0
      %v2951 = vmax.f32 %v2875, 0.0
      %v2952 = vmax.f32 %v2880, 0.0
      %v2953 = vmax.f32 %v2883, 0.0
      %v2954 = vmax.f32 %v2888, 0.0
      %v2955 = vmax.f32 %v2891, 0.0
      %v2956 = vmax.f32 %v2896, 0.0
      %v2957 = vmax.f32 %v2899, 0.0
      %v2958 = vmax.f32 %v2904, 0.0
      %v2959 = vmax.f32 %v2907, 0.0
      %v2960 = vmax.f32 %v2912, 0.0
      %v2961 = vmax.f32 %v2915, 0.0
      %v2962 = vmax.f32 %v2920, 0.0
      %v2963 = vmax.f32 %v2923, 0.0
      %v2964 = vmax.f32 %v2928, 0.0
      %v2965 = vmax.f32 %v2931, 0.0
      %v2966 = vpack.c.bf16 %v2935, %v2934
      %v2967 = vpack.c.bf16 %v2937, %v2936
      %v2968 = vpack.c.bf16 %v2939, %v2938
      %v2969 = vpack.c.bf16 %v2941, %v2940
      %v2970 = vpack.c.bf16 %v2943, %v2942
      %v2971 = vpack.c.bf16 %v2945, %v2944
      %v2972 = vpack.c.bf16 %v2947, %v2946
      %v2973 = vpack.c.bf16 %v2949, %v2948
      %v2974 = vpack.c.bf16 %v2951, %v2950
      %v2975 = vpack.c.bf16 %v2953, %v2952
      %v2976 = vpack.c.bf16 %v2955, %v2954
      %v2977 = vpack.c.bf16 %v2957, %v2956
      %v2978 = vpack.c.bf16 %v2959, %v2958
      %v2979 = vpack.c.bf16 %v2961, %v2960
      %v2980 = vpack.c.bf16 %v2963, %v2962
      %v2981 = vpack.c.bf16 %v2965, %v2964
      %v2982 = vld [vmem:[%s9] sm:$0xf]
      %v2983 = vld [vmem:[%s9 + $0x4] sm:$0xf]
      %v2984 = vld [vmem:[%s9 + $0x8] sm:$0xf]
      %v2985 = vld [vmem:[%s9 + $0xc] sm:$0xf]
      %v2986 = vld [vmem:[%s9 + $0x10] sm:$0xf]
      %v2987 = vld [vmem:[%s9 + $0x14] sm:$0xf]
      %v2988 = vld [vmem:[%s9 + $0x18] sm:$0xf]
      %v2989 = vld [vmem:[%s9 + $0x1c] sm:$0xf]
      %v2990 = vld [vmem:[%s9 + $0x20] sm:$0xf]
      %v2991 = vld [vmem:[%s9 + $0x24] sm:$0xf]
      %v2992 = vld [vmem:[%s9 + $0x28] sm:$0xf]
      %v2993 = vld [vmem:[%s9 + $0x2c] sm:$0xf]
      %v2994 = vld [vmem:[%s9 + $0x30] sm:$0xf]
      %v2995 = vld [vmem:[%s9 + $0x34] sm:$0xf]
      %v2996 = vld [vmem:[%s9 + $0x38] sm:$0xf]
      %v2997 = vld [vmem:[%s9 + $0x3c] sm:$0xf]
      %v2998 = vld [vmem:[%s10] sm:$0x1]
      %v3000 = vlaneseq
      %v3001 = vshrl.u32 %v3000, 7
      %v3002 = vsub.s32 0, %v3001
      %v3003 = vrot.slane %v2998, %v3002
      %v3021 = vunpack.c.l.b16 %v2982
      %v3022 = vunpack.c.l.b16 %v2983
      %v3023 = vunpack.c.l.b16 %v2984
      %v3024 = vunpack.c.l.b16 %v2985
      %v3025 = vunpack.c.l.b16 %v2986
      %v3026 = vunpack.c.l.b16 %v2987
      %v3027 = vunpack.c.l.b16 %v2988
      %v3028 = vunpack.c.l.b16 %v2989
      %v3029 = vunpack.c.l.b16 %v2990
      %v3030 = vunpack.c.l.b16 %v2991
      %v3031 = vunpack.c.l.b16 %v2992
      %v3032 = vunpack.c.l.b16 %v2993
      %v3033 = vunpack.c.l.b16 %v2994
      %v3034 = vunpack.c.l.b16 %v2995
      %v3035 = vunpack.c.l.b16 %v2996
      %v3036 = vunpack.c.l.b16 %v2997
      %v3037 = vpack.c.b16 %v3022, %v3021
      %v3038 = vpack.c.b16 %v3024, %v3023
      %v3039 = vpack.c.b16 %v3026, %v3025
      %v3040 = vpack.c.b16 %v3028, %v3027
      %v3041 = vpack.c.b16 %v3030, %v3029
      %v3042 = vpack.c.b16 %v3032, %v3031
      %v3043 = vpack.c.b16 %v3034, %v3033
      %v3044 = vpack.c.b16 %v3036, %v3035
      %3053 = vmatprep.subr.bf16.mxu0 0
      %3054 = vmatpush1.bf16.msra.mxu0 %v3044
      %3055 = vmatprep.subr.bf16.mxu0 0
      %3056 = vmatpush1.bf16.msra.mxu0 %v3043
      %3057 = vmatprep.subr.bf16.mxu0 0
      %3058 = vmatpush1.bf16.msra.mxu0 %v3042
      %3059 = vmatprep.subr.bf16.mxu0 0
      %3060 = vmatpush1.bf16.msra.mxu0 %v3041
      %3061 = vmatprep.subr.bf16.mxu0 0
      %3062 = vmatpush1.bf16.msra.mxu0 %v3040
      %3063 = vmatprep.subr.bf16.mxu0 0
      %3064 = vmatpush1.bf16.msra.mxu0 %v3039
      %3065 = vmatprep.subr.bf16.mxu0 0
      %3066 = vmatpush1.bf16.msra.mxu0 %v3038
      %3067 = vmatprep.subr.bf16.mxu0 0
      %3068 = vmatpush1.bf16.msra.mxu0 %v3037
      %3069 = vmatprep.subr.bf16.mxu0 0
      %3070 = vmatpush2.bf16.msra.mxu0 0
      %3071 = vmatprep.subr.bf16.mxu0 0
      %3072 = vmatpush2.bf16.msra.mxu0 0
      %3073 = vmatprep.subr.bf16.mxu0 0
      %3074 = vmatpush2.bf16.msra.mxu0 0
      %3075 = vmatprep.subr.bf16.mxu0 0
      %3076 = vmatpush2.bf16.msra.mxu0 0
      %3077 = vmatprep.subr.bf16.mxu0 0
      %3078 = vmatpush2.bf16.msra.mxu0 0
      %3079 = vmatprep.subr.bf16.mxu0 0
      %3080 = vmatpush2.bf16.msra.mxu0 0
      %3081 = vmatprep.subr.bf16.mxu0 0
      %3082 = vmatpush2.bf16.msra.mxu0 0
      %3083 = vmatprep.subr.bf16.mxu0 0
      %3084 = vmatpush2.bf16.msra.mxu0 0
      %3085 = vmatprep.mubr.bf16.mxu0 0
      %3086 = vmatmul.mubr.bf16.gmra.mxu0 %v2966
      %v3087 = vpop.f32.mrf.mxu0
      %v3088 = vadd.f32 %v3003, %v3087
      %v3089 = vpop.f32.mrf.mxu0
      %v3090 = vpop.f32.mrf.mxu0
      %v3091 = vadd.f32 %v3003, %v3090
      %v3092 = vpop.f32.mrf.mxu0
      %3093 = vmatprep.mubr.bf16.mxu0 0
      %3094 = vmatmul.mubr.bf16.gmra.mxu0 %v2967
      %v3095 = vpop.f32.mrf.mxu0
      %v3096 = vadd.f32 %v3003, %v3095
      %v3097 = vpop.f32.mrf.mxu0
      %v3098 = vpop.f32.mrf.mxu0
      %v3099 = vadd.f32 %v3003, %v3098
      %v3100 = vpop.f32.mrf.mxu0
      %3101 = vmatprep.mubr.bf16.mxu0 0
      %3102 = vmatmul.mubr.bf16.gmra.mxu0 %v2968
      %v3103 = vpop.f32.mrf.mxu0
      %v3104 = vadd.f32 %v3003, %v3103
      %v3105 = vpop.f32.mrf.mxu0
      %v3106 = vpop.f32.mrf.mxu0
      %v3107 = vadd.f32 %v3003, %v3106
      %v3108 = vpop.f32.mrf.mxu0
      %3109 = vmatprep.mubr.bf16.mxu0 0
      %3110 = vmatmul.mubr.bf16.gmra.mxu0 %v2969
      %v3111 = vpop.f32.mrf.mxu0
      %v3112 = vadd.f32 %v3003, %v3111
      %v3113 = vpop.f32.mrf.mxu0
      %v3114 = vpop.f32.mrf.mxu0
      %v3115 = vadd.f32 %v3003, %v3114
      %v3116 = vpop.f32.mrf.mxu0
      %3117 = vmatprep.mubr.bf16.mxu0 0
      %3118 = vmatmul.mubr.bf16.gmra.mxu0 %v2970
      %v3119 = vpop.f32.mrf.mxu0
      %v3120 = vadd.f32 %v3003, %v3119
      %v3121 = vpop.f32.mrf.mxu0
      %v3122 = vpop.f32.mrf.mxu0
      %v3123 = vadd.f32 %v3003, %v3122
      %v3124 = vpop.f32.mrf.mxu0
      %3125 = vmatprep.mubr.bf16.mxu0 0
      %3126 = vmatmul.mubr.bf16.gmra.mxu0 %v2971
      %v3127 = vpop.f32.mrf.mxu0
      %v3128 = vadd.f32 %v3003, %v3127
      %v3129 = vpop.f32.mrf.mxu0
      %v3130 = vpop.f32.mrf.mxu0
      %v3131 = vadd.f32 %v3003, %v3130
      %v3132 = vpop.f32.mrf.mxu0
      %3133 = vmatprep.mubr.bf16.mxu0 0
      %3134 = vmatmul.mubr.bf16.gmra.mxu0 %v2972
      %v3135 = vpop.f32.mrf.mxu0
      %v3136 = vadd.f32 %v3003, %v3135
      %v3137 = vpop.f32.mrf.mxu0
      %v3138 = vpop.f32.mrf.mxu0
      %v3139 = vadd.f32 %v3003, %v3138
      %v3140 = vpop.f32.mrf.mxu0
      %3141 = vmatprep.mubr.bf16.mxu0 0
      %3142 = vmatmul.mubr.bf16.gmra.mxu0 %v2973
      %v3143 = vpop.f32.mrf.mxu0
      %v3144 = vadd.f32 %v3003, %v3143
      %v3145 = vpop.f32.mrf.mxu0
      %v3146 = vpop.f32.mrf.mxu0
      %v3147 = vadd.f32 %v3003, %v3146
      %v3148 = vpop.f32.mrf.mxu0
      %3149 = vmatprep.mubr.bf16.mxu0 0
      %3150 = vmatmul.mubr.bf16.gmra.mxu0 %v2974
      %v3151 = vpop.f32.mrf.mxu0
      %v3152 = vadd.f32 %v3003, %v3151
      %v3153 = vpop.f32.mrf.mxu0
      %v3154 = vpop.f32.mrf.mxu0
      %v3155 = vadd.f32 %v3003, %v3154
      %v3156 = vpop.f32.mrf.mxu0
      %3157 = vmatprep.mubr.bf16.mxu0 0
      %3158 = vmatmul.mubr.bf16.gmra.mxu0 %v2975
      %v3159 = vpop.f32.mrf.mxu0
      %v3160 = vadd.f32 %v3003, %v3159
      %v3161 = vpop.f32.mrf.mxu0
      %v3162 = vpop.f32.mrf.mxu0
      %v3163 = vadd.f32 %v3003, %v3162
      %v3164 = vpop.f32.mrf.mxu0
      %3165 = vmatprep.mubr.bf16.mxu0 0
      %3166 = vmatmul.mubr.bf16.gmra.mxu0 %v2976
      %v3167 = vpop.f32.mrf.mxu0
      %v3168 = vadd.f32 %v3003, %v3167
      %v3169 = vpop.f32.mrf.mxu0
      %v3170 = vpop.f32.mrf.mxu0
      %v3171 = vadd.f32 %v3003, %v3170
      %v3172 = vpop.f32.mrf.mxu0
      %3173 = vmatprep.mubr.bf16.mxu0 0
      %3174 = vmatmul.mubr.bf16.gmra.mxu0 %v2977
      %v3175 = vpop.f32.mrf.mxu0
      %v3176 = vadd.f32 %v3003, %v3175
      %v3177 = vpop.f32.mrf.mxu0
      %v3178 = vpop.f32.mrf.mxu0
      %v3179 = vadd.f32 %v3003, %v3178
      %v3180 = vpop.f32.mrf.mxu0
      %3181 = vmatprep.mubr.bf16.mxu0 0
      %3182 = vmatmul.mubr.bf16.gmra.mxu0 %v2978
      %v3183 = vpop.f32.mrf.mxu0
      %v3184 = vadd.f32 %v3003, %v3183
      %v3185 = vpop.f32.mrf.mxu0
      %v3186 = vpop.f32.mrf.mxu0
      %v3187 = vadd.f32 %v3003, %v3186
      %v3188 = vpop.f32.mrf.mxu0
      %3189 = vmatprep.mubr.bf16.mxu0 0
      %3190 = vmatmul.mubr.bf16.gmra.mxu0 %v2979
      %v3191 = vpop.f32.mrf.mxu0
      %v3192 = vadd.f32 %v3003, %v3191
      %v3193 = vpop.f32.mrf.mxu0
      %v3194 = vpop.f32.mrf.mxu0
      %v3195 = vadd.f32 %v3003, %v3194
      %v3196 = vpop.f32.mrf.mxu0
      %3197 = vmatprep.mubr.bf16.mxu0 0
      %3198 = vmatmul.mubr.bf16.gmra.mxu0 %v2980
      %v3199 = vpop.f32.mrf.mxu0
      %v3200 = vadd.f32 %v3003, %v3199
      %v3201 = vpop.f32.mrf.mxu0
      %v3202 = vpop.f32.mrf.mxu0
      %v3203 = vadd.f32 %v3003, %v3202
      %v3204 = vpop.f32.mrf.mxu0
      %3205 = vmatprep.mubr.bf16.mxu0 0
      %3206 = vmatmul.mubr.bf16.gmra.mxu0 %v2981
      %v3207 = vpop.f32.mrf.mxu0
      %v3208 = vadd.f32 %v3003, %v3207
      %v3209 = vpop.f32.mrf.mxu0
      %v3210 = vpop.f32.mrf.mxu0
      %v3211 = vadd.f32 %v3003, %v3210
      %v3212 = vpop.f32.mrf.mxu0
      %3213 = vdwg.mxu0
      %v3214 = vpack.c.bf16 %v3091, %v3088
      %v3215 = vpack.c.bf16 %v3099, %v3096
      %v3216 = vpack.c.bf16 %v3107, %v3104
      %v3217 = vpack.c.bf16 %v3115, %v3112
      %v3218 = vpack.c.bf16 %v3123, %v3120
      %v3219 = vpack.c.bf16 %v3131, %v3128
      %v3220 = vpack.c.bf16 %v3139, %v3136
      %v3221 = vpack.c.bf16 %v3147, %v3144
      %v3222 = vpack.c.bf16 %v3155, %v3152
      %v3223 = vpack.c.bf16 %v3163, %v3160
      %v3224 = vpack.c.bf16 %v3171, %v3168
      %v3225 = vpack.c.bf16 %v3179, %v3176
      %v3226 = vpack.c.bf16 %v3187, %v3184
      %v3227 = vpack.c.bf16 %v3195, %v3192
      %v3228 = vpack.c.bf16 %v3203, %v3200
      %v3229 = vpack.c.bf16 %v3211, %v3208
      %v3230 = vld [vmem:[%s11] sm:$0xf]
      %v3231 = vld [vmem:[%s11 + $0x4] sm:$0xf]
      %v3232 = vld [vmem:[%s11 + $0x8] sm:$0xf]
      %v3233 = vld [vmem:[%s11 + $0xc] sm:$0xf]
      %v3234 = vld [vmem:[%s11 + $0x10] sm:$0xf]
      %v3235 = vld [vmem:[%s11 + $0x14] sm:$0xf]
      %v3236 = vld [vmem:[%s11 + $0x18] sm:$0xf]
      %v3237 = vld [vmem:[%s11 + $0x1c] sm:$0xf]
      %v3238 = vld [vmem:[%s11 + $0x20] sm:$0xf]
      %v3239 = vld [vmem:[%s11 + $0x24] sm:$0xf]
      %v3240 = vld [vmem:[%s11 + $0x28] sm:$0xf]
      %v3241 = vld [vmem:[%s11 + $0x2c] sm:$0xf]
      %v3242 = vld [vmem:[%s11 + $0x30] sm:$0xf]
      %v3243 = vld [vmem:[%s11 + $0x34] sm:$0xf]
      %v3244 = vld [vmem:[%s11 + $0x38] sm:$0xf]
      %v3245 = vld [vmem:[%s11 + $0x3c] sm:$0xf]
      %v3246 = vld [vmem:[%s12] sm:$0x1]
      %v3248 = vlaneseq
      %v3249 = vshrl.u32 %v3248, 7
      %v3250 = vsub.s32 0, %v3249
      %v3251 = vrot.slane %v3246, %v3250
      %v3269 = vunpack.c.l.b16 %v3230
      %v3270 = vunpack.c.l.b16 %v3231
      %v3271 = vunpack.c.l.b16 %v3232
      %v3272 = vunpack.c.l.b16 %v3233
      %v3273 = vunpack.c.l.b16 %v3234
      %v3274 = vunpack.c.l.b16 %v3235
      %v3275 = vunpack.c.l.b16 %v3236
      %v3276 = vunpack.c.l.b16 %v3237
      %v3277 = vunpack.c.l.b16 %v3238
      %v3278 = vunpack.c.l.b16 %v3239
      %v3279 = vunpack.c.l.b16 %v3240
      %v3280 = vunpack.c.l.b16 %v3241
      %v3281 = vunpack.c.l.b16 %v3242
      %v3282 = vunpack.c.l.b16 %v3243
      %v3283 = vunpack.c.l.b16 %v3244
      %v3284 = vunpack.c.l.b16 %v3245
      %v3285 = vpack.c.b16 %v3270, %v3269
      %v3286 = vpack.c.b16 %v3272, %v3271
      %v3287 = vpack.c.b16 %v3274, %v3273
      %v3288 = vpack.c.b16 %v3276, %v3275
      %v3289 = vpack.c.b16 %v3278, %v3277
      %v3290 = vpack.c.b16 %v3280, %v3279
      %v3291 = vpack.c.b16 %v3282, %v3281
      %v3292 = vpack.c.b16 %v3284, %v3283
      %3301 = vmatprep.subr.bf16.mxu0 0
      %3302 = vmatpush1.bf16.msra.mxu0 %v3292
      %3303 = vmatprep.subr.bf16.mxu0 0
      %3304 = vmatpush1.bf16.msra.mxu0 %v3291
      %3305 = vmatprep.subr.bf16.mxu0 0
      %3306 = vmatpush1.bf16.msra.mxu0 %v3290
      %3307 = vmatprep.subr.bf16.mxu0 0
      %3308 = vmatpush1.bf16.msra.mxu0 %v3289
      %3309 = vmatprep.subr.bf16.mxu0 0
      %3310 = vmatpush1.bf16.msra.mxu0 %v3288
      %3311 = vmatprep.subr.bf16.mxu0 0
      %3312 = vmatpush1.bf16.msra.mxu0 %v3287
      %3313 = vmatprep.subr.bf16.mxu0 0
      %3314 = vmatpush1.bf16.msra.mxu0 %v3286
      %3315 = vmatprep.subr.bf16.mxu0 0
      %3316 = vmatpush1.bf16.msra.mxu0 %v3285
      %3317 = vmatprep.subr.bf16.mxu0 0
      %3318 = vmatpush2.bf16.msra.mxu0 0
      %3319 = vmatprep.subr.bf16.mxu0 0
      %3320 = vmatpush2.bf16.msra.mxu0 0
      %3321 = vmatprep.subr.bf16.mxu0 0
      %3322 = vmatpush2.bf16.msra.mxu0 0
      %3323 = vmatprep.subr.bf16.mxu0 0
      %3324 = vmatpush2.bf16.msra.mxu0 0
      %3325 = vmatprep.subr.bf16.mxu0 0
      %3326 = vmatpush2.bf16.msra.mxu0 0
      %3327 = vmatprep.subr.bf16.mxu0 0
      %3328 = vmatpush2.bf16.msra.mxu0 0
      %3329 = vmatprep.subr.bf16.mxu0 0
      %3330 = vmatpush2.bf16.msra.mxu0 0
      %3331 = vmatprep.subr.bf16.mxu0 0
      %3332 = vmatpush2.bf16.msra.mxu0 0
      %3333 = vmatprep.mubr.bf16.mxu0 0
      %3334 = vmatmul.mubr.bf16.gmra.mxu0 %v3214
      %v3335 = vpop.f32.mrf.mxu0
      %v3336 = vadd.f32 %v3251, %v3335
      %v3337 = vpop.f32.mrf.mxu0
      %v3338 = vpop.f32.mrf.mxu0
      %v3339 = vadd.f32 %v3251, %v3338
      %v3340 = vpop.f32.mrf.mxu0
      %3341 = vmatprep.mubr.bf16.mxu0 0
      %3342 = vmatmul.mubr.bf16.gmra.mxu0 %v3215
      %v3343 = vpop.f32.mrf.mxu0
      %v3344 = vadd.f32 %v3251, %v3343
      %v3345 = vpop.f32.mrf.mxu0
      %v3346 = vpop.f32.mrf.mxu0
      %v3347 = vadd.f32 %v3251, %v3346
      %v3348 = vpop.f32.mrf.mxu0
      %3349 = vmatprep.mubr.bf16.mxu0 0
      %3350 = vmatmul.mubr.bf16.gmra.mxu0 %v3216
      %v3351 = vpop.f32.mrf.mxu0
      %v3352 = vadd.f32 %v3251, %v3351
      %v3353 = vpop.f32.mrf.mxu0
      %v3354 = vpop.f32.mrf.mxu0
      %v3355 = vadd.f32 %v3251, %v3354
      %v3356 = vpop.f32.mrf.mxu0
      %3357 = vmatprep.mubr.bf16.mxu0 0
      %3358 = vmatmul.mubr.bf16.gmra.mxu0 %v3217
      %v3359 = vpop.f32.mrf.mxu0
      %v3360 = vadd.f32 %v3251, %v3359
      %v3361 = vpop.f32.mrf.mxu0
      %v3362 = vpop.f32.mrf.mxu0
      %v3363 = vadd.f32 %v3251, %v3362
      %v3364 = vpop.f32.mrf.mxu0
      %3365 = vmatprep.mubr.bf16.mxu0 0
      %3366 = vmatmul.mubr.bf16.gmra.mxu0 %v3218
      %v3367 = vpop.f32.mrf.mxu0
      %v3368 = vadd.f32 %v3251, %v3367
      %v3369 = vpop.f32.mrf.mxu0
      %v3370 = vpop.f32.mrf.mxu0
      %v3371 = vadd.f32 %v3251, %v3370
      %v3372 = vpop.f32.mrf.mxu0
      %3373 = vmatprep.mubr.bf16.mxu0 0
      %3374 = vmatmul.mubr.bf16.gmra.mxu0 %v3219
      %v3375 = vpop.f32.mrf.mxu0
      %v3376 = vadd.f32 %v3251, %v3375
      %v3377 = vpop.f32.mrf.mxu0
      %v3378 = vpop.f32.mrf.mxu0
      %v3379 = vadd.f32 %v3251, %v3378
      %v3380 = vpop.f32.mrf.mxu0
      %3381 = vmatprep.mubr.bf16.mxu0 0
      %3382 = vmatmul.mubr.bf16.gmra.mxu0 %v3220
      %v3383 = vpop.f32.mrf.mxu0
      %v3384 = vadd.f32 %v3251, %v3383
      %v3385 = vpop.f32.mrf.mxu0
      %v3386 = vpop.f32.mrf.mxu0
      %v3387 = vadd.f32 %v3251, %v3386
      %v3388 = vpop.f32.mrf.mxu0
      %3389 = vmatprep.mubr.bf16.mxu0 0
      %3390 = vmatmul.mubr.bf16.gmra.mxu0 %v3221
      %v3391 = vpop.f32.mrf.mxu0
      %v3392 = vadd.f32 %v3251, %v3391
      %v3393 = vpop.f32.mrf.mxu0
      %v3394 = vpop.f32.mrf.mxu0
      %v3395 = vadd.f32 %v3251, %v3394
      %v3396 = vpop.f32.mrf.mxu0
      %3397 = vmatprep.mubr.bf16.mxu0 0
      %3398 = vmatmul.mubr.bf16.gmra.mxu0 %v3222
      %v3399 = vpop.f32.mrf.mxu0
      %v3400 = vadd.f32 %v3251, %v3399
      %v3401 = vpop.f32.mrf.mxu0
      %v3402 = vpop.f32.mrf.mxu0
      %v3403 = vadd.f32 %v3251, %v3402
      %v3404 = vpop.f32.mrf.mxu0
      %3405 = vmatprep.mubr.bf16.mxu0 0
      %3406 = vmatmul.mubr.bf16.gmra.mxu0 %v3223
      %v3407 = vpop.f32.mrf.mxu0
      %v3408 = vadd.f32 %v3251, %v3407
      %v3409 = vpop.f32.mrf.mxu0
      %v3410 = vpop.f32.mrf.mxu0
      %v3411 = vadd.f32 %v3251, %v3410
      %v3412 = vpop.f32.mrf.mxu0
      %3413 = vmatprep.mubr.bf16.mxu0 0
      %3414 = vmatmul.mubr.bf16.gmra.mxu0 %v3224
      %v3415 = vpop.f32.mrf.mxu0
      %v3416 = vadd.f32 %v3251, %v3415
      %v3417 = vpop.f32.mrf.mxu0
      %v3418 = vpop.f32.mrf.mxu0
      %v3419 = vadd.f32 %v3251, %v3418
      %v3420 = vpop.f32.mrf.mxu0
      %3421 = vmatprep.mubr.bf16.mxu0 0
      %3422 = vmatmul.mubr.bf16.gmra.mxu0 %v3225
      %v3423 = vpop.f32.mrf.mxu0
      %v3424 = vadd.f32 %v3251, %v3423
      %v3425 = vpop.f32.mrf.mxu0
      %v3426 = vpop.f32.mrf.mxu0
      %v3427 = vadd.f32 %v3251, %v3426
      %v3428 = vpop.f32.mrf.mxu0
      %3429 = vmatprep.mubr.bf16.mxu0 0
      %3430 = vmatmul.mubr.bf16.gmra.mxu0 %v3226
      %v3431 = vpop.f32.mrf.mxu0
      %v3432 = vadd.f32 %v3251, %v3431
      %v3433 = vpop.f32.mrf.mxu0
      %v3434 = vpop.f32.mrf.mxu0
      %v3435 = vadd.f32 %v3251, %v3434
      %v3436 = vpop.f32.mrf.mxu0
      %3437 = vmatprep.mubr.bf16.mxu0 0
      %3438 = vmatmul.mubr.bf16.gmra.mxu0 %v3227
      %v3439 = vpop.f32.mrf.mxu0
      %v3440 = vadd.f32 %v3251, %v3439
      %v3441 = vpop.f32.mrf.mxu0
      %v3442 = vpop.f32.mrf.mxu0
      %v3443 = vadd.f32 %v3251, %v3442
      %v3444 = vpop.f32.mrf.mxu0
      %3445 = vmatprep.mubr.bf16.mxu0 0
      %3446 = vmatmul.mubr.bf16.gmra.mxu0 %v3228
      %v3447 = vpop.f32.mrf.mxu0
      %v3448 = vadd.f32 %v3251, %v3447
      %v3449 = vpop.f32.mrf.mxu0
      %v3450 = vpop.f32.mrf.mxu0
      %v3451 = vadd.f32 %v3251, %v3450
      %v3452 = vpop.f32.mrf.mxu0
      %3453 = vmatprep.mubr.bf16.mxu0 0
      %3454 = vmatmul.mubr.bf16.gmra.mxu0 %v3229
      %v3455 = vpop.f32.mrf.mxu0
      %v3456 = vadd.f32 %v3251, %v3455
      %v3457 = vpop.f32.mrf.mxu0
      %v3458 = vpop.f32.mrf.mxu0
      %v3459 = vadd.f32 %v3251, %v3458
      %v3460 = vpop.f32.mrf.mxu0
      %3461 = vdwg.mxu0
      %v3462 = vmax.f32 %v3336, 0.0
      %v3463 = vmax.f32 %v3339, 0.0
      %v3464 = vmax.f32 %v3344, 0.0
      %v3465 = vmax.f32 %v3347, 0.0
      %v3466 = vmax.f32 %v3352, 0.0
      %v3467 = vmax.f32 %v3355, 0.0
      %v3468 = vmax.f32 %v3360, 0.0
      %v3469 = vmax.f32 %v3363, 0.0
      %v3470 = vmax.f32 %v3368, 0.0
      %v3471 = vmax.f32 %v3371, 0.0
      %v3472 = vmax.f32 %v3376, 0.0
      %v3473 = vmax.f32 %v3379, 0.0
      %v3474 = vmax.f32 %v3384, 0.0
      %v3475 = vmax.f32 %v3387, 0.0
      %v3476 = vmax.f32 %v3392, 0.0
      %v3477 = vmax.f32 %v3395, 0.0
      %v3478 = vmax.f32 %v3400, 0.0
      %v3479 = vmax.f32 %v3403, 0.0
      %v3480 = vmax.f32 %v3408, 0.0
      %v3481 = vmax.f32 %v3411, 0.0
      %v3482 = vmax.f32 %v3416, 0.0
      %v3483 = vmax.f32 %v3419, 0.0
      %v3484 = vmax.f32 %v3424, 0.0
      %v3485 = vmax.f32 %v3427, 0.0
      %v3486 = vmax.f32 %v3432, 0.0
      %v3487 = vmax.f32 %v3435, 0.0
      %v3488 = vmax.f32 %v3440, 0.0
      %v3489 = vmax.f32 %v3443, 0.0
      %v3490 = vmax.f32 %v3448, 0.0
      %v3491 = vmax.f32 %v3451, 0.0
      %v3492 = vmax.f32 %v3456, 0.0
      %v3493 = vmax.f32 %v3459, 0.0
      %v3494 = vpack.c.bf16 %v3463, %v3462
      %v3495 = vpack.c.bf16 %v3465, %v3464
      %v3496 = vpack.c.bf16 %v3467, %v3466
      %v3497 = vpack.c.bf16 %v3469, %v3468
      %v3498 = vpack.c.bf16 %v3471, %v3470
      %v3499 = vpack.c.bf16 %v3473, %v3472
      %v3500 = vpack.c.bf16 %v3475, %v3474
      %v3501 = vpack.c.bf16 %v3477, %v3476
      %v3502 = vpack.c.bf16 %v3479, %v3478
      %v3503 = vpack.c.bf16 %v3481, %v3480
      %v3504 = vpack.c.bf16 %v3483, %v3482
      %v3505 = vpack.c.bf16 %v3485, %v3484
      %v3506 = vpack.c.bf16 %v3487, %v3486
      %v3507 = vpack.c.bf16 %v3489, %v3488
      %v3508 = vpack.c.bf16 %v3491, %v3490
      %v3509 = vpack.c.bf16 %v3493, %v3492
      %v3510 = vld [vmem:[%s13] sm:$0xf]
      %v3511 = vld [vmem:[%s13 + $0x4] sm:$0xf]
      %v3512 = vld [vmem:[%s13 + $0x8] sm:$0xf]
      %v3513 = vld [vmem:[%s13 + $0xc] sm:$0xf]
      %v3514 = vld [vmem:[%s13 + $0x10] sm:$0xf]
      %v3515 = vld [vmem:[%s13 + $0x14] sm:$0xf]
      %v3516 = vld [vmem:[%s13 + $0x18] sm:$0xf]
      %v3517 = vld [vmem:[%s13 + $0x1c] sm:$0xf]
      %v3518 = vld [vmem:[%s13 + $0x20] sm:$0xf]
      %v3519 = vld [vmem:[%s13 + $0x24] sm:$0xf]
      %v3520 = vld [vmem:[%s13 + $0x28] sm:$0xf]
      %v3521 = vld [vmem:[%s13 + $0x2c] sm:$0xf]
      %v3522 = vld [vmem:[%s13 + $0x30] sm:$0xf]
      %v3523 = vld [vmem:[%s13 + $0x34] sm:$0xf]
      %v3524 = vld [vmem:[%s13 + $0x38] sm:$0xf]
      %v3525 = vld [vmem:[%s13 + $0x3c] sm:$0xf]
      %v3526 = vld [vmem:[%s14] sm:$0x1]
      %v3528 = vlaneseq
      %v3529 = vshrl.u32 %v3528, 7
      %v3530 = vsub.s32 0, %v3529
      %v3531 = vrot.slane %v3526, %v3530
      %v3549 = vunpack.c.l.b16 %v3510
      %v3550 = vunpack.c.l.b16 %v3511
      %v3551 = vunpack.c.l.b16 %v3512
      %v3552 = vunpack.c.l.b16 %v3513
      %v3553 = vunpack.c.l.b16 %v3514
      %v3554 = vunpack.c.l.b16 %v3515
      %v3555 = vunpack.c.l.b16 %v3516
      %v3556 = vunpack.c.l.b16 %v3517
      %v3557 = vunpack.c.l.b16 %v3518
      %v3558 = vunpack.c.l.b16 %v3519
      %v3559 = vunpack.c.l.b16 %v3520
      %v3560 = vunpack.c.l.b16 %v3521
      %v3561 = vunpack.c.l.b16 %v3522
      %v3562 = vunpack.c.l.b16 %v3523
      %v3563 = vunpack.c.l.b16 %v3524
      %v3564 = vunpack.c.l.b16 %v3525
      %v3565 = vpack.c.b16 %v3550, %v3549
      %v3566 = vpack.c.b16 %v3552, %v3551
      %v3567 = vpack.c.b16 %v3554, %v3553
      %v3568 = vpack.c.b16 %v3556, %v3555
      %v3569 = vpack.c.b16 %v3558, %v3557
      %v3570 = vpack.c.b16 %v3560, %v3559
      %v3571 = vpack.c.b16 %v3562, %v3561
      %v3572 = vpack.c.b16 %v3564, %v3563
      %3581 = vmatprep.subr.bf16.mxu0 0
      %3582 = vmatpush1.bf16.msra.mxu0 %v3572
      %3583 = vmatprep.subr.bf16.mxu0 0
      %3584 = vmatpush1.bf16.msra.mxu0 %v3571
      %3585 = vmatprep.subr.bf16.mxu0 0
      %3586 = vmatpush1.bf16.msra.mxu0 %v3570
      %3587 = vmatprep.subr.bf16.mxu0 0
      %3588 = vmatpush1.bf16.msra.mxu0 %v3569
      %3589 = vmatprep.subr.bf16.mxu0 0
      %3590 = vmatpush1.bf16.msra.mxu0 %v3568
      %3591 = vmatprep.subr.bf16.mxu0 0
      %3592 = vmatpush1.bf16.msra.mxu0 %v3567
      %3593 = vmatprep.subr.bf16.mxu0 0
      %3594 = vmatpush1.bf16.msra.mxu0 %v3566
      %3595 = vmatprep.subr.bf16.mxu0 0
      %3596 = vmatpush1.bf16.msra.mxu0 %v3565
      %3597 = vmatprep.subr.bf16.mxu0 0
      %3598 = vmatpush2.bf16.msra.mxu0 0
      %3599 = vmatprep.subr.bf16.mxu0 0
      %3600 = vmatpush2.bf16.msra.mxu0 0
      %3601 = vmatprep.subr.bf16.mxu0 0
      %3602 = vmatpush2.bf16.msra.mxu0 0
      %3603 = vmatprep.subr.bf16.mxu0 0
      %3604 = vmatpush2.bf16.msra.mxu0 0
      %3605 = vmatprep.subr.bf16.mxu0 0
      %3606 = vmatpush2.bf16.msra.mxu0 0
      %3607 = vmatprep.subr.bf16.mxu0 0
      %3608 = vmatpush2.bf16.msra.mxu0 0
      %3609 = vmatprep.subr.bf16.mxu0 0
      %3610 = vmatpush2.bf16.msra.mxu0 0
      %3611 = vmatprep.subr.bf16.mxu0 0
      %3612 = vmatpush2.bf16.msra.mxu0 0
      %3613 = vmatprep.mubr.bf16.mxu0 0
      %3614 = vmatmul.mubr.bf16.gmra.mxu0 %v3494
      %v3615 = vpop.f32.mrf.mxu0
      %v3616 = vadd.f32 %v3531, %v3615
      %v3617 = vpop.f32.mrf.mxu0
      %v3618 = vpop.f32.mrf.mxu0
      %v3619 = vadd.f32 %v3531, %v3618
      %v3620 = vpop.f32.mrf.mxu0
      %3621 = vmatprep.mubr.bf16.mxu0 0
      %3622 = vmatmul.mubr.bf16.gmra.mxu0 %v3495
      %v3623 = vpop.f32.mrf.mxu0
      %v3624 = vadd.f32 %v3531, %v3623
      %v3625 = vpop.f32.mrf.mxu0
      %v3626 = vpop.f32.mrf.mxu0
      %v3627 = vadd.f32 %v3531, %v3626
      %v3628 = vpop.f32.mrf.mxu0
      %3629 = vmatprep.mubr.bf16.mxu0 0
      %3630 = vmatmul.mubr.bf16.gmra.mxu0 %v3496
      %v3631 = vpop.f32.mrf.mxu0
      %v3632 = vadd.f32 %v3531, %v3631
      %v3633 = vpop.f32.mrf.mxu0
      %v3634 = vpop.f32.mrf.mxu0
      %v3635 = vadd.f32 %v3531, %v3634
      %v3636 = vpop.f32.mrf.mxu0
      %3637 = vmatprep.mubr.bf16.mxu0 0
      %3638 = vmatmul.mubr.bf16.gmra.mxu0 %v3497
      %v3639 = vpop.f32.mrf.mxu0
      %v3640 = vadd.f32 %v3531, %v3639
      %v3641 = vpop.f32.mrf.mxu0
      %v3642 = vpop.f32.mrf.mxu0
      %v3643 = vadd.f32 %v3531, %v3642
      %v3644 = vpop.f32.mrf.mxu0
      %3645 = vmatprep.mubr.bf16.mxu0 0
      %3646 = vmatmul.mubr.bf16.gmra.mxu0 %v3498
      %v3647 = vpop.f32.mrf.mxu0
      %v3648 = vadd.f32 %v3531, %v3647
      %v3649 = vpop.f32.mrf.mxu0
      %v3650 = vpop.f32.mrf.mxu0
      %v3651 = vadd.f32 %v3531, %v3650
      %v3652 = vpop.f32.mrf.mxu0
      %3653 = vmatprep.mubr.bf16.mxu0 0
      %3654 = vmatmul.mubr.bf16.gmra.mxu0 %v3499
      %v3655 = vpop.f32.mrf.mxu0
      %v3656 = vadd.f32 %v3531, %v3655
      %v3657 = vpop.f32.mrf.mxu0
      %v3658 = vpop.f32.mrf.mxu0
      %v3659 = vadd.f32 %v3531, %v3658
      %v3660 = vpop.f32.mrf.mxu0
      %3661 = vmatprep.mubr.bf16.mxu0 0
      %3662 = vmatmul.mubr.bf16.gmra.mxu0 %v3500
      %v3663 = vpop.f32.mrf.mxu0
      %v3664 = vadd.f32 %v3531, %v3663
      %v3665 = vpop.f32.mrf.mxu0
      %v3666 = vpop.f32.mrf.mxu0
      %v3667 = vadd.f32 %v3531, %v3666
      %v3668 = vpop.f32.mrf.mxu0
      %3669 = vmatprep.mubr.bf16.mxu0 0
      %3670 = vmatmul.mubr.bf16.gmra.mxu0 %v3501
      %v3671 = vpop.f32.mrf.mxu0
      %v3672 = vadd.f32 %v3531, %v3671
      %v3673 = vpop.f32.mrf.mxu0
      %v3674 = vpop.f32.mrf.mxu0
      %v3675 = vadd.f32 %v3531, %v3674
      %v3676 = vpop.f32.mrf.mxu0
      %3677 = vmatprep.mubr.bf16.mxu0 0
      %3678 = vmatmul.mubr.bf16.gmra.mxu0 %v3502
      %v3679 = vpop.f32.mrf.mxu0
      %v3680 = vadd.f32 %v3531, %v3679
      %v3681 = vpop.f32.mrf.mxu0
      %v3682 = vpop.f32.mrf.mxu0
      %v3683 = vadd.f32 %v3531, %v3682
      %v3684 = vpop.f32.mrf.mxu0
      %3685 = vmatprep.mubr.bf16.mxu0 0
      %3686 = vmatmul.mubr.bf16.gmra.mxu0 %v3503
      %v3687 = vpop.f32.mrf.mxu0
      %v3688 = vadd.f32 %v3531, %v3687
      %v3689 = vpop.f32.mrf.mxu0
      %v3690 = vpop.f32.mrf.mxu0
      %v3691 = vadd.f32 %v3531, %v3690
      %v3692 = vpop.f32.mrf.mxu0
      %3693 = vmatprep.mubr.bf16.mxu0 0
      %3694 = vmatmul.mubr.bf16.gmra.mxu0 %v3504
      %v3695 = vpop.f32.mrf.mxu0
      %v3696 = vadd.f32 %v3531, %v3695
      %v3697 = vpop.f32.mrf.mxu0
      %v3698 = vpop.f32.mrf.mxu0
      %v3699 = vadd.f32 %v3531, %v3698
      %v3700 = vpop.f32.mrf.mxu0
      %3701 = vmatprep.mubr.bf16.mxu0 0
      %3702 = vmatmul.mubr.bf16.gmra.mxu0 %v3505
      %v3703 = vpop.f32.mrf.mxu0
      %v3704 = vadd.f32 %v3531, %v3703
      %v3705 = vpop.f32.mrf.mxu0
      %v3706 = vpop.f32.mrf.mxu0
      %v3707 = vadd.f32 %v3531, %v3706
      %v3708 = vpop.f32.mrf.mxu0
      %3709 = vmatprep.mubr.bf16.mxu0 0
      %3710 = vmatmul.mubr.bf16.gmra.mxu0 %v3506
      %v3711 = vpop.f32.mrf.mxu0
      %v3712 = vadd.f32 %v3531, %v3711
      %v3713 = vpop.f32.mrf.mxu0
      %v3714 = vpop.f32.mrf.mxu0
      %v3715 = vadd.f32 %v3531, %v3714
      %v3716 = vpop.f32.mrf.mxu0
      %3717 = vmatprep.mubr.bf16.mxu0 0
      %3718 = vmatmul.mubr.bf16.gmra.mxu0 %v3507
      %v3719 = vpop.f32.mrf.mxu0
      %v3720 = vadd.f32 %v3531, %v3719
      %v3721 = vpop.f32.mrf.mxu0
      %v3722 = vpop.f32.mrf.mxu0
      %v3723 = vadd.f32 %v3531, %v3722
      %v3724 = vpop.f32.mrf.mxu0
      %3725 = vmatprep.mubr.bf16.mxu0 0
      %3726 = vmatmul.mubr.bf16.gmra.mxu0 %v3508
      %v3727 = vpop.f32.mrf.mxu0
      %v3728 = vadd.f32 %v3531, %v3727
      %v3729 = vpop.f32.mrf.mxu0
      %v3730 = vpop.f32.mrf.mxu0
      %v3731 = vadd.f32 %v3531, %v3730
      %v3732 = vpop.f32.mrf.mxu0
      %3733 = vmatprep.mubr.bf16.mxu0 0
      %3734 = vmatmul.mubr.bf16.gmra.mxu0 %v3509
      %v3735 = vpop.f32.mrf.mxu0
      %v3736 = vadd.f32 %v3531, %v3735
      %v3737 = vpop.f32.mrf.mxu0
      %v3738 = vpop.f32.mrf.mxu0
      %v3739 = vadd.f32 %v3531, %v3738
      %v3740 = vpop.f32.mrf.mxu0
      %3741 = vdwg.mxu0
      %v3742 = vmax.f32 %v3616, 0.0
      %v3743 = vmax.f32 %v3619, 0.0
      %v3744 = vmax.f32 %v3624, 0.0
      %v3745 = vmax.f32 %v3627, 0.0
      %v3746 = vmax.f32 %v3632, 0.0
      %v3747 = vmax.f32 %v3635, 0.0
      %v3748 = vmax.f32 %v3640, 0.0
      %v3749 = vmax.f32 %v3643, 0.0
      %v3750 = vmax.f32 %v3648, 0.0
      %v3751 = vmax.f32 %v3651, 0.0
      %v3752 = vmax.f32 %v3656, 0.0
      %v3753 = vmax.f32 %v3659, 0.0
      %v3754 = vmax.f32 %v3664, 0.0
      %v3755 = vmax.f32 %v3667, 0.0
      %v3756 = vmax.f32 %v3672, 0.0
      %v3757 = vmax.f32 %v3675, 0.0
      %v3758 = vmax.f32 %v3680, 0.0
      %v3759 = vmax.f32 %v3683, 0.0
      %v3760 = vmax.f32 %v3688, 0.0
      %v3761 = vmax.f32 %v3691, 0.0
      %v3762 = vmax.f32 %v3696, 0.0
      %v3763 = vmax.f32 %v3699, 0.0
      %v3764 = vmax.f32 %v3704, 0.0
      %v3765 = vmax.f32 %v3707, 0.0
      %v3766 = vmax.f32 %v3712, 0.0
      %v3767 = vmax.f32 %v3715, 0.0
      %v3768 = vmax.f32 %v3720, 0.0
      %v3769 = vmax.f32 %v3723, 0.0
      %v3770 = vmax.f32 %v3728, 0.0
      %v3771 = vmax.f32 %v3731, 0.0
      %v3772 = vmax.f32 %v3736, 0.0
      %v3773 = vmax.f32 %v3739, 0.0
      %v3774 = vpack.c.bf16 %v3743, %v3742
      %v3775 = vpack.c.bf16 %v3745, %v3744
      %v3776 = vpack.c.bf16 %v3747, %v3746
      %v3777 = vpack.c.bf16 %v3749, %v3748
      %v3778 = vpack.c.bf16 %v3751, %v3750
      %v3779 = vpack.c.bf16 %v3753, %v3752
      %v3780 = vpack.c.bf16 %v3755, %v3754
      %v3781 = vpack.c.bf16 %v3757, %v3756
      %v3782 = vpack.c.bf16 %v3759, %v3758
      %v3783 = vpack.c.bf16 %v3761, %v3760
      %v3784 = vpack.c.bf16 %v3763, %v3762
      %v3785 = vpack.c.bf16 %v3765, %v3764
      %v3786 = vpack.c.bf16 %v3767, %v3766
      %v3787 = vpack.c.bf16 %v3769, %v3768
      %v3788 = vpack.c.bf16 %v3771, %v3770
      %v3789 = vpack.c.bf16 %v3773, %v3772
      %v3790 = vld [vmem:[%s15] sm:$0xf]
      %v3791 = vld [vmem:[%s15 + $0x4] sm:$0xf]
      %v3792 = vld [vmem:[%s15 + $0x8] sm:$0xf]
      %v3793 = vld [vmem:[%s15 + $0xc] sm:$0xf]
      %v3794 = vld [vmem:[%s15 + $0x10] sm:$0xf]
      %v3795 = vld [vmem:[%s15 + $0x14] sm:$0xf]
      %v3796 = vld [vmem:[%s15 + $0x18] sm:$0xf]
      %v3797 = vld [vmem:[%s15 + $0x1c] sm:$0xf]
      %v3798 = vld [vmem:[%s15 + $0x20] sm:$0xf]
      %v3799 = vld [vmem:[%s15 + $0x24] sm:$0xf]
      %v3800 = vld [vmem:[%s15 + $0x28] sm:$0xf]
      %v3801 = vld [vmem:[%s15 + $0x2c] sm:$0xf]
      %v3802 = vld [vmem:[%s15 + $0x30] sm:$0xf]
      %v3803 = vld [vmem:[%s15 + $0x34] sm:$0xf]
      %v3804 = vld [vmem:[%s15 + $0x38] sm:$0xf]
      %v3805 = vld [vmem:[%s15 + $0x3c] sm:$0xf]
      %v3806 = vld [vmem:[%s16] sm:$0x1]
      %v3808 = vlaneseq
      %v3809 = vshrl.u32 %v3808, 7
      %v3810 = vsub.s32 0, %v3809
      %v3811 = vrot.slane %v3806, %v3810
      %v3829 = vunpack.c.l.b16 %v3790
      %v3830 = vunpack.c.l.b16 %v3791
      %v3831 = vunpack.c.l.b16 %v3792
      %v3832 = vunpack.c.l.b16 %v3793
      %v3833 = vunpack.c.l.b16 %v3794
      %v3834 = vunpack.c.l.b16 %v3795
      %v3835 = vunpack.c.l.b16 %v3796
      %v3836 = vunpack.c.l.b16 %v3797
      %v3837 = vunpack.c.l.b16 %v3798
      %v3838 = vunpack.c.l.b16 %v3799
      %v3839 = vunpack.c.l.b16 %v3800
      %v3840 = vunpack.c.l.b16 %v3801
      %v3841 = vunpack.c.l.b16 %v3802
      %v3842 = vunpack.c.l.b16 %v3803
      %v3843 = vunpack.c.l.b16 %v3804
      %v3844 = vunpack.c.l.b16 %v3805
      %v3845 = vpack.c.b16 %v3830, %v3829
      %v3846 = vpack.c.b16 %v3832, %v3831
      %v3847 = vpack.c.b16 %v3834, %v3833
      %v3848 = vpack.c.b16 %v3836, %v3835
      %v3849 = vpack.c.b16 %v3838, %v3837
      %v3850 = vpack.c.b16 %v3840, %v3839
      %v3851 = vpack.c.b16 %v3842, %v3841
      %v3852 = vpack.c.b16 %v3844, %v3843
      %3861 = vmatprep.subr.bf16.mxu0 0
      %3862 = vmatpush1.bf16.msra.mxu0 %v3852
      %3863 = vmatprep.subr.bf16.mxu0 0
      %3864 = vmatpush1.bf16.msra.mxu0 %v3851
      %3865 = vmatprep.subr.bf16.mxu0 0
      %3866 = vmatpush1.bf16.msra.mxu0 %v3850
      %3867 = vmatprep.subr.bf16.mxu0 0
      %3868 = vmatpush1.bf16.msra.mxu0 %v3849
      %3869 = vmatprep.subr.bf16.mxu0 0
      %3870 = vmatpush1.bf16.msra.mxu0 %v3848
      %3871 = vmatprep.subr.bf16.mxu0 0
      %3872 = vmatpush1.bf16.msra.mxu0 %v3847
      %3873 = vmatprep.subr.bf16.mxu0 0
      %3874 = vmatpush1.bf16.msra.mxu0 %v3846
      %3875 = vmatprep.subr.bf16.mxu0 0
      %3876 = vmatpush1.bf16.msra.mxu0 %v3845
      %3877 = vmatprep.subr.bf16.mxu0 0
      %3878 = vmatpush2.bf16.msra.mxu0 0
      %3879 = vmatprep.subr.bf16.mxu0 0
      %3880 = vmatpush2.bf16.msra.mxu0 0
      %3881 = vmatprep.subr.bf16.mxu0 0
      %3882 = vmatpush2.bf16.msra.mxu0 0
      %3883 = vmatprep.subr.bf16.mxu0 0
      %3884 = vmatpush2.bf16.msra.mxu0 0
      %3885 = vmatprep.subr.bf16.mxu0 0
      %3886 = vmatpush2.bf16.msra.mxu0 0
      %3887 = vmatprep.subr.bf16.mxu0 0
      %3888 = vmatpush2.bf16.msra.mxu0 0
      %3889 = vmatprep.subr.bf16.mxu0 0
      %3890 = vmatpush2.bf16.msra.mxu0 0
      %3891 = vmatprep.subr.bf16.mxu0 0
      %3892 = vmatpush2.bf16.msra.mxu0 0
      %3893 = vmatprep.mubr.bf16.mxu0 0
      %3894 = vmatmul.mubr.bf16.gmra.mxu0 %v3774
      %v3895 = vpop.f32.mrf.mxu0
      %v3896 = vadd.f32 %v3811, %v3895
      %v3897 = vpop.f32.mrf.mxu0
      %v3898 = vpop.f32.mrf.mxu0
      %v3899 = vadd.f32 %v3811, %v3898
      %v3900 = vpop.f32.mrf.mxu0
      %3901 = vmatprep.mubr.bf16.mxu0 0
      %3902 = vmatmul.mubr.bf16.gmra.mxu0 %v3775
      %v3903 = vpop.f32.mrf.mxu0
      %v3904 = vadd.f32 %v3811, %v3903
      %v3905 = vpop.f32.mrf.mxu0
      %v3906 = vpop.f32.mrf.mxu0
      %v3907 = vadd.f32 %v3811, %v3906
      %v3908 = vpop.f32.mrf.mxu0
      %3909 = vmatprep.mubr.bf16.mxu0 0
      %3910 = vmatmul.mubr.bf16.gmra.mxu0 %v3776
      %v3911 = vpop.f32.mrf.mxu0
      %v3912 = vadd.f32 %v3811, %v3911
      %v3913 = vpop.f32.mrf.mxu0
      %v3914 = vpop.f32.mrf.mxu0
      %v3915 = vadd.f32 %v3811, %v3914
      %v3916 = vpop.f32.mrf.mxu0
      %3917 = vmatprep.mubr.bf16.mxu0 0
      %3918 = vmatmul.mubr.bf16.gmra.mxu0 %v3777
      %v3919 = vpop.f32.mrf.mxu0
      %v3920 = vadd.f32 %v3811, %v3919
      %v3921 = vpop.f32.mrf.mxu0
      %v3922 = vpop.f32.mrf.mxu0
      %v3923 = vadd.f32 %v3811, %v3922
      %v3924 = vpop.f32.mrf.mxu0
      %3925 = vmatprep.mubr.bf16.mxu0 0
      %3926 = vmatmul.mubr.bf16.gmra.mxu0 %v3778
      %v3927 = vpop.f32.mrf.mxu0
      %v3928 = vadd.f32 %v3811, %v3927
      %v3929 = vpop.f32.mrf.mxu0
      %v3930 = vpop.f32.mrf.mxu0
      %v3931 = vadd.f32 %v3811, %v3930
      %v3932 = vpop.f32.mrf.mxu0
      %3933 = vmatprep.mubr.bf16.mxu0 0
      %3934 = vmatmul.mubr.bf16.gmra.mxu0 %v3779
      %v3935 = vpop.f32.mrf.mxu0
      %v3936 = vadd.f32 %v3811, %v3935
      %v3937 = vpop.f32.mrf.mxu0
      %v3938 = vpop.f32.mrf.mxu0
      %v3939 = vadd.f32 %v3811, %v3938
      %v3940 = vpop.f32.mrf.mxu0
      %3941 = vmatprep.mubr.bf16.mxu0 0
      %3942 = vmatmul.mubr.bf16.gmra.mxu0 %v3780
      %v3943 = vpop.f32.mrf.mxu0
      %v3944 = vadd.f32 %v3811, %v3943
      %v3945 = vpop.f32.mrf.mxu0
      %v3946 = vpop.f32.mrf.mxu0
      %v3947 = vadd.f32 %v3811, %v3946
      %v3948 = vpop.f32.mrf.mxu0
      %3949 = vmatprep.mubr.bf16.mxu0 0
      %3950 = vmatmul.mubr.bf16.gmra.mxu0 %v3781
      %v3951 = vpop.f32.mrf.mxu0
      %v3952 = vadd.f32 %v3811, %v3951
      %v3953 = vpop.f32.mrf.mxu0
      %v3954 = vpop.f32.mrf.mxu0
      %v3955 = vadd.f32 %v3811, %v3954
      %v3956 = vpop.f32.mrf.mxu0
      %3957 = vmatprep.mubr.bf16.mxu0 0
      %3958 = vmatmul.mubr.bf16.gmra.mxu0 %v3782
      %v3959 = vpop.f32.mrf.mxu0
      %v3960 = vadd.f32 %v3811, %v3959
      %v3961 = vpop.f32.mrf.mxu0
      %v3962 = vpop.f32.mrf.mxu0
      %v3963 = vadd.f32 %v3811, %v3962
      %v3964 = vpop.f32.mrf.mxu0
      %3965 = vmatprep.mubr.bf16.mxu0 0
      %3966 = vmatmul.mubr.bf16.gmra.mxu0 %v3783
      %v3967 = vpop.f32.mrf.mxu0
      %v3968 = vadd.f32 %v3811, %v3967
      %v3969 = vpop.f32.mrf.mxu0
      %v3970 = vpop.f32.mrf.mxu0
      %v3971 = vadd.f32 %v3811, %v3970
      %v3972 = vpop.f32.mrf.mxu0
      %3973 = vmatprep.mubr.bf16.mxu0 0
      %3974 = vmatmul.mubr.bf16.gmra.mxu0 %v3784
      %v3975 = vpop.f32.mrf.mxu0
      %v3976 = vadd.f32 %v3811, %v3975
      %v3977 = vpop.f32.mrf.mxu0
      %v3978 = vpop.f32.mrf.mxu0
      %v3979 = vadd.f32 %v3811, %v3978
      %v3980 = vpop.f32.mrf.mxu0
      %3981 = vmatprep.mubr.bf16.mxu0 0
      %3982 = vmatmul.mubr.bf16.gmra.mxu0 %v3785
      %v3983 = vpop.f32.mrf.mxu0
      %v3984 = vadd.f32 %v3811, %v3983
      %v3985 = vpop.f32.mrf.mxu0
      %v3986 = vpop.f32.mrf.mxu0
      %v3987 = vadd.f32 %v3811, %v3986
      %v3988 = vpop.f32.mrf.mxu0
      %3989 = vmatprep.mubr.bf16.mxu0 0
      %3990 = vmatmul.mubr.bf16.gmra.mxu0 %v3786
      %v3991 = vpop.f32.mrf.mxu0
      %v3992 = vadd.f32 %v3811, %v3991
      %v3993 = vpop.f32.mrf.mxu0
      %v3994 = vpop.f32.mrf.mxu0
      %v3995 = vadd.f32 %v3811, %v3994
      %v3996 = vpop.f32.mrf.mxu0
      %3997 = vmatprep.mubr.bf16.mxu0 0
      %3998 = vmatmul.mubr.bf16.gmra.mxu0 %v3787
      %v3999 = vpop.f32.mrf.mxu0
      %v4000 = vadd.f32 %v3811, %v3999
      %v4001 = vpop.f32.mrf.mxu0
      %v4002 = vpop.f32.mrf.mxu0
      %v4003 = vadd.f32 %v3811, %v4002
      %v4004 = vpop.f32.mrf.mxu0
      %4005 = vmatprep.mubr.bf16.mxu0 0
      %4006 = vmatmul.mubr.bf16.gmra.mxu0 %v3788
      %v4007 = vpop.f32.mrf.mxu0
      %v4008 = vadd.f32 %v3811, %v4007
      %v4009 = vpop.f32.mrf.mxu0
      %v4010 = vpop.f32.mrf.mxu0
      %v4011 = vadd.f32 %v3811, %v4010
      %v4012 = vpop.f32.mrf.mxu0
      %4013 = vmatprep.mubr.bf16.mxu0 0
      %4014 = vmatmul.mubr.bf16.gmra.mxu0 %v3789
      %v4015 = vpop.f32.mrf.mxu0
      %v4016 = vadd.f32 %v3811, %v4015
      %v4017 = vpop.f32.mrf.mxu0
      %v4018 = vpop.f32.mrf.mxu0
      %v4019 = vadd.f32 %v3811, %v4018
      %v4020 = vpop.f32.mrf.mxu0
      %4021 = vdwg.mxu0
      %v4022 = vmax.f32 %v3896, 0.0
      %v4023 = vmax.f32 %v3899, 0.0
      %v4024 = vmax.f32 %v3904, 0.0
      %v4025 = vmax.f32 %v3907, 0.0
      %v4026 = vmax.f32 %v3912, 0.0
      %v4027 = vmax.f32 %v3915, 0.0
      %v4028 = vmax.f32 %v3920, 0.0
      %v4029 = vmax.f32 %v3923, 0.0
      %v4030 = vmax.f32 %v3928, 0.0
      %v4031 = vmax.f32 %v3931, 0.0
      %v4032 = vmax.f32 %v3936, 0.0
      %v4033 = vmax.f32 %v3939, 0.0
      %v4034 = vmax.f32 %v3944, 0.0
      %v4035 = vmax.f32 %v3947, 0.0
      %v4036 = vmax.f32 %v3952, 0.0
      %v4037 = vmax.f32 %v3955, 0.0
      %v4038 = vmax.f32 %v3960, 0.0
      %v4039 = vmax.f32 %v3963, 0.0
      %v4040 = vmax.f32 %v3968, 0.0
      %v4041 = vmax.f32 %v3971, 0.0
      %v4042 = vmax.f32 %v3976, 0.0
      %v4043 = vmax.f32 %v3979, 0.0
      %v4044 = vmax.f32 %v3984, 0.0
      %v4045 = vmax.f32 %v3987, 0.0
      %v4046 = vmax.f32 %v3992, 0.0
      %v4047 = vmax.f32 %v3995, 0.0
      %v4048 = vmax.f32 %v4000, 0.0
      %v4049 = vmax.f32 %v4003, 0.0
      %v4050 = vmax.f32 %v4008, 0.0
      %v4051 = vmax.f32 %v4011, 0.0
      %v4052 = vmax.f32 %v4016, 0.0
      %v4053 = vmax.f32 %v4019, 0.0
      %v4054 = vpack.c.bf16 %v4023, %v4022
      %v4055 = vpack.c.bf16 %v4025, %v4024
      %v4056 = vpack.c.bf16 %v4027, %v4026
      %v4057 = vpack.c.bf16 %v4029, %v4028
      %v4058 = vpack.c.bf16 %v4031, %v4030
      %v4059 = vpack.c.bf16 %v4033, %v4032
      %v4060 = vpack.c.bf16 %v4035, %v4034
      %v4061 = vpack.c.bf16 %v4037, %v4036
      %v4062 = vpack.c.bf16 %v4039, %v4038
      %v4063 = vpack.c.bf16 %v4041, %v4040
      %v4064 = vpack.c.bf16 %v4043, %v4042
      %v4065 = vpack.c.bf16 %v4045, %v4044
      %v4066 = vpack.c.bf16 %v4047, %v4046
      %v4067 = vpack.c.bf16 %v4049, %v4048
      %v4068 = vpack.c.bf16 %v4051, %v4050
      %v4069 = vpack.c.bf16 %v4053, %v4052
      %v4070 = vld [vmem:[%s17] sm:$0xf]
      %v4071 = vld [vmem:[%s17 + $0x4] sm:$0xf]
      %v4072 = vld [vmem:[%s17 + $0x8] sm:$0xf]
      %v4073 = vld [vmem:[%s17 + $0xc] sm:$0xf]
      %v4074 = vld [vmem:[%s17 + $0x10] sm:$0xf]
      %v4075 = vld [vmem:[%s17 + $0x14] sm:$0xf]
      %v4076 = vld [vmem:[%s17 + $0x18] sm:$0xf]
      %v4077 = vld [vmem:[%s17 + $0x1c] sm:$0xf]
      %v4078 = vld [vmem:[%s17 + $0x20] sm:$0xf]
      %v4079 = vld [vmem:[%s17 + $0x24] sm:$0xf]
      %v4080 = vld [vmem:[%s17 + $0x28] sm:$0xf]
      %v4081 = vld [vmem:[%s17 + $0x2c] sm:$0xf]
      %v4082 = vld [vmem:[%s17 + $0x30] sm:$0xf]
      %v4083 = vld [vmem:[%s17 + $0x34] sm:$0xf]
      %v4084 = vld [vmem:[%s17 + $0x38] sm:$0xf]
      %v4085 = vld [vmem:[%s17 + $0x3c] sm:$0xf]
      %v4086 = vld [vmem:[%s18] sm:$0x1]
      %v4088 = vlaneseq
      %v4089 = vshrl.u32 %v4088, 7
      %v4090 = vsub.s32 0, %v4089
      %v4091 = vrot.slane %v4086, %v4090
      %v4109 = vunpack.c.l.b16 %v4070
      %v4110 = vunpack.c.l.b16 %v4071
      %v4111 = vunpack.c.l.b16 %v4072
      %v4112 = vunpack.c.l.b16 %v4073
      %v4113 = vunpack.c.l.b16 %v4074
      %v4114 = vunpack.c.l.b16 %v4075
      %v4115 = vunpack.c.l.b16 %v4076
      %v4116 = vunpack.c.l.b16 %v4077
      %v4117 = vunpack.c.l.b16 %v4078
      %v4118 = vunpack.c.l.b16 %v4079
      %v4119 = vunpack.c.l.b16 %v4080
      %v4120 = vunpack.c.l.b16 %v4081
      %v4121 = vunpack.c.l.b16 %v4082
      %v4122 = vunpack.c.l.b16 %v4083
      %v4123 = vunpack.c.l.b16 %v4084
      %v4124 = vunpack.c.l.b16 %v4085
      %v4125 = vpack.c.b16 %v4110, %v4109
      %v4126 = vpack.c.b16 %v4112, %v4111
      %v4127 = vpack.c.b16 %v4114, %v4113
      %v4128 = vpack.c.b16 %v4116, %v4115
      %v4129 = vpack.c.b16 %v4118, %v4117
      %v4130 = vpack.c.b16 %v4120, %v4119
      %v4131 = vpack.c.b16 %v4122, %v4121
      %v4132 = vpack.c.b16 %v4124, %v4123
      %4141 = vmatprep.subr.bf16.mxu0 0
      %4142 = vmatpush1.bf16.msra.mxu0 %v4132
      %4143 = vmatprep.subr.bf16.mxu0 0
      %4144 = vmatpush1.bf16.msra.mxu0 %v4131
      %4145 = vmatprep.subr.bf16.mxu0 0
      %4146 = vmatpush1.bf16.msra.mxu0 %v4130
      %4147 = vmatprep.subr.bf16.mxu0 0
      %4148 = vmatpush1.bf16.msra.mxu0 %v4129
      %4149 = vmatprep.subr.bf16.mxu0 0
      %4150 = vmatpush1.bf16.msra.mxu0 %v4128
      %4151 = vmatprep.subr.bf16.mxu0 0
      %4152 = vmatpush1.bf16.msra.mxu0 %v4127
      %4153 = vmatprep.subr.bf16.mxu0 0
      %4154 = vmatpush1.bf16.msra.mxu0 %v4126
      %4155 = vmatprep.subr.bf16.mxu0 0
      %4156 = vmatpush1.bf16.msra.mxu0 %v4125
      %4157 = vmatprep.subr.bf16.mxu0 0
      %4158 = vmatpush2.bf16.msra.mxu0 0
      %4159 = vmatprep.subr.bf16.mxu0 0
      %4160 = vmatpush2.bf16.msra.mxu0 0
      %4161 = vmatprep.subr.bf16.mxu0 0
      %4162 = vmatpush2.bf16.msra.mxu0 0
      %4163 = vmatprep.subr.bf16.mxu0 0
      %4164 = vmatpush2.bf16.msra.mxu0 0
      %4165 = vmatprep.subr.bf16.mxu0 0
      %4166 = vmatpush2.bf16.msra.mxu0 0
      %4167 = vmatprep.subr.bf16.mxu0 0
      %4168 = vmatpush2.bf16.msra.mxu0 0
      %4169 = vmatprep.subr.bf16.mxu0 0
      %4170 = vmatpush2.bf16.msra.mxu0 0
      %4171 = vmatprep.subr.bf16.mxu0 0
      %4172 = vmatpush2.bf16.msra.mxu0 0
      %4173 = vmatprep.mubr.bf16.mxu0 0
      %4174 = vmatmul.mubr.bf16.gmra.mxu0 %v4054
      %v4175 = vpop.f32.mrf.mxu0
      %v4176 = vadd.f32 %v4091, %v4175
      %v4177 = vpop.f32.mrf.mxu0
      %v4178 = vpop.f32.mrf.mxu0
      %v4179 = vadd.f32 %v4091, %v4178
      %v4180 = vpop.f32.mrf.mxu0
      %4181 = vmatprep.mubr.bf16.mxu0 0
      %4182 = vmatmul.mubr.bf16.gmra.mxu0 %v4055
      %v4183 = vpop.f32.mrf.mxu0
      %v4184 = vadd.f32 %v4091, %v4183
      %v4185 = vpop.f32.mrf.mxu0
      %v4186 = vpop.f32.mrf.mxu0
      %v4187 = vadd.f32 %v4091, %v4186
      %v4188 = vpop.f32.mrf.mxu0
      %4189 = vmatprep.mubr.bf16.mxu0 0
      %4190 = vmatmul.mubr.bf16.gmra.mxu0 %v4056
      %v4191 = vpop.f32.mrf.mxu0
      %v4192 = vadd.f32 %v4091, %v4191
      %v4193 = vpop.f32.mrf.mxu0
      %v4194 = vpop.f32.mrf.mxu0
      %v4195 = vadd.f32 %v4091, %v4194
      %v4196 = vpop.f32.mrf.mxu0
      %4197 = vmatprep.mubr.bf16.mxu0 0
      %4198 = vmatmul.mubr.bf16.gmra.mxu0 %v4057
      %v4199 = vpop.f32.mrf.mxu0
      %v4200 = vadd.f32 %v4091, %v4199
      %v4201 = vpop.f32.mrf.mxu0
      %v4202 = vpop.f32.mrf.mxu0
      %v4203 = vadd.f32 %v4091, %v4202
      %v4204 = vpop.f32.mrf.mxu0
      %4205 = vmatprep.mubr.bf16.mxu0 0
      %4206 = vmatmul.mubr.bf16.gmra.mxu0 %v4058
      %v4207 = vpop.f32.mrf.mxu0
      %v4208 = vadd.f32 %v4091, %v4207
      %v4209 = vpop.f32.mrf.mxu0
      %v4210 = vpop.f32.mrf.mxu0
      %v4211 = vadd.f32 %v4091, %v4210
      %v4212 = vpop.f32.mrf.mxu0
      %4213 = vmatprep.mubr.bf16.mxu0 0
      %4214 = vmatmul.mubr.bf16.gmra.mxu0 %v4059
      %v4215 = vpop.f32.mrf.mxu0
      %v4216 = vadd.f32 %v4091, %v4215
      %v4217 = vpop.f32.mrf.mxu0
      %v4218 = vpop.f32.mrf.mxu0
      %v4219 = vadd.f32 %v4091, %v4218
      %v4220 = vpop.f32.mrf.mxu0
      %4221 = vmatprep.mubr.bf16.mxu0 0
      %4222 = vmatmul.mubr.bf16.gmra.mxu0 %v4060
      %v4223 = vpop.f32.mrf.mxu0
      %v4224 = vadd.f32 %v4091, %v4223
      %v4225 = vpop.f32.mrf.mxu0
      %v4226 = vpop.f32.mrf.mxu0
      %v4227 = vadd.f32 %v4091, %v4226
      %v4228 = vpop.f32.mrf.mxu0
      %4229 = vmatprep.mubr.bf16.mxu0 0
      %4230 = vmatmul.mubr.bf16.gmra.mxu0 %v4061
      %v4231 = vpop.f32.mrf.mxu0
      %v4232 = vadd.f32 %v4091, %v4231
      %v4233 = vpop.f32.mrf.mxu0
      %v4234 = vpop.f32.mrf.mxu0
      %v4235 = vadd.f32 %v4091, %v4234
      %v4236 = vpop.f32.mrf.mxu0
      %4237 = vmatprep.mubr.bf16.mxu0 0
      %4238 = vmatmul.mubr.bf16.gmra.mxu0 %v4062
      %v4239 = vpop.f32.mrf.mxu0
      %v4240 = vadd.f32 %v4091, %v4239
      %v4241 = vpop.f32.mrf.mxu0
      %v4242 = vpop.f32.mrf.mxu0
      %v4243 = vadd.f32 %v4091, %v4242
      %v4244 = vpop.f32.mrf.mxu0
      %4245 = vmatprep.mubr.bf16.mxu0 0
      %4246 = vmatmul.mubr.bf16.gmra.mxu0 %v4063
      %v4247 = vpop.f32.mrf.mxu0
      %v4248 = vadd.f32 %v4091, %v4247
      %v4249 = vpop.f32.mrf.mxu0
      %v4250 = vpop.f32.mrf.mxu0
      %v4251 = vadd.f32 %v4091, %v4250
      %v4252 = vpop.f32.mrf.mxu0
      %4253 = vmatprep.mubr.bf16.mxu0 0
      %4254 = vmatmul.mubr.bf16.gmra.mxu0 %v4064
      %v4255 = vpop.f32.mrf.mxu0
      %v4256 = vadd.f32 %v4091, %v4255
      %v4257 = vpop.f32.mrf.mxu0
      %v4258 = vpop.f32.mrf.mxu0
      %v4259 = vadd.f32 %v4091, %v4258
      %v4260 = vpop.f32.mrf.mxu0
      %4261 = vmatprep.mubr.bf16.mxu0 0
      %4262 = vmatmul.mubr.bf16.gmra.mxu0 %v4065
      %v4263 = vpop.f32.mrf.mxu0
      %v4264 = vadd.f32 %v4091, %v4263
      %v4265 = vpop.f32.mrf.mxu0
      %v4266 = vpop.f32.mrf.mxu0
      %v4267 = vadd.f32 %v4091, %v4266
      %v4268 = vpop.f32.mrf.mxu0
      %4269 = vmatprep.mubr.bf16.mxu0 0
      %4270 = vmatmul.mubr.bf16.gmra.mxu0 %v4066
      %v4271 = vpop.f32.mrf.mxu0
      %v4272 = vadd.f32 %v4091, %v4271
      %v4273 = vpop.f32.mrf.mxu0
      %v4274 = vpop.f32.mrf.mxu0
      %v4275 = vadd.f32 %v4091, %v4274
      %v4276 = vpop.f32.mrf.mxu0
      %4277 = vmatprep.mubr.bf16.mxu0 0
      %4278 = vmatmul.mubr.bf16.gmra.mxu0 %v4067
      %v4279 = vpop.f32.mrf.mxu0
      %v4280 = vadd.f32 %v4091, %v4279
      %v4281 = vpop.f32.mrf.mxu0
      %v4282 = vpop.f32.mrf.mxu0
      %v4283 = vadd.f32 %v4091, %v4282
      %v4284 = vpop.f32.mrf.mxu0
      %4285 = vmatprep.mubr.bf16.mxu0 0
      %4286 = vmatmul.mubr.bf16.gmra.mxu0 %v4068
      %v4287 = vpop.f32.mrf.mxu0
      %v4288 = vadd.f32 %v4091, %v4287
      %v4289 = vpop.f32.mrf.mxu0
      %v4290 = vpop.f32.mrf.mxu0
      %v4291 = vadd.f32 %v4091, %v4290
      %v4292 = vpop.f32.mrf.mxu0
      %4293 = vmatprep.mubr.bf16.mxu0 0
      %4294 = vmatmul.mubr.bf16.gmra.mxu0 %v4069
      %v4295 = vpop.f32.mrf.mxu0
      %v4296 = vadd.f32 %v4091, %v4295
      %v4297 = vpop.f32.mrf.mxu0
      %v4298 = vpop.f32.mrf.mxu0
      %v4299 = vadd.f32 %v4091, %v4298
      %v4300 = vpop.f32.mrf.mxu0
      %4301 = vdwg.mxu0
      %v4302 = vmax.f32 %v4176, 0.0
      %v4303 = vmax.f32 %v4179, 0.0
      %v4304 = vmax.f32 %v4184, 0.0
      %v4305 = vmax.f32 %v4187, 0.0
      %v4306 = vmax.f32 %v4192, 0.0
      %v4307 = vmax.f32 %v4195, 0.0
      %v4308 = vmax.f32 %v4200, 0.0
      %v4309 = vmax.f32 %v4203, 0.0
      %v4310 = vmax.f32 %v4208, 0.0
      %v4311 = vmax.f32 %v4211, 0.0
      %v4312 = vmax.f32 %v4216, 0.0
      %v4313 = vmax.f32 %v4219, 0.0
      %v4314 = vmax.f32 %v4224, 0.0
      %v4315 = vmax.f32 %v4227, 0.0
      %v4316 = vmax.f32 %v4232, 0.0
      %v4317 = vmax.f32 %v4235, 0.0
      %v4318 = vmax.f32 %v4240, 0.0
      %v4319 = vmax.f32 %v4243, 0.0
      %v4320 = vmax.f32 %v4248, 0.0
      %v4321 = vmax.f32 %v4251, 0.0
      %v4322 = vmax.f32 %v4256, 0.0
      %v4323 = vmax.f32 %v4259, 0.0
      %v4324 = vmax.f32 %v4264, 0.0
      %v4325 = vmax.f32 %v4267, 0.0
      %v4326 = vmax.f32 %v4272, 0.0
      %v4327 = vmax.f32 %v4275, 0.0
      %v4328 = vmax.f32 %v4280, 0.0
      %v4329 = vmax.f32 %v4283, 0.0
      %v4330 = vmax.f32 %v4288, 0.0
      %v4331 = vmax.f32 %v4291, 0.0
      %v4332 = vmax.f32 %v4296, 0.0
      %v4333 = vmax.f32 %v4299, 0.0
      %v4334 = vpack.c.bf16 %v4303, %v4302
      %v4335 = vpack.c.bf16 %v4305, %v4304
      %v4336 = vpack.c.bf16 %v4307, %v4306
      %v4337 = vpack.c.bf16 %v4309, %v4308
      %v4338 = vpack.c.bf16 %v4311, %v4310
      %v4339 = vpack.c.bf16 %v4313, %v4312
      %v4340 = vpack.c.bf16 %v4315, %v4314
      %v4341 = vpack.c.bf16 %v4317, %v4316
      %v4342 = vpack.c.bf16 %v4319, %v4318
      %v4343 = vpack.c.bf16 %v4321, %v4320
      %v4344 = vpack.c.bf16 %v4323, %v4322
      %v4345 = vpack.c.bf16 %v4325, %v4324
      %v4346 = vpack.c.bf16 %v4327, %v4326
      %v4347 = vpack.c.bf16 %v4329, %v4328
      %v4348 = vpack.c.bf16 %v4331, %v4330
      %v4349 = vpack.c.bf16 %v4333, %v4332
      %v4350 = vld [vmem:[%s19] sm:$0xff]
      %v4351 = vld [vmem:[%s19 + $0x8] sm:$0xff]
      %v4352 = vld [vmem:[%s19 + $0x10] sm:$0xff]
      %v4353 = vld [vmem:[%s19 + $0x18] sm:$0xf]
      %v4354 = vld [vmem:[%s19 + $0x1c] sm:$0xff]
      %v4355 = vld [vmem:[%s19 + $0x24] sm:$0xff]
      %v4356 = vld [vmem:[%s19 + $0x2c] sm:$0xff]
      %v4357 = vld [vmem:[%s19 + $0x34] sm:$0xf]
      %v4358 = vld [vmem:[%s19 + $0x38] sm:$0xff]
      %v4359 = vld [vmem:[%s19 + $0x40] sm:$0xff]
      %v4360 = vld [vmem:[%s19 + $0x48] sm:$0xff]
      %v4361 = vld [vmem:[%s19 + $0x50] sm:$0xf]
      %v4362 = vld [vmem:[%s19 + $0x54] sm:$0xff]
      %v4363 = vld [vmem:[%s19 + $0x5c] sm:$0xff]
      %v4364 = vld [vmem:[%s19 + $0x64] sm:$0xff]
      %v4365 = vld [vmem:[%s19 + $0x6c] sm:$0xf]
      %v4366 = vld [vmem:[%s19 + $0x70] sm:$0xff]
      %v4367 = vld [vmem:[%s19 + $0x78] sm:$0xff]
      %v4368 = vld [vmem:[%s19 + $0x80] sm:$0xff]
      %v4369 = vld [vmem:[%s19 + $0x88] sm:$0xf]
      %v4370 = vld [vmem:[%s19 + $0x8c] sm:$0xff]
      %v4371 = vld [vmem:[%s19 + $0x94] sm:$0xff]
      %v4372 = vld [vmem:[%s19 + $0x9c] sm:$0xff]
      %v4373 = vld [vmem:[%s19 + $0xa4] sm:$0xf]
      %v4374 = vld [vmem:[%s19 + $0xa8] sm:$0xff]
      %v4375 = vld [vmem:[%s19 + $0xb0] sm:$0xff]
      %v4376 = vld [vmem:[%s19 + $0xb8] sm:$0xff]
      %v4377 = vld [vmem:[%s19 + $0xc0] sm:$0xf]
      %v4378 = vld [vmem:[%s19 + $0xc4] sm:$0xff]
      %v4379 = vld [vmem:[%s19 + $0xcc] sm:$0xff]
      %v4380 = vld [vmem:[%s19 + $0xd4] sm:$0xff]
      %v4381 = vld [vmem:[%s19 + $0xdc] sm:$0xf]
      %v4382 = vld [vmem:[%s19 + $0xe0] sm:$0xff]
      %v4383 = vld [vmem:[%s19 + $0xe8] sm:$0xff]
      %v4384 = vld [vmem:[%s19 + $0xf0] sm:$0xff]
      %v4385 = vld [vmem:[%s19 + $0xf8] sm:$0xf]
      %v4386 = vld [vmem:[%s19 + $0xfc] sm:$0xff]
      %v4387 = vld [vmem:[%s19 + $0x104] sm:$0xff]
      %v4388 = vld [vmem:[%s19 + $0x10c] sm:$0xff]
      %v4389 = vld [vmem:[%s19 + $0x114] sm:$0xf]
      %v4390 = vld [vmem:[%s19 + $0x118] sm:$0xff]
      %v4391 = vld [vmem:[%s19 + $0x120] sm:$0xff]
      %v4392 = vld [vmem:[%s19 + $0x128] sm:$0xff]
      %v4393 = vld [vmem:[%s19 + $0x130] sm:$0xf]
      %v4394 = vld [vmem:[%s19 + $0x134] sm:$0xff]
      %v4395 = vld [vmem:[%s19 + $0x13c] sm:$0xff]
      %v4396 = vld [vmem:[%s19 + $0x144] sm:$0xff]
      %v4397 = vld [vmem:[%s19 + $0x14c] sm:$0xf]
      %v4398 = vld [vmem:[%s19 + $0x150] sm:$0xff]
      %v4399 = vld [vmem:[%s19 + $0x158] sm:$0xff]
      %v4400 = vld [vmem:[%s19 + $0x160] sm:$0xff]
      %v4401 = vld [vmem:[%s19 + $0x168] sm:$0xf]
      %v4402 = vld [vmem:[%s19 + $0x16c] sm:$0xff]
      %v4403 = vld [vmem:[%s19 + $0x174] sm:$0xff]
      %v4404 = vld [vmem:[%s19 + $0x17c] sm:$0xff]
      %v4405 = vld [vmem:[%s19 + $0x184] sm:$0xf]
      %v4406 = vld [vmem:[%s19 + $0x188] sm:$0xff]
      %v4407 = vld [vmem:[%s19 + $0x190] sm:$0xff]
      %v4408 = vld [vmem:[%s19 + $0x198] sm:$0xff]
      %v4409 = vld [vmem:[%s19 + $0x1a0] sm:$0xf]
      %v4410 = vld [vmem:[%s19 + $0x1a4] sm:$0xff]
      %v4411 = vld [vmem:[%s19 + $0x1ac] sm:$0xff]
      %v4412 = vld [vmem:[%s19 + $0x1b4] sm:$0xff]
      %v4413 = vld [vmem:[%s19 + $0x1bc] sm:$0xf]
      %v4414 = vld [vmem:[%s20] sm:$0x7f]
      %v4416 = vlaneseq
      %v4417 = vshrl.u32 %v4416, 7
      %v4418 = vsub.s32 0, %v4417
      %v4419 = vrot.slane %v4414, %v4418
      %v4420 = vlaneseq
      %v4421 = vshrl.u32 %v4420, 7
      %v4422 = vsub.s32 1, %v4421
      %v4423 = vrot.slane %v4414, %v4422
      %v4424 = vlaneseq
      %v4425 = vshrl.u32 %v4424, 7
      %v4426 = vsub.s32 2, %v4425
      %v4427 = vrot.slane %v4414, %v4426
      %v4428 = vlaneseq
      %v4429 = vshrl.u32 %v4428, 7
      %v4430 = vsub.s32 3, %v4429
      %v4431 = vrot.slane %v4414, %v4430
      %v4432 = vlaneseq
      %v4433 = vshrl.u32 %v4432, 7
      %v4434 = vsub.s32 4, %v4433
      %v4435 = vrot.slane %v4414, %v4434
      %v4436 = vlaneseq
      %v4437 = vshrl.u32 %v4436, 7
      %v4438 = vsub.s32 5, %v4437
      %v4439 = vrot.slane %v4414, %v4438
      %v4440 = vlaneseq
      %v4441 = vshrl.u32 %v4440, 7
      %v4442 = vsub.s32 6, %v4441
      %v4443 = vrot.slane %v4414, %v4442
      %v4515 = vunpack.c.l.b16 %v4350
      %v4516 = vunpack.c.h.b16 %v4350
      %v4517 = vunpack.c.l.b16 %v4351
      %v4518 = vunpack.c.h.b16 %v4351
      %v4519 = vunpack.c.l.b16 %v4352
      %v4520 = vunpack.c.h.b16 %v4352
      %v4521 = vunpack.c.l.b16 %v4353
      %v4522 = vunpack.c.l.b16 %v4354
      %v4523 = vunpack.c.h.b16 %v4354
      %v4524 = vunpack.c.l.b16 %v4355
      %v4525 = vunpack.c.h.b16 %v4355
      %v4526 = vunpack.c.l.b16 %v4356
      %v4527 = vunpack.c.h.b16 %v4356
      %v4528 = vunpack.c.l.b16 %v4357
      %v4529 = vunpack.c.l.b16 %v4358
      %v4530 = vunpack.c.h.b16 %v4358
      %v4531 = vunpack.c.l.b16 %v4359
      %v4532 = vunpack.c.h.b16 %v4359
      %v4533 = vunpack.c.l.b16 %v4360
      %v4534 = vunpack.c.h.b16 %v4360
      %v4535 = vunpack.c.l.b16 %v4361
      %v4536 = vunpack.c.l.b16 %v4362
      %v4537 = vunpack.c.h.b16 %v4362
      %v4538 = vunpack.c.l.b16 %v4363
      %v4539 = vunpack.c.h.b16 %v4363
      %v4540 = vunpack.c.l.b16 %v4364
      %v4541 = vunpack.c.h.b16 %v4364
      %v4542 = vunpack.c.l.b16 %v4365
      %v4543 = vunpack.c.l.b16 %v4366
      %v4544 = vunpack.c.h.b16 %v4366
      %v4545 = vunpack.c.l.b16 %v4367
      %v4546 = vunpack.c.h.b16 %v4367
      %v4547 = vunpack.c.l.b16 %v4368
      %v4548 = vunpack.c.h.b16 %v4368
      %v4549 = vunpack.c.l.b16 %v4369
      %v4550 = vunpack.c.l.b16 %v4370
      %v4551 = vunpack.c.h.b16 %v4370
      %v4552 = vunpack.c.l.b16 %v4371
      %v4553 = vunpack.c.h.b16 %v4371
      %v4554 = vunpack.c.l.b16 %v4372
      %v4555 = vunpack.c.h.b16 %v4372
      %v4556 = vunpack.c.l.b16 %v4373
      %v4557 = vunpack.c.l.b16 %v4374
      %v4558 = vunpack.c.h.b16 %v4374
      %v4559 = vunpack.c.l.b16 %v4375
      %v4560 = vunpack.c.h.b16 %v4375
      %v4561 = vunpack.c.l.b16 %v4376
      %v4562 = vunpack.c.h.b16 %v4376
      %v4563 = vunpack.c.l.b16 %v4377
      %v4564 = vunpack.c.l.b16 %v4378
      %v4565 = vunpack.c.h.b16 %v4378
      %v4566 = vunpack.c.l.b16 %v4379
      %v4567 = vunpack.c.h.b16 %v4379
      %v4568 = vunpack.c.l.b16 %v4380
      %v4569 = vunpack.c.h.b16 %v4380
      %v4570 = vunpack.c.l.b16 %v4381
      %v4571 = vunpack.c.l.b16 %v4382
      %v4572 = vunpack.c.h.b16 %v4382
      %v4573 = vunpack.c.l.b16 %v4383
      %v4574 = vunpack.c.h.b16 %v4383
      %v4575 = vunpack.c.l.b16 %v4384
      %v4576 = vunpack.c.h.b16 %v4384
      %v4577 = vunpack.c.l.b16 %v4385
      %v4578 = vunpack.c.l.b16 %v4386
      %v4579 = vunpack.c.h.b16 %v4386
      %v4580 = vunpack.c.l.b16 %v4387
      %v4581 = vunpack.c.h.b16 %v4387
      %v4582 = vunpack.c.l.b16 %v4388
      %v4583 = vunpack.c.h.b16 %v4388
      %v4584 = vunpack.c.l.b16 %v4389
      %v4585 = vunpack.c.l.b16 %v4390
      %v4586 = vunpack.c.h.b16 %v4390
      %v4587 = vunpack.c.l.b16 %v4391
      %v4588 = vunpack.c.h.b16 %v4391
      %v4589 = vunpack.c.l.b16 %v4392
      %v4590 = vunpack.c.h.b16 %v4392
      %v4591 = vunpack.c.l.b16 %v4393
      %v4592 = vunpack.c.l.b16 %v4394
      %v4593 = vunpack.c.h.b16 %v4394
      %v4594 = vunpack.c.l.b16 %v4395
      %v4595 = vunpack.c.h.b16 %v4395
      %v4596 = vunpack.c.l.b16 %v4396
      %v4597 = vunpack.c.h.b16 %v4396
      %v4598 = vunpack.c.l.b16 %v4397
      %v4599 = vunpack.c.l.b16 %v4398
      %v4600 = vunpack.c.h.b16 %v4398
      %v4601 = vunpack.c.l.b16 %v4399
      %v4602 = vunpack.c.h.b16 %v4399
      %v4603 = vunpack.c.l.b16 %v4400
      %v4604 = vunpack.c.h.b16 %v4400
      %v4605 = vunpack.c.l.b16 %v4401
      %v4606 = vunpack.c.l.b16 %v4402
      %v4607 = vunpack.c.h.b16 %v4402
      %v4608 = vunpack.c.l.b16 %v4403
      %v4609 = vunpack.c.h.b16 %v4403
      %v4610 = vunpack.c.l.b16 %v4404
      %v4611 = vunpack.c.h.b16 %v4404
      %v4612 = vunpack.c.l.b16 %v4405
      %v4613 = vunpack.c.l.b16 %v4406
      %v4614 = vunpack.c.h.b16 %v4406
      %v4615 = vunpack.c.l.b16 %v4407
      %v4616 = vunpack.c.h.b16 %v4407
      %v4617 = vunpack.c.l.b16 %v4408
      %v4618 = vunpack.c.h.b16 %v4408
      %v4619 = vunpack.c.l.b16 %v4409
      %v4620 = vunpack.c.l.b16 %v4410
      %v4621 = vunpack.c.h.b16 %v4410
      %v4622 = vunpack.c.l.b16 %v4411
      %v4623 = vunpack.c.h.b16 %v4411
      %v4624 = vunpack.c.l.b16 %v4412
      %v4625 = vunpack.c.h.b16 %v4412
      %v4626 = vunpack.c.l.b16 %v4413
      %v4627 = vpack.c.b16 %v4522, %v4515
      %v4628 = vpack.c.b16 %v4523, %v4516
      %v4629 = vpack.c.b16 %v4524, %v4517
      %v4630 = vpack.c.b16 %v4525, %v4518
      %v4631 = vpack.c.b16 %v4526, %v4519
      %v4632 = vpack.c.b16 %v4527, %v4520
      %v4633 = vpack.c.b16 %v4528, %v4521
      %v4634 = vpack.c.b16 %v4536, %v4529
      %v4635 = vpack.c.b16 %v4537, %v4530
      %v4636 = vpack.c.b16 %v4538, %v4531
      %v4637 = vpack.c.b16 %v4539, %v4532
      %v4638 = vpack.c.b16 %v4540, %v4533
      %v4639 = vpack.c.b16 %v4541, %v4534
      %v4640 = vpack.c.b16 %v4542, %v4535
      %v4641 = vpack.c.b16 %v4550, %v4543
      %v4642 = vpack.c.b16 %v4551, %v4544
      %v4643 = vpack.c.b16 %v4552, %v4545
      %v4644 = vpack.c.b16 %v4553, %v4546
      %v4645 = vpack.c.b16 %v4554, %v4547
      %v4646 = vpack.c.b16 %v4555, %v4548
      %v4647 = vpack.c.b16 %v4556, %v4549
      %v4648 = vpack.c.b16 %v4564, %v4557
      %v4649 = vpack.c.b16 %v4565, %v4558
      %v4650 = vpack.c.b16 %v4566, %v4559
      %v4651 = vpack.c.b16 %v4567, %v4560
      %v4652 = vpack.c.b16 %v4568, %v4561
      %v4653 = vpack.c.b16 %v4569, %v4562
      %v4654 = vpack.c.b16 %v4570, %v4563
      %v4655 = vpack.c.b16 %v4578, %v4571
      %v4656 = vpack.c.b16 %v4579, %v4572
      %v4657 = vpack.c.b16 %v4580, %v4573
      %v4658 = vpack.c.b16 %v4581, %v4574
      %v4659 = vpack.c.b16 %v4582, %v4575
      %v4660 = vpack.c.b16 %v4583, %v4576
      %v4661 = vpack.c.b16 %v4584, %v4577
      %v4662 = vpack.c.b16 %v4592, %v4585
      %v4663 = vpack.c.b16 %v4593, %v4586
      %v4664 = vpack.c.b16 %v4594, %v4587
      %v4665 = vpack.c.b16 %v4595, %v4588
      %v4666 = vpack.c.b16 %v4596, %v4589
      %v4667 = vpack.c.b16 %v4597, %v4590
      %v4668 = vpack.c.b16 %v4598, %v4591
      %v4669 = vpack.c.b16 %v4606, %v4599
      %v4670 = vpack.c.b16 %v4607, %v4600
      %v4671 = vpack.c.b16 %v4608, %v4601
      %v4672 = vpack.c.b16 %v4609, %v4602
      %v4673 = vpack.c.b16 %v4610, %v4603
      %v4674 = vpack.c.b16 %v4611, %v4604
      %v4675 = vpack.c.b16 %v4612, %v4605
      %v4676 = vpack.c.b16 %v4620, %v4613
      %v4677 = vpack.c.b16 %v4621, %v4614
      %v4678 = vpack.c.b16 %v4622, %v4615
      %v4679 = vpack.c.b16 %v4623, %v4616
      %v4680 = vpack.c.b16 %v4624, %v4617
      %v4681 = vpack.c.b16 %v4625, %v4618
      %v4682 = vpack.c.b16 %v4626, %v4619
      %4739 = vmatprep.subr.bf16.mxu0 %v4677
      %4740 = vmatpush1.bf16.msra.mxu0 %v4676
      %4741 = vmatprep.subr.bf16.mxu0 %v4670
      %4742 = vmatpush1.bf16.msra.mxu0 %v4669
      %4743 = vmatprep.subr.bf16.mxu0 %v4663
      %4744 = vmatpush1.bf16.msra.mxu0 %v4662
      %4745 = vmatprep.subr.bf16.mxu0 %v4656
      %4746 = vmatpush1.bf16.msra.mxu0 %v4655
      %4747 = vmatprep.subr.bf16.mxu0 %v4649
      %4748 = vmatpush1.bf16.msra.mxu0 %v4648
      %4749 = vmatprep.subr.bf16.mxu0 %v4642
      %4750 = vmatpush1.bf16.msra.mxu0 %v4641
      %4751 = vmatprep.subr.bf16.mxu0 %v4635
      %4752 = vmatpush1.bf16.msra.mxu0 %v4634
      %4753 = vmatprep.subr.bf16.mxu0 %v4628
      %4754 = vmatpush1.bf16.msra.mxu0 %v4627
      %4755 = vmatprep.subr.bf16.mxu0 0
      %4756 = vmatpush2.bf16.msra.mxu0 0
      %4757 = vmatprep.subr.bf16.mxu0 0
      %4758 = vmatpush2.bf16.msra.mxu0 0
      %4759 = vmatprep.subr.bf16.mxu0 0
      %4760 = vmatpush2.bf16.msra.mxu0 0
      %4761 = vmatprep.subr.bf16.mxu0 0
      %4762 = vmatpush2.bf16.msra.mxu0 0
      %4763 = vmatprep.subr.bf16.mxu0 0
      %4764 = vmatpush2.bf16.msra.mxu0 0
      %4765 = vmatprep.subr.bf16.mxu0 0
      %4766 = vmatpush2.bf16.msra.mxu0 0
      %4767 = vmatprep.subr.bf16.mxu0 0
      %4768 = vmatpush2.bf16.msra.mxu0 0
      %4769 = vmatprep.subr.bf16.mxu0 0
      %4770 = vmatpush2.bf16.msra.mxu0 0
      %4771 = vmatprep.mubr.bf16.mxu0 0
      %4772 = vmatmul.mubr.bf16.gmra.mxu0 %v4334
      %v4773 = vpop.f32.mrf.mxu0
      %v4774 = vadd.f32 %v4419, %v4773
      %v4775 = vpop.f32.mrf.mxu0
      %v4776 = vadd.f32 %v4423, %v4775
      %v4777 = vpop.f32.mrf.mxu0
      %v4778 = vadd.f32 %v4419, %v4777
      %v4779 = vpop.f32.mrf.mxu0
      %v4780 = vadd.f32 %v4423, %v4779
      %4781 = vmatprep.mubr.bf16.mxu0 0
      %4782 = vmatmul.mubr.bf16.gmra.mxu0 %v4335
      %v4783 = vpop.f32.mrf.mxu0
      %v4784 = vadd.f32 %v4419, %v4783
      %v4785 = vpop.f32.mrf.mxu0
      %v4786 = vadd.f32 %v4423, %v4785
      %v4787 = vpop.f32.mrf.mxu0
      %v4788 = vadd.f32 %v4419, %v4787
      %v4789 = vpop.f32.mrf.mxu0
      %v4790 = vadd.f32 %v4423, %v4789
      %4791 = vmatprep.mubr.bf16.mxu0 0
      %4792 = vmatmul.mubr.bf16.gmra.mxu0 %v4336
      %v4793 = vpop.f32.mrf.mxu0
      %v4794 = vadd.f32 %v4419, %v4793
      %v4795 = vpop.f32.mrf.mxu0
      %v4796 = vadd.f32 %v4423, %v4795
      %v4797 = vpop.f32.mrf.mxu0
      %v4798 = vadd.f32 %v4419, %v4797
      %v4799 = vpop.f32.mrf.mxu0
      %v4800 = vadd.f32 %v4423, %v4799
      %4801 = vmatprep.mubr.bf16.mxu0 0
      %4802 = vmatmul.mubr.bf16.gmra.mxu0 %v4337
      %v4803 = vpop.f32.mrf.mxu0
      %v4804 = vadd.f32 %v4419, %v4803
      %v4805 = vpop.f32.mrf.mxu0
      %v4806 = vadd.f32 %v4423, %v4805
      %v4807 = vpop.f32.mrf.mxu0
      %v4808 = vadd.f32 %v4419, %v4807
      %v4809 = vpop.f32.mrf.mxu0
      %v4810 = vadd.f32 %v4423, %v4809
      %4811 = vmatprep.mubr.bf16.mxu0 0
      %4812 = vmatmul.mubr.bf16.gmra.mxu0 %v4338
      %v4813 = vpop.f32.mrf.mxu0
      %v4814 = vadd.f32 %v4419, %v4813
      %v4815 = vpop.f32.mrf.mxu0
      %v4816 = vadd.f32 %v4423, %v4815
      %v4817 = vpop.f32.mrf.mxu0
      %v4818 = vadd.f32 %v4419, %v4817
      %v4819 = vpop.f32.mrf.mxu0
      %v4820 = vadd.f32 %v4423, %v4819
      %4821 = vmatprep.mubr.bf16.mxu0 0
      %4822 = vmatmul.mubr.bf16.gmra.mxu0 %v4339
      %v4823 = vpop.f32.mrf.mxu0
      %v4824 = vadd.f32 %v4419, %v4823
      %v4825 = vpop.f32.mrf.mxu0
      %v4826 = vadd.f32 %v4423, %v4825
      %v4827 = vpop.f32.mrf.mxu0
      %v4828 = vadd.f32 %v4419, %v4827
      %v4829 = vpop.f32.mrf.mxu0
      %v4830 = vadd.f32 %v4423, %v4829
      %4831 = vmatprep.mubr.bf16.mxu0 0
      %4832 = vmatmul.mubr.bf16.gmra.mxu0 %v4340
      %v4833 = vpop.f32.mrf.mxu0
      %v4834 = vadd.f32 %v4419, %v4833
      %v4835 = vpop.f32.mrf.mxu0
      %v4836 = vadd.f32 %v4423, %v4835
      %v4837 = vpop.f32.mrf.mxu0
      %v4838 = vadd.f32 %v4419, %v4837
      %v4839 = vpop.f32.mrf.mxu0
      %v4840 = vadd.f32 %v4423, %v4839
      %4841 = vmatprep.mubr.bf16.mxu0 0
      %4842 = vmatmul.mubr.bf16.gmra.mxu0 %v4341
      %v4843 = vpop.f32.mrf.mxu0
      %v4844 = vadd.f32 %v4419, %v4843
      %v4845 = vpop.f32.mrf.mxu0
      %v4846 = vadd.f32 %v4423, %v4845
      %v4847 = vpop.f32.mrf.mxu0
      %v4848 = vadd.f32 %v4419, %v4847
      %v4849 = vpop.f32.mrf.mxu0
      %v4850 = vadd.f32 %v4423, %v4849
      %4851 = vmatprep.mubr.bf16.mxu0 0
      %4852 = vmatmul.mubr.bf16.gmra.mxu0 %v4342
      %v4853 = vpop.f32.mrf.mxu0
      %v4854 = vadd.f32 %v4419, %v4853
      %v4855 = vpop.f32.mrf.mxu0
      %v4856 = vadd.f32 %v4423, %v4855
      %v4857 = vpop.f32.mrf.mxu0
      %v4858 = vadd.f32 %v4419, %v4857
      %v4859 = vpop.f32.mrf.mxu0
      %v4860 = vadd.f32 %v4423, %v4859
      %4861 = vmatprep.mubr.bf16.mxu0 0
      %4862 = vmatmul.mubr.bf16.gmra.mxu0 %v4343
      %v4863 = vpop.f32.mrf.mxu0
      %v4864 = vadd.f32 %v4419, %v4863
      %v4865 = vpop.f32.mrf.mxu0
      %v4866 = vadd.f32 %v4423, %v4865
      %v4867 = vpop.f32.mrf.mxu0
      %v4868 = vadd.f32 %v4419, %v4867
      %v4869 = vpop.f32.mrf.mxu0
      %v4870 = vadd.f32 %v4423, %v4869
      %4871 = vmatprep.mubr.bf16.mxu0 0
      %4872 = vmatmul.mubr.bf16.gmra.mxu0 %v4344
      %v4873 = vpop.f32.mrf.mxu0
      %v4874 = vadd.f32 %v4419, %v4873
      %v4875 = vpop.f32.mrf.mxu0
      %v4876 = vadd.f32 %v4423, %v4875
      %v4877 = vpop.f32.mrf.mxu0
      %v4878 = vadd.f32 %v4419, %v4877
      %v4879 = vpop.f32.mrf.mxu0
      %v4880 = vadd.f32 %v4423, %v4879
      %4881 = vmatprep.mubr.bf16.mxu0 0
      %4882 = vmatmul.mubr.bf16.gmra.mxu0 %v4345
      %v4883 = vpop.f32.mrf.mxu0
      %v4884 = vadd.f32 %v4419, %v4883
      %v4885 = vpop.f32.mrf.mxu0
      %v4886 = vadd.f32 %v4423, %v4885
      %v4887 = vpop.f32.mrf.mxu0
      %v4888 = vadd.f32 %v4419, %v4887
      %v4889 = vpop.f32.mrf.mxu0
      %v4890 = vadd.f32 %v4423, %v4889
      %4891 = vmatprep.mubr.bf16.mxu0 0
      %4892 = vmatmul.mubr.bf16.gmra.mxu0 %v4346
      %v4893 = vpop.f32.mrf.mxu0
      %v4894 = vadd.f32 %v4419, %v4893
      %v4895 = vpop.f32.mrf.mxu0
      %v4896 = vadd.f32 %v4423, %v4895
      %v4897 = vpop.f32.mrf.mxu0
      %v4898 = vadd.f32 %v4419, %v4897
      %v4899 = vpop.f32.mrf.mxu0
      %v4900 = vadd.f32 %v4423, %v4899
      %4901 = vmatprep.mubr.bf16.mxu0 0
      %4902 = vmatmul.mubr.bf16.gmra.mxu0 %v4347
      %v4903 = vpop.f32.mrf.mxu0
      %v4904 = vadd.f32 %v4419, %v4903
      %v4905 = vpop.f32.mrf.mxu0
      %v4906 = vadd.f32 %v4423, %v4905
      %v4907 = vpop.f32.mrf.mxu0
      %v4908 = vadd.f32 %v4419, %v4907
      %v4909 = vpop.f32.mrf.mxu0
      %v4910 = vadd.f32 %v4423, %v4909
      %4911 = vmatprep.mubr.bf16.mxu0 0
      %4912 = vmatmul.mubr.bf16.gmra.mxu0 %v4348
      %v4913 = vpop.f32.mrf.mxu0
      %v4914 = vadd.f32 %v4419, %v4913
      %v4915 = vpop.f32.mrf.mxu0
      %v4916 = vadd.f32 %v4423, %v4915
      %v4917 = vpop.f32.mrf.mxu0
      %v4918 = vadd.f32 %v4419, %v4917
      %v4919 = vpop.f32.mrf.mxu0
      %v4920 = vadd.f32 %v4423, %v4919
      %4921 = vmatprep.mubr.bf16.mxu0 0
      %4922 = vmatmul.mubr.bf16.gmra.mxu0 %v4349
      %v4923 = vpop.f32.mrf.mxu0
      %v4924 = vadd.f32 %v4419, %v4923
      %v4925 = vpop.f32.mrf.mxu0
      %v4926 = vadd.f32 %v4423, %v4925
      %v4927 = vpop.f32.mrf.mxu0
      %v4928 = vadd.f32 %v4419, %v4927
      %v4929 = vpop.f32.mrf.mxu0
      %v4930 = vadd.f32 %v4423, %v4929
      %4931 = vdwg.mxu0
      %4932 = vmatprep.subr.bf16.mxu0 %v4679
      %4933 = vmatpush1.bf16.msra.mxu0 %v4678
      %4934 = vmatprep.subr.bf16.mxu0 %v4672
      %4935 = vmatpush1.bf16.msra.mxu0 %v4671
      %4936 = vmatprep.subr.bf16.mxu0 %v4665
      %4937 = vmatpush1.bf16.msra.mxu0 %v4664
      %4938 = vmatprep.subr.bf16.mxu0 %v4658
      %4939 = vmatpush1.bf16.msra.mxu0 %v4657
      %4940 = vmatprep.subr.bf16.mxu0 %v4651
      %4941 = vmatpush1.bf16.msra.mxu0 %v4650
      %4942 = vmatprep.subr.bf16.mxu0 %v4644
      %4943 = vmatpush1.bf16.msra.mxu0 %v4643
      %4944 = vmatprep.subr.bf16.mxu0 %v4637
      %4945 = vmatpush1.bf16.msra.mxu0 %v4636
      %4946 = vmatprep.subr.bf16.mxu0 %v4630
      %4947 = vmatpush1.bf16.msra.mxu0 %v4629
      %4948 = vmatprep.subr.bf16.mxu0 0
      %4949 = vmatpush2.bf16.msra.mxu0 0
      %4950 = vmatprep.subr.bf16.mxu0 0
      %4951 = vmatpush2.bf16.msra.mxu0 0
      %4952 = vmatprep.subr.bf16.mxu0 0
      %4953 = vmatpush2.bf16.msra.mxu0 0
      %4954 = vmatprep.subr.bf16.mxu0 0
      %4955 = vmatpush2.bf16.msra.mxu0 0
      %4956 = vmatprep.subr.bf16.mxu0 0
      %4957 = vmatpush2.bf16.msra.mxu0 0
      %4958 = vmatprep.subr.bf16.mxu0 0
      %4959 = vmatpush2.bf16.msra.mxu0 0
      %4960 = vmatprep.subr.bf16.mxu0 0
      %4961 = vmatpush2.bf16.msra.mxu0 0
      %4962 = vmatprep.subr.bf16.mxu0 0
      %4963 = vmatpush2.bf16.msra.mxu0 0
      %4964 = vmatprep.mubr.bf16.mxu0 0
      %4965 = vmatmul.mubr.bf16.gmra.mxu0 %v4334
      %v4966 = vpop.f32.mrf.mxu0
      %v4967 = vadd.f32 %v4427, %v4966
      %v4968 = vpop.f32.mrf.mxu0
      %v4969 = vadd.f32 %v4431, %v4968
      %v4970 = vpop.f32.mrf.mxu0
      %v4971 = vadd.f32 %v4427, %v4970
      %v4972 = vpop.f32.mrf.mxu0
      %v4973 = vadd.f32 %v4431, %v4972
      %4974 = vmatprep.mubr.bf16.mxu0 0
      %4975 = vmatmul.mubr.bf16.gmra.mxu0 %v4335
      %v4976 = vpop.f32.mrf.mxu0
      %v4977 = vadd.f32 %v4427, %v4976
      %v4978 = vpop.f32.mrf.mxu0
      %v4979 = vadd.f32 %v4431, %v4978
      %v4980 = vpop.f32.mrf.mxu0
      %v4981 = vadd.f32 %v4427, %v4980
      %v4982 = vpop.f32.mrf.mxu0
      %v4983 = vadd.f32 %v4431, %v4982
      %4984 = vmatprep.mubr.bf16.mxu0 0
      %4985 = vmatmul.mubr.bf16.gmra.mxu0 %v4336
      %v4986 = vpop.f32.mrf.mxu0
      %v4987 = vadd.f32 %v4427, %v4986
      %v4988 = vpop.f32.mrf.mxu0
      %v4989 = vadd.f32 %v4431, %v4988
      %v4990 = vpop.f32.mrf.mxu0
      %v4991 = vadd.f32 %v4427, %v4990
      %v4992 = vpop.f32.mrf.mxu0
      %v4993 = vadd.f32 %v4431, %v4992
      %4994 = vmatprep.mubr.bf16.mxu0 0
      %4995 = vmatmul.mubr.bf16.gmra.mxu0 %v4337
      %v4996 = vpop.f32.mrf.mxu0
      %v4997 = vadd.f32 %v4427, %v4996
      %v4998 = vpop.f32.mrf.mxu0
      %v4999 = vadd.f32 %v4431, %v4998
      %v5000 = vpop.f32.mrf.mxu0
      %v5001 = vadd.f32 %v4427, %v5000
      %v5002 = vpop.f32.mrf.mxu0
      %v5003 = vadd.f32 %v4431, %v5002
      %5004 = vmatprep.mubr.bf16.mxu0 0
      %5005 = vmatmul.mubr.bf16.gmra.mxu0 %v4338
      %v5006 = vpop.f32.mrf.mxu0
      %v5007 = vadd.f32 %v4427, %v5006
      %v5008 = vpop.f32.mrf.mxu0
      %v5009 = vadd.f32 %v4431, %v5008
      %v5010 = vpop.f32.mrf.mxu0
      %v5011 = vadd.f32 %v4427, %v5010
      %v5012 = vpop.f32.mrf.mxu0
      %v5013 = vadd.f32 %v4431, %v5012
      %5014 = vmatprep.mubr.bf16.mxu0 0
      %5015 = vmatmul.mubr.bf16.gmra.mxu0 %v4339
      %v5016 = vpop.f32.mrf.mxu0
      %v5017 = vadd.f32 %v4427, %v5016
      %v5018 = vpop.f32.mrf.mxu0
      %v5019 = vadd.f32 %v4431, %v5018
      %v5020 = vpop.f32.mrf.mxu0
      %v5021 = vadd.f32 %v4427, %v5020
      %v5022 = vpop.f32.mrf.mxu0
      %v5023 = vadd.f32 %v4431, %v5022
      %5024 = vmatprep.mubr.bf16.mxu0 0
      %5025 = vmatmul.mubr.bf16.gmra.mxu0 %v4340
      %v5026 = vpop.f32.mrf.mxu0
      %v5027 = vadd.f32 %v4427, %v5026
      %v5028 = vpop.f32.mrf.mxu0
      %v5029 = vadd.f32 %v4431, %v5028
      %v5030 = vpop.f32.mrf.mxu0
      %v5031 = vadd.f32 %v4427, %v5030
      %v5032 = vpop.f32.mrf.mxu0
      %v5033 = vadd.f32 %v4431, %v5032
      %5034 = vmatprep.mubr.bf16.mxu0 0
      %5035 = vmatmul.mubr.bf16.gmra.mxu0 %v4341
      %v5036 = vpop.f32.mrf.mxu0
      %v5037 = vadd.f32 %v4427, %v5036
      %v5038 = vpop.f32.mrf.mxu0
      %v5039 = vadd.f32 %v4431, %v5038
      %v5040 = vpop.f32.mrf.mxu0
      %v5041 = vadd.f32 %v4427, %v5040
      %v5042 = vpop.f32.mrf.mxu0
      %v5043 = vadd.f32 %v4431, %v5042
      %5044 = vmatprep.mubr.bf16.mxu0 0
      %5045 = vmatmul.mubr.bf16.gmra.mxu0 %v4342
      %v5046 = vpop.f32.mrf.mxu0
      %v5047 = vadd.f32 %v4427, %v5046
      %v5048 = vpop.f32.mrf.mxu0
      %v5049 = vadd.f32 %v4431, %v5048
      %v5050 = vpop.f32.mrf.mxu0
      %v5051 = vadd.f32 %v4427, %v5050
      %v5052 = vpop.f32.mrf.mxu0
      %v5053 = vadd.f32 %v4431, %v5052
      %5054 = vmatprep.mubr.bf16.mxu0 0
      %5055 = vmatmul.mubr.bf16.gmra.mxu0 %v4343
      %v5056 = vpop.f32.mrf.mxu0
      %v5057 = vadd.f32 %v4427, %v5056
      %v5058 = vpop.f32.mrf.mxu0
      %v5059 = vadd.f32 %v4431, %v5058
      %v5060 = vpop.f32.mrf.mxu0
      %v5061 = vadd.f32 %v4427, %v5060
      %v5062 = vpop.f32.mrf.mxu0
      %v5063 = vadd.f32 %v4431, %v5062
      %5064 = vmatprep.mubr.bf16.mxu0 0
      %5065 = vmatmul.mubr.bf16.gmra.mxu0 %v4344
      %v5066 = vpop.f32.mrf.mxu0
      %v5067 = vadd.f32 %v4427, %v5066
      %v5068 = vpop.f32.mrf.mxu0
      %v5069 = vadd.f32 %v4431, %v5068
      %v5070 = vpop.f32.mrf.mxu0
      %v5071 = vadd.f32 %v4427, %v5070
      %v5072 = vpop.f32.mrf.mxu0
      %v5073 = vadd.f32 %v4431, %v5072
      %5074 = vmatprep.mubr.bf16.mxu0 0
      %5075 = vmatmul.mubr.bf16.gmra.mxu0 %v4345
      %v5076 = vpop.f32.mrf.mxu0
      %v5077 = vadd.f32 %v4427, %v5076
      %v5078 = vpop.f32.mrf.mxu0
      %v5079 = vadd.f32 %v4431, %v5078
      %v5080 = vpop.f32.mrf.mxu0
      %v5081 = vadd.f32 %v4427, %v5080
      %v5082 = vpop.f32.mrf.mxu0
      %v5083 = vadd.f32 %v4431, %v5082
      %5084 = vmatprep.mubr.bf16.mxu0 0
      %5085 = vmatmul.mubr.bf16.gmra.mxu0 %v4346
      %v5086 = vpop.f32.mrf.mxu0
      %v5087 = vadd.f32 %v4427, %v5086
      %v5088 = vpop.f32.mrf.mxu0
      %v5089 = vadd.f32 %v4431, %v5088
      %v5090 = vpop.f32.mrf.mxu0
      %v5091 = vadd.f32 %v4427, %v5090
      %v5092 = vpop.f32.mrf.mxu0
      %v5093 = vadd.f32 %v4431, %v5092
      %5094 = vmatprep.mubr.bf16.mxu0 0
      %5095 = vmatmul.mubr.bf16.gmra.mxu0 %v4347
      %v5096 = vpop.f32.mrf.mxu0
      %v5097 = vadd.f32 %v4427, %v5096
      %v5098 = vpop.f32.mrf.mxu0
      %v5099 = vadd.f32 %v4431, %v5098
      %v5100 = vpop.f32.mrf.mxu0
      %v5101 = vadd.f32 %v4427, %v5100
      %v5102 = vpop.f32.mrf.mxu0
      %v5103 = vadd.f32 %v4431, %v5102
      %5104 = vmatprep.mubr.bf16.mxu0 0
      %5105 = vmatmul.mubr.bf16.gmra.mxu0 %v4348
      %v5106 = vpop.f32.mrf.mxu0
      %v5107 = vadd.f32 %v4427, %v5106
      %v5108 = vpop.f32.mrf.mxu0
      %v5109 = vadd.f32 %v4431, %v5108
      %v5110 = vpop.f32.mrf.mxu0
      %v5111 = vadd.f32 %v4427, %v5110
      %v5112 = vpop.f32.mrf.mxu0
      %v5113 = vadd.f32 %v4431, %v5112
      %5114 = vmatprep.mubr.bf16.mxu0 0
      %5115 = vmatmul.mubr.bf16.gmra.mxu0 %v4349
      %v5116 = vpop.f32.mrf.mxu0
      %v5117 = vadd.f32 %v4427, %v5116
      %v5118 = vpop.f32.mrf.mxu0
      %v5119 = vadd.f32 %v4431, %v5118
      %v5120 = vpop.f32.mrf.mxu0
      %v5121 = vadd.f32 %v4427, %v5120
      %v5122 = vpop.f32.mrf.mxu0
      %v5123 = vadd.f32 %v4431, %v5122
      %5124 = vdwg.mxu0
      %5125 = vmatprep.subr.bf16.mxu0 %v4681
      %5126 = vmatpush1.bf16.msra.mxu0 %v4680
      %5127 = vmatprep.subr.bf16.mxu0 %v4674
      %5128 = vmatpush1.bf16.msra.mxu0 %v4673
      %5129 = vmatprep.subr.bf16.mxu0 %v4667
      %5130 = vmatpush1.bf16.msra.mxu0 %v4666
      %5131 = vmatprep.subr.bf16.mxu0 %v4660
      %5132 = vmatpush1.bf16.msra.mxu0 %v4659
      %5133 = vmatprep.subr.bf16.mxu0 %v4653
      %5134 = vmatpush1.bf16.msra.mxu0 %v4652
      %5135 = vmatprep.subr.bf16.mxu0 %v4646
      %5136 = vmatpush1.bf16.msra.mxu0 %v4645
      %5137 = vmatprep.subr.bf16.mxu0 %v4639
      %5138 = vmatpush1.bf16.msra.mxu0 %v4638
      %5139 = vmatprep.subr.bf16.mxu0 %v4632
      %5140 = vmatpush1.bf16.msra.mxu0 %v4631
      %5141 = vmatprep.subr.bf16.mxu0 0
      %5142 = vmatpush2.bf16.msra.mxu0 0
      %5143 = vmatprep.subr.bf16.mxu0 0
      %5144 = vmatpush2.bf16.msra.mxu0 0
      %5145 = vmatprep.subr.bf16.mxu0 0
      %5146 = vmatpush2.bf16.msra.mxu0 0
      %5147 = vmatprep.subr.bf16.mxu0 0
      %5148 = vmatpush2.bf16.msra.mxu0 0
      %5149 = vmatprep.subr.bf16.mxu0 0
      %5150 = vmatpush2.bf16.msra.mxu0 0
      %5151 = vmatprep.subr.bf16.mxu0 0
      %5152 = vmatpush2.bf16.msra.mxu0 0
      %5153 = vmatprep.subr.bf16.mxu0 0
      %5154 = vmatpush2.bf16.msra.mxu0 0
      %5155 = vmatprep.subr.bf16.mxu0 0
      %5156 = vmatpush2.bf16.msra.mxu0 0
      %5157 = vmatprep.mubr.bf16.mxu0 0
      %5158 = vmatmul.mubr.bf16.gmra.mxu0 %v4334
      %v5159 = vpop.f32.mrf.mxu0
      %v5160 = vadd.f32 %v4435, %v5159
      %v5161 = vpop.f32.mrf.mxu0
      %v5162 = vadd.f32 %v4439, %v5161
      %v5163 = vpop.f32.mrf.mxu0
      %v5164 = vadd.f32 %v4435, %v5163
      %v5165 = vpop.f32.mrf.mxu0
      %v5166 = vadd.f32 %v4439, %v5165
      %5167 = vmatprep.mubr.bf16.mxu0 0
      %5168 = vmatmul.mubr.bf16.gmra.mxu0 %v4335
      %v5169 = vpop.f32.mrf.mxu0
      %v5170 = vadd.f32 %v4435, %v5169
      %v5171 = vpop.f32.mrf.mxu0
      %v5172 = vadd.f32 %v4439, %v5171
      %v5173 = vpop.f32.mrf.mxu0
      %v5174 = vadd.f32 %v4435, %v5173
      %v5175 = vpop.f32.mrf.mxu0
      %v5176 = vadd.f32 %v4439, %v5175
      %5177 = vmatprep.mubr.bf16.mxu0 0
      %5178 = vmatmul.mubr.bf16.gmra.mxu0 %v4336
      %v5179 = vpop.f32.mrf.mxu0
      %v5180 = vadd.f32 %v4435, %v5179
      %v5181 = vpop.f32.mrf.mxu0
      %v5182 = vadd.f32 %v4439, %v5181
      %v5183 = vpop.f32.mrf.mxu0
      %v5184 = vadd.f32 %v4435, %v5183
      %v5185 = vpop.f32.mrf.mxu0
      %v5186 = vadd.f32 %v4439, %v5185
      %5187 = vmatprep.mubr.bf16.mxu0 0
      %5188 = vmatmul.mubr.bf16.gmra.mxu0 %v4337
      %v5189 = vpop.f32.mrf.mxu0
      %v5190 = vadd.f32 %v4435, %v5189
      %v5191 = vpop.f32.mrf.mxu0
      %v5192 = vadd.f32 %v4439, %v5191
      %v5193 = vpop.f32.mrf.mxu0
      %v5194 = vadd.f32 %v4435, %v5193
      %v5195 = vpop.f32.mrf.mxu0
      %v5196 = vadd.f32 %v4439, %v5195
      %5197 = vmatprep.mubr.bf16.mxu0 0
      %5198 = vmatmul.mubr.bf16.gmra.mxu0 %v4338
      %v5199 = vpop.f32.mrf.mxu0
      %v5200 = vadd.f32 %v4435, %v5199
      %v5201 = vpop.f32.mrf.mxu0
      %v5202 = vadd.f32 %v4439, %v5201
      %v5203 = vpop.f32.mrf.mxu0
      %v5204 = vadd.f32 %v4435, %v5203
      %v5205 = vpop.f32.mrf.mxu0
      %v5206 = vadd.f32 %v4439, %v5205
      %5207 = vmatprep.mubr.bf16.mxu0 0
      %5208 = vmatmul.mubr.bf16.gmra.mxu0 %v4339
      %v5209 = vpop.f32.mrf.mxu0
      %v5210 = vadd.f32 %v4435, %v5209
      %v5211 = vpop.f32.mrf.mxu0
      %v5212 = vadd.f32 %v4439, %v5211
      %v5213 = vpop.f32.mrf.mxu0
      %v5214 = vadd.f32 %v4435, %v5213
      %v5215 = vpop.f32.mrf.mxu0
      %v5216 = vadd.f32 %v4439, %v5215
      %5217 = vmatprep.mubr.bf16.mxu0 0
      %5218 = vmatmul.mubr.bf16.gmra.mxu0 %v4340
      %v5219 = vpop.f32.mrf.mxu0
      %v5220 = vadd.f32 %v4435, %v5219
      %v5221 = vpop.f32.mrf.mxu0
      %v5222 = vadd.f32 %v4439, %v5221
      %v5223 = vpop.f32.mrf.mxu0
      %v5224 = vadd.f32 %v4435, %v5223
      %v5225 = vpop.f32.mrf.mxu0
      %v5226 = vadd.f32 %v4439, %v5225
      %5227 = vmatprep.mubr.bf16.mxu0 0
      %5228 = vmatmul.mubr.bf16.gmra.mxu0 %v4341
      %v5229 = vpop.f32.mrf.mxu0
      %v5230 = vadd.f32 %v4435, %v5229
      %v5231 = vpop.f32.mrf.mxu0
      %v5232 = vadd.f32 %v4439, %v5231
      %v5233 = vpop.f32.mrf.mxu0
      %v5234 = vadd.f32 %v4435, %v5233
      %v5235 = vpop.f32.mrf.mxu0
      %v5236 = vadd.f32 %v4439, %v5235
      %5237 = vmatprep.mubr.bf16.mxu0 0
      %5238 = vmatmul.mubr.bf16.gmra.mxu0 %v4342
      %v5239 = vpop.f32.mrf.mxu0
      %v5240 = vadd.f32 %v4435, %v5239
      %v5241 = vpop.f32.mrf.mxu0
      %v5242 = vadd.f32 %v4439, %v5241
      %v5243 = vpop.f32.mrf.mxu0
      %v5244 = vadd.f32 %v4435, %v5243
      %v5245 = vpop.f32.mrf.mxu0
      %v5246 = vadd.f32 %v4439, %v5245
      %5247 = vmatprep.mubr.bf16.mxu0 0
      %5248 = vmatmul.mubr.bf16.gmra.mxu0 %v4343
      %v5249 = vpop.f32.mrf.mxu0
      %v5250 = vadd.f32 %v4435, %v5249
      %v5251 = vpop.f32.mrf.mxu0
      %v5252 = vadd.f32 %v4439, %v5251
      %v5253 = vpop.f32.mrf.mxu0
      %v5254 = vadd.f32 %v4435, %v5253
      %v5255 = vpop.f32.mrf.mxu0
      %v5256 = vadd.f32 %v4439, %v5255
      %5257 = vmatprep.mubr.bf16.mxu0 0
      %5258 = vmatmul.mubr.bf16.gmra.mxu0 %v4344
      %v5259 = vpop.f32.mrf.mxu0
      %v5260 = vadd.f32 %v4435, %v5259
      %v5261 = vpop.f32.mrf.mxu0
      %v5262 = vadd.f32 %v4439, %v5261
      %v5263 = vpop.f32.mrf.mxu0
      %v5264 = vadd.f32 %v4435, %v5263
      %v5265 = vpop.f32.mrf.mxu0
      %v5266 = vadd.f32 %v4439, %v5265
      %5267 = vmatprep.mubr.bf16.mxu0 0
      %5268 = vmatmul.mubr.bf16.gmra.mxu0 %v4345
      %v5269 = vpop.f32.mrf.mxu0
      %v5270 = vadd.f32 %v4435, %v5269
      %v5271 = vpop.f32.mrf.mxu0
      %v5272 = vadd.f32 %v4439, %v5271
      %v5273 = vpop.f32.mrf.mxu0
      %v5274 = vadd.f32 %v4435, %v5273
      %v5275 = vpop.f32.mrf.mxu0
      %v5276 = vadd.f32 %v4439, %v5275
      %5277 = vmatprep.mubr.bf16.mxu0 0
      %5278 = vmatmul.mubr.bf16.gmra.mxu0 %v4346
      %v5279 = vpop.f32.mrf.mxu0
      %v5280 = vadd.f32 %v4435, %v5279
      %v5281 = vpop.f32.mrf.mxu0
      %v5282 = vadd.f32 %v4439, %v5281
      %v5283 = vpop.f32.mrf.mxu0
      %v5284 = vadd.f32 %v4435, %v5283
      %v5285 = vpop.f32.mrf.mxu0
      %v5286 = vadd.f32 %v4439, %v5285
      %5287 = vmatprep.mubr.bf16.mxu0 0
      %5288 = vmatmul.mubr.bf16.gmra.mxu0 %v4347
      %v5289 = vpop.f32.mrf.mxu0
      %v5290 = vadd.f32 %v4435, %v5289
      %v5291 = vpop.f32.mrf.mxu0
      %v5292 = vadd.f32 %v4439, %v5291
      %v5293 = vpop.f32.mrf.mxu0
      %v5294 = vadd.f32 %v4435, %v5293
      %v5295 = vpop.f32.mrf.mxu0
      %v5296 = vadd.f32 %v4439, %v5295
      %5297 = vmatprep.mubr.bf16.mxu0 0
      %5298 = vmatmul.mubr.bf16.gmra.mxu0 %v4348
      %v5299 = vpop.f32.mrf.mxu0
      %v5300 = vadd.f32 %v4435, %v5299
      %v5301 = vpop.f32.mrf.mxu0
      %v5302 = vadd.f32 %v4439, %v5301
      %v5303 = vpop.f32.mrf.mxu0
      %v5304 = vadd.f32 %v4435, %v5303
      %v5305 = vpop.f32.mrf.mxu0
      %v5306 = vadd.f32 %v4439, %v5305
      %5307 = vmatprep.mubr.bf16.mxu0 0
      %5308 = vmatmul.mubr.bf16.gmra.mxu0 %v4349
      %v5309 = vpop.f32.mrf.mxu0
      %v5310 = vadd.f32 %v4435, %v5309
      %v5311 = vpop.f32.mrf.mxu0
      %v5312 = vadd.f32 %v4439, %v5311
      %v5313 = vpop.f32.mrf.mxu0
      %v5314 = vadd.f32 %v4435, %v5313
      %v5315 = vpop.f32.mrf.mxu0
      %v5316 = vadd.f32 %v4439, %v5315
      %5317 = vdwg.mxu0
      %5318 = vmatprep.subr.bf16.mxu0 0
      %5319 = vmatpush1.bf16.msra.mxu0 %v4682
      %5320 = vmatprep.subr.bf16.mxu0 0
      %5321 = vmatpush1.bf16.msra.mxu0 %v4675
      %5322 = vmatprep.subr.bf16.mxu0 0
      %5323 = vmatpush1.bf16.msra.mxu0 %v4668
      %5324 = vmatprep.subr.bf16.mxu0 0
      %5325 = vmatpush1.bf16.msra.mxu0 %v4661
      %5326 = vmatprep.subr.bf16.mxu0 0
      %5327 = vmatpush1.bf16.msra.mxu0 %v4654
      %5328 = vmatprep.subr.bf16.mxu0 0
      %5329 = vmatpush1.bf16.msra.mxu0 %v4647
      %5330 = vmatprep.subr.bf16.mxu0 0
      %5331 = vmatpush1.bf16.msra.mxu0 %v4640
      %5332 = vmatprep.subr.bf16.mxu0 0
      %5333 = vmatpush1.bf16.msra.mxu0 %v4633
      %5334 = vmatprep.subr.bf16.mxu0 0
      %5335 = vmatpush2.bf16.msra.mxu0 0
      %5336 = vmatprep.subr.bf16.mxu0 0
      %5337 = vmatpush2.bf16.msra.mxu0 0
      %5338 = vmatprep.subr.bf16.mxu0 0
      %5339 = vmatpush2.bf16.msra.mxu0 0
      %5340 = vmatprep.subr.bf16.mxu0 0
      %5341 = vmatpush2.bf16.msra.mxu0 0
      %5342 = vmatprep.subr.bf16.mxu0 0
      %5343 = vmatpush2.bf16.msra.mxu0 0
      %5344 = vmatprep.subr.bf16.mxu0 0
      %5345 = vmatpush2.bf16.msra.mxu0 0
      %5346 = vmatprep.subr.bf16.mxu0 0
      %5347 = vmatpush2.bf16.msra.mxu0 0
      %5348 = vmatprep.subr.bf16.mxu0 0
      %5349 = vmatpush2.bf16.msra.mxu0 0
      %5350 = vmatprep.mubr.bf16.mxu0 0
      %5351 = vmatmul.mubr.bf16.gmra.mxu0 %v4334
      %v5352 = vpop.f32.mrf.mxu0
      %v5353 = vadd.f32 %v4443, %v5352
      %v5354 = vpop.f32.mrf.mxu0
      %v5355 = vpop.f32.mrf.mxu0
      %v5356 = vadd.f32 %v4443, %v5355
      %v5357 = vpop.f32.mrf.mxu0
      %5358 = vmatprep.mubr.bf16.mxu0 0
      %5359 = vmatmul.mubr.bf16.gmra.mxu0 %v4335
      %v5360 = vpop.f32.mrf.mxu0
      %v5361 = vadd.f32 %v4443, %v5360
      %v5362 = vpop.f32.mrf.mxu0
      %v5363 = vpop.f32.mrf.mxu0
      %v5364 = vadd.f32 %v4443, %v5363
      %v5365 = vpop.f32.mrf.mxu0
      %5366 = vmatprep.mubr.bf16.mxu0 0
      %5367 = vmatmul.mubr.bf16.gmra.mxu0 %v4336
      %v5368 = vpop.f32.mrf.mxu0
      %v5369 = vadd.f32 %v4443, %v5368
      %v5370 = vpop.f32.mrf.mxu0
      %v5371 = vpop.f32.mrf.mxu0
      %v5372 = vadd.f32 %v4443, %v5371
      %v5373 = vpop.f32.mrf.mxu0
      %5374 = vmatprep.mubr.bf16.mxu0 0
      %5375 = vmatmul.mubr.bf16.gmra.mxu0 %v4337
      %v5376 = vpop.f32.mrf.mxu0
      %v5377 = vadd.f32 %v4443, %v5376
      %v5378 = vpop.f32.mrf.mxu0
      %v5379 = vpop.f32.mrf.mxu0
      %v5380 = vadd.f32 %v4443, %v5379
      %v5381 = vpop.f32.mrf.mxu0
      %5382 = vmatprep.mubr.bf16.mxu0 0
      %5383 = vmatmul.mubr.bf16.gmra.mxu0 %v4338
      %v5384 = vpop.f32.mrf.mxu0
      %v5385 = vadd.f32 %v4443, %v5384
      %v5386 = vpop.f32.mrf.mxu0
      %v5387 = vpop.f32.mrf.mxu0
      %v5388 = vadd.f32 %v4443, %v5387
      %v5389 = vpop.f32.mrf.mxu0
      %5390 = vmatprep.mubr.bf16.mxu0 0
      %5391 = vmatmul.mubr.bf16.gmra.mxu0 %v4339
      %v5392 = vpop.f32.mrf.mxu0
      %v5393 = vadd.f32 %v4443, %v5392
      %v5394 = vpop.f32.mrf.mxu0
      %v5395 = vpop.f32.mrf.mxu0
      %v5396 = vadd.f32 %v4443, %v5395
      %v5397 = vpop.f32.mrf.mxu0
      %5398 = vmatprep.mubr.bf16.mxu0 0
      %5399 = vmatmul.mubr.bf16.gmra.mxu0 %v4340
      %v5400 = vpop.f32.mrf.mxu0
      %v5401 = vadd.f32 %v4443, %v5400
      %v5402 = vpop.f32.mrf.mxu0
      %v5403 = vpop.f32.mrf.mxu0
      %v5404 = vadd.f32 %v4443, %v5403
      %v5405 = vpop.f32.mrf.mxu0
      %5406 = vmatprep.mubr.bf16.mxu0 0
      %5407 = vmatmul.mubr.bf16.gmra.mxu0 %v4341
      %v5408 = vpop.f32.mrf.mxu0
      %v5409 = vadd.f32 %v4443, %v5408
      %v5410 = vpop.f32.mrf.mxu0
      %v5411 = vpop.f32.mrf.mxu0
      %v5412 = vadd.f32 %v4443, %v5411
      %v5413 = vpop.f32.mrf.mxu0
      %5414 = vmatprep.mubr.bf16.mxu0 0
      %5415 = vmatmul.mubr.bf16.gmra.mxu0 %v4342
      %v5416 = vpop.f32.mrf.mxu0
      %v5417 = vadd.f32 %v4443, %v5416
      %v5418 = vpop.f32.mrf.mxu0
      %v5419 = vpop.f32.mrf.mxu0
      %v5420 = vadd.f32 %v4443, %v5419
      %v5421 = vpop.f32.mrf.mxu0
      %5422 = vmatprep.mubr.bf16.mxu0 0
      %5423 = vmatmul.mubr.bf16.gmra.mxu0 %v4343
      %v5424 = vpop.f32.mrf.mxu0
      %v5425 = vadd.f32 %v4443, %v5424
      %v5426 = vpop.f32.mrf.mxu0
      %v5427 = vpop.f32.mrf.mxu0
      %v5428 = vadd.f32 %v4443, %v5427
      %v5429 = vpop.f32.mrf.mxu0
      %5430 = vmatprep.mubr.bf16.mxu0 0
      %5431 = vmatmul.mubr.bf16.gmra.mxu0 %v4344
      %v5432 = vpop.f32.mrf.mxu0
      %v5433 = vadd.f32 %v4443, %v5432
      %v5434 = vpop.f32.mrf.mxu0
      %v5435 = vpop.f32.mrf.mxu0
      %v5436 = vadd.f32 %v4443, %v5435
      %v5437 = vpop.f32.mrf.mxu0
      %5438 = vmatprep.mubr.bf16.mxu0 0
      %5439 = vmatmul.mubr.bf16.gmra.mxu0 %v4345
      %v5440 = vpop.f32.mrf.mxu0
      %v5441 = vadd.f32 %v4443, %v5440
      %v5442 = vpop.f32.mrf.mxu0
      %v5443 = vpop.f32.mrf.mxu0
      %v5444 = vadd.f32 %v4443, %v5443
      %v5445 = vpop.f32.mrf.mxu0
      %5446 = vmatprep.mubr.bf16.mxu0 0
      %5447 = vmatmul.mubr.bf16.gmra.mxu0 %v4346
      %v5448 = vpop.f32.mrf.mxu0
      %v5449 = vadd.f32 %v4443, %v5448
      %v5450 = vpop.f32.mrf.mxu0
      %v5451 = vpop.f32.mrf.mxu0
      %v5452 = vadd.f32 %v4443, %v5451
      %v5453 = vpop.f32.mrf.mxu0
      %5454 = vmatprep.mubr.bf16.mxu0 0
      %5455 = vmatmul.mubr.bf16.gmra.mxu0 %v4347
      %v5456 = vpop.f32.mrf.mxu0
      %v5457 = vadd.f32 %v4443, %v5456
      %v5458 = vpop.f32.mrf.mxu0
      %v5459 = vpop.f32.mrf.mxu0
      %v5460 = vadd.f32 %v4443, %v5459
      %v5461 = vpop.f32.mrf.mxu0
      %5462 = vmatprep.mubr.bf16.mxu0 0
      %5463 = vmatmul.mubr.bf16.gmra.mxu0 %v4348
      %v5464 = vpop.f32.mrf.mxu0
      %v5465 = vadd.f32 %v4443, %v5464
      %v5466 = vpop.f32.mrf.mxu0
      %v5467 = vpop.f32.mrf.mxu0
      %v5468 = vadd.f32 %v4443, %v5467
      %v5469 = vpop.f32.mrf.mxu0
      %5470 = vmatprep.mubr.bf16.mxu0 0
      %5471 = vmatmul.mubr.bf16.gmra.mxu0 %v4349
      %v5472 = vpop.f32.mrf.mxu0
      %v5473 = vadd.f32 %v4443, %v5472
      %v5474 = vpop.f32.mrf.mxu0
      %v5475 = vpop.f32.mrf.mxu0
      %v5476 = vadd.f32 %v4443, %v5475
      %v5477 = vpop.f32.mrf.mxu0
      %5478 = vdwg.mxu0
      %v5479 = vsub.f32 0.0, %v4774
      %v5480 = vsub.f32 0.0, %v4776
      %v5481 = vsub.f32 0.0, %v4967
      %v5482 = vsub.f32 0.0, %v4969
      %v5483 = vsub.f32 0.0, %v5160
      %v5484 = vsub.f32 0.0, %v5162
      %v5485 = vsub.f32 0.0, %v5353
      %v5486 = vsub.f32 0.0, %v4778
      %v5487 = vsub.f32 0.0, %v4780
      %v5488 = vsub.f32 0.0, %v4971
      %v5489 = vsub.f32 0.0, %v4973
      %v5490 = vsub.f32 0.0, %v5164
      %v5491 = vsub.f32 0.0, %v5166
      %v5492 = vsub.f32 0.0, %v5356
      %v5493 = vsub.f32 0.0, %v4784
      %v5494 = vsub.f32 0.0, %v4786
      %v5495 = vsub.f32 0.0, %v4977
      %v5496 = vsub.f32 0.0, %v4979
      %v5497 = vsub.f32 0.0, %v5170
      %v5498 = vsub.f32 0.0, %v5172
      %v5499 = vsub.f32 0.0, %v5361
      %v5500 = vsub.f32 0.0, %v4788
      %v5501 = vsub.f32 0.0, %v4790
      %v5502 = vsub.f32 0.0, %v4981
      %v5503 = vsub.f32 0.0, %v4983
      %v5504 = vsub.f32 0.0, %v5174
      %v5505 = vsub.f32 0.0, %v5176
      %v5506 = vsub.f32 0.0, %v5364
      %v5507 = vsub.f32 0.0, %v4794
      %v5508 = vsub.f32 0.0, %v4796
      %v5509 = vsub.f32 0.0, %v4987
      %v5510 = vsub.f32 0.0, %v4989
      %v5511 = vsub.f32 0.0, %v5180
      %v5512 = vsub.f32 0.0, %v5182
      %v5513 = vsub.f32 0.0, %v5369
      %v5514 = vsub.f32 0.0, %v4798
      %v5515 = vsub.f32 0.0, %v4800
      %v5516 = vsub.f32 0.0, %v4991
      %v5517 = vsub.f32 0.0, %v4993
      %v5518 = vsub.f32 0.0, %v5184
      %v5519 = vsub.f32 0.0, %v5186
      %v5520 = vsub.f32 0.0, %v5372
      %v5521 = vsub.f32 0.0, %v4804
      %v5522 = vsub.f32 0.0, %v4806
      %v5523 = vsub.f32 0.0, %v4997
      %v5524 = vsub.f32 0.0, %v4999
      %v5525 = vsub.f32 0.0, %v5190
      %v5526 = vsub.f32 0.0, %v5192
      %v5527 = vsub.f32 0.0, %v5377
      %v5528 = vsub.f32 0.0, %v4808
      %v5529 = vsub.f32 0.0, %v4810
      %v5530 = vsub.f32 0.0, %v5001
      %v5531 = vsub.f32 0.0, %v5003
      %v5532 = vsub.f32 0.0, %v5194
      %v5533 = vsub.f32 0.0, %v5196
      %v5534 = vsub.f32 0.0, %v5380
      %v5535 = vsub.f32 0.0, %v4814
      %v5536 = vsub.f32 0.0, %v4816
      %v5537 = vsub.f32 0.0, %v5007
      %v5538 = vsub.f32 0.0, %v5009
      %v5539 = vsub.f32 0.0, %v5200
      %v5540 = vsub.f32 0.0, %v5202
      %v5541 = vsub.f32 0.0, %v5385
      %v5542 = vsub.f32 0.0, %v4818
      %v5543 = vsub.f32 0.0, %v4820
      %v5544 = vsub.f32 0.0, %v5011
      %v5545 = vsub.f32 0.0, %v5013
      %v5546 = vsub.f32 0.0, %v5204
      %v5547 = vsub.f32 0.0, %v5206
      %v5548 = vsub.f32 0.0, %v5388
      %v5549 = vsub.f32 0.0, %v4824
      %v5550 = vsub.f32 0.0, %v4826
      %v5551 = vsub.f32 0.0, %v5017
      %v5552 = vsub.f32 0.0, %v5019
      %v5553 = vsub.f32 0.0, %v5210
      %v5554 = vsub.f32 0.0, %v5212
      %v5555 = vsub.f32 0.0, %v5393
      %v5556 = vsub.f32 0.0, %v4828
      %v5557 = vsub.f32 0.0, %v4830
      %v5558 = vsub.f32 0.0, %v5021
      %v5559 = vsub.f32 0.0, %v5023
      %v5560 = vsub.f32 0.0, %v5214
      %v5561 = vsub.f32 0.0, %v5216
      %v5562 = vsub.f32 0.0, %v5396
      %v5563 = vsub.f32 0.0, %v4834
      %v5564 = vsub.f32 0.0, %v4836
      %v5565 = vsub.f32 0.0, %v5027
      %v5566 = vsub.f32 0.0, %v5029
      %v5567 = vsub.f32 0.0, %v5220
      %v5568 = vsub.f32 0.0, %v5222
      %v5569 = vsub.f32 0.0, %v5401
      %v5570 = vsub.f32 0.0, %v4838
      %v5571 = vsub.f32 0.0, %v4840
      %v5572 = vsub.f32 0.0, %v5031
      %v5573 = vsub.f32 0.0, %v5033
      %v5574 = vsub.f32 0.0, %v5224
      %v5575 = vsub.f32 0.0, %v5226
      %v5576 = vsub.f32 0.0, %v5404
      %v5577 = vsub.f32 0.0, %v4844
      %v5578 = vsub.f32 0.0, %v4846
      %v5579 = vsub.f32 0.0, %v5037
      %v5580 = vsub.f32 0.0, %v5039
      %v5581 = vsub.f32 0.0, %v5230
      %v5582 = vsub.f32 0.0, %v5232
      %v5583 = vsub.f32 0.0, %v5409
      %v5584 = vsub.f32 0.0, %v4848
      %v5585 = vsub.f32 0.0, %v4850
      %v5586 = vsub.f32 0.0, %v5041
      %v5587 = vsub.f32 0.0, %v5043
      %v5588 = vsub.f32 0.0, %v5234
      %v5589 = vsub.f32 0.0, %v5236
      %v5590 = vsub.f32 0.0, %v5412
      %v5591 = vsub.f32 0.0, %v4854
      %v5592 = vsub.f32 0.0, %v4856
      %v5593 = vsub.f32 0.0, %v5047
      %v5594 = vsub.f32 0.0, %v5049
      %v5595 = vsub.f32 0.0, %v5240
      %v5596 = vsub.f32 0.0, %v5242
      %v5597 = vsub.f32 0.0, %v5417
      %v5598 = vsub.f32 0.0, %v4858
      %v5599 = vsub.f32 0.0, %v4860
      %v5600 = vsub.f32 0.0, %v5051
      %v5601 = vsub.f32 0.0, %v5053
      %v5602 = vsub.f32 0.0, %v5244
      %v5603 = vsub.f32 0.0, %v5246
      %v5604 = vsub.f32 0.0, %v5420
      %v5605 = vsub.f32 0.0, %v4864
      %v5606 = vsub.f32 0.0, %v4866
      %v5607 = vsub.f32 0.0, %v5057
      %v5608 = vsub.f32 0.0, %v5059
      %v5609 = vsub.f32 0.0, %v5250
      %v5610 = vsub.f32 0.0, %v5252
      %v5611 = vsub.f32 0.0, %v5425
      %v5612 = vsub.f32 0.0, %v4868
      %v5613 = vsub.f32 0.0, %v4870
      %v5614 = vsub.f32 0.0, %v5061
      %v5615 = vsub.f32 0.0, %v5063
      %v5616 = vsub.f32 0.0, %v5254
      %v5617 = vsub.f32 0.0, %v5256
      %v5618 = vsub.f32 0.0, %v5428
      %v5619 = vsub.f32 0.0, %v4874
      %v5620 = vsub.f32 0.0, %v4876
      %v5621 = vsub.f32 0.0, %v5067
      %v5622 = vsub.f32 0.0, %v5069
      %v5623 = vsub.f32 0.0, %v5260
      %v5624 = vsub.f32 0.0, %v5262
      %v5625 = vsub.f32 0.0, %v5433
      %v5626 = vsub.f32 0.0, %v4878
      %v5627 = vsub.f32 0.0, %v4880
      %v5628 = vsub.f32 0.0, %v5071
      %v5629 = vsub.f32 0.0, %v5073
      %v5630 = vsub.f32 0.0, %v5264
      %v5631 = vsub.f32 0.0, %v5266
      %v5632 = vsub.f32 0.0, %v5436
      %v5633 = vsub.f32 0.0, %v4884
      %v5634 = vsub.f32 0.0, %v4886
      %v5635 = vsub.f32 0.0, %v5077
      %v5636 = vsub.f32 0.0, %v5079
      %v5637 = vsub.f32 0.0, %v5270
      %v5638 = vsub.f32 0.0, %v5272
      %v5639 = vsub.f32 0.0, %v5441
      %v5640 = vsub.f32 0.0, %v4888
      %v5641 = vsub.f32 0.0, %v4890
      %v5642 = vsub.f32 0.0, %v5081
      %v5643 = vsub.f32 0.0, %v5083
      %v5644 = vsub.f32 0.0, %v5274
      %v5645 = vsub.f32 0.0, %v5276
      %v5646 = vsub.f32 0.0, %v5444
      %v5647 = vsub.f32 0.0, %v4894
      %v5648 = vsub.f32 0.0, %v4896
      %v5649 = vsub.f32 0.0, %v5087
      %v5650 = vsub.f32 0.0, %v5089
      %v5651 = vsub.f32 0.0, %v5280
      %v5652 = vsub.f32 0.0, %v5282
      %v5653 = vsub.f32 0.0, %v5449
      %v5654 = vsub.f32 0.0, %v4898
      %v5655 = vsub.f32 0.0, %v4900
      %v5656 = vsub.f32 0.0, %v5091
      %v5657 = vsub.f32 0.0, %v5093
      %v5658 = vsub.f32 0.0, %v5284
      %v5659 = vsub.f32 0.0, %v5286
      %v5660 = vsub.f32 0.0, %v5452
      %v5661 = vsub.f32 0.0, %v4904
      %v5662 = vsub.f32 0.0, %v4906
      %v5663 = vsub.f32 0.0, %v5097
      %v5664 = vsub.f32 0.0, %v5099
      %v5665 = vsub.f32 0.0, %v5290
      %v5666 = vsub.f32 0.0, %v5292
      %v5667 = vsub.f32 0.0, %v5457
      %v5668 = vsub.f32 0.0, %v4908
      %v5669 = vsub.f32 0.0, %v4910
      %v5670 = vsub.f32 0.0, %v5101
      %v5671 = vsub.f32 0.0, %v5103
      %v5672 = vsub.f32 0.0, %v5294
      %v5673 = vsub.f32 0.0, %v5296
      %v5674 = vsub.f32 0.0, %v5460
      %v5675 = vsub.f32 0.0, %v4914
      %v5676 = vsub.f32 0.0, %v4916
      %v5677 = vsub.f32 0.0, %v5107
      %v5678 = vsub.f32 0.0, %v5109
      %v5679 = vsub.f32 0.0, %v5300
      %v5680 = vsub.f32 0.0, %v5302
      %v5681 = vsub.f32 0.0, %v5465
      %v5682 = vsub.f32 0.0, %v4918
      %v5683 = vsub.f32 0.0, %v4920
      %v5684 = vsub.f32 0.0, %v5111
      %v5685 = vsub.f32 0.0, %v5113
      %v5686 = vsub.f32 0.0, %v5304
      %v5687 = vsub.f32 0.0, %v5306
      %v5688 = vsub.f32 0.0, %v5468
      %v5689 = vsub.f32 0.0, %v4924
      %v5690 = vsub.f32 0.0, %v4926
      %v5691 = vsub.f32 0.0, %v5117
      %v5692 = vsub.f32 0.0, %v5119
      %v5693 = vsub.f32 0.0, %v5310
      %v5694 = vsub.f32 0.0, %v5312
      %v5695 = vsub.f32 0.0, %v5473
      %v5696 = vsub.f32 0.0, %v4928
      %v5697 = vsub.f32 0.0, %v4930
      %v5698 = vsub.f32 0.0, %v5121
      %v5699 = vsub.f32 0.0, %v5123
      %v5700 = vsub.f32 0.0, %v5314
      %v5701 = vsub.f32 0.0, %v5316
      %v5702 = vsub.f32 0.0, %v5476
      %v5703 = vmul.f32 %v5479, 1.442695
      %v5704 = vpow.pop %v5703
      %v5705 = vmul.f32 %v5480, 1.442695
      %v5706 = vpow.pop %v5705
      %v5707 = vmul.f32 %v5481, 1.442695
      %v5708 = vpow.pop %v5707
      %v5709 = vmul.f32 %v5482, 1.442695
      %v5710 = vpow.pop %v5709
      %v5711 = vmul.f32 %v5483, 1.442695
      %v5712 = vpow.pop %v5711
      %v5713 = vmul.f32 %v5484, 1.442695
      %v5714 = vpow.pop %v5713
      %v5715 = vmul.f32 %v5485, 1.442695
      %v5716 = vpow.pop %v5715
      %v5717 = vmul.f32 %v5486, 1.442695
      %v5718 = vpow.pop %v5717
      %v5719 = vmul.f32 %v5487, 1.442695
      %v5720 = vpow.pop %v5719
      %v5721 = vmul.f32 %v5488, 1.442695
      %v5722 = vpow.pop %v5721
      %v5723 = vmul.f32 %v5489, 1.442695
      %v5724 = vpow.pop %v5723
      %v5725 = vmul.f32 %v5490, 1.442695
      %v5726 = vpow.pop %v5725
      %v5727 = vmul.f32 %v5491, 1.442695
      %v5728 = vpow.pop %v5727
      %v5729 = vmul.f32 %v5492, 1.442695
      %v5730 = vpow.pop %v5729
      %v5731 = vmul.f32 %v5493, 1.442695
      %v5732 = vpow.pop %v5731
      %v5733 = vmul.f32 %v5494, 1.442695
      %v5734 = vpow.pop %v5733
      %v5735 = vmul.f32 %v5495, 1.442695
      %v5736 = vpow.pop %v5735
      %v5737 = vmul.f32 %v5496, 1.442695
      %v5738 = vpow.pop %v5737
      %v5739 = vmul.f32 %v5497, 1.442695
      %v5740 = vpow.pop %v5739
      %v5741 = vmul.f32 %v5498, 1.442695
      %v5742 = vpow.pop %v5741
      %v5743 = vmul.f32 %v5499, 1.442695
      %v5744 = vpow.pop %v5743
      %v5745 = vmul.f32 %v5500, 1.442695
      %v5746 = vpow.pop %v5745
      %v5747 = vmul.f32 %v5501, 1.442695
      %v5748 = vpow.pop %v5747
      %v5749 = vmul.f32 %v5502, 1.442695
      %v5750 = vpow.pop %v5749
      %v5751 = vmul.f32 %v5503, 1.442695
      %v5752 = vpow.pop %v5751
      %v5753 = vmul.f32 %v5504, 1.442695
      %v5754 = vpow.pop %v5753
      %v5755 = vmul.f32 %v5505, 1.442695
      %v5756 = vpow.pop %v5755
      %v5757 = vmul.f32 %v5506, 1.442695
      %v5758 = vpow.pop %v5757
      %v5759 = vmul.f32 %v5507, 1.442695
      %v5760 = vpow.pop %v5759
      %v5761 = vmul.f32 %v5508, 1.442695
      %v5762 = vpow.pop %v5761
      %v5763 = vmul.f32 %v5509, 1.442695
      %v5764 = vpow.pop %v5763
      %v5765 = vmul.f32 %v5510, 1.442695
      %v5766 = vpow.pop %v5765
      %v5767 = vmul.f32 %v5511, 1.442695
      %v5768 = vpow.pop %v5767
      %v5769 = vmul.f32 %v5512, 1.442695
      %v5770 = vpow.pop %v5769
      %v5771 = vmul.f32 %v5513, 1.442695
      %v5772 = vpow.pop %v5771
      %v5773 = vmul.f32 %v5514, 1.442695
      %v5774 = vpow.pop %v5773
      %v5775 = vmul.f32 %v5515, 1.442695
      %v5776 = vpow.pop %v5775
      %v5777 = vmul.f32 %v5516, 1.442695
      %v5778 = vpow.pop %v5777
      %v5779 = vmul.f32 %v5517, 1.442695
      %v5780 = vpow.pop %v5779
      %v5781 = vmul.f32 %v5518, 1.442695
      %v5782 = vpow.pop %v5781
      %v5783 = vmul.f32 %v5519, 1.442695
      %v5784 = vpow.pop %v5783
      %v5785 = vmul.f32 %v5520, 1.442695
      %v5786 = vpow.pop %v5785
      %v5787 = vmul.f32 %v5521, 1.442695
      %v5788 = vpow.pop %v5787
      %v5789 = vmul.f32 %v5522, 1.442695
      %v5790 = vpow.pop %v5789
      %v5791 = vmul.f32 %v5523, 1.442695
      %v5792 = vpow.pop %v5791
      %v5793 = vmul.f32 %v5524, 1.442695
      %v5794 = vpow.pop %v5793
      %v5795 = vmul.f32 %v5525, 1.442695
      %v5796 = vpow.pop %v5795
      %v5797 = vmul.f32 %v5526, 1.442695
      %v5798 = vpow.pop %v5797
      %v5799 = vmul.f32 %v5527, 1.442695
      %v5800 = vpow.pop %v5799
      %v5801 = vmul.f32 %v5528, 1.442695
      %v5802 = vpow.pop %v5801
      %v5803 = vmul.f32 %v5529, 1.442695
      %v5804 = vpow.pop %v5803
      %v5805 = vmul.f32 %v5530, 1.442695
      %v5806 = vpow.pop %v5805
      %v5807 = vmul.f32 %v5531, 1.442695
      %v5808 = vpow.pop %v5807
      %v5809 = vmul.f32 %v5532, 1.442695
      %v5810 = vpow.pop %v5809
      %v5811 = vmul.f32 %v5533, 1.442695
      %v5812 = vpow.pop %v5811
      %v5813 = vmul.f32 %v5534, 1.442695
      %v5814 = vpow.pop %v5813
      %v5815 = vmul.f32 %v5535, 1.442695
      %v5816 = vpow.pop %v5815
      %v5817 = vmul.f32 %v5536, 1.442695
      %v5818 = vpow.pop %v5817
      %v5819 = vmul.f32 %v5537, 1.442695
      %v5820 = vpow.pop %v5819
      %v5821 = vmul.f32 %v5538, 1.442695
      %v5822 = vpow.pop %v5821
      %v5823 = vmul.f32 %v5539, 1.442695
      %v5824 = vpow.pop %v5823
      %v5825 = vmul.f32 %v5540, 1.442695
      %v5826 = vpow.pop %v5825
      %v5827 = vmul.f32 %v5541, 1.442695
      %v5828 = vpow.pop %v5827
      %v5829 = vmul.f32 %v5542, 1.442695
      %v5830 = vpow.pop %v5829
      %v5831 = vmul.f32 %v5543, 1.442695
      %v5832 = vpow.pop %v5831
      %v5833 = vmul.f32 %v5544, 1.442695
      %v5834 = vpow.pop %v5833
      %v5835 = vmul.f32 %v5545, 1.442695
      %v5836 = vpow.pop %v5835
      %v5837 = vmul.f32 %v5546, 1.442695
      %v5838 = vpow.pop %v5837
      %v5839 = vmul.f32 %v5547, 1.442695
      %v5840 = vpow.pop %v5839
      %v5841 = vmul.f32 %v5548, 1.442695
      %v5842 = vpow.pop %v5841
      %v5843 = vmul.f32 %v5549, 1.442695
      %v5844 = vpow.pop %v5843
      %v5845 = vmul.f32 %v5550, 1.442695
      %v5846 = vpow.pop %v5845
      %v5847 = vmul.f32 %v5551, 1.442695
      %v5848 = vpow.pop %v5847
      %v5849 = vmul.f32 %v5552, 1.442695
      %v5850 = vpow.pop %v5849
      %v5851 = vmul.f32 %v5553, 1.442695
      %v5852 = vpow.pop %v5851
      %v5853 = vmul.f32 %v5554, 1.442695
      %v5854 = vpow.pop %v5853
      %v5855 = vmul.f32 %v5555, 1.442695
      %v5856 = vpow.pop %v5855
      %v5857 = vmul.f32 %v5556, 1.442695
      %v5858 = vpow.pop %v5857
      %v5859 = vmul.f32 %v5557, 1.442695
      %v5860 = vpow.pop %v5859
      %v5861 = vmul.f32 %v5558, 1.442695
      %v5862 = vpow.pop %v5861
      %v5863 = vmul.f32 %v5559, 1.442695
      %v5864 = vpow.pop %v5863
      %v5865 = vmul.f32 %v5560, 1.442695
      %v5866 = vpow.pop %v5865
      %v5867 = vmul.f32 %v5561, 1.442695
      %v5868 = vpow.pop %v5867
      %v5869 = vmul.f32 %v5562, 1.442695
      %v5870 = vpow.pop %v5869
      %v5871 = vmul.f32 %v5563, 1.442695
      %v5872 = vpow.pop %v5871
      %v5873 = vmul.f32 %v5564, 1.442695
      %v5874 = vpow.pop %v5873
      %v5875 = vmul.f32 %v5565, 1.442695
      %v5876 = vpow.pop %v5875
      %v5877 = vmul.f32 %v5566, 1.442695
      %v5878 = vpow.pop %v5877
      %v5879 = vmul.f32 %v5567, 1.442695
      %v5880 = vpow.pop %v5879
      %v5881 = vmul.f32 %v5568, 1.442695
      %v5882 = vpow.pop %v5881
      %v5883 = vmul.f32 %v5569, 1.442695
      %v5884 = vpow.pop %v5883
      %v5885 = vmul.f32 %v5570, 1.442695
      %v5886 = vpow.pop %v5885
      %v5887 = vmul.f32 %v5571, 1.442695
      %v5888 = vpow.pop %v5887
      %v5889 = vmul.f32 %v5572, 1.442695
      %v5890 = vpow.pop %v5889
      %v5891 = vmul.f32 %v5573, 1.442695
      %v5892 = vpow.pop %v5891
      %v5893 = vmul.f32 %v5574, 1.442695
      %v5894 = vpow.pop %v5893
      %v5895 = vmul.f32 %v5575, 1.442695
      %v5896 = vpow.pop %v5895
      %v5897 = vmul.f32 %v5576, 1.442695
      %v5898 = vpow.pop %v5897
      %v5899 = vmul.f32 %v5577, 1.442695
      %v5900 = vpow.pop %v5899
      %v5901 = vmul.f32 %v5578, 1.442695
      %v5902 = vpow.pop %v5901
      %v5903 = vmul.f32 %v5579, 1.442695
      %v5904 = vpow.pop %v5903
      %v5905 = vmul.f32 %v5580, 1.442695
      %v5906 = vpow.pop %v5905
      %v5907 = vmul.f32 %v5581, 1.442695
      %v5908 = vpow.pop %v5907
      %v5909 = vmul.f32 %v5582, 1.442695
      %v5910 = vpow.pop %v5909
      %v5911 = vmul.f32 %v5583, 1.442695
      %v5912 = vpow.pop %v5911
      %v5913 = vmul.f32 %v5584, 1.442695
      %v5914 = vpow.pop %v5913
      %v5915 = vmul.f32 %v5585, 1.442695
      %v5916 = vpow.pop %v5915
      %v5917 = vmul.f32 %v5586, 1.442695
      %v5918 = vpow.pop %v5917
      %v5919 = vmul.f32 %v5587, 1.442695
      %v5920 = vpow.pop %v5919
      %v5921 = vmul.f32 %v5588, 1.442695
      %v5922 = vpow.pop %v5921
      %v5923 = vmul.f32 %v5589, 1.442695
      %v5924 = vpow.pop %v5923
      %v5925 = vmul.f32 %v5590, 1.442695
      %v5926 = vpow.pop %v5925
      %v5927 = vmul.f32 %v5591, 1.442695
      %v5928 = vpow.pop %v5927
      %v5929 = vmul.f32 %v5592, 1.442695
      %v5930 = vpow.pop %v5929
      %v5931 = vmul.f32 %v5593, 1.442695
      %v5932 = vpow.pop %v5931
      %v5933 = vmul.f32 %v5594, 1.442695
      %v5934 = vpow.pop %v5933
      %v5935 = vmul.f32 %v5595, 1.442695
      %v5936 = vpow.pop %v5935
      %v5937 = vmul.f32 %v5596, 1.442695
      %v5938 = vpow.pop %v5937
      %v5939 = vmul.f32 %v5597, 1.442695
      %v5940 = vpow.pop %v5939
      %v5941 = vmul.f32 %v5598, 1.442695
      %v5942 = vpow.pop %v5941
      %v5943 = vmul.f32 %v5599, 1.442695
      %v5944 = vpow.pop %v5943
      %v5945 = vmul.f32 %v5600, 1.442695
      %v5946 = vpow.pop %v5945
      %v5947 = vmul.f32 %v5601, 1.442695
      %v5948 = vpow.pop %v5947
      %v5949 = vmul.f32 %v5602, 1.442695
      %v5950 = vpow.pop %v5949
      %v5951 = vmul.f32 %v5603, 1.442695
      %v5952 = vpow.pop %v5951
      %v5953 = vmul.f32 %v5604, 1.442695
      %v5954 = vpow.pop %v5953
      %v5955 = vmul.f32 %v5605, 1.442695
      %v5956 = vpow.pop %v5955
      %v5957 = vmul.f32 %v5606, 1.442695
      %v5958 = vpow.pop %v5957
      %v5959 = vmul.f32 %v5607, 1.442695
      %v5960 = vpow.pop %v5959
      %v5961 = vmul.f32 %v5608, 1.442695
      %v5962 = vpow.pop %v5961
      %v5963 = vmul.f32 %v5609, 1.442695
      %v5964 = vpow.pop %v5963
      %v5965 = vmul.f32 %v5610, 1.442695
      %v5966 = vpow.pop %v5965
      %v5967 = vmul.f32 %v5611, 1.442695
      %v5968 = vpow.pop %v5967
      %v5969 = vmul.f32 %v5612, 1.442695
      %v5970 = vpow.pop %v5969
      %v5971 = vmul.f32 %v5613, 1.442695
      %v5972 = vpow.pop %v5971
      %v5973 = vmul.f32 %v5614, 1.442695
      %v5974 = vpow.pop %v5973
      %v5975 = vmul.f32 %v5615, 1.442695
      %v5976 = vpow.pop %v5975
      %v5977 = vmul.f32 %v5616, 1.442695
      %v5978 = vpow.pop %v5977
      %v5979 = vmul.f32 %v5617, 1.442695
      %v5980 = vpow.pop %v5979
      %v5981 = vmul.f32 %v5618, 1.442695
      %v5982 = vpow.pop %v5981
      %v5983 = vmul.f32 %v5619, 1.442695
      %v5984 = vpow.pop %v5983
      %v5985 = vmul.f32 %v5620, 1.442695
      %v5986 = vpow.pop %v5985
      %v5987 = vmul.f32 %v5621, 1.442695
      %v5988 = vpow.pop %v5987
      %v5989 = vmul.f32 %v5622, 1.442695
      %v5990 = vpow.pop %v5989
      %v5991 = vmul.f32 %v5623, 1.442695
      %v5992 = vpow.pop %v5991
      %v5993 = vmul.f32 %v5624, 1.442695
      %v5994 = vpow.pop %v5993
      %v5995 = vmul.f32 %v5625, 1.442695
      %v5996 = vpow.pop %v5995
      %v5997 = vmul.f32 %v5626, 1.442695
      %v5998 = vpow.pop %v5997
      %v5999 = vmul.f32 %v5627, 1.442695
      %v6000 = vpow.pop %v5999
      %v6001 = vmul.f32 %v5628, 1.442695
      %v6002 = vpow.pop %v6001
      %v6003 = vmul.f32 %v5629, 1.442695
      %v6004 = vpow.pop %v6003
      %v6005 = vmul.f32 %v5630, 1.442695
      %v6006 = vpow.pop %v6005
      %v6007 = vmul.f32 %v5631, 1.442695
      %v6008 = vpow.pop %v6007
      %v6009 = vmul.f32 %v5632, 1.442695
      %v6010 = vpow.pop %v6009
      %v6011 = vmul.f32 %v5633, 1.442695
      %v6012 = vpow.pop %v6011
      %v6013 = vmul.f32 %v5634, 1.442695
      %v6014 = vpow.pop %v6013
      %v6015 = vmul.f32 %v5635, 1.442695
      %v6016 = vpow.pop %v6015
      %v6017 = vmul.f32 %v5636, 1.442695
      %v6018 = vpow.pop %v6017
      %v6019 = vmul.f32 %v5637, 1.442695
      %v6020 = vpow.pop %v6019
      %v6021 = vmul.f32 %v5638, 1.442695
      %v6022 = vpow.pop %v6021
      %v6023 = vmul.f32 %v5639, 1.442695
      %v6024 = vpow.pop %v6023
      %v6025 = vmul.f32 %v5640, 1.442695
      %v6026 = vpow.pop %v6025
      %v6027 = vmul.f32 %v5641, 1.442695
      %v6028 = vpow.pop %v6027
      %v6029 = vmul.f32 %v5642, 1.442695
      %v6030 = vpow.pop %v6029
      %v6031 = vmul.f32 %v5643, 1.442695
      %v6032 = vpow.pop %v6031
      %v6033 = vmul.f32 %v5644, 1.442695
      %v6034 = vpow.pop %v6033
      %v6035 = vmul.f32 %v5645, 1.442695
      %v6036 = vpow.pop %v6035
      %v6037 = vmul.f32 %v5646, 1.442695
      %v6038 = vpow.pop %v6037
      %v6039 = vmul.f32 %v5647, 1.442695
      %v6040 = vpow.pop %v6039
      %v6041 = vmul.f32 %v5648, 1.442695
      %v6042 = vpow.pop %v6041
      %v6043 = vmul.f32 %v5649, 1.442695
      %v6044 = vpow.pop %v6043
      %v6045 = vmul.f32 %v5650, 1.442695
      %v6046 = vpow.pop %v6045
      %v6047 = vmul.f32 %v5651, 1.442695
      %v6048 = vpow.pop %v6047
      %v6049 = vmul.f32 %v5652, 1.442695
      %v6050 = vpow.pop %v6049
      %v6051 = vmul.f32 %v5653, 1.442695
      %v6052 = vpow.pop %v6051
      %v6053 = vmul.f32 %v5654, 1.442695
      %v6054 = vpow.pop %v6053
      %v6055 = vmul.f32 %v5655, 1.442695
      %v6056 = vpow.pop %v6055
      %v6057 = vmul.f32 %v5656, 1.442695
      %v6058 = vpow.pop %v6057
      %v6059 = vmul.f32 %v5657, 1.442695
      %v6060 = vpow.pop %v6059
      %v6061 = vmul.f32 %v5658, 1.442695
      %v6062 = vpow.pop %v6061
      %v6063 = vmul.f32 %v5659, 1.442695
      %v6064 = vpow.pop %v6063
      %v6065 = vmul.f32 %v5660, 1.442695
      %v6066 = vpow.pop %v6065
      %v6067 = vmul.f32 %v5661, 1.442695
      %v6068 = vpow.pop %v6067
      %v6069 = vmul.f32 %v5662, 1.442695
      %v6070 = vpow.pop %v6069
      %v6071 = vmul.f32 %v5663, 1.442695
      %v6072 = vpow.pop %v6071
      %v6073 = vmul.f32 %v5664, 1.442695
      %v6074 = vpow.pop %v6073
      %v6075 = vmul.f32 %v5665, 1.442695
      %v6076 = vpow.pop %v6075
      %v6077 = vmul.f32 %v5666, 1.442695
      %v6078 = vpow.pop %v6077
      %v6079 = vmul.f32 %v5667, 1.442695
      %v6080 = vpow.pop %v6079
      %v6081 = vmul.f32 %v5668, 1.442695
      %v6082 = vpow.pop %v6081
      %v6083 = vmul.f32 %v5669, 1.442695
      %v6084 = vpow.pop %v6083
      %v6085 = vmul.f32 %v5670, 1.442695
      %v6086 = vpow.pop %v6085
      %v6087 = vmul.f32 %v5671, 1.442695
      %v6088 = vpow.pop %v6087
      %v6089 = vmul.f32 %v5672, 1.442695
      %v6090 = vpow.pop %v6089
      %v6091 = vmul.f32 %v5673, 1.442695
      %v6092 = vpow.pop %v6091
      %v6093 = vmul.f32 %v5674, 1.442695
      %v6094 = vpow.pop %v6093
      %v6095 = vmul.f32 %v5675, 1.442695
      %v6096 = vpow.pop %v6095
      %v6097 = vmul.f32 %v5676, 1.442695
      %v6098 = vpow.pop %v6097
      %v6099 = vmul.f32 %v5677, 1.442695
      %v6100 = vpow.pop %v6099
      %v6101 = vmul.f32 %v5678, 1.442695
      %v6102 = vpow.pop %v6101
      %v6103 = vmul.f32 %v5679, 1.442695
      %v6104 = vpow.pop %v6103
      %v6105 = vmul.f32 %v5680, 1.442695
      %v6106 = vpow.pop %v6105
      %v6107 = vmul.f32 %v5681, 1.442695
      %v6108 = vpow.pop %v6107
      %v6109 = vmul.f32 %v5682, 1.442695
      %v6110 = vpow.pop %v6109
      %v6111 = vmul.f32 %v5683, 1.442695
      %v6112 = vpow.pop %v6111
      %v6113 = vmul.f32 %v5684, 1.442695
      %v6114 = vpow.pop %v6113
      %v6115 = vmul.f32 %v5685, 1.442695
      %v6116 = vpow.pop %v6115
      %v6117 = vmul.f32 %v5686, 1.442695
      %v6118 = vpow.pop %v6117
      %v6119 = vmul.f32 %v5687, 1.442695
      %v6120 = vpow.pop %v6119
      %v6121 = vmul.f32 %v5688, 1.442695
      %v6122 = vpow.pop %v6121
      %v6123 = vmul.f32 %v5689, 1.442695
      %v6124 = vpow.pop %v6123
      %v6125 = vmul.f32 %v5690, 1.442695
      %v6126 = vpow.pop %v6125
      %v6127 = vmul.f32 %v5691, 1.442695
      %v6128 = vpow.pop %v6127
      %v6129 = vmul.f32 %v5692, 1.442695
      %v6130 = vpow.pop %v6129
      %v6131 = vmul.f32 %v5693, 1.442695
      %v6132 = vpow.pop %v6131
      %v6133 = vmul.f32 %v5694, 1.442695
      %v6134 = vpow.pop %v6133
      %v6135 = vmul.f32 %v5695, 1.442695
      %v6136 = vpow.pop %v6135
      %v6137 = vmul.f32 %v5696, 1.442695
      %v6138 = vpow.pop %v6137
      %v6139 = vmul.f32 %v5697, 1.442695
      %v6140 = vpow.pop %v6139
      %v6141 = vmul.f32 %v5698, 1.442695
      %v6142 = vpow.pop %v6141
      %v6143 = vmul.f32 %v5699, 1.442695
      %v6144 = vpow.pop %v6143
      %v6145 = vmul.f32 %v5700, 1.442695
      %v6146 = vpow.pop %v6145
      %v6147 = vmul.f32 %v5701, 1.442695
      %v6148 = vpow.pop %v6147
      %v6149 = vmul.f32 %v5702, 1.442695
      %v6150 = vpow.pop %v6149
      %v6151 = vadd.f32 %v5704, 1.0
      %v6152 = vadd.f32 %v5706, 1.0
      %v6153 = vadd.f32 %v5708, 1.0
      %v6154 = vadd.f32 %v5710, 1.0
      %v6155 = vadd.f32 %v5712, 1.0
      %v6156 = vadd.f32 %v5714, 1.0
      %v6157 = vadd.f32 %v5716, 1.0
      %v6158 = vadd.f32 %v5718, 1.0
      %v6159 = vadd.f32 %v5720, 1.0
      %v6160 = vadd.f32 %v5722, 1.0
      %v6161 = vadd.f32 %v5724, 1.0
      %v6162 = vadd.f32 %v5726, 1.0
      %v6163 = vadd.f32 %v5728, 1.0
      %v6164 = vadd.f32 %v5730, 1.0
      %v6165 = vadd.f32 %v5732, 1.0
      %v6166 = vadd.f32 %v5734, 1.0
      %v6167 = vadd.f32 %v5736, 1.0
      %v6168 = vadd.f32 %v5738, 1.0
      %v6169 = vadd.f32 %v5740, 1.0
      %v6170 = vadd.f32 %v5742, 1.0
      %v6171 = vadd.f32 %v5744, 1.0
      %v6172 = vadd.f32 %v5746, 1.0
      %v6173 = vadd.f32 %v5748, 1.0
      %v6174 = vadd.f32 %v5750, 1.0
      %v6175 = vadd.f32 %v5752, 1.0
      %v6176 = vadd.f32 %v5754, 1.0
      %v6177 = vadd.f32 %v5756, 1.0
      %v6178 = vadd.f32 %v5758, 1.0
      %v6179 = vadd.f32 %v5760, 1.0
      %v6180 = vadd.f32 %v5762, 1.0
      %v6181 = vadd.f32 %v5764, 1.0
      %v6182 = vadd.f32 %v5766, 1.0
      %v6183 = vadd.f32 %v5768, 1.0
      %v6184 = vadd.f32 %v5770, 1.0
      %v6185 = vadd.f32 %v5772, 1.0
      %v6186 = vadd.f32 %v5774, 1.0
      %v6187 = vadd.f32 %v5776, 1.0
      %v6188 = vadd.f32 %v5778, 1.0
      %v6189 = vadd.f32 %v5780, 1.0
      %v6190 = vadd.f32 %v5782, 1.0
      %v6191 = vadd.f32 %v5784, 1.0
      %v6192 = vadd.f32 %v5786, 1.0
      %v6193 = vadd.f32 %v5788, 1.0
      %v6194 = vadd.f32 %v5790, 1.0
      %v6195 = vadd.f32 %v5792, 1.0
      %v6196 = vadd.f32 %v5794, 1.0
      %v6197 = vadd.f32 %v5796, 1.0
      %v6198 = vadd.f32 %v5798, 1.0
      %v6199 = vadd.f32 %v5800, 1.0
      %v6200 = vadd.f32 %v5802, 1.0
      %v6201 = vadd.f32 %v5804, 1.0
      %v6202 = vadd.f32 %v5806, 1.0
      %v6203 = vadd.f32 %v5808, 1.0
      %v6204 = vadd.f32 %v5810, 1.0
      %v6205 = vadd.f32 %v5812, 1.0
      %v6206 = vadd.f32 %v5814, 1.0
      %v6207 = vadd.f32 %v5816, 1.0
      %v6208 = vadd.f32 %v5818, 1.0
      %v6209 = vadd.f32 %v5820, 1.0
      %v6210 = vadd.f32 %v5822, 1.0
      %v6211 = vadd.f32 %v5824, 1.0
      %v6212 = vadd.f32 %v5826, 1.0
      %v6213 = vadd.f32 %v5828, 1.0
      %v6214 = vadd.f32 %v5830, 1.0
      %v6215 = vadd.f32 %v5832, 1.0
      %v6216 = vadd.f32 %v5834, 1.0
      %v6217 = vadd.f32 %v5836, 1.0
      %v6218 = vadd.f32 %v5838, 1.0
      %v6219 = vadd.f32 %v5840, 1.0
      %v6220 = vadd.f32 %v5842, 1.0
      %v6221 = vadd.f32 %v5844, 1.0
      %v6222 = vadd.f32 %v5846, 1.0
      %v6223 = vadd.f32 %v5848, 1.0
      %v6224 = vadd.f32 %v5850, 1.0
      %v6225 = vadd.f32 %v5852, 1.0
      %v6226 = vadd.f32 %v5854, 1.0
      %v6227 = vadd.f32 %v5856, 1.0
      %v6228 = vadd.f32 %v5858, 1.0
      %v6229 = vadd.f32 %v5860, 1.0
      %v6230 = vadd.f32 %v5862, 1.0
      %v6231 = vadd.f32 %v5864, 1.0
      %v6232 = vadd.f32 %v5866, 1.0
      %v6233 = vadd.f32 %v5868, 1.0
      %v6234 = vadd.f32 %v5870, 1.0
      %v6235 = vadd.f32 %v5872, 1.0
      %v6236 = vadd.f32 %v5874, 1.0
      %v6237 = vadd.f32 %v5876, 1.0
      %v6238 = vadd.f32 %v5878, 1.0
      %v6239 = vadd.f32 %v5880, 1.0
      %v6240 = vadd.f32 %v5882, 1.0
      %v6241 = vadd.f32 %v5884, 1.0
      %v6242 = vadd.f32 %v5886, 1.0
      %v6243 = vadd.f32 %v5888, 1.0
      %v6244 = vadd.f32 %v5890, 1.0
      %v6245 = vadd.f32 %v5892, 1.0
      %v6246 = vadd.f32 %v5894, 1.0
      %v6247 = vadd.f32 %v5896, 1.0
      %v6248 = vadd.f32 %v5898, 1.0
      %v6249 = vadd.f32 %v5900, 1.0
      %v6250 = vadd.f32 %v5902, 1.0
      %v6251 = vadd.f32 %v5904, 1.0
      %v6252 = vadd.f32 %v5906, 1.0
      %v6253 = vadd.f32 %v5908, 1.0
      %v6254 = vadd.f32 %v5910, 1.0
      %v6255 = vadd.f32 %v5912, 1.0
      %v6256 = vadd.f32 %v5914, 1.0
      %v6257 = vadd.f32 %v5916, 1.0
      %v6258 = vadd.f32 %v5918, 1.0
      %v6259 = vadd.f32 %v5920, 1.0
      %v6260 = vadd.f32 %v5922, 1.0
      %v6261 = vadd.f32 %v5924, 1.0
      %v6262 = vadd.f32 %v5926, 1.0
      %v6263 = vadd.f32 %v5928, 1.0
      %v6264 = vadd.f32 %v5930, 1.0
      %v6265 = vadd.f32 %v5932, 1.0
      %v6266 = vadd.f32 %v5934, 1.0
      %v6267 = vadd.f32 %v5936, 1.0
      %v6268 = vadd.f32 %v5938, 1.0
      %v6269 = vadd.f32 %v5940, 1.0
      %v6270 = vadd.f32 %v5942, 1.0
      %v6271 = vadd.f32 %v5944, 1.0
      %v6272 = vadd.f32 %v5946, 1.0
      %v6273 = vadd.f32 %v5948, 1.0
      %v6274 = vadd.f32 %v5950, 1.0
      %v6275 = vadd.f32 %v5952, 1.0
      %v6276 = vadd.f32 %v5954, 1.0
      %v6277 = vadd.f32 %v5956, 1.0
      %v6278 = vadd.f32 %v5958, 1.0
      %v6279 = vadd.f32 %v5960, 1.0
      %v6280 = vadd.f32 %v5962, 1.0
      %v6281 = vadd.f32 %v5964, 1.0
      %v6282 = vadd.f32 %v5966, 1.0
      %v6283 = vadd.f32 %v5968, 1.0
      %v6284 = vadd.f32 %v5970, 1.0
      %v6285 = vadd.f32 %v5972, 1.0
      %v6286 = vadd.f32 %v5974, 1.0
      %v6287 = vadd.f32 %v5976, 1.0
      %v6288 = vadd.f32 %v5978, 1.0
      %v6289 = vadd.f32 %v5980, 1.0
      %v6290 = vadd.f32 %v5982, 1.0
      %v6291 = vadd.f32 %v5984, 1.0
      %v6292 = vadd.f32 %v5986, 1.0
      %v6293 = vadd.f32 %v5988, 1.0
      %v6294 = vadd.f32 %v5990, 1.0
      %v6295 = vadd.f32 %v5992, 1.0
      %v6296 = vadd.f32 %v5994, 1.0
      %v6297 = vadd.f32 %v5996, 1.0
      %v6298 = vadd.f32 %v5998, 1.0
      %v6299 = vadd.f32 %v6000, 1.0
      %v6300 = vadd.f32 %v6002, 1.0
      %v6301 = vadd.f32 %v6004, 1.0
      %v6302 = vadd.f32 %v6006, 1.0
      %v6303 = vadd.f32 %v6008, 1.0
      %v6304 = vadd.f32 %v6010, 1.0
      %v6305 = vadd.f32 %v6012, 1.0
      %v6306 = vadd.f32 %v6014, 1.0
      %v6307 = vadd.f32 %v6016, 1.0
      %v6308 = vadd.f32 %v6018, 1.0
      %v6309 = vadd.f32 %v6020, 1.0
      %v6310 = vadd.f32 %v6022, 1.0
      %v6311 = vadd.f32 %v6024, 1.0
      %v6312 = vadd.f32 %v6026, 1.0
      %v6313 = vadd.f32 %v6028, 1.0
      %v6314 = vadd.f32 %v6030, 1.0
      %v6315 = vadd.f32 %v6032, 1.0
      %v6316 = vadd.f32 %v6034, 1.0
      %v6317 = vadd.f32 %v6036, 1.0
      %v6318 = vadd.f32 %v6038, 1.0
      %v6319 = vadd.f32 %v6040, 1.0
      %v6320 = vadd.f32 %v6042, 1.0
      %v6321 = vadd.f32 %v6044, 1.0
      %v6322 = vadd.f32 %v6046, 1.0
      %v6323 = vadd.f32 %v6048, 1.0
      %v6324 = vadd.f32 %v6050, 1.0
      %v6325 = vadd.f32 %v6052, 1.0
      %v6326 = vadd.f32 %v6054, 1.0
      %v6327 = vadd.f32 %v6056, 1.0
      %v6328 = vadd.f32 %v6058, 1.0
      %v6329 = vadd.f32 %v6060, 1.0
      %v6330 = vadd.f32 %v6062, 1.0
      %v6331 = vadd.f32 %v6064, 1.0
      %v6332 = vadd.f32 %v6066, 1.0
      %v6333 = vadd.f32 %v6068, 1.0
      %v6334 = vadd.f32 %v6070, 1.0
      %v6335 = vadd.f32 %v6072, 1.0
      %v6336 = vadd.f32 %v6074, 1.0
      %v6337 = vadd.f32 %v6076, 1.0
      %v6338 = vadd.f32 %v6078, 1.0
      %v6339 = vadd.f32 %v6080, 1.0
      %v6340 = vadd.f32 %v6082, 1.0
      %v6341 = vadd.f32 %v6084, 1.0
      %v6342 = vadd.f32 %v6086, 1.0
      %v6343 = vadd.f32 %v6088, 1.0
      %v6344 = vadd.f32 %v6090, 1.0
      %v6345 = vadd.f32 %v6092, 1.0
      %v6346 = vadd.f32 %v6094, 1.0
      %v6347 = vadd.f32 %v6096, 1.0
      %v6348 = vadd.f32 %v6098, 1.0
      %v6349 = vadd.f32 %v6100, 1.0
      %v6350 = vadd.f32 %v6102, 1.0
      %v6351 = vadd.f32 %v6104, 1.0
      %v6352 = vadd.f32 %v6106, 1.0
      %v6353 = vadd.f32 %v6108, 1.0
      %v6354 = vadd.f32 %v6110, 1.0
      %v6355 = vadd.f32 %v6112, 1.0
      %v6356 = vadd.f32 %v6114, 1.0
      %v6357 = vadd.f32 %v6116, 1.0
      %v6358 = vadd.f32 %v6118, 1.0
      %v6359 = vadd.f32 %v6120, 1.0
      %v6360 = vadd.f32 %v6122, 1.0
      %v6361 = vadd.f32 %v6124, 1.0
      %v6362 = vadd.f32 %v6126, 1.0
      %v6363 = vadd.f32 %v6128, 1.0
      %v6364 = vadd.f32 %v6130, 1.0
      %v6365 = vadd.f32 %v6132, 1.0
      %v6366 = vadd.f32 %v6134, 1.0
      %v6367 = vadd.f32 %v6136, 1.0
      %v6368 = vadd.f32 %v6138, 1.0
      %v6369 = vadd.f32 %v6140, 1.0
      %v6370 = vadd.f32 %v6142, 1.0
      %v6371 = vadd.f32 %v6144, 1.0
      %v6372 = vadd.f32 %v6146, 1.0
      %v6373 = vadd.f32 %v6148, 1.0
      %v6374 = vadd.f32 %v6150, 1.0
      %v6375 = vrcp.pop %v6151
      %v6376 = vrcp.pop %v6152
      %v6377 = vrcp.pop %v6153
      %v6378 = vrcp.pop %v6154
      %v6379 = vrcp.pop %v6155
      %v6380 = vrcp.pop %v6156
      %v6381 = vrcp.pop %v6157
      %v6382 = vrcp.pop %v6158
      %v6383 = vrcp.pop %v6159
      %v6384 = vrcp.pop %v6160
      %v6385 = vrcp.pop %v6161
      %v6386 = vrcp.pop %v6162
      %v6387 = vrcp.pop %v6163
      %v6388 = vrcp.pop %v6164
      %v6389 = vrcp.pop %v6165
      %v6390 = vrcp.pop %v6166
      %v6391 = vrcp.pop %v6167
      %v6392 = vrcp.pop %v6168
      %v6393 = vrcp.pop %v6169
      %v6394 = vrcp.pop %v6170
      %v6395 = vrcp.pop %v6171
      %v6396 = vrcp.pop %v6172
      %v6397 = vrcp.pop %v6173
      %v6398 = vrcp.pop %v6174
      %v6399 = vrcp.pop %v6175
      %v6400 = vrcp.pop %v6176
      %v6401 = vrcp.pop %v6177
      %v6402 = vrcp.pop %v6178
      %v6403 = vrcp.pop %v6179
      %v6404 = vrcp.pop %v6180
      %v6405 = vrcp.pop %v6181
      %v6406 = vrcp.pop %v6182
      %v6407 = vrcp.pop %v6183
      %v6408 = vrcp.pop %v6184
      %v6409 = vrcp.pop %v6185
      %v6410 = vrcp.pop %v6186
      %v6411 = vrcp.pop %v6187
      %v6412 = vrcp.pop %v6188
      %v6413 = vrcp.pop %v6189
      %v6414 = vrcp.pop %v6190
      %v6415 = vrcp.pop %v6191
      %v6416 = vrcp.pop %v6192
      %v6417 = vrcp.pop %v6193
      %v6418 = vrcp.pop %v6194
      %v6419 = vrcp.pop %v6195
      %v6420 = vrcp.pop %v6196
      %v6421 = vrcp.pop %v6197
      %v6422 = vrcp.pop %v6198
      %v6423 = vrcp.pop %v6199
      %v6424 = vrcp.pop %v6200
      %v6425 = vrcp.pop %v6201
      %v6426 = vrcp.pop %v6202
      %v6427 = vrcp.pop %v6203
      %v6428 = vrcp.pop %v6204
      %v6429 = vrcp.pop %v6205
      %v6430 = vrcp.pop %v6206
      %v6431 = vrcp.pop %v6207
      %v6432 = vrcp.pop %v6208
      %v6433 = vrcp.pop %v6209
      %v6434 = vrcp.pop %v6210
      %v6435 = vrcp.pop %v6211
      %v6436 = vrcp.pop %v6212
      %v6437 = vrcp.pop %v6213
      %v6438 = vrcp.pop %v6214
      %v6439 = vrcp.pop %v6215
      %v6440 = vrcp.pop %v6216
      %v6441 = vrcp.pop %v6217
      %v6442 = vrcp.pop %v6218
      %v6443 = vrcp.pop %v6219
      %v6444 = vrcp.pop %v6220
      %v6445 = vrcp.pop %v6221
      %v6446 = vrcp.pop %v6222
      %v6447 = vrcp.pop %v6223
      %v6448 = vrcp.pop %v6224
      %v6449 = vrcp.pop %v6225
      %v6450 = vrcp.pop %v6226
      %v6451 = vrcp.pop %v6227
      %v6452 = vrcp.pop %v6228
      %v6453 = vrcp.pop %v6229
      %v6454 = vrcp.pop %v6230
      %v6455 = vrcp.pop %v6231
      %v6456 = vrcp.pop %v6232
      %v6457 = vrcp.pop %v6233
      %v6458 = vrcp.pop %v6234
      %v6459 = vrcp.pop %v6235
      %v6460 = vrcp.pop %v6236
      %v6461 = vrcp.pop %v6237
      %v6462 = vrcp.pop %v6238
      %v6463 = vrcp.pop %v6239
      %v6464 = vrcp.pop %v6240
      %v6465 = vrcp.pop %v6241
      %v6466 = vrcp.pop %v6242
      %v6467 = vrcp.pop %v6243
      %v6468 = vrcp.pop %v6244
      %v6469 = vrcp.pop %v6245
      %v6470 = vrcp.pop %v6246
      %v6471 = vrcp.pop %v6247
      %v6472 = vrcp.pop %v6248
      %v6473 = vrcp.pop %v6249
      %v6474 = vrcp.pop %v6250
      %v6475 = vrcp.pop %v6251
      %v6476 = vrcp.pop %v6252
      %v6477 = vrcp.pop %v6253
      %v6478 = vrcp.pop %v6254
      %v6479 = vrcp.pop %v6255
      %v6480 = vrcp.pop %v6256
      %v6481 = vrcp.pop %v6257
      %v6482 = vrcp.pop %v6258
      %v6483 = vrcp.pop %v6259
      %v6484 = vrcp.pop %v6260
      %v6485 = vrcp.pop %v6261
      %v6486 = vrcp.pop %v6262
      %v6487 = vrcp.pop %v6263
      %v6488 = vrcp.pop %v6264
      %v6489 = vrcp.pop %v6265
      %v6490 = vrcp.pop %v6266
      %v6491 = vrcp.pop %v6267
      %v6492 = vrcp.pop %v6268
      %v6493 = vrcp.pop %v6269
      %v6494 = vrcp.pop %v6270
      %v6495 = vrcp.pop %v6271
      %v6496 = vrcp.pop %v6272
      %v6497 = vrcp.pop %v6273
      %v6498 = vrcp.pop %v6274
      %v6499 = vrcp.pop %v6275
      %v6500 = vrcp.pop %v6276
      %v6501 = vrcp.pop %v6277
      %v6502 = vrcp.pop %v6278
      %v6503 = vrcp.pop %v6279
      %v6504 = vrcp.pop %v6280
      %v6505 = vrcp.pop %v6281
      %v6506 = vrcp.pop %v6282
      %v6507 = vrcp.pop %v6283
      %v6508 = vrcp.pop %v6284
      %v6509 = vrcp.pop %v6285
      %v6510 = vrcp.pop %v6286
      %v6511 = vrcp.pop %v6287
      %v6512 = vrcp.pop %v6288
      %v6513 = vrcp.pop %v6289
      %v6514 = vrcp.pop %v6290
      %v6515 = vrcp.pop %v6291
      %v6516 = vrcp.pop %v6292
      %v6517 = vrcp.pop %v6293
      %v6518 = vrcp.pop %v6294
      %v6519 = vrcp.pop %v6295
      %v6520 = vrcp.pop %v6296
      %v6521 = vrcp.pop %v6297
      %v6522 = vrcp.pop %v6298
      %v6523 = vrcp.pop %v6299
      %v6524 = vrcp.pop %v6300
      %v6525 = vrcp.pop %v6301
      %v6526 = vrcp.pop %v6302
      %v6527 = vrcp.pop %v6303
      %v6528 = vrcp.pop %v6304
      %v6529 = vrcp.pop %v6305
      %v6530 = vrcp.pop %v6306
      %v6531 = vrcp.pop %v6307
      %v6532 = vrcp.pop %v6308
      %v6533 = vrcp.pop %v6309
      %v6534 = vrcp.pop %v6310
      %v6535 = vrcp.pop %v6311
      %v6536 = vrcp.pop %v6312
      %v6537 = vrcp.pop %v6313
      %v6538 = vrcp.pop %v6314
      %v6539 = vrcp.pop %v6315
      %v6540 = vrcp.pop %v6316
      %v6541 = vrcp.pop %v6317
      %v6542 = vrcp.pop %v6318
      %v6543 = vrcp.pop %v6319
      %v6544 = vrcp.pop %v6320
      %v6545 = vrcp.pop %v6321
      %v6546 = vrcp.pop %v6322
      %v6547 = vrcp.pop %v6323
      %v6548 = vrcp.pop %v6324
      %v6549 = vrcp.pop %v6325
      %v6550 = vrcp.pop %v6326
      %v6551 = vrcp.pop %v6327
      %v6552 = vrcp.pop %v6328
      %v6553 = vrcp.pop %v6329
      %v6554 = vrcp.pop %v6330
      %v6555 = vrcp.pop %v6331
      %v6556 = vrcp.pop %v6332
      %v6557 = vrcp.pop %v6333
      %v6558 = vrcp.pop %v6334
      %v6559 = vrcp.pop %v6335
      %v6560 = vrcp.pop %v6336
      %v6561 = vrcp.pop %v6337
      %v6562 = vrcp.pop %v6338
      %v6563 = vrcp.pop %v6339
      %v6564 = vrcp.pop %v6340
      %v6565 = vrcp.pop %v6341
      %v6566 = vrcp.pop %v6342
      %v6567 = vrcp.pop %v6343
      %v6568 = vrcp.pop %v6344
      %v6569 = vrcp.pop %v6345
      %v6570 = vrcp.pop %v6346
      %v6571 = vrcp.pop %v6347
      %v6572 = vrcp.pop %v6348
      %v6573 = vrcp.pop %v6349
      %v6574 = vrcp.pop %v6350
      %v6575 = vrcp.pop %v6351
      %v6576 = vrcp.pop %v6352
      %v6577 = vrcp.pop %v6353
      %v6578 = vrcp.pop %v6354
      %v6579 = vrcp.pop %v6355
      %v6580 = vrcp.pop %v6356
      %v6581 = vrcp.pop %v6357
      %v6582 = vrcp.pop %v6358
      %v6583 = vrcp.pop %v6359
      %v6584 = vrcp.pop %v6360
      %v6585 = vrcp.pop %v6361
      %v6586 = vrcp.pop %v6362
      %v6587 = vrcp.pop %v6363
      %v6588 = vrcp.pop %v6364
      %v6589 = vrcp.pop %v6365
      %v6590 = vrcp.pop %v6366
      %v6591 = vrcp.pop %v6367
      %v6592 = vrcp.pop %v6368
      %v6593 = vrcp.pop %v6369
      %v6594 = vrcp.pop %v6370
      %v6595 = vrcp.pop %v6371
      %v6596 = vrcp.pop %v6372
      %v6597 = vrcp.pop %v6373
      %v6598 = vrcp.pop %v6374
      %v6599 = vpack.c.bf16 %v6382, %v6375
      %v6600 = vpack.c.bf16 %v6383, %v6376
      %v6601 = vpack.c.bf16 %v6384, %v6377
      %v6602 = vpack.c.bf16 %v6385, %v6378
      %v6603 = vpack.c.bf16 %v6386, %v6379
      %v6604 = vpack.c.bf16 %v6387, %v6380
      %v6605 = vpack.c.bf16 %v6388, %v6381
      %v6606 = vpack.c.bf16 %v6396, %v6389
      %v6607 = vpack.c.bf16 %v6397, %v6390
      %v6608 = vpack.c.bf16 %v6398, %v6391
      %v6609 = vpack.c.bf16 %v6399, %v6392
      %v6610 = vpack.c.bf16 %v6400, %v6393
      %v6611 = vpack.c.bf16 %v6401, %v6394
      %v6612 = vpack.c.bf16 %v6402, %v6395
      %v6613 = vpack.c.bf16 %v6410, %v6403
      %v6614 = vpack.c.bf16 %v6411, %v6404
      %v6615 = vpack.c.bf16 %v6412, %v6405
      %v6616 = vpack.c.bf16 %v6413, %v6406
      %v6617 = vpack.c.bf16 %v6414, %v6407
      %v6618 = vpack.c.bf16 %v6415, %v6408
      %v6619 = vpack.c.bf16 %v6416, %v6409
      %v6620 = vpack.c.bf16 %v6424, %v6417
      %v6621 = vpack.c.bf16 %v6425, %v6418
      %v6622 = vpack.c.bf16 %v6426, %v6419
      %v6623 = vpack.c.bf16 %v6427, %v6420
      %v6624 = vpack.c.bf16 %v6428, %v6421
      %v6625 = vpack.c.bf16 %v6429, %v6422
      %v6626 = vpack.c.bf16 %v6430, %v6423
      %v6627 = vpack.c.bf16 %v6438, %v6431
      %v6628 = vpack.c.bf16 %v6439, %v6432
      %v6629 = vpack.c.bf16 %v6440, %v6433
      %v6630 = vpack.c.bf16 %v6441, %v6434
      %v6631 = vpack.c.bf16 %v6442, %v6435
      %v6632 = vpack.c.bf16 %v6443, %v6436
      %v6633 = vpack.c.bf16 %v6444, %v6437
      %v6634 = vpack.c.bf16 %v6452, %v6445
      %v6635 = vpack.c.bf16 %v6453, %v6446
      %v6636 = vpack.c.bf16 %v6454, %v6447
      %v6637 = vpack.c.bf16 %v6455, %v6448
      %v6638 = vpack.c.bf16 %v6456, %v6449
      %v6639 = vpack.c.bf16 %v6457, %v6450
      %v6640 = vpack.c.bf16 %v6458, %v6451
      %v6641 = vpack.c.bf16 %v6466, %v6459
      %v6642 = vpack.c.bf16 %v6467, %v6460
      %v6643 = vpack.c.bf16 %v6468, %v6461
      %v6644 = vpack.c.bf16 %v6469, %v6462
      %v6645 = vpack.c.bf16 %v6470, %v6463
      %v6646 = vpack.c.bf16 %v6471, %v6464
      %v6647 = vpack.c.bf16 %v6472, %v6465
      %v6648 = vpack.c.bf16 %v6480, %v6473
      %v6649 = vpack.c.bf16 %v6481, %v6474
      %v6650 = vpack.c.bf16 %v6482, %v6475
      %v6651 = vpack.c.bf16 %v6483, %v6476
      %v6652 = vpack.c.bf16 %v6484, %v6477
      %v6653 = vpack.c.bf16 %v6485, %v6478
      %v6654 = vpack.c.bf16 %v6486, %v6479
      %v6655 = vpack.c.bf16 %v6494, %v6487
      %v6656 = vpack.c.bf16 %v6495, %v6488
      %v6657 = vpack.c.bf16 %v6496, %v6489
      %v6658 = vpack.c.bf16 %v6497, %v6490
      %v6659 = vpack.c.bf16 %v6498, %v6491
      %v6660 = vpack.c.bf16 %v6499, %v6492
      %v6661 = vpack.c.bf16 %v6500, %v6493
      %v6662 = vpack.c.bf16 %v6508, %v6501
      %v6663 = vpack.c.bf16 %v6509, %v6502
      %v6664 = vpack.c.bf16 %v6510, %v6503
      %v6665 = vpack.c.bf16 %v6511, %v6504
      %v6666 = vpack.c.bf16 %v6512, %v6505
      %v6667 = vpack.c.bf16 %v6513, %v6506
      %v6668 = vpack.c.bf16 %v6514, %v6507
      %v6669 = vpack.c.bf16 %v6522, %v6515
      %v6670 = vpack.c.bf16 %v6523, %v6516
      %v6671 = vpack.c.bf16 %v6524, %v6517
      %v6672 = vpack.c.bf16 %v6525, %v6518
      %v6673 = vpack.c.bf16 %v6526, %v6519
      %v6674 = vpack.c.bf16 %v6527, %v6520
      %v6675 = vpack.c.bf16 %v6528, %v6521
      %v6676 = vpack.c.bf16 %v6536, %v6529
      %v6677 = vpack.c.bf16 %v6537, %v6530
      %v6678 = vpack.c.bf16 %v6538, %v6531
      %v6679 = vpack.c.bf16 %v6539, %v6532
      %v6680 = vpack.c.bf16 %v6540, %v6533
      %v6681 = vpack.c.bf16 %v6541, %v6534
      %v6682 = vpack.c.bf16 %v6542, %v6535
      %v6683 = vpack.c.bf16 %v6550, %v6543
      %v6684 = vpack.c.bf16 %v6551, %v6544
      %v6685 = vpack.c.bf16 %v6552, %v6545
      %v6686 = vpack.c.bf16 %v6553, %v6546
      %v6687 = vpack.c.bf16 %v6554, %v6547
      %v6688 = vpack.c.bf16 %v6555, %v6548
      %v6689 = vpack.c.bf16 %v6556, %v6549
      %v6690 = vpack.c.bf16 %v6564, %v6557
      %v6691 = vpack.c.bf16 %v6565, %v6558
      %v6692 = vpack.c.bf16 %v6566, %v6559
      %v6693 = vpack.c.bf16 %v6567, %v6560
      %v6694 = vpack.c.bf16 %v6568, %v6561
      %v6695 = vpack.c.bf16 %v6569, %v6562
      %v6696 = vpack.c.bf16 %v6570, %v6563
      %v6697 = vpack.c.bf16 %v6578, %v6571
      %v6698 = vpack.c.bf16 %v6579, %v6572
      %v6699 = vpack.c.bf16 %v6580, %v6573
      %v6700 = vpack.c.bf16 %v6581, %v6574
      %v6701 = vpack.c.bf16 %v6582, %v6575
      %v6702 = vpack.c.bf16 %v6583, %v6576
      %v6703 = vpack.c.bf16 %v6584, %v6577
      %v6704 = vpack.c.bf16 %v6592, %v6585
      %v6705 = vpack.c.bf16 %v6593, %v6586
      %v6706 = vpack.c.bf16 %v6594, %v6587
      %v6707 = vpack.c.bf16 %v6595, %v6588
      %v6708 = vpack.c.bf16 %v6596, %v6589
      %v6709 = vpack.c.bf16 %v6597, %v6590
      %v6710 = vpack.c.bf16 %v6598, %v6591
      %v6823 = vunpack.c.l.b16 %v6599
      %v6824 = vunpack.c.l.b16 %v6600
      %v6825 = vunpack.c.l.b16 %v6601
      %v6826 = vunpack.c.l.b16 %v6602
      %v6827 = vunpack.c.l.b16 %v6603
      %v6828 = vunpack.c.l.b16 %v6604
      %v6829 = vunpack.c.l.b16 %v6605
      %v6830 = vunpack.c.h.b16 %v6599
      %v6831 = vunpack.c.h.b16 %v6600
      %v6832 = vunpack.c.h.b16 %v6601
      %v6833 = vunpack.c.h.b16 %v6602
      %v6834 = vunpack.c.h.b16 %v6603
      %v6835 = vunpack.c.h.b16 %v6604
      %v6836 = vunpack.c.h.b16 %v6605
      %v6837 = vunpack.c.l.b16 %v6606
      %v6838 = vunpack.c.l.b16 %v6607
      %v6839 = vunpack.c.l.b16 %v6608
      %v6840 = vunpack.c.l.b16 %v6609
      %v6841 = vunpack.c.l.b16 %v6610
      %v6842 = vunpack.c.l.b16 %v6611
      %v6843 = vunpack.c.l.b16 %v6612
      %v6844 = vunpack.c.h.b16 %v6606
      %v6845 = vunpack.c.h.b16 %v6607
      %v6846 = vunpack.c.h.b16 %v6608
      %v6847 = vunpack.c.h.b16 %v6609
      %v6848 = vunpack.c.h.b16 %v6610
      %v6849 = vunpack.c.h.b16 %v6611
      %v6850 = vunpack.c.h.b16 %v6612
      %v6851 = vunpack.c.l.b16 %v6613
      %v6852 = vunpack.c.l.b16 %v6614
      %v6853 = vunpack.c.l.b16 %v6615
      %v6854 = vunpack.c.l.b16 %v6616
      %v6855 = vunpack.c.l.b16 %v6617
      %v6856 = vunpack.c.l.b16 %v6618
      %v6857 = vunpack.c.l.b16 %v6619
      %v6858 = vunpack.c.h.b16 %v6613
      %v6859 = vunpack.c.h.b16 %v6614
      %v6860 = vunpack.c.h.b16 %v6615
      %v6861 = vunpack.c.h.b16 %v6616
      %v6862 = vunpack.c.h.b16 %v6617
      %v6863 = vunpack.c.h.b16 %v6618
      %v6864 = vunpack.c.h.b16 %v6619
      %v6865 = vunpack.c.l.b16 %v6620
      %v6866 = vunpack.c.l.b16 %v6621
      %v6867 = vunpack.c.l.b16 %v6622
      %v6868 = vunpack.c.l.b16 %v6623
      %v6869 = vunpack.c.l.b16 %v6624
      %v6870 = vunpack.c.l.b16 %v6625
      %v6871 = vunpack.c.l.b16 %v6626
      %v6872 = vunpack.c.h.b16 %v6620
      %v6873 = vunpack.c.h.b16 %v6621
      %v6874 = vunpack.c.h.b16 %v6622
      %v6875 = vunpack.c.h.b16 %v6623
      %v6876 = vunpack.c.h.b16 %v6624
      %v6877 = vunpack.c.h.b16 %v6625
      %v6878 = vunpack.c.h.b16 %v6626
      %v6879 = vunpack.c.l.b16 %v6627
      %v6880 = vunpack.c.l.b16 %v6628
      %v6881 = vunpack.c.l.b16 %v6629
      %v6882 = vunpack.c.l.b16 %v6630
      %v6883 = vunpack.c.l.b16 %v6631
      %v6884 = vunpack.c.l.b16 %v6632
      %v6885 = vunpack.c.l.b16 %v6633
      %v6886 = vunpack.c.h.b16 %v6627
      %v6887 = vunpack.c.h.b16 %v6628
      %v6888 = vunpack.c.h.b16 %v6629
      %v6889 = vunpack.c.h.b16 %v6630
      %v6890 = vunpack.c.h.b16 %v6631
      %v6891 = vunpack.c.h.b16 %v6632
      %v6892 = vunpack.c.h.b16 %v6633
      %v6893 = vunpack.c.l.b16 %v6634
      %v6894 = vunpack.c.l.b16 %v6635
      %v6895 = vunpack.c.l.b16 %v6636
      %v6896 = vunpack.c.l.b16 %v6637
      %v6897 = vunpack.c.l.b16 %v6638
      %v6898 = vunpack.c.l.b16 %v6639
      %v6899 = vunpack.c.l.b16 %v6640
      %v6900 = vunpack.c.h.b16 %v6634
      %v6901 = vunpack.c.h.b16 %v6635
      %v6902 = vunpack.c.h.b16 %v6636
      %v6903 = vunpack.c.h.b16 %v6637
      %v6904 = vunpack.c.h.b16 %v6638
      %v6905 = vunpack.c.h.b16 %v6639
      %v6906 = vunpack.c.h.b16 %v6640
      %v6907 = vunpack.c.l.b16 %v6641
      %v6908 = vunpack.c.l.b16 %v6642
      %v6909 = vunpack.c.l.b16 %v6643
      %v6910 = vunpack.c.l.b16 %v6644
      %v6911 = vunpack.c.l.b16 %v6645
      %v6912 = vunpack.c.l.b16 %v6646
      %v6913 = vunpack.c.l.b16 %v6647
      %v6914 = vunpack.c.h.b16 %v6641
      %v6915 = vunpack.c.h.b16 %v6642
      %v6916 = vunpack.c.h.b16 %v6643
      %v6917 = vunpack.c.h.b16 %v6644
      %v6918 = vunpack.c.h.b16 %v6645
      %v6919 = vunpack.c.h.b16 %v6646
      %v6920 = vunpack.c.h.b16 %v6647
      %v6921 = vunpack.c.l.b16 %v6648
      %v6922 = vunpack.c.l.b16 %v6649
      %v6923 = vunpack.c.l.b16 %v6650
      %v6924 = vunpack.c.l.b16 %v6651
      %v6925 = vunpack.c.l.b16 %v6652
      %v6926 = vunpack.c.l.b16 %v6653
      %v6927 = vunpack.c.l.b16 %v6654
      %v6928 = vunpack.c.h.b16 %v6648
      %v6929 = vunpack.c.h.b16 %v6649
      %v6930 = vunpack.c.h.b16 %v6650
      %v6931 = vunpack.c.h.b16 %v6651
      %v6932 = vunpack.c.h.b16 %v6652
      %v6933 = vunpack.c.h.b16 %v6653
      %v6934 = vunpack.c.h.b16 %v6654
      %v6935 = vunpack.c.l.b16 %v6655
      %v6936 = vunpack.c.l.b16 %v6656
      %v6937 = vunpack.c.l.b16 %v6657
      %v6938 = vunpack.c.l.b16 %v6658
      %v6939 = vunpack.c.l.b16 %v6659
      %v6940 = vunpack.c.l.b16 %v6660
      %v6941 = vunpack.c.l.b16 %v6661
      %v6942 = vunpack.c.h.b16 %v6655
      %v6943 = vunpack.c.h.b16 %v6656
      %v6944 = vunpack.c.h.b16 %v6657
      %v6945 = vunpack.c.h.b16 %v6658
      %v6946 = vunpack.c.h.b16 %v6659
      %v6947 = vunpack.c.h.b16 %v6660
      %v6948 = vunpack.c.h.b16 %v6661
      %v6949 = vunpack.c.l.b16 %v6662
      %v6950 = vunpack.c.l.b16 %v6663
      %v6951 = vunpack.c.l.b16 %v6664
      %v6952 = vunpack.c.l.b16 %v6665
      %v6953 = vunpack.c.l.b16 %v6666
      %v6954 = vunpack.c.l.b16 %v6667
      %v6955 = vunpack.c.l.b16 %v6668
      %v6956 = vunpack.c.h.b16 %v6662
      %v6957 = vunpack.c.h.b16 %v6663
      %v6958 = vunpack.c.h.b16 %v6664
      %v6959 = vunpack.c.h.b16 %v6665
      %v6960 = vunpack.c.h.b16 %v6666
      %v6961 = vunpack.c.h.b16 %v6667
      %v6962 = vunpack.c.h.b16 %v6668
      %v6963 = vunpack.c.l.b16 %v6669
      %v6964 = vunpack.c.l.b16 %v6670
      %v6965 = vunpack.c.l.b16 %v6671
      %v6966 = vunpack.c.l.b16 %v6672
      %v6967 = vunpack.c.l.b16 %v6673
      %v6968 = vunpack.c.l.b16 %v6674
      %v6969 = vunpack.c.l.b16 %v6675
      %v6970 = vunpack.c.h.b16 %v6669
      %v6971 = vunpack.c.h.b16 %v6670
      %v6972 = vunpack.c.h.b16 %v6671
      %v6973 = vunpack.c.h.b16 %v6672
      %v6974 = vunpack.c.h.b16 %v6673
      %v6975 = vunpack.c.h.b16 %v6674
      %v6976 = vunpack.c.h.b16 %v6675
      %v6977 = vunpack.c.l.b16 %v6676
      %v6978 = vunpack.c.l.b16 %v6677
      %v6979 = vunpack.c.l.b16 %v6678
      %v6980 = vunpack.c.l.b16 %v6679
      %v6981 = vunpack.c.l.b16 %v6680
      %v6982 = vunpack.c.l.b16 %v6681
      %v6983 = vunpack.c.l.b16 %v6682
      %v6984 = vunpack.c.h.b16 %v6676
      %v6985 = vunpack.c.h.b16 %v6677
      %v6986 = vunpack.c.h.b16 %v6678
      %v6987 = vunpack.c.h.b16 %v6679
      %v6988 = vunpack.c.h.b16 %v6680
      %v6989 = vunpack.c.h.b16 %v6681
      %v6990 = vunpack.c.h.b16 %v6682
      %v6991 = vunpack.c.l.b16 %v6683
      %v6992 = vunpack.c.l.b16 %v6684
      %v6993 = vunpack.c.l.b16 %v6685
      %v6994 = vunpack.c.l.b16 %v6686
      %v6995 = vunpack.c.l.b16 %v6687
      %v6996 = vunpack.c.l.b16 %v6688
      %v6997 = vunpack.c.l.b16 %v6689
      %v6998 = vunpack.c.h.b16 %v6683
      %v6999 = vunpack.c.h.b16 %v6684
      %v7000 = vunpack.c.h.b16 %v6685
      %v7001 = vunpack.c.h.b16 %v6686
      %v7002 = vunpack.c.h.b16 %v6687
      %v7003 = vunpack.c.h.b16 %v6688
      %v7004 = vunpack.c.h.b16 %v6689
      %v7005 = vunpack.c.l.b16 %v6690
      %v7006 = vunpack.c.l.b16 %v6691
      %v7007 = vunpack.c.l.b16 %v6692
      %v7008 = vunpack.c.l.b16 %v6693
      %v7009 = vunpack.c.l.b16 %v6694
      %v7010 = vunpack.c.l.b16 %v6695
      %v7011 = vunpack.c.l.b16 %v6696
      %v7012 = vunpack.c.h.b16 %v6690
      %v7013 = vunpack.c.h.b16 %v6691
      %v7014 = vunpack.c.h.b16 %v6692
      %v7015 = vunpack.c.h.b16 %v6693
      %v7016 = vunpack.c.h.b16 %v6694
      %v7017 = vunpack.c.h.b16 %v6695
      %v7018 = vunpack.c.h.b16 %v6696
      %v7019 = vunpack.c.l.b16 %v6697
      %v7020 = vunpack.c.l.b16 %v6698
      %v7021 = vunpack.c.l.b16 %v6699
      %v7022 = vunpack.c.l.b16 %v6700
      %v7023 = vunpack.c.l.b16 %v6701
      %v7024 = vunpack.c.l.b16 %v6702
      %v7025 = vunpack.c.l.b16 %v6703
      %v7026 = vunpack.c.h.b16 %v6697
      %v7027 = vunpack.c.h.b16 %v6698
      %v7028 = vunpack.c.h.b16 %v6699
      %v7029 = vunpack.c.h.b16 %v6700
      %v7030 = vunpack.c.h.b16 %v6701
      %v7031 = vunpack.c.h.b16 %v6702
      %v7032 = vunpack.c.h.b16 %v6703
      %v7033 = vunpack.c.l.b16 %v6704
      %v7034 = vunpack.c.l.b16 %v6705
      %v7035 = vunpack.c.l.b16 %v6706
      %v7036 = vunpack.c.l.b16 %v6707
      %v7037 = vunpack.c.l.b16 %v6708
      %v7038 = vunpack.c.l.b16 %v6709
      %v7039 = vunpack.c.l.b16 %v6710
      %v7040 = vunpack.c.h.b16 %v6704
      %v7041 = vunpack.c.h.b16 %v6705
      %v7042 = vunpack.c.h.b16 %v6706
      %v7043 = vunpack.c.h.b16 %v6707
      %v7044 = vunpack.c.h.b16 %v6708
      %v7045 = vunpack.c.h.b16 %v6709
      %v7046 = vunpack.c.h.b16 %v6710
      %v7047 = vpack.c.b16 %v6824, %v6823
      %v7048 = vpack.c.b16 %v6826, %v6825
      %v7049 = vpack.c.b16 %v6828, %v6827
      %v7050 = vpack.c.b16 %v6829, %v6829
      %v7051 = vpack.c.b16 %v6831, %v6830
      %v7052 = vpack.c.b16 %v6833, %v6832
      %v7053 = vpack.c.b16 %v6835, %v6834
      %v7054 = vpack.c.b16 %v6836, %v6836
      %v7055 = vpack.c.b16 %v6838, %v6837
      %v7056 = vpack.c.b16 %v6840, %v6839
      %v7057 = vpack.c.b16 %v6842, %v6841
      %v7058 = vpack.c.b16 %v6843, %v6843
      %v7059 = vpack.c.b16 %v6845, %v6844
      %v7060 = vpack.c.b16 %v6847, %v6846
      %v7061 = vpack.c.b16 %v6849, %v6848
      %v7062 = vpack.c.b16 %v6850, %v6850
      %v7063 = vpack.c.b16 %v6852, %v6851
      %v7064 = vpack.c.b16 %v6854, %v6853
      %v7065 = vpack.c.b16 %v6856, %v6855
      %v7066 = vpack.c.b16 %v6857, %v6857
      %v7067 = vpack.c.b16 %v6859, %v6858
      %v7068 = vpack.c.b16 %v6861, %v6860
      %v7069 = vpack.c.b16 %v6863, %v6862
      %v7070 = vpack.c.b16 %v6864, %v6864
      %v7071 = vpack.c.b16 %v6866, %v6865
      %v7072 = vpack.c.b16 %v6868, %v6867
      %v7073 = vpack.c.b16 %v6870, %v6869
      %v7074 = vpack.c.b16 %v6871, %v6871
      %v7075 = vpack.c.b16 %v6873, %v6872
      %v7076 = vpack.c.b16 %v6875, %v6874
      %v7077 = vpack.c.b16 %v6877, %v6876
      %v7078 = vpack.c.b16 %v6878, %v6878
      %v7079 = vpack.c.b16 %v6880, %v6879
      %v7080 = vpack.c.b16 %v6882, %v6881
      %v7081 = vpack.c.b16 %v6884, %v6883
      %v7082 = vpack.c.b16 %v6885, %v6885
      %v7083 = vpack.c.b16 %v6887, %v6886
      %v7084 = vpack.c.b16 %v6889, %v6888
      %v7085 = vpack.c.b16 %v6891, %v6890
      %v7086 = vpack.c.b16 %v6892, %v6892
      %v7087 = vpack.c.b16 %v6894, %v6893
      %v7088 = vpack.c.b16 %v6896, %v6895
      %v7089 = vpack.c.b16 %v6898, %v6897
      %v7090 = vpack.c.b16 %v6899, %v6899
      %v7091 = vpack.c.b16 %v6901, %v6900
      %v7092 = vpack.c.b16 %v6903, %v6902
      %v7093 = vpack.c.b16 %v6905, %v6904
      %v7094 = vpack.c.b16 %v6906, %v6906
      %v7095 = vpack.c.b16 %v6908, %v6907
      %v7096 = vpack.c.b16 %v6910, %v6909
      %v7097 = vpack.c.b16 %v6912, %v6911
      %v7098 = vpack.c.b16 %v6913, %v6913
      %v7099 = vpack.c.b16 %v6915, %v6914
      %v7100 = vpack.c.b16 %v6917, %v6916
      %v7101 = vpack.c.b16 %v6919, %v6918
      %v7102 = vpack.c.b16 %v6920, %v6920
      %v7103 = vpack.c.b16 %v6922, %v6921
      %v7104 = vpack.c.b16 %v6924, %v6923
      %v7105 = vpack.c.b16 %v6926, %v6925
      %v7106 = vpack.c.b16 %v6927, %v6927
      %v7107 = vpack.c.b16 %v6929, %v6928
      %v7108 = vpack.c.b16 %v6931, %v6930
      %v7109 = vpack.c.b16 %v6933, %v6932
      %v7110 = vpack.c.b16 %v6934, %v6934
      %v7111 = vpack.c.b16 %v6936, %v6935
      %v7112 = vpack.c.b16 %v6938, %v6937
      %v7113 = vpack.c.b16 %v6940, %v6939
      %v7114 = vpack.c.b16 %v6941, %v6941
      %v7115 = vpack.c.b16 %v6943, %v6942
      %v7116 = vpack.c.b16 %v6945, %v6944
      %v7117 = vpack.c.b16 %v6947, %v6946
      %v7118 = vpack.c.b16 %v6948, %v6948
      %v7119 = vpack.c.b16 %v6950, %v6949
      %v7120 = vpack.c.b16 %v6952, %v6951
      %v7121 = vpack.c.b16 %v6954, %v6953
      %v7122 = vpack.c.b16 %v6955, %v6955
      %v7123 = vpack.c.b16 %v6957, %v6956
      %v7124 = vpack.c.b16 %v6959, %v6958
      %v7125 = vpack.c.b16 %v6961, %v6960
      %v7126 = vpack.c.b16 %v6962, %v6962
      %v7127 = vpack.c.b16 %v6964, %v6963
      %v7128 = vpack.c.b16 %v6966, %v6965
      %v7129 = vpack.c.b16 %v6968, %v6967
      %v7130 = vpack.c.b16 %v6969, %v6969
      %v7131 = vpack.c.b16 %v6971, %v6970
      %v7132 = vpack.c.b16 %v6973, %v6972
      %v7133 = vpack.c.b16 %v6975, %v6974
      %v7134 = vpack.c.b16 %v6976, %v6976
      %v7135 = vpack.c.b16 %v6978, %v6977
      %v7136 = vpack.c.b16 %v6980, %v6979
      %v7137 = vpack.c.b16 %v6982, %v6981
      %v7138 = vpack.c.b16 %v6983, %v6983
      %v7139 = vpack.c.b16 %v6985, %v6984
      %v7140 = vpack.c.b16 %v6987, %v6986
      %v7141 = vpack.c.b16 %v6989, %v6988
      %v7142 = vpack.c.b16 %v6990, %v6990
      %v7143 = vpack.c.b16 %v6992, %v6991
      %v7144 = vpack.c.b16 %v6994, %v6993
      %v7145 = vpack.c.b16 %v6996, %v6995
      %v7146 = vpack.c.b16 %v6997, %v6997
      %v7147 = vpack.c.b16 %v6999, %v6998
      %v7148 = vpack.c.b16 %v7001, %v7000
      %v7149 = vpack.c.b16 %v7003, %v7002
      %v7150 = vpack.c.b16 %v7004, %v7004
      %v7151 = vpack.c.b16 %v7006, %v7005
      %v7152 = vpack.c.b16 %v7008, %v7007
      %v7153 = vpack.c.b16 %v7010, %v7009
      %v7154 = vpack.c.b16 %v7011, %v7011
      %v7155 = vpack.c.b16 %v7013, %v7012
      %v7156 = vpack.c.b16 %v7015, %v7014
      %v7157 = vpack.c.b16 %v7017, %v7016
      %v7158 = vpack.c.b16 %v7018, %v7018
      %v7159 = vpack.c.b16 %v7020, %v7019
      %v7160 = vpack.c.b16 %v7022, %v7021
      %v7161 = vpack.c.b16 %v7024, %v7023
      %v7162 = vpack.c.b16 %v7025, %v7025
      %v7163 = vpack.c.b16 %v7027, %v7026
      %v7164 = vpack.c.b16 %v7029, %v7028
      %v7165 = vpack.c.b16 %v7031, %v7030
      %v7166 = vpack.c.b16 %v7032, %v7032
      %v7167 = vpack.c.b16 %v7034, %v7033
      %v7168 = vpack.c.b16 %v7036, %v7035
      %v7169 = vpack.c.b16 %v7038, %v7037
      %v7170 = vpack.c.b16 %v7039, %v7039
      %v7171 = vpack.c.b16 %v7041, %v7040
      %v7172 = vpack.c.b16 %v7043, %v7042
      %v7173 = vpack.c.b16 %v7045, %v7044
      %v7174 = vpack.c.b16 %v7046, %v7046
      %7303 = vst [vmem:[%s663] sm:$0xff] %v7047
      %7304 = vst [vmem:[%s663 + $0x8] sm:$0xff] %v7048
      %7305 = vst [vmem:[%s663 + $0x10] sm:$0xff] %v7049
      %vm7306 = vcmask 125952
      %7307 = vst.msk [vmem:[%s663 + $0x18] sm:$0xf] %vm7306, %v7050
      %7308 = vst [vmem:[%s663 + $0x1c] sm:$0xff] %v7051
      %7309 = vst [vmem:[%s663 + $0x24] sm:$0xff] %v7052
      %7310 = vst [vmem:[%s663 + $0x2c] sm:$0xff] %v7053
      %7311 = vst.msk [vmem:[%s663 + $0x34] sm:$0xf] %vm7306, %v7054
      %7312 = vst [vmem:[%s663 + $0x38] sm:$0xff] %v7055
      %7313 = vst [vmem:[%s663 + $0x40] sm:$0xff] %v7056
      %7314 = vst [vmem:[%s663 + $0x48] sm:$0xff] %v7057
      %7315 = vst.msk [vmem:[%s663 + $0x50] sm:$0xf] %vm7306, %v7058
      %7316 = vst [vmem:[%s663 + $0x54] sm:$0xff] %v7059
      %7317 = vst [vmem:[%s663 + $0x5c] sm:$0xff] %v7060
      %7318 = vst [vmem:[%s663 + $0x64] sm:$0xff] %v7061
      %7319 = vst.msk [vmem:[%s663 + $0x6c] sm:$0xf] %vm7306, %v7062
      %7320 = vst [vmem:[%s663 + $0x70] sm:$0xff] %v7063
      %7321 = vst [vmem:[%s663 + $0x78] sm:$0xff] %v7064
      %7322 = vst [vmem:[%s663 + $0x80] sm:$0xff] %v7065
      %7323 = vst.msk [vmem:[%s663 + $0x88] sm:$0xf] %vm7306, %v7066
      %7324 = vst [vmem:[%s663 + $0x8c] sm:$0xff] %v7067
      %7325 = vst [vmem:[%s663 + $0x94] sm:$0xff] %v7068
      %7326 = vst [vmem:[%s663 + $0x9c] sm:$0xff] %v7069
      %7327 = vst.msk [vmem:[%s663 + $0xa4] sm:$0xf] %vm7306, %v7070
      %7328 = vst [vmem:[%s663 + $0xa8] sm:$0xff] %v7071
      %7329 = vst [vmem:[%s663 + $0xb0] sm:$0xff] %v7072
      %7330 = vst [vmem:[%s663 + $0xb8] sm:$0xff] %v7073
      %7331 = vst.msk [vmem:[%s663 + $0xc0] sm:$0xf] %vm7306, %v7074
      %7332 = vst [vmem:[%s663 + $0xc4] sm:$0xff] %v7075
      %7333 = vst [vmem:[%s663 + $0xcc] sm:$0xff] %v7076
      %7334 = vst [vmem:[%s663 + $0xd4] sm:$0xff] %v7077
      %7335 = vst.msk [vmem:[%s663 + $0xdc] sm:$0xf] %vm7306, %v7078
      %7336 = vst [vmem:[%s663 + $0xe0] sm:$0xff] %v7079
      %7337 = vst [vmem:[%s663 + $0xe8] sm:$0xff] %v7080
      %7338 = vst [vmem:[%s663 + $0xf0] sm:$0xff] %v7081
      %7339 = vst.msk [vmem:[%s663 + $0xf8] sm:$0xf] %vm7306, %v7082
      %7340 = vst [vmem:[%s663 + $0xfc] sm:$0xff] %v7083
      %7341 = vst [vmem:[%s663 + $0x104] sm:$0xff] %v7084
      %7342 = vst [vmem:[%s663 + $0x10c] sm:$0xff] %v7085
      %7343 = vst.msk [vmem:[%s663 + $0x114] sm:$0xf] %vm7306, %v7086
      %7344 = vst [vmem:[%s663 + $0x118] sm:$0xff] %v7087
      %7345 = vst [vmem:[%s663 + $0x120] sm:$0xff] %v7088
      %7346 = vst [vmem:[%s663 + $0x128] sm:$0xff] %v7089
      %7347 = vst.msk [vmem:[%s663 + $0x130] sm:$0xf] %vm7306, %v7090
      %7348 = vst [vmem:[%s663 + $0x134] sm:$0xff] %v7091
      %7349 = vst [vmem:[%s663 + $0x13c] sm:$0xff] %v7092
      %7350 = vst [vmem:[%s663 + $0x144] sm:$0xff] %v7093
      %7351 = vst.msk [vmem:[%s663 + $0x14c] sm:$0xf] %vm7306, %v7094
      %7352 = vst [vmem:[%s663 + $0x150] sm:$0xff] %v7095
      %7353 = vst [vmem:[%s663 + $0x158] sm:$0xff] %v7096
      %7354 = vst [vmem:[%s663 + $0x160] sm:$0xff] %v7097
      %7355 = vst.msk [vmem:[%s663 + $0x168] sm:$0xf] %vm7306, %v7098
      %7356 = vst [vmem:[%s663 + $0x16c] sm:$0xff] %v7099
      %7357 = vst [vmem:[%s663 + $0x174] sm:$0xff] %v7100
      %7358 = vst [vmem:[%s663 + $0x17c] sm:$0xff] %v7101
      %7359 = vst.msk [vmem:[%s663 + $0x184] sm:$0xf] %vm7306, %v7102
      %7360 = vst [vmem:[%s663 + $0x188] sm:$0xff] %v7103
      %7361 = vst [vmem:[%s663 + $0x190] sm:$0xff] %v7104
      %7362 = vst [vmem:[%s663 + $0x198] sm:$0xff] %v7105
      %7363 = vst.msk [vmem:[%s663 + $0x1a0] sm:$0xf] %vm7306, %v7106
      %7364 = vst [vmem:[%s663 + $0x1a4] sm:$0xff] %v7107
      %7365 = vst [vmem:[%s663 + $0x1ac] sm:$0xff] %v7108
      %7366 = vst [vmem:[%s663 + $0x1b4] sm:$0xff] %v7109
      %7367 = vst.msk [vmem:[%s663 + $0x1bc] sm:$0xf] %vm7306, %v7110
      %7368 = vst [vmem:[%s663 + $0x1c0] sm:$0xff] %v7111
      %7369 = vst [vmem:[%s663 + $0x1c8] sm:$0xff] %v7112
      %7370 = vst [vmem:[%s663 + $0x1d0] sm:$0xff] %v7113
      %7371 = vst.msk [vmem:[%s663 + $0x1d8] sm:$0xf] %vm7306, %v7114
      %7372 = vst [vmem:[%s663 + $0x1dc] sm:$0xff] %v7115
      %7373 = vst [vmem:[%s663 + $0x1e4] sm:$0xff] %v7116
      %7374 = vst [vmem:[%s663 + $0x1ec] sm:$0xff] %v7117
      %7375 = vst.msk [vmem:[%s663 + $0x1f4] sm:$0xf] %vm7306, %v7118
      %7376 = vst [vmem:[%s663 + $0x1f8] sm:$0xff] %v7119
      %7377 = vst [vmem:[%s663 + $0x200] sm:$0xff] %v7120
      %7378 = vst [vmem:[%s663 + $0x208] sm:$0xff] %v7121
      %7379 = vst.msk [vmem:[%s663 + $0x210] sm:$0xf] %vm7306, %v7122
      %7380 = vst [vmem:[%s663 + $0x214] sm:$0xff] %v7123
      %7381 = vst [vmem:[%s663 + $0x21c] sm:$0xff] %v7124
      %7382 = vst [vmem:[%s663 + $0x224] sm:$0xff] %v7125
      %7383 = vst.msk [vmem:[%s663 + $0x22c] sm:$0xf] %vm7306, %v7126
      %7384 = vst [vmem:[%s663 + $0x230] sm:$0xff] %v7127
      %7385 = vst [vmem:[%s663 + $0x238] sm:$0xff] %v7128
      %7386 = vst [vmem:[%s663 + $0x240] sm:$0xff] %v7129
      %7387 = vst.msk [vmem:[%s663 + $0x248] sm:$0xf] %vm7306, %v7130
      %7388 = vst [vmem:[%s663 + $0x24c] sm:$0xff] %v7131
      %7389 = vst [vmem:[%s663 + $0x254] sm:$0xff] %v7132
      %7390 = vst [vmem:[%s663 + $0x25c] sm:$0xff] %v7133
      %7391 = vst.msk [vmem:[%s663 + $0x264] sm:$0xf] %vm7306, %v7134
      %7392 = vst [vmem:[%s663 + $0x268] sm:$0xff] %v7135
      %7393 = vst [vmem:[%s663 + $0x270] sm:$0xff] %v7136
      %7394 = vst [vmem:[%s663 + $0x278] sm:$0xff] %v7137
      %7395 = vst.msk [vmem:[%s663 + $0x280] sm:$0xf] %vm7306, %v7138
      %7396 = vst [vmem:[%s663 + $0x284] sm:$0xff] %v7139
      %7397 = vst [vmem:[%s663 + $0x28c] sm:$0xff] %v7140
      %7398 = vst [vmem:[%s663 + $0x294] sm:$0xff] %v7141
      %7399 = vst.msk [vmem:[%s663 + $0x29c] sm:$0xf] %vm7306, %v7142
      %7400 = vst [vmem:[%s663 + $0x2a0] sm:$0xff] %v7143
      %7401 = vst [vmem:[%s663 + $0x2a8] sm:$0xff] %v7144
      %7402 = vst [vmem:[%s663 + $0x2b0] sm:$0xff] %v7145
      %7403 = vst.msk [vmem:[%s663 + $0x2b8] sm:$0xf] %vm7306, %v7146
      %7404 = vst [vmem:[%s663 + $0x2bc] sm:$0xff] %v7147
      %7405 = vst [vmem:[%s663 + $0x2c4] sm:$0xff] %v7148
      %7406 = vst [vmem:[%s663 + $0x2cc] sm:$0xff] %v7149
      %7407 = vst.msk [vmem:[%s663 + $0x2d4] sm:$0xf] %vm7306, %v7150
      %7408 = vst [vmem:[%s663 + $0x2d8] sm:$0xff] %v7151
      %7409 = vst [vmem:[%s663 + $0x2e0] sm:$0xff] %v7152
      %7410 = vst [vmem:[%s663 + $0x2e8] sm:$0xff] %v7153
      %7411 = vst.msk [vmem:[%s663 + $0x2f0] sm:$0xf] %vm7306, %v7154
      %7412 = vst [vmem:[%s663 + $0x2f4] sm:$0xff] %v7155
      %7413 = vst [vmem:[%s663 + $0x2fc] sm:$0xff] %v7156
      %7414 = vst [vmem:[%s663 + $0x304] sm:$0xff] %v7157
      %7415 = vst.msk [vmem:[%s663 + $0x30c] sm:$0xf] %vm7306, %v7158
      %7416 = vst [vmem:[%s663 + $0x310] sm:$0xff] %v7159
      %7417 = vst [vmem:[%s663 + $0x318] sm:$0xff] %v7160
      %7418 = vst [vmem:[%s663 + $0x320] sm:$0xff] %v7161
      %7419 = vst.msk [vmem:[%s663 + $0x328] sm:$0xf] %vm7306, %v7162
      %7420 = vst [vmem:[%s663 + $0x32c] sm:$0xff] %v7163
      %7421 = vst [vmem:[%s663 + $0x334] sm:$0xff] %v7164
      %7422 = vst [vmem:[%s663 + $0x33c] sm:$0xff] %v7165
      %7423 = vst.msk [vmem:[%s663 + $0x344] sm:$0xf] %vm7306, %v7166
      %7424 = vst [vmem:[%s663 + $0x348] sm:$0xff] %v7167
      %7425 = vst [vmem:[%s663 + $0x350] sm:$0xff] %v7168
      %7426 = vst [vmem:[%s663 + $0x358] sm:$0xff] %v7169
      %7427 = vst.msk [vmem:[%s663 + $0x360] sm:$0xf] %vm7306, %v7170
      %7428 = vst [vmem:[%s663 + $0x364] sm:$0xff] %v7171
      %7429 = vst [vmem:[%s663 + $0x36c] sm:$0xff] %v7172
      %7430 = vst [vmem:[%s663 + $0x374] sm:$0xff] %v7173
      %7431 = vst.msk [vmem:[%s663 + $0x37c] sm:$0xf] %vm7306, %v7174
      %s7432 = smul.u32 32, %s32
      %p7433 = scmp.lt.s32.totalorder %s7432, 63
      %s7434 = scalar_select %p7433, %s7432, 63
      %s7435 = smul.addr %s7434, 7
      %s7436 = smul.addr %s7435, 4
      %s7437 = scalar_lea.vmem %s21, %s7436
      // Predicated region
      $region105: #{_ae_pallas.1} parent=103 // pred_check
        %p7438 = pneg %p496
      $region106: #{_ae_pallas.1} parent=103 // pred_check_branch
        %7440 = sbr.rel (%p7438) target = $region108
      $region107: #{_ae_pallas.1} parent=103 // pred_region
        %s7441 = smul.u32 32, %s32
      $region108: #{_ae_pallas.1} parent=103 // pred_fallthru
        _
    $region104: #{_ae_pallas.1} parent=5 // pred_fallthru
      _
    %p7442 = scmp.le.s32.totalorder 2, %s27
    // Predicated region
    $region109: #{_ae_pallas.1} parent=5 // pred_check
      %p7443 = pneg %p7442
    $region110: #{_ae_pallas.1} parent=5 // pred_check_branch
      %7445 = sbr.rel (%p7443) target = $region112
    $region111: #{_ae_pallas.1} parent=5 // pred_region
      %s7446 = ssub.s32 %s27, 2
      // Predicated region
      $region113: #{_ae_pallas.1} parent=111 // pred_check
        %p7447 = pneg %p502
      $region114: #{_ae_pallas.1} parent=111 // pred_check_branch
        %7449 = sbr.rel (%p7447) target = $region116
      $region115: #{_ae_pallas.1} parent=111 // pred_region
        %s7450 = smul.u32 32, %s33
        %p7451 = scmp.lt.s32.totalorder %s7450, 63
        %s7452 = scalar_select %p7451, %s7450, 63
        %s7453 = smul.addr %s7452, 7
        %s7454 = smul.addr %s7453, 4
        %s7455 = scalar_lea.vmem %s21, %s7454
      $region116: #{_ae_pallas.1} parent=111 // pred_fallthru
        _
    $region112: #{_ae_pallas.1} parent=5 // pred_fallthru
      _
  $region6: #{_ae_pallas.1} parent=0 // loop_footer
    %s31 = sadd.s32 1, %s27
  $region7: #{_ae_pallas.1} parent=0 // loop_footer_branch
    %26 = sbr.rel target = $region3
  $region8: #{_ae_pallas.1} parent=0 // loop_exit
    _

</llo_original>
